<compile_context>
chip_gen: v7x
topology: tpu7x:2x2x1
jax: 0.10.0
libtpu: 0.0.40
codegen_flags: <defaults>
</compile_context>

<pallas_src>
import jax
import jax.numpy as jnp
from jax.experimental import pallas as pl
from jax.experimental.pallas import tpu as pltpu

LEAKY_SLOPE = 0.01   # torch.nn.LeakyReLU default
EPS = 1e-5           # torch InstanceNorm1d / BatchNorm1d default eps
KSIZE = 3            # self.k
C1 = 8               # conv1 out_channels
C2 = 16              # conv2 out_channels
FC1 = 16             # fc1 out_features


def _leaky(v):
    # Perf review: cmp+mul+select (3 VALU ops) -> mul+max (2 VALU ops).
    return jnp.maximum(v, LEAKY_SLOPE * v)


def _mean_all(v):
    """Mean over all elements of a 2-D value, kept as a (1, 1) broadcastable."""
    m = jnp.mean(v, axis=1, keepdims=True)     # lane reduce
    return jnp.mean(m, axis=0, keepdims=True)  # sublane reduce (equal-length rows)


def _batch_stats(v):
    """One-pass biased stats over every element of a (B, L) plane.

    E[v] and E[v*v] are issued back-to-back (independent reduction chains) and
    var = max(E[v^2] - E[v]^2, 0).  Used only on post-activation maps where the
    mean/std are both O(1), so f32 cancellation is benign.
    """
    m = _mean_all(v)
    msq = _mean_all(v * v)
    var = jnp.maximum(msq - m * m, 0.0)
    return m, var


def _bn_fold(m, var, gamma, beta):
    # Perf review: fold BN into a single scale/shift -> 2 VALU ops/element apply.
    scale = gamma * jax.lax.rsqrt(var + EPS)
    shift = beta - m * scale
    return scale, shift


# ---------------------------------------------------------------------------
# Fused encoder kernel
# ---------------------------------------------------------------------------
def _encoder_kernel(x_ref,
                    w1_ref, b1_ref, g1_ref, be1_ref,
                    w2_ref, b2_ref, g2_ref, be2_ref,
                    wfc1_ref, bfc1_ref, gfc1_ref, befc1_ref,
                    wfc2_ref, bfc2_ref,
                    o_ref):
    B, L = x_ref.shape
    L1 = L - (KSIZE - 1)          # conv1 output length (k=3, p=0, s=1); conv2 keeps it (p=1)

    # ---- InstanceNorm1d(1): per-sample stats over the length axis ----------
    # Two-pass form kept on purpose: raw-input statistics are unknown, so the
    # E[x^2]-E[x]^2 shortcut is not numerically safe here.
    x = x_ref[...]
    mu = jnp.mean(x, axis=1, keepdims=True)
    var = jnp.mean((x - mu) ** 2, axis=1, keepdims=True)
    xn = (x - mu) * jax.lax.rsqrt(var + EPS)

    # ---- conv1 (1 -> C1, k=3, p=0) + LeakyReLU + BatchNorm1d(C1) -----------
    # Channel maps are lane-dense (B, L1) vectors: pure VPU FMAs (channel count
    # 1->8 is far below the 128-lane width, so the MXU would be lane-starved).
    t0 = xn[:, 0:L1]
    t1 = xn[:, 1:L1 + 1]
    t2 = xn[:, 2:L1 + 2]
    h1 = []
    for c in range(C1):
        v = (w1_ref[0 * C1 + c] * t0 + w1_ref[1 * C1 + c] * t1
             + w1_ref[2 * C1 + c] * t2 + b1_ref[c])
        v = _leaky(v)
        m, s2 = _batch_stats(v)                       # training-mode batch stats
        sc, sh = _bn_fold(m, s2, g1_ref[c], be1_ref[c])
        h1.append(v * sc + sh)

    # ---- conv2 (C1 -> C2, k=3, p=1) + LeakyReLU + BatchNorm1d(C2) ----------
    # One zero-padded plane per input channel (8 concats, not 16 shifted copies);
    # taps are static lane-offset slices of it.
    zcol = jnp.zeros((B, 1), jnp.float32)
    h1_lft, h1_rgt = [], []
    for ci in range(C1):
        hp = jnp.concatenate([zcol, h1[ci], zcol], axis=1)   # (B, L1 + 2)
        h1_lft.append(hp[:, 0:L1])          # in[l-1]
        h1_rgt.append(hp[:, 2:L1 + 2])      # in[l+1]

    # NOTE: for large B*L1 this 16x8x3 FMA unroll should become an im2col MXU
    # matmul (perf review); at the small shapes used here the VPU form wins.
    h2 = []
    for co in range(C2):
        acc = jnp.zeros((B, L1), jnp.float32)
        for ci in range(C1):
            acc = acc + w2_ref[(0 * C1 + ci) * C2 + co] * h1_lft[ci]
            acc = acc + w2_ref[(1 * C1 + ci) * C2 + co] * h1[ci]
            acc = acc + w2_ref[(2 * C1 + ci) * C2 + co] * h1_rgt[ci]
        v = _leaky(acc + b2_ref[co])
        m, s2 = _batch_stats(v)
        sc, sh = _bn_fold(m, s2, g2_ref[co], be2_ref[co])
        h2.append(v * sc + sh)

    # ---- fc1 + LeakyReLU + BatchNorm1d(16), WITHOUT materializing `flat` ----
    # torch's .view(B,-1) is channel-major, so accumulating one (B,L1)@(L1,16)
    # MXU partial per conv2 channel reproduces flat @ Wfc1 exactly.
    z = jnp.zeros((B, FC1), jnp.float32)
    for c in range(C2):
        z = z + jnp.dot(h2[c].astype(jnp.bfloat16), wfc1_ref[c],
                        preferred_element_type=jnp.float32)
    z = _leaky(z + bfc1_ref[...])
    m = jnp.mean(z, axis=0, keepdims=True)
    msq = jnp.mean(z * z, axis=0, keepdims=True)
    s2 = jnp.maximum(msq - m * m, 0.0)
    sc = gfc1_ref[...] * jax.lax.rsqrt(s2 + EPS)
    sh = befc1_ref[...] - m * sc
    z = z * sc + sh

    # ---- fc2 ----------------------------------------------------------------
    o_ref[...] = (jnp.dot(z.astype(jnp.bfloat16), wfc2_ref[...],
                          preferred_element_type=jnp.float32)
                  + bfc2_ref[...])


_VMEM = pl.BlockSpec(memory_space=pltpu.MemorySpace.VMEM)
_SMEM = pl.BlockSpec(memory_space=pltpu.MemorySpace.SMEM)


def conv_encoder_forward(x, params):
    """x: (B, 1, L) float32 (torch NCL layout).  Returns (B, n) like the module."""
    B = x.shape[0]
    L = x.shape[-1]
    L1 = L - (KSIZE - 1)
    n = params["wfc2"].shape[1]
    x2d = x.reshape(B, L).astype(jnp.float32)

    row = lambda a: a.reshape(1, -1).astype(jnp.float32)
    flat = lambda a: a.reshape(-1).astype(jnp.float32)     # 1-D SMEM (no 2-D padding)

    # fc weights fed to the MXU as bf16 (single-pass matmul, f32 accumulation).
    wfc1_3d = params["wfc1"].reshape(C2, L1, FC1).astype(jnp.bfloat16)
    wfc2_bf = params["wfc2"].astype(jnp.bfloat16)

    # Explicit scoped-VMEM budget: ~footprint of the fully-resident activations
    # with headroom; above v5e's 16 MiB default, well under v7x's 64 MiB physical
    # at these sizes.  Batch tiling is needed before B*L grows past a few 100K.
    est = 4 * 64 * B * L + (2 << 20)
    vmem_limit = int(min(max(est, 32 << 20), 100 << 20))

    return pl.pallas_call(
        _encoder_kernel,
        out_shape=jax.ShapeDtypeStruct((B, n), jnp.float32),
        in_specs=[_VMEM,                               # x
                  _SMEM, _SMEM, _SMEM, _SMEM,          # conv1 w, b, BN gamma/beta (1-D)
                  _SMEM, _SMEM, _SMEM, _SMEM,          # conv2 w, b, BN gamma/beta (1-D)
                  _VMEM, _VMEM, _VMEM, _VMEM,          # fc1 w (bf16), b, BN gamma/beta
                  _VMEM, _VMEM],                       # fc2 w (bf16), b
        out_specs=_VMEM,
        compiler_params=pltpu.CompilerParams(vmem_limit_bytes=vmem_limit),
    )(x2d,
      flat(params["w1"]), flat(params["b1"]), flat(params["g1"]), flat(params["be1"]),
      flat(params["w2"]), flat(params["b2"]), flat(params["g2"]), flat(params["be2"]),
      wfc1_3d, row(params["bfc1"]), row(params["gfc1"]), row(params["befc1"]),
      wfc2_bf, row(params["bfc2"]))


# ---------------------------------------------------------------------------
# Pure-JAX reference (same math, XLA ops) for in-script validation
# ---------------------------------------------------------------------------
def reference_forward(x, params):
    B, _, L = x.shape
    L1 = L - (KSIZE - 1)
    xs = x.reshape(B, L)
    m = xs.mean(axis=1, keepdims=True)
    v = ((xs - m) ** 2).mean(axis=1, keepdims=True)
    xn = (xs - m) / jnp.sqrt(v + EPS)

    def lk(a):
        return jnp.where(a >= 0.0, a, LEAKY_SLOPE * a)

    taps = jnp.stack([xn[:, k:k + L1] for k in range(KSIZE)], axis=-1)      # (B,L1,3)
    h1 = jnp.einsum("blk,kc->blc", taps, params["w1"]) + params["b1"]
    h1 = lk(h1)
    mu = h1.mean(axis=(0, 1)); vv = ((h1 - mu) ** 2).mean(axis=(0, 1))
    h1 = (h1 - mu) / jnp.sqrt(vv + EPS) * params["g1"] + params["be1"]

    h1p = jnp.pad(h1, ((0, 0), (1, 1), (0, 0)))
    cols = jnp.concatenate([h1p[:, k:k + L1, :] for k in range(KSIZE)], axis=-1)  # (B,L1,24)
    h2 = jnp.einsum("blk,kc->blc", cols, params["w2"]) + params["b2"]
    h2 = lk(h2)
    mu = h2.mean(axis=(0, 1)); vv = ((h2 - mu) ** 2).mean(axis=(0, 1))
    h2 = (h2 - mu) / jnp.sqrt(vv + EPS) * params["g2"] + params["be2"]

    flat = jnp.transpose(h2, (0, 2, 1)).reshape(B, -1)   # torch .view(B,-1) order
    z = flat @ params["wfc1"] + params["bfc1"]
    z = lk(z)
    mu = z.mean(axis=0); vv = ((z - mu) ** 2).mean(axis=0)
    z = (z - mu) / jnp.sqrt(vv + EPS) * params["gfc1"] + params["befc1"]
    return z @ params["wfc2"] + params["bfc2"]


# ---------------------------------------------------------------------------
# Deterministic synthetic parameters (torch layouts converted to kernel layouts)
# ---------------------------------------------------------------------------
def init_params(key, encoded_dim, conv_shape):
    L2 = conv_shape - (KSIZE - 1)          # length after conv1 (conv2 keeps it)
    feat = C2 * L2
    ks = jax.random.split(key, 8)
    nrm = lambda k, shape, s: (s * jax.random.normal(k, shape)).astype(jnp.float32)

    p = {}
    # conv1 torch weight (C1, 1, 3) -> (3, C1):   w1[k, c] = W[c, 0, k]
    p["w1"] = nrm(ks[0], (C1, 1, KSIZE), 0.3)[:, 0, :].T
    p["b1"] = nrm(ks[1], (C1,), 0.1)
    p["g1"] = jnp.ones((C1,), jnp.float32)
    p["be1"] = jnp.zeros((C1,), jnp.float32)
    # conv2 torch weight (C2, C1, 3) -> (3*C1, C2):  w2[k*C1+ci, co] = W[co, ci, k]
    p["w2"] = jnp.transpose(nrm(ks[2], (C2, C1, KSIZE), 0.2), (2, 1, 0)).reshape(KSIZE * C1, C2)
    p["b2"] = nrm(ks[3], (C2,), 0.1)
    p["g2"] = jnp.ones((C2,), jnp.float32)
    p["be2"] = jnp.zeros((C2,), jnp.float32)
    # fc1 torch weight (16, feat) -> (feat, 16) ;  row index = c*L2 + i (torch flatten order)
    p["wfc1"] = nrm(ks[4], (FC1, feat), 0.05).T
    p["bfc1"] = nrm(ks[5], (FC1,), 0.1)
    p["gfc1"] = jnp.ones((FC1,), jnp.float32)
    p["befc1"] = jnp.zeros((FC1,), jnp.float32)
    # fc2 torch weight (n, 16) -> (16, n)
    p["wfc2"] = nrm(ks[6], (encoded_dim, FC1), 0.2).T
    p["bfc2"] = nrm(ks[7], (encoded_dim,), 0.1)
    return p


if __name__ == "__main__":
    conv_shape = 32          # input signal length L (the torch ctor's conv_shape)
    encoded_dim = 8
    batch = 4

    key = jax.random.PRNGKey(0)
    kx, kp = jax.random.split(key)
    x = jax.random.normal(kx, (batch, 1, conv_shape), dtype=jnp.float32)
    params = init_params(kp, encoded_dim, conv_shape)

    out = conv_encoder_forward(x, params)
    out = jax.block_until_ready(out)

    ref = reference_forward(x, params)

    assert out.shape == (batch, encoded_dim), out.shape
    assert bool(jnp.all(jnp.isfinite(out)))
    max_err = float(jnp.max(jnp.abs(out - ref)))
    assert max_err < 2e-2, max_err        # tolerance covers bf16 MXU pass differences
    print("KERNEL_OK")
</pallas_src>

<mosaic_0001>
module attributes {stable_mosaic.version = 11 : i64} {
  func.func @_encoder_kernel(%arg0: memref<4x32xf32, #tpu.memory_space<vmem>>, %arg1: memref<24xf32, #tpu.memory_space<smem>>, %arg2: memref<8xf32, #tpu.memory_space<smem>>, %arg3: memref<8xf32, #tpu.memory_space<smem>>, %arg4: memref<8xf32, #tpu.memory_space<smem>>, %arg5: memref<384xf32, #tpu.memory_space<smem>>, %arg6: memref<16xf32, #tpu.memory_space<smem>>, %arg7: memref<16xf32, #tpu.memory_space<smem>>, %arg8: memref<16xf32, #tpu.memory_space<smem>>, %arg9: memref<16x30x16xbf16, #tpu.memory_space<vmem>>, %arg10: memref<1x16xf32, #tpu.memory_space<vmem>>, %arg11: memref<1x16xf32, #tpu.memory_space<vmem>>, %arg12: memref<1x16xf32, #tpu.memory_space<vmem>>, %arg13: memref<16x8xbf16, #tpu.memory_space<vmem>>, %arg14: memref<1x8xf32, #tpu.memory_space<vmem>>, %arg15: memref<4x8xf32, #tpu.memory_space<vmem>>) attributes {dimension_semantics = [], scalar_prefetch = 0 : i64, scratch_operands = 0 : i64, tpu.core_type = #tpu.core_type<tc>} {
    %c0 = arith.constant 0 : index
    %c0_0 = arith.constant 0 : index
    %0 = vector.load %arg0[%c0, %c0_0] : memref<4x32xf32, #tpu.memory_space<vmem>>, vector<4x32xf32>
    %cst = arith.constant dense<0.000000e+00> : vector<4xf32>
    %1 = vector.multi_reduction <add>, %0, %cst [1] : vector<4x32xf32> to vector<4xf32>
    %2 = vector.shape_cast %1 : vector<4xf32> to vector<4x1xf32>
    %cst_1 = arith.constant 3.200000e+01 : f32
    %3 = vector.broadcast %cst_1 : f32 to vector<4x1xf32>
    %4 = arith.divf %2, %3 : vector<4x1xf32>
    %5 = vector.broadcast %4 : vector<4x1xf32> to vector<4x32xf32>
    %6 = arith.subf %0, %5 : vector<4x32xf32>
    %7 = arith.mulf %6, %6 : vector<4x32xf32>
    %cst_2 = arith.constant dense<0.000000e+00> : vector<4xf32>
    %8 = vector.multi_reduction <add>, %7, %cst_2 [1] : vector<4x32xf32> to vector<4xf32>
    %9 = vector.shape_cast %8 : vector<4xf32> to vector<4x1xf32>
    %cst_3 = arith.constant 3.200000e+01 : f32
    %10 = vector.broadcast %cst_3 : f32 to vector<4x1xf32>
    %11 = arith.divf %9, %10 : vector<4x1xf32>
    %12 = vector.broadcast %4 : vector<4x1xf32> to vector<4x32xf32>
    %13 = arith.subf %0, %12 : vector<4x32xf32>
    %cst_4 = arith.constant 9.99999974E-6 : f32
    %14 = vector.broadcast %cst_4 : f32 to vector<4x1xf32>
    %15 = arith.addf %11, %14 : vector<4x1xf32>
    %16 = math.rsqrt %15 : vector<4x1xf32>
    %17 = vector.broadcast %16 : vector<4x1xf32> to vector<4x32xf32>
    %18 = arith.mulf %13, %17 : vector<4x32xf32>
    %19 = vector.extract_strided_slice %18 {offsets = [0, 0], sizes = [4, 30], strides = [1, 1]} : vector<4x32xf32> to vector<4x30xf32>
    %20 = vector.extract_strided_slice %18 {offsets = [0, 1], sizes = [4, 30], strides = [1, 1]} : vector<4x32xf32> to vector<4x30xf32>
    %21 = vector.extract_strided_slice %18 {offsets = [0, 2], sizes = [4, 30], strides = [1, 1]} : vector<4x32xf32> to vector<4x30xf32>
    %c0_5 = arith.constant 0 : index
    %22 = memref.load %arg1[%c0_5] : memref<24xf32, #tpu.memory_space<smem>>
    %23 = vector.broadcast %22 : f32 to vector<4x30xf32>
    %24 = arith.mulf %23, %19 : vector<4x30xf32>
    %c8 = arith.constant 8 : index
    %25 = memref.load %arg1[%c8] : memref<24xf32, #tpu.memory_space<smem>>
    %26 = vector.broadcast %25 : f32 to vector<4x30xf32>
    %27 = arith.mulf %26, %20 : vector<4x30xf32>
    %28 = arith.addf %24, %27 : vector<4x30xf32>
    %c16 = arith.constant 16 : index
    %29 = memref.load %arg1[%c16] : memref<24xf32, #tpu.memory_space<smem>>
    %30 = vector.broadcast %29 : f32 to vector<4x30xf32>
    %31 = arith.mulf %30, %21 : vector<4x30xf32>
    %32 = arith.addf %28, %31 : vector<4x30xf32>
    %c0_6 = arith.constant 0 : index
    %33 = memref.load %arg2[%c0_6] : memref<8xf32, #tpu.memory_space<smem>>
    %34 = vector.broadcast %33 : f32 to vector<4x30xf32>
    %35 = arith.addf %32, %34 : vector<4x30xf32>
    %cst_7 = arith.constant 0.00999999977 : f32
    %36 = vector.broadcast %cst_7 : f32 to vector<4x30xf32>
    %37 = arith.mulf %36, %35 : vector<4x30xf32>
    %38 = arith.maximumf %35, %37 : vector<4x30xf32>
    %cst_8 = arith.constant dense<0.000000e+00> : vector<4xf32>
    %39 = vector.multi_reduction <add>, %38, %cst_8 [1] : vector<4x30xf32> to vector<4xf32>
    %40 = vector.shape_cast %39 : vector<4xf32> to vector<4x1xf32>
    %cst_9 = arith.constant 3.000000e+01 : f32
    %41 = vector.broadcast %cst_9 : f32 to vector<4x1xf32>
    %42 = arith.divf %40, %41 : vector<4x1xf32>
    %cst_10 = arith.constant dense<0.000000e+00> : vector<1xf32>
    %43 = vector.multi_reduction <add>, %42, %cst_10 [0] : vector<4x1xf32> to vector<1xf32>
    %44 = vector.shape_cast %43 : vector<1xf32> to vector<1x1xf32>
    %cst_11 = arith.constant 4.000000e+00 : f32
    %45 = vector.broadcast %cst_11 : f32 to vector<1x1xf32>
    %46 = arith.divf %44, %45 : vector<1x1xf32>
    %47 = arith.mulf %38, %38 : vector<4x30xf32>
    %cst_12 = arith.constant dense<0.000000e+00> : vector<4xf32>
    %48 = vector.multi_reduction <add>, %47, %cst_12 [1] : vector<4x30xf32> to vector<4xf32>
    %49 = vector.shape_cast %48 : vector<4xf32> to vector<4x1xf32>
    %cst_13 = arith.constant 3.000000e+01 : f32
    %50 = vector.broadcast %cst_13 : f32 to vector<4x1xf32>
    %51 = arith.divf %49, %50 : vector<4x1xf32>
    %cst_14 = arith.constant dense<0.000000e+00> : vector<1xf32>
    %52 = vector.multi_reduction <add>, %51, %cst_14 [0] : vector<4x1xf32> to vector<1xf32>
    %53 = vector.shape_cast %52 : vector<1xf32> to vector<1x1xf32>
    %cst_15 = arith.constant 4.000000e+00 : f32
    %54 = vector.broadcast %cst_15 : f32 to vector<1x1xf32>
    %55 = arith.divf %53, %54 : vector<1x1xf32>
    %56 = arith.mulf %46, %46 : vector<1x1xf32>
    %57 = arith.subf %55, %56 : vector<1x1xf32>
    %cst_16 = arith.constant 0.000000e+00 : f32
    %58 = vector.broadcast %cst_16 : f32 to vector<1x1xf32>
    %59 = arith.maximumf %57, %58 : vector<1x1xf32>
    %c0_17 = arith.constant 0 : index
    %60 = memref.load %arg3[%c0_17] : memref<8xf32, #tpu.memory_space<smem>>
    %c0_18 = arith.constant 0 : index
    %61 = memref.load %arg4[%c0_18] : memref<8xf32, #tpu.memory_space<smem>>
    %cst_19 = arith.constant 9.99999974E-6 : f32
    %62 = vector.broadcast %cst_19 : f32 to vector<1x1xf32>
    %63 = arith.addf %59, %62 : vector<1x1xf32>
    %64 = math.rsqrt %63 : vector<1x1xf32>
    %65 = vector.broadcast %60 : f32 to vector<1x1xf32>
    %66 = arith.mulf %65, %64 : vector<1x1xf32>
    %67 = arith.mulf %46, %66 : vector<1x1xf32>
    %68 = vector.broadcast %61 : f32 to vector<1x1xf32>
    %69 = arith.subf %68, %67 : vector<1x1xf32>
    %70 = vector.broadcast %66 : vector<1x1xf32> to vector<4x30xf32>
    %71 = arith.mulf %38, %70 : vector<4x30xf32>
    %72 = vector.broadcast %69 : vector<1x1xf32> to vector<4x30xf32>
    %73 = arith.addf %71, %72 : vector<4x30xf32>
    %c1 = arith.constant 1 : index
    %74 = memref.load %arg1[%c1] : memref<24xf32, #tpu.memory_space<smem>>
    %75 = vector.broadcast %74 : f32 to vector<4x30xf32>
    %76 = arith.mulf %75, %19 : vector<4x30xf32>
    %c9 = arith.constant 9 : index
    %77 = memref.load %arg1[%c9] : memref<24xf32, #tpu.memory_space<smem>>
    %78 = vector.broadcast %77 : f32 to vector<4x30xf32>
    %79 = arith.mulf %78, %20 : vector<4x30xf32>
    %80 = arith.addf %76, %79 : vector<4x30xf32>
    %c17 = arith.constant 17 : index
    %81 = memref.load %arg1[%c17] : memref<24xf32, #tpu.memory_space<smem>>
    %82 = vector.broadcast %81 : f32 to vector<4x30xf32>
    %83 = arith.mulf %82, %21 : vector<4x30xf32>
    %84 = arith.addf %80, %83 : vector<4x30xf32>
    %c1_20 = arith.constant 1 : index
    %85 = memref.load %arg2[%c1_20] : memref<8xf32, #tpu.memory_space<smem>>
    %86 = vector.broadcast %85 : f32 to vector<4x30xf32>
    %87 = arith.addf %84, %86 : vector<4x30xf32>
    %cst_21 = arith.constant 0.00999999977 : f32
    %88 = vector.broadcast %cst_21 : f32 to vector<4x30xf32>
    %89 = arith.mulf %88, %87 : vector<4x30xf32>
    %90 = arith.maximumf %87, %89 : vector<4x30xf32>
    %cst_22 = arith.constant dense<0.000000e+00> : vector<4xf32>
    %91 = vector.multi_reduction <add>, %90, %cst_22 [1] : vector<4x30xf32> to vector<4xf32>
    %92 = vector.shape_cast %91 : vector<4xf32> to vector<4x1xf32>
    %cst_23 = arith.constant 3.000000e+01 : f32
    %93 = vector.broadcast %cst_23 : f32 to vector<4x1xf32>
    %94 = arith.divf %92, %93 : vector<4x1xf32>
    %cst_24 = arith.constant dense<0.000000e+00> : vector<1xf32>
    %95 = vector.multi_reduction <add>, %94, %cst_24 [0] : vector<4x1xf32> to vector<1xf32>
    %96 = vector.shape_cast %95 : vector<1xf32> to vector<1x1xf32>
    %cst_25 = arith.constant 4.000000e+00 : f32
    %97 = vector.broadcast %cst_25 : f32 to vector<1x1xf32>
    %98 = arith.divf %96, %97 : vector<1x1xf32>
    %99 = arith.mulf %90, %90 : vector<4x30xf32>
    %cst_26 = arith.constant dense<0.000000e+00> : vector<4xf32>
    %100 = vector.multi_reduction <add>, %99, %cst_26 [1] : vector<4x30xf32> to vector<4xf32>
    %101 = vector.shape_cast %100 : vector<4xf32> to vector<4x1xf32>
    %cst_27 = arith.constant 3.000000e+01 : f32
    %102 = vector.broadcast %cst_27 : f32 to vector<4x1xf32>
    %103 = arith.divf %101, %102 : vector<4x1xf32>
    %cst_28 = arith.constant dense<0.000000e+00> : vector<1xf32>
    %104 = vector.multi_reduction <add>, %103, %cst_28 [0] : vector<4x1xf32> to vector<1xf32>
    %105 = vector.shape_cast %104 : vector<1xf32> to vector<1x1xf32>
    %cst_29 = arith.constant 4.000000e+00 : f32
    %106 = vector.broadcast %cst_29 : f32 to vector<1x1xf32>
    %107 = arith.divf %105, %106 : vector<1x1xf32>
    %108 = arith.mulf %98, %98 : vector<1x1xf32>
    %109 = arith.subf %107, %108 : vector<1x1xf32>
    %cst_30 = arith.constant 0.000000e+00 : f32
    %110 = vector.broadcast %cst_30 : f32 to vector<1x1xf32>
    %111 = arith.maximumf %109, %110 : vector<1x1xf32>
    %c1_31 = arith.constant 1 : index
    %112 = memref.load %arg3[%c1_31] : memref<8xf32, #tpu.memory_space<smem>>
    %c1_32 = arith.constant 1 : index
    %113 = memref.load %arg4[%c1_32] : memref<8xf32, #tpu.memory_space<smem>>
    %cst_33 = arith.constant 9.99999974E-6 : f32
    %114 = vector.broadcast %cst_33 : f32 to vector<1x1xf32>
    %115 = arith.addf %111, %114 : vector<1x1xf32>
    %116 = math.rsqrt %115 : vector<1x1xf32>
    %117 = vector.broadcast %112 : f32 to vector<1x1xf32>
    %118 = arith.mulf %117, %116 : vector<1x1xf32>
    %119 = arith.mulf %98, %118 : vector<1x1xf32>
    %120 = vector.broadcast %113 : f32 to vector<1x1xf32>
    %121 = arith.subf %120, %119 : vector<1x1xf32>
    %122 = vector.broadcast %118 : vector<1x1xf32> to vector<4x30xf32>
    %123 = arith.mulf %90, %122 : vector<4x30xf32>
    %124 = vector.broadcast %121 : vector<1x1xf32> to vector<4x30xf32>
    %125 = arith.addf %123, %124 : vector<4x30xf32>
    %c2 = arith.constant 2 : index
    %126 = memref.load %arg1[%c2] : memref<24xf32, #tpu.memory_space<smem>>
    %127 = vector.broadcast %126 : f32 to vector<4x30xf32>
    %128 = arith.mulf %127, %19 : vector<4x30xf32>
    %c10 = arith.constant 10 : index
    %129 = memref.load %arg1[%c10] : memref<24xf32, #tpu.memory_space<smem>>
    %130 = vector.broadcast %129 : f32 to vector<4x30xf32>
    %131 = arith.mulf %130, %20 : vector<4x30xf32>
    %132 = arith.addf %128, %131 : vector<4x30xf32>
    %c18 = arith.constant 18 : index
    %133 = memref.load %arg1[%c18] : memref<24xf32, #tpu.memory_space<smem>>
    %134 = vector.broadcast %133 : f32 to vector<4x30xf32>
    %135 = arith.mulf %134, %21 : vector<4x30xf32>
    %136 = arith.addf %132, %135 : vector<4x30xf32>
    %c2_34 = arith.constant 2 : index
    %137 = memref.load %arg2[%c2_34] : memref<8xf32, #tpu.memory_space<smem>>
    %138 = vector.broadcast %137 : f32 to vector<4x30xf32>
    %139 = arith.addf %136, %138 : vector<4x30xf32>
    %cst_35 = arith.constant 0.00999999977 : f32
    %140 = vector.broadcast %cst_35 : f32 to vector<4x30xf32>
    %141 = arith.mulf %140, %139 : vector<4x30xf32>
    %142 = arith.maximumf %139, %141 : vector<4x30xf32>
    %cst_36 = arith.constant dense<0.000000e+00> : vector<4xf32>
    %143 = vector.multi_reduction <add>, %142, %cst_36 [1] : vector<4x30xf32> to vector<4xf32>
    %144 = vector.shape_cast %143 : vector<4xf32> to vector<4x1xf32>
    %cst_37 = arith.constant 3.000000e+01 : f32
    %145 = vector.broadcast %cst_37 : f32 to vector<4x1xf32>
    %146 = arith.divf %144, %145 : vector<4x1xf32>
    %cst_38 = arith.constant dense<0.000000e+00> : vector<1xf32>
    %147 = vector.multi_reduction <add>, %146, %cst_38 [0] : vector<4x1xf32> to vector<1xf32>
    %148 = vector.shape_cast %147 : vector<1xf32> to vector<1x1xf32>
    %cst_39 = arith.constant 4.000000e+00 : f32
    %149 = vector.broadcast %cst_39 : f32 to vector<1x1xf32>
    %150 = arith.divf %148, %149 : vector<1x1xf32>
    %151 = arith.mulf %142, %142 : vector<4x30xf32>
    %cst_40 = arith.constant dense<0.000000e+00> : vector<4xf32>
    %152 = vector.multi_reduction <add>, %151, %cst_40 [1] : vector<4x30xf32> to vector<4xf32>
    %153 = vector.shape_cast %152 : vector<4xf32> to vector<4x1xf32>
    %cst_41 = arith.constant 3.000000e+01 : f32
    %154 = vector.broadcast %cst_41 : f32 to vector<4x1xf32>
    %155 = arith.divf %153, %154 : vector<4x1xf32>
    %cst_42 = arith.constant dense<0.000000e+00> : vector<1xf32>
    %156 = vector.multi_reduction <add>, %155, %cst_42 [0] : vector<4x1xf32> to vector<1xf32>
    %157 = vector.shape_cast %156 : vector<1xf32> to vector<1x1xf32>
    %cst_43 = arith.constant 4.000000e+00 : f32
    %158 = vector.broadcast %cst_43 : f32 to vector<1x1xf32>
    %159 = arith.divf %157, %158 : vector<1x1xf32>
    %160 = arith.mulf %150, %150 : vector<1x1xf32>
    %161 = arith.subf %159, %160 : vector<1x1xf32>
    %cst_44 = arith.constant 0.000000e+00 : f32
    %162 = vector.broadcast %cst_44 : f32 to vector<1x1xf32>
    %163 = arith.maximumf %161, %162 : vector<1x1xf32>
    %c2_45 = arith.constant 2 : index
    %164 = memref.load %arg3[%c2_45] : memref<8xf32, #tpu.memory_space<smem>>
    %c2_46 = arith.constant 2 : index
    %165 = memref.load %arg4[%c2_46] : memref<8xf32, #tpu.memory_space<smem>>
    %cst_47 = arith.constant 9.99999974E-6 : f32
    %166 = vector.broadcast %cst_47 : f32 to vector<1x1xf32>
    %167 = arith.addf %163, %166 : vector<1x1xf32>
    %168 = math.rsqrt %167 : vector<1x1xf32>
    %169 = vector.broadcast %164 : f32 to vector<1x1xf32>
    %170 = arith.mulf %169, %168 : vector<1x1xf32>
    %171 = arith.mulf %150, %170 : vector<1x1xf32>
    %172 = vector.broadcast %165 : f32 to vector<1x1xf32>
    %173 = arith.subf %172, %171 : vector<1x1xf32>
    %174 = vector.broadcast %170 : vector<1x1xf32> to vector<4x30xf32>
    %175 = arith.mulf %142, %174 : vector<4x30xf32>
    %176 = vector.broadcast %173 : vector<1x1xf32> to vector<4x30xf32>
    %177 = arith.addf %175, %176 : vector<4x30xf32>
    %c3 = arith.constant 3 : index
    %178 = memref.load %arg1[%c3] : memref<24xf32, #tpu.memory_space<smem>>
    %179 = vector.broadcast %178 : f32 to vector<4x30xf32>
    %180 = arith.mulf %179, %19 : vector<4x30xf32>
    %c11 = arith.constant 11 : index
    %181 = memref.load %arg1[%c11] : memref<24xf32, #tpu.memory_space<smem>>
    %182 = vector.broadcast %181 : f32 to vector<4x30xf32>
    %183 = arith.mulf %182, %20 : vector<4x30xf32>
    %184 = arith.addf %180, %183 : vector<4x30xf32>
    %c19 = arith.constant 19 : index
    %185 = memref.load %arg1[%c19] : memref<24xf32, #tpu.memory_space<smem>>
    %186 = vector.broadcast %185 : f32 to vector<4x30xf32>
    %187 = arith.mulf %186, %21 : vector<4x30xf32>
    %188 = arith.addf %184, %187 : vector<4x30xf32>
    %c3_48 = arith.constant 3 : index
    %189 = memref.load %arg2[%c3_48] : memref<8xf32, #tpu.memory_space<smem>>
    %190 = vector.broadcast %189 : f32 to vector<4x30xf32>
    %191 = arith.addf %188, %190 : vector<4x30xf32>
    %cst_49 = arith.constant 0.00999999977 : f32
    %192 = vector.broadcast %cst_49 : f32 to vector<4x30xf32>
    %193 = arith.mulf %192, %191 : vector<4x30xf32>
    %194 = arith.maximumf %191, %193 : vector<4x30xf32>
    %cst_50 = arith.constant dense<0.000000e+00> : vector<4xf32>
    %195 = vector.multi_reduction <add>, %194, %cst_50 [1] : vector<4x30xf32> to vector<4xf32>
    %196 = vector.shape_cast %195 : vector<4xf32> to vector<4x1xf32>
    %cst_51 = arith.constant 3.000000e+01 : f32
    %197 = vector.broadcast %cst_51 : f32 to vector<4x1xf32>
    %198 = arith.divf %196, %197 : vector<4x1xf32>
    %cst_52 = arith.constant dense<0.000000e+00> : vector<1xf32>
    %199 = vector.multi_reduction <add>, %198, %cst_52 [0] : vector<4x1xf32> to vector<1xf32>
    %200 = vector.shape_cast %199 : vector<1xf32> to vector<1x1xf32>
    %cst_53 = arith.constant 4.000000e+00 : f32
    %201 = vector.broadcast %cst_53 : f32 to vector<1x1xf32>
    %202 = arith.divf %200, %201 : vector<1x1xf32>
    %203 = arith.mulf %194, %194 : vector<4x30xf32>
    %cst_54 = arith.constant dense<0.000000e+00> : vector<4xf32>
    %204 = vector.multi_reduction <add>, %203, %cst_54 [1] : vector<4x30xf32> to vector<4xf32>
    %205 = vector.shape_cast %204 : vector<4xf32> to vector<4x1xf32>
    %cst_55 = arith.constant 3.000000e+01 : f32
    %206 = vector.broadcast %cst_55 : f32 to vector<4x1xf32>
    %207 = arith.divf %205, %206 : vector<4x1xf32>
    %cst_56 = arith.constant dense<0.000000e+00> : vector<1xf32>
    %208 = vector.multi_reduction <add>, %207, %cst_56 [0] : vector<4x1xf32> to vector<1xf32>
    %209 = vector.shape_cast %208 : vector<1xf32> to vector<1x1xf32>
    %cst_57 = arith.constant 4.000000e+00 : f32
    %210 = vector.broadcast %cst_57 : f32 to vector<1x1xf32>
    %211 = arith.divf %209, %210 : vector<1x1xf32>
    %212 = arith.mulf %202, %202 : vector<1x1xf32>
    %213 = arith.subf %211, %212 : vector<1x1xf32>
    %cst_58 = arith.constant 0.000000e+00 : f32
    %214 = vector.broadcast %cst_58 : f32 to vector<1x1xf32>
    %215 = arith.maximumf %213, %214 : vector<1x1xf32>
    %c3_59 = arith.constant 3 : index
    %216 = memref.load %arg3[%c3_59] : memref<8xf32, #tpu.memory_space<smem>>
    %c3_60 = arith.constant 3 : index
    %217 = memref.load %arg4[%c3_60] : memref<8xf32, #tpu.memory_space<smem>>
    %cst_61 = arith.constant 9.99999974E-6 : f32
    %218 = vector.broadcast %cst_61 : f32 to vector<1x1xf32>
    %219 = arith.addf %215, %218 : vector<1x1xf32>
    %220 = math.rsqrt %219 : vector<1x1xf32>
    %221 = vector.broadcast %216 : f32 to vector<1x1xf32>
    %222 = arith.mulf %221, %220 : vector<1x1xf32>
    %223 = arith.mulf %202, %222 : vector<1x1xf32>
    %224 = vector.broadcast %217 : f32 to vector<1x1xf32>
    %225 = arith.subf %224, %223 : vector<1x1xf32>
    %226 = vector.broadcast %222 : vector<1x1xf32> to vector<4x30xf32>
    %227 = arith.mulf %194, %226 : vector<4x30xf32>
    %228 = vector.broadcast %225 : vector<1x1xf32> to vector<4x30xf32>
    %229 = arith.addf %227, %228 : vector<4x30xf32>
    %c4 = arith.constant 4 : index
    %230 = memref.load %arg1[%c4] : memref<24xf32, #tpu.memory_space<smem>>
    %231 = vector.broadcast %230 : f32 to vector<4x30xf32>
    %232 = arith.mulf %231, %19 : vector<4x30xf32>
    %c12 = arith.constant 12 : index
    %233 = memref.load %arg1[%c12] : memref<24xf32, #tpu.memory_space<smem>>
    %234 = vector.broadcast %233 : f32 to vector<4x30xf32>
    %235 = arith.mulf %234, %20 : vector<4x30xf32>
    %236 = arith.addf %232, %235 : vector<4x30xf32>
    %c20 = arith.constant 20 : index
    %237 = memref.load %arg1[%c20] : memref<24xf32, #tpu.memory_space<smem>>
    %238 = vector.broadcast %237 : f32 to vector<4x30xf32>
    %239 = arith.mulf %238, %21 : vector<4x30xf32>
    %240 = arith.addf %236, %239 : vector<4x30xf32>
    %c4_62 = arith.constant 4 : index
    %241 = memref.load %arg2[%c4_62] : memref<8xf32, #tpu.memory_space<smem>>
    %242 = vector.broadcast %241 : f32 to vector<4x30xf32>
    %243 = arith.addf %240, %242 : vector<4x30xf32>
    %cst_63 = arith.constant 0.00999999977 : f32
    %244 = vector.broadcast %cst_63 : f32 to vector<4x30xf32>
    %245 = arith.mulf %244, %243 : vector<4x30xf32>
    %246 = arith.maximumf %243, %245 : vector<4x30xf32>
    %cst_64 = arith.constant dense<0.000000e+00> : vector<4xf32>
    %247 = vector.multi_reduction <add>, %246, %cst_64 [1] : vector<4x30xf32> to vector<4xf32>
    %248 = vector.shape_cast %247 : vector<4xf32> to vector<4x1xf32>
    %cst_65 = arith.constant 3.000000e+01 : f32
    %249 = vector.broadcast %cst_65 : f32 to vector<4x1xf32>
    %250 = arith.divf %248, %249 : vector<4x1xf32>
    %cst_66 = arith.constant dense<0.000000e+00> : vector<1xf32>
    %251 = vector.multi_reduction <add>, %250, %cst_66 [0] : vector<4x1xf32> to vector<1xf32>
    %252 = vector.shape_cast %251 : vector<1xf32> to vector<1x1xf32>
    %cst_67 = arith.constant 4.000000e+00 : f32
    %253 = vector.broadcast %cst_67 : f32 to vector<1x1xf32>
    %254 = arith.divf %252, %253 : vector<1x1xf32>
    %255 = arith.mulf %246, %246 : vector<4x30xf32>
    %cst_68 = arith.constant dense<0.000000e+00> : vector<4xf32>
    %256 = vector.multi_reduction <add>, %255, %cst_68 [1] : vector<4x30xf32> to vector<4xf32>
    %257 = vector.shape_cast %256 : vector<4xf32> to vector<4x1xf32>
    %cst_69 = arith.constant 3.000000e+01 : f32
    %258 = vector.broadcast %cst_69 : f32 to vector<4x1xf32>
    %259 = arith.divf %257, %258 : vector<4x1xf32>
    %cst_70 = arith.constant dense<0.000000e+00> : vector<1xf32>
    %260 = vector.multi_reduction <add>, %259, %cst_70 [0] : vector<4x1xf32> to vector<1xf32>
    %261 = vector.shape_cast %260 : vector<1xf32> to vector<1x1xf32>
    %cst_71 = arith.constant 4.000000e+00 : f32
    %262 = vector.broadcast %cst_71 : f32 to vector<1x1xf32>
    %263 = arith.divf %261, %262 : vector<1x1xf32>
    %264 = arith.mulf %254, %254 : vector<1x1xf32>
    %265 = arith.subf %263, %264 : vector<1x1xf32>
    %cst_72 = arith.constant 0.000000e+00 : f32
    %266 = vector.broadcast %cst_72 : f32 to vector<1x1xf32>
    %267 = arith.maximumf %265, %266 : vector<1x1xf32>
    %c4_73 = arith.constant 4 : index
    %268 = memref.load %arg3[%c4_73] : memref<8xf32, #tpu.memory_space<smem>>
    %c4_74 = arith.constant 4 : index
    %269 = memref.load %arg4[%c4_74] : memref<8xf32, #tpu.memory_space<smem>>
    %cst_75 = arith.constant 9.99999974E-6 : f32
    %270 = vector.broadcast %cst_75 : f32 to vector<1x1xf32>
    %271 = arith.addf %267, %270 : vector<1x1xf32>
    %272 = math.rsqrt %271 : vector<1x1xf32>
    %273 = vector.broadcast %268 : f32 to vector<1x1xf32>
    %274 = arith.mulf %273, %272 : vector<1x1xf32>
    %275 = arith.mulf %254, %274 : vector<1x1xf32>
    %276 = vector.broadcast %269 : f32 to vector<1x1xf32>
    %277 = arith.subf %276, %275 : vector<1x1xf32>
    %278 = vector.broadcast %274 : vector<1x1xf32> to vector<4x30xf32>
    %279 = arith.mulf %246, %278 : vector<4x30xf32>
    %280 = vector.broadcast %277 : vector<1x1xf32> to vector<4x30xf32>
    %281 = arith.addf %279, %280 : vector<4x30xf32>
    %c5 = arith.constant 5 : index
    %282 = memref.load %arg1[%c5] : memref<24xf32, #tpu.memory_space<smem>>
    %283 = vector.broadcast %282 : f32 to vector<4x30xf32>
    %284 = arith.mulf %283, %19 : vector<4x30xf32>
    %c13 = arith.constant 13 : index
    %285 = memref.load %arg1[%c13] : memref<24xf32, #tpu.memory_space<smem>>
    %286 = vector.broadcast %285 : f32 to vector<4x30xf32>
    %287 = arith.mulf %286, %20 : vector<4x30xf32>
    %288 = arith.addf %284, %287 : vector<4x30xf32>
    %c21 = arith.constant 21 : index
    %289 = memref.load %arg1[%c21] : memref<24xf32, #tpu.memory_space<smem>>
    %290 = vector.broadcast %289 : f32 to vector<4x30xf32>
    %291 = arith.mulf %290, %21 : vector<4x30xf32>
    %292 = arith.addf %288, %291 : vector<4x30xf32>
    %c5_76 = arith.constant 5 : index
    %293 = memref.load %arg2[%c5_76] : memref<8xf32, #tpu.memory_space<smem>>
    %294 = vector.broadcast %293 : f32 to vector<4x30xf32>
    %295 = arith.addf %292, %294 : vector<4x30xf32>
    %cst_77 = arith.constant 0.00999999977 : f32
    %296 = vector.broadcast %cst_77 : f32 to vector<4x30xf32>
    %297 = arith.mulf %296, %295 : vector<4x30xf32>
    %298 = arith.maximumf %295, %297 : vector<4x30xf32>
    %cst_78 = arith.constant dense<0.000000e+00> : vector<4xf32>
    %299 = vector.multi_reduction <add>, %298, %cst_78 [1] : vector<4x30xf32> to vector<4xf32>
    %300 = vector.shape_cast %299 : vector<4xf32> to vector<4x1xf32>
    %cst_79 = arith.constant 3.000000e+01 : f32
    %301 = vector.broadcast %cst_79 : f32 to vector<4x1xf32>
    %302 = arith.divf %300, %301 : vector<4x1xf32>
    %cst_80 = arith.constant dense<0.000000e+00> : vector<1xf32>
    %303 = vector.multi_reduction <add>, %302, %cst_80 [0] : vector<4x1xf32> to vector<1xf32>
    %304 = vector.shape_cast %303 : vector<1xf32> to vector<1x1xf32>
    %cst_81 = arith.constant 4.000000e+00 : f32
    %305 = vector.broadcast %cst_81 : f32 to vector<1x1xf32>
    %306 = arith.divf %304, %305 : vector<1x1xf32>
    %307 = arith.mulf %298, %298 : vector<4x30xf32>
    %cst_82 = arith.constant dense<0.000000e+00> : vector<4xf32>
    %308 = vector.multi_reduction <add>, %307, %cst_82 [1] : vector<4x30xf32> to vector<4xf32>
    %309 = vector.shape_cast %308 : vector<4xf32> to vector<4x1xf32>
    %cst_83 = arith.constant 3.000000e+01 : f32
    %310 = vector.broadcast %cst_83 : f32 to vector<4x1xf32>
    %311 = arith.divf %309, %310 : vector<4x1xf32>
    %cst_84 = arith.constant dense<0.000000e+00> : vector<1xf32>
    %312 = vector.multi_reduction <add>, %311, %cst_84 [0] : vector<4x1xf32> to vector<1xf32>
    %313 = vector.shape_cast %312 : vector<1xf32> to vector<1x1xf32>
    %cst_85 = arith.constant 4.000000e+00 : f32
    %314 = vector.broadcast %cst_85 : f32 to vector<1x1xf32>
    %315 = arith.divf %313, %314 : vector<1x1xf32>
    %316 = arith.mulf %306, %306 : vector<1x1xf32>
    %317 = arith.subf %315, %316 : vector<1x1xf32>
    %cst_86 = arith.constant 0.000000e+00 : f32
    %318 = vector.broadcast %cst_86 : f32 to vector<1x1xf32>
    %319 = arith.maximumf %317, %318 : vector<1x1xf32>
    %c5_87 = arith.constant 5 : index
    %320 = memref.load %arg3[%c5_87] : memref<8xf32, #tpu.memory_space<smem>>
    %c5_88 = arith.constant 5 : index
    %321 = memref.load %arg4[%c5_88] : memref<8xf32, #tpu.memory_space<smem>>
    %cst_89 = arith.constant 9.99999974E-6 : f32
    %322 = vector.broadcast %cst_89 : f32 to vector<1x1xf32>
    %323 = arith.addf %319, %322 : vector<1x1xf32>
    %324 = math.rsqrt %323 : vector<1x1xf32>
    %325 = vector.broadcast %320 : f32 to vector<1x1xf32>
    %326 = arith.mulf %325, %324 : vector<1x1xf32>
    %327 = arith.mulf %306, %326 : vector<1x1xf32>
    %328 = vector.broadcast %321 : f32 to vector<1x1xf32>
    %329 = arith.subf %328, %327 : vector<1x1xf32>
    %330 = vector.broadcast %326 : vector<1x1xf32> to vector<4x30xf32>
    %331 = arith.mulf %298, %330 : vector<4x30xf32>
    %332 = vector.broadcast %329 : vector<1x1xf32> to vector<4x30xf32>
    %333 = arith.addf %331, %332 : vector<4x30xf32>
    %c6 = arith.constant 6 : index
    %334 = memref.load %arg1[%c6] : memref<24xf32, #tpu.memory_space<smem>>
    %335 = vector.broadcast %334 : f32 to vector<4x30xf32>
    %336 = arith.mulf %335, %19 : vector<4x30xf32>
    %c14 = arith.constant 14 : index
    %337 = memref.load %arg1[%c14] : memref<24xf32, #tpu.memory_space<smem>>
    %338 = vector.broadcast %337 : f32 to vector<4x30xf32>
    %339 = arith.mulf %338, %20 : vector<4x30xf32>
    %340 = arith.addf %336, %339 : vector<4x30xf32>
    %c22 = arith.constant 22 : index
    %341 = memref.load %arg1[%c22] : memref<24xf32, #tpu.memory_space<smem>>
    %342 = vector.broadcast %341 : f32 to vector<4x30xf32>
    %343 = arith.mulf %342, %21 : vector<4x30xf32>
    %344 = arith.addf %340, %343 : vector<4x30xf32>
    %c6_90 = arith.constant 6 : index
    %345 = memref.load %arg2[%c6_90] : memref<8xf32, #tpu.memory_space<smem>>
    %346 = vector.broadcast %345 : f32 to vector<4x30xf32>
    %347 = arith.addf %344, %346 : vector<4x30xf32>
    %cst_91 = arith.constant 0.00999999977 : f32
    %348 = vector.broadcast %cst_91 : f32 to vector<4x30xf32>
    %349 = arith.mulf %348, %347 : vector<4x30xf32>
    %350 = arith.maximumf %347, %349 : vector<4x30xf32>
    %cst_92 = arith.constant dense<0.000000e+00> : vector<4xf32>
    %351 = vector.multi_reduction <add>, %350, %cst_92 [1] : vector<4x30xf32> to vector<4xf32>
    %352 = vector.shape_cast %351 : vector<4xf32> to vector<4x1xf32>
    %cst_93 = arith.constant 3.000000e+01 : f32
    %353 = vector.broadcast %cst_93 : f32 to vector<4x1xf32>
    %354 = arith.divf %352, %353 : vector<4x1xf32>
    %cst_94 = arith.constant dense<0.000000e+00> : vector<1xf32>
    %355 = vector.multi_reduction <add>, %354, %cst_94 [0] : vector<4x1xf32> to vector<1xf32>
    %356 = vector.shape_cast %355 : vector<1xf32> to vector<1x1xf32>
    %cst_95 = arith.constant 4.000000e+00 : f32
    %357 = vector.broadcast %cst_95 : f32 to vector<1x1xf32>
    %358 = arith.divf %356, %357 : vector<1x1xf32>
    %359 = arith.mulf %350, %350 : vector<4x30xf32>
    %cst_96 = arith.constant dense<0.000000e+00> : vector<4xf32>
    %360 = vector.multi_reduction <add>, %359, %cst_96 [1] : vector<4x30xf32> to vector<4xf32>
    %361 = vector.shape_cast %360 : vector<4xf32> to vector<4x1xf32>
    %cst_97 = arith.constant 3.000000e+01 : f32
    %362 = vector.broadcast %cst_97 : f32 to vector<4x1xf32>
    %363 = arith.divf %361, %362 : vector<4x1xf32>
    %cst_98 = arith.constant dense<0.000000e+00> : vector<1xf32>
    %364 = vector.multi_reduction <add>, %363, %cst_98 [0] : vector<4x1xf32> to vector<1xf32>
    %365 = vector.shape_cast %364 : vector<1xf32> to vector<1x1xf32>
    %cst_99 = arith.constant 4.000000e+00 : f32
    %366 = vector.broadcast %cst_99 : f32 to vector<1x1xf32>
    %367 = arith.divf %365, %366 : vector<1x1xf32>
    %368 = arith.mulf %358, %358 : vector<1x1xf32>
    %369 = arith.subf %367, %368 : vector<1x1xf32>
    %cst_100 = arith.constant 0.000000e+00 : f32
    %370 = vector.broadcast %cst_100 : f32 to vector<1x1xf32>
    %371 = arith.maximumf %369, %370 : vector<1x1xf32>
    %c6_101 = arith.constant 6 : index
    %372 = memref.load %arg3[%c6_101] : memref<8xf32, #tpu.memory_space<smem>>
    %c6_102 = arith.constant 6 : index
    %373 = memref.load %arg4[%c6_102] : memref<8xf32, #tpu.memory_space<smem>>
    %cst_103 = arith.constant 9.99999974E-6 : f32
    %374 = vector.broadcast %cst_103 : f32 to vector<1x1xf32>
    %375 = arith.addf %371, %374 : vector<1x1xf32>
    %376 = math.rsqrt %375 : vector<1x1xf32>
    %377 = vector.broadcast %372 : f32 to vector<1x1xf32>
    %378 = arith.mulf %377, %376 : vector<1x1xf32>
    %379 = arith.mulf %358, %378 : vector<1x1xf32>
    %380 = vector.broadcast %373 : f32 to vector<1x1xf32>
    %381 = arith.subf %380, %379 : vector<1x1xf32>
    %382 = vector.broadcast %378 : vector<1x1xf32> to vector<4x30xf32>
    %383 = arith.mulf %350, %382 : vector<4x30xf32>
    %384 = vector.broadcast %381 : vector<1x1xf32> to vector<4x30xf32>
    %385 = arith.addf %383, %384 : vector<4x30xf32>
    %c7 = arith.constant 7 : index
    %386 = memref.load %arg1[%c7] : memref<24xf32, #tpu.memory_space<smem>>
    %387 = vector.broadcast %386 : f32 to vector<4x30xf32>
    %388 = arith.mulf %387, %19 : vector<4x30xf32>
    %c15 = arith.constant 15 : index
    %389 = memref.load %arg1[%c15] : memref<24xf32, #tpu.memory_space<smem>>
    %390 = vector.broadcast %389 : f32 to vector<4x30xf32>
    %391 = arith.mulf %390, %20 : vector<4x30xf32>
    %392 = arith.addf %388, %391 : vector<4x30xf32>
    %c23 = arith.constant 23 : index
    %393 = memref.load %arg1[%c23] : memref<24xf32, #tpu.memory_space<smem>>
    %394 = vector.broadcast %393 : f32 to vector<4x30xf32>
    %395 = arith.mulf %394, %21 : vector<4x30xf32>
    %396 = arith.addf %392, %395 : vector<4x30xf32>
    %c7_104 = arith.constant 7 : index
    %397 = memref.load %arg2[%c7_104] : memref<8xf32, #tpu.memory_space<smem>>
    %398 = vector.broadcast %397 : f32 to vector<4x30xf32>
    %399 = arith.addf %396, %398 : vector<4x30xf32>
    %cst_105 = arith.constant 0.00999999977 : f32
    %400 = vector.broadcast %cst_105 : f32 to vector<4x30xf32>
    %401 = arith.mulf %400, %399 : vector<4x30xf32>
    %402 = arith.maximumf %399, %401 : vector<4x30xf32>
    %cst_106 = arith.constant dense<0.000000e+00> : vector<4xf32>
    %403 = vector.multi_reduction <add>, %402, %cst_106 [1] : vector<4x30xf32> to vector<4xf32>
    %404 = vector.shape_cast %403 : vector<4xf32> to vector<4x1xf32>
    %cst_107 = arith.constant 3.000000e+01 : f32
    %405 = vector.broadcast %cst_107 : f32 to vector<4x1xf32>
    %406 = arith.divf %404, %405 : vector<4x1xf32>
    %cst_108 = arith.constant dense<0.000000e+00> : vector<1xf32>
    %407 = vector.multi_reduction <add>, %406, %cst_108 [0] : vector<4x1xf32> to vector<1xf32>
    %408 = vector.shape_cast %407 : vector<1xf32> to vector<1x1xf32>
    %cst_109 = arith.constant 4.000000e+00 : f32
    %409 = vector.broadcast %cst_109 : f32 to vector<1x1xf32>
    %410 = arith.divf %408, %409 : vector<1x1xf32>
    %411 = arith.mulf %402, %402 : vector<4x30xf32>
    %cst_110 = arith.constant dense<0.000000e+00> : vector<4xf32>
    %412 = vector.multi_reduction <add>, %411, %cst_110 [1] : vector<4x30xf32> to vector<4xf32>
    %413 = vector.shape_cast %412 : vector<4xf32> to vector<4x1xf32>
    %cst_111 = arith.constant 3.000000e+01 : f32
    %414 = vector.broadcast %cst_111 : f32 to vector<4x1xf32>
    %415 = arith.divf %413, %414 : vector<4x1xf32>
    %cst_112 = arith.constant dense<0.000000e+00> : vector<1xf32>
    %416 = vector.multi_reduction <add>, %415, %cst_112 [0] : vector<4x1xf32> to vector<1xf32>
    %417 = vector.shape_cast %416 : vector<1xf32> to vector<1x1xf32>
    %cst_113 = arith.constant 4.000000e+00 : f32
    %418 = vector.broadcast %cst_113 : f32 to vector<1x1xf32>
    %419 = arith.divf %417, %418 : vector<1x1xf32>
    %420 = arith.mulf %410, %410 : vector<1x1xf32>
    %421 = arith.subf %419, %420 : vector<1x1xf32>
    %cst_114 = arith.constant 0.000000e+00 : f32
    %422 = vector.broadcast %cst_114 : f32 to vector<1x1xf32>
    %423 = arith.maximumf %421, %422 : vector<1x1xf32>
    %c7_115 = arith.constant 7 : index
    %424 = memref.load %arg3[%c7_115] : memref<8xf32, #tpu.memory_space<smem>>
    %c7_116 = arith.constant 7 : index
    %425 = memref.load %arg4[%c7_116] : memref<8xf32, #tpu.memory_space<smem>>
    %cst_117 = arith.constant 9.99999974E-6 : f32
    %426 = vector.broadcast %cst_117 : f32 to vector<1x1xf32>
    %427 = arith.addf %423, %426 : vector<1x1xf32>
    %428 = math.rsqrt %427 : vector<1x1xf32>
    %429 = vector.broadcast %424 : f32 to vector<1x1xf32>
    %430 = arith.mulf %429, %428 : vector<1x1xf32>
    %431 = arith.mulf %410, %430 : vector<1x1xf32>
    %432 = vector.broadcast %425 : f32 to vector<1x1xf32>
    %433 = arith.subf %432, %431 : vector<1x1xf32>
    %434 = vector.broadcast %430 : vector<1x1xf32> to vector<4x30xf32>
    %435 = arith.mulf %402, %434 : vector<4x30xf32>
    %436 = vector.broadcast %433 : vector<1x1xf32> to vector<4x30xf32>
    %437 = arith.addf %435, %436 : vector<4x30xf32>
    %cst_118 = arith.constant 0.000000e+00 : f32
    %438 = vector.broadcast %cst_118 : f32 to vector<4x1xf32>
    %439 = tpu.concatenate %438, %73, %438 in 1 : vector<4x1xf32>, vector<4x30xf32>, vector<4x1xf32> -> vector<4x32xf32>
    %440 = vector.extract_strided_slice %439 {offsets = [0, 0], sizes = [4, 30], strides = [1, 1]} : vector<4x32xf32> to vector<4x30xf32>
    %441 = vector.extract_strided_slice %439 {offsets = [0, 2], sizes = [4, 30], strides = [1, 1]} : vector<4x32xf32> to vector<4x30xf32>
    %442 = tpu.concatenate %438, %125, %438 in 1 : vector<4x1xf32>, vector<4x30xf32>, vector<4x1xf32> -> vector<4x32xf32>
    %443 = vector.extract_strided_slice %442 {offsets = [0, 0], sizes = [4, 30], strides = [1, 1]} : vector<4x32xf32> to vector<4x30xf32>
    %444 = vector.extract_strided_slice %442 {offsets = [0, 2], sizes = [4, 30], strides = [1, 1]} : vector<4x32xf32> to vector<4x30xf32>
    %445 = tpu.concatenate %438, %177, %438 in 1 : vector<4x1xf32>, vector<4x30xf32>, vector<4x1xf32> -> vector<4x32xf32>
    %446 = vector.extract_strided_slice %445 {offsets = [0, 0], sizes = [4, 30], strides = [1, 1]} : vector<4x32xf32> to vector<4x30xf32>
    %447 = vector.extract_strided_slice %445 {offsets = [0, 2], sizes = [4, 30], strides = [1, 1]} : vector<4x32xf32> to vector<4x30xf32>
    %448 = tpu.concatenate %438, %229, %438 in 1 : vector<4x1xf32>, vector<4x30xf32>, vector<4x1xf32> -> vector<4x32xf32>
    %449 = vector.extract_strided_slice %448 {offsets = [0, 0], sizes = [4, 30], strides = [1, 1]} : vector<4x32xf32> to vector<4x30xf32>
    %450 = vector.extract_strided_slice %448 {offsets = [0, 2], sizes = [4, 30], strides = [1, 1]} : vector<4x32xf32> to vector<4x30xf32>
    %451 = tpu.concatenate %438, %281, %438 in 1 : vector<4x1xf32>, vector<4x30xf32>, vector<4x1xf32> -> vector<4x32xf32>
    %452 = vector.extract_strided_slice %451 {offsets = [0, 0], sizes = [4, 30], strides = [1, 1]} : vector<4x32xf32> to vector<4x30xf32>
    %453 = vector.extract_strided_slice %451 {offsets = [0, 2], sizes = [4, 30], strides = [1, 1]} : vector<4x32xf32> to vector<4x30xf32>
    %454 = tpu.concatenate %438, %333, %438 in 1 : vector<4x1xf32>, vector<4x30xf32>, vector<4x1xf32> -> vector<4x32xf32>
    %455 = vector.extract_strided_slice %454 {offsets = [0, 0], sizes = [4, 30], strides = [1, 1]} : vector<4x32xf32> to vector<4x30xf32>
    %456 = vector.extract_strided_slice %454 {offsets = [0, 2], sizes = [4, 30], strides = [1, 1]} : vector<4x32xf32> to vector<4x30xf32>
    %457 = tpu.concatenate %438, %385, %438 in 1 : vector<4x1xf32>, vector<4x30xf32>, vector<4x1xf32> -> vector<4x32xf32>
    %458 = vector.extract_strided_slice %457 {offsets = [0, 0], sizes = [4, 30], strides = [1, 1]} : vector<4x32xf32> to vector<4x30xf32>
    %459 = vector.extract_strided_slice %457 {offsets = [0, 2], sizes = [4, 30], strides = [1, 1]} : vector<4x32xf32> to vector<4x30xf32>
    %460 = tpu.concatenate %438, %437, %438 in 1 : vector<4x1xf32>, vector<4x30xf32>, vector<4x1xf32> -> vector<4x32xf32>
    %461 = vector.extract_strided_slice %460 {offsets = [0, 0], sizes = [4, 30], strides = [1, 1]} : vector<4x32xf32> to vector<4x30xf32>
    %462 = vector.extract_strided_slice %460 {offsets = [0, 2], sizes = [4, 30], strides = [1, 1]} : vector<4x32xf32> to vector<4x30xf32>
    %cst_119 = arith.constant 0.000000e+00 : f32
    %463 = vector.broadcast %cst_119 : f32 to vector<4x30xf32>
    %c0_120 = arith.constant 0 : index
    %464 = memref.load %arg5[%c0_120] : memref<384xf32, #tpu.memory_space<smem>>
    %465 = vector.broadcast %464 : f32 to vector<4x30xf32>
    %466 = arith.mulf %465, %440 : vector<4x30xf32>
    %467 = arith.addf %463, %466 : vector<4x30xf32>
    %c128 = arith.constant 128 : index
    %468 = memref.load %arg5[%c128] : memref<384xf32, #tpu.memory_space<smem>>
    %469 = vector.broadcast %468 : f32 to vector<4x30xf32>
    %470 = arith.mulf %469, %73 : vector<4x30xf32>
    %471 = arith.addf %467, %470 : vector<4x30xf32>
    %c256 = arith.constant 256 : index
    %472 = memref.load %arg5[%c256] : memref<384xf32, #tpu.memory_space<smem>>
    %473 = vector.broadcast %472 : f32 to vector<4x30xf32>
    %474 = arith.mulf %473, %441 : vector<4x30xf32>
    %475 = arith.addf %471, %474 : vector<4x30xf32>
    %c16_121 = arith.constant 16 : index
    %476 = memref.load %arg5[%c16_121] : memref<384xf32, #tpu.memory_space<smem>>
    %477 = vector.broadcast %476 : f32 to vector<4x30xf32>
    %478 = arith.mulf %477, %443 : vector<4x30xf32>
    %479 = arith.addf %475, %478 : vector<4x30xf32>
    %c144 = arith.constant 144 : index
    %480 = memref.load %arg5[%c144] : memref<384xf32, #tpu.memory_space<smem>>
    %481 = vector.broadcast %480 : f32 to vector<4x30xf32>
    %482 = arith.mulf %481, %125 : vector<4x30xf32>
    %483 = arith.addf %479, %482 : vector<4x30xf32>
    %c272 = arith.constant 272 : index
    %484 = memref.load %arg5[%c272] : memref<384xf32, #tpu.memory_space<smem>>
    %485 = vector.broadcast %484 : f32 to vector<4x30xf32>
    %486 = arith.mulf %485, %444 : vector<4x30xf32>
    %487 = arith.addf %483, %486 : vector<4x30xf32>
    %c32 = arith.constant 32 : index
    %488 = memref.load %arg5[%c32] : memref<384xf32, #tpu.memory_space<smem>>
    %489 = vector.broadcast %488 : f32 to vector<4x30xf32>
    %490 = arith.mulf %489, %446 : vector<4x30xf32>
    %491 = arith.addf %487, %490 : vector<4x30xf32>
    %c160 = arith.constant 160 : index
    %492 = memref.load %arg5[%c160] : memref<384xf32, #tpu.memory_space<smem>>
    %493 = vector.broadcast %492 : f32 to vector<4x30xf32>
    %494 = arith.mulf %493, %177 : vector<4x30xf32>
    %495 = arith.addf %491, %494 : vector<4x30xf32>
    %c288 = arith.constant 288 : index
    %496 = memref.load %arg5[%c288] : memref<384xf32, #tpu.memory_space<smem>>
    %497 = vector.broadcast %496 : f32 to vector<4x30xf32>
    %498 = arith.mulf %497, %447 : vector<4x30xf32>
    %499 = arith.addf %495, %498 : vector<4x30xf32>
    %c48 = arith.constant 48 : index
    %500 = memref.load %arg5[%c48] : memref<384xf32, #tpu.memory_space<smem>>
    %501 = vector.broadcast %500 : f32 to vector<4x30xf32>
    %502 = arith.mulf %501, %449 : vector<4x30xf32>
    %503 = arith.addf %499, %502 : vector<4x30xf32>
    %c176 = arith.constant 176 : index
    %504 = memref.load %arg5[%c176] : memref<384xf32, #tpu.memory_space<smem>>
    %505 = vector.broadcast %504 : f32 to vector<4x30xf32>
    %506 = arith.mulf %505, %229 : vector<4x30xf32>
    %507 = arith.addf %503, %506 : vector<4x30xf32>
    %c304 = arith.constant 304 : index
    %508 = memref.load %arg5[%c304] : memref<384xf32, #tpu.memory_space<smem>>
    %509 = vector.broadcast %508 : f32 to vector<4x30xf32>
    %510 = arith.mulf %509, %450 : vector<4x30xf32>
    %511 = arith.addf %507, %510 : vector<4x30xf32>
    %c64 = arith.constant 64 : index
    %512 = memref.load %arg5[%c64] : memref<384xf32, #tpu.memory_space<smem>>
    %513 = vector.broadcast %512 : f32 to vector<4x30xf32>
    %514 = arith.mulf %513, %452 : vector<4x30xf32>
    %515 = arith.addf %511, %514 : vector<4x30xf32>
    %c192 = arith.constant 192 : index
    %516 = memref.load %arg5[%c192] : memref<384xf32, #tpu.memory_space<smem>>
    %517 = vector.broadcast %516 : f32 to vector<4x30xf32>
    %518 = arith.mulf %517, %281 : vector<4x30xf32>
    %519 = arith.addf %515, %518 : vector<4x30xf32>
    %c320 = arith.constant 320 : index
    %520 = memref.load %arg5[%c320] : memref<384xf32, #tpu.memory_space<smem>>
    %521 = vector.broadcast %520 : f32 to vector<4x30xf32>
    %522 = arith.mulf %521, %453 : vector<4x30xf32>
    %523 = arith.addf %519, %522 : vector<4x30xf32>
    %c80 = arith.constant 80 : index
    %524 = memref.load %arg5[%c80] : memref<384xf32, #tpu.memory_space<smem>>
    %525 = vector.broadcast %524 : f32 to vector<4x30xf32>
    %526 = arith.mulf %525, %455 : vector<4x30xf32>
    %527 = arith.addf %523, %526 : vector<4x30xf32>
    %c208 = arith.constant 208 : index
    %528 = memref.load %arg5[%c208] : memref<384xf32, #tpu.memory_space<smem>>
    %529 = vector.broadcast %528 : f32 to vector<4x30xf32>
    %530 = arith.mulf %529, %333 : vector<4x30xf32>
    %531 = arith.addf %527, %530 : vector<4x30xf32>
    %c336 = arith.constant 336 : index
    %532 = memref.load %arg5[%c336] : memref<384xf32, #tpu.memory_space<smem>>
    %533 = vector.broadcast %532 : f32 to vector<4x30xf32>
    %534 = arith.mulf %533, %456 : vector<4x30xf32>
    %535 = arith.addf %531, %534 : vector<4x30xf32>
    %c96 = arith.constant 96 : index
    %536 = memref.load %arg5[%c96] : memref<384xf32, #tpu.memory_space<smem>>
    %537 = vector.broadcast %536 : f32 to vector<4x30xf32>
    %538 = arith.mulf %537, %458 : vector<4x30xf32>
    %539 = arith.addf %535, %538 : vector<4x30xf32>
    %c224 = arith.constant 224 : index
    %540 = memref.load %arg5[%c224] : memref<384xf32, #tpu.memory_space<smem>>
    %541 = vector.broadcast %540 : f32 to vector<4x30xf32>
    %542 = arith.mulf %541, %385 : vector<4x30xf32>
    %543 = arith.addf %539, %542 : vector<4x30xf32>
    %c352 = arith.constant 352 : index
    %544 = memref.load %arg5[%c352] : memref<384xf32, #tpu.memory_space<smem>>
    %545 = vector.broadcast %544 : f32 to vector<4x30xf32>
    %546 = arith.mulf %545, %459 : vector<4x30xf32>
    %547 = arith.addf %543, %546 : vector<4x30xf32>
    %c112 = arith.constant 112 : index
    %548 = memref.load %arg5[%c112] : memref<384xf32, #tpu.memory_space<smem>>
    %549 = vector.broadcast %548 : f32 to vector<4x30xf32>
    %550 = arith.mulf %549, %461 : vector<4x30xf32>
    %551 = arith.addf %547, %550 : vector<4x30xf32>
    %c240 = arith.constant 240 : index
    %552 = memref.load %arg5[%c240] : memref<384xf32, #tpu.memory_space<smem>>
    %553 = vector.broadcast %552 : f32 to vector<4x30xf32>
    %554 = arith.mulf %553, %437 : vector<4x30xf32>
    %555 = arith.addf %551, %554 : vector<4x30xf32>
    %c368 = arith.constant 368 : index
    %556 = memref.load %arg5[%c368] : memref<384xf32, #tpu.memory_space<smem>>
    %557 = vector.broadcast %556 : f32 to vector<4x30xf32>
    %558 = arith.mulf %557, %462 : vector<4x30xf32>
    %559 = arith.addf %555, %558 : vector<4x30xf32>
    %c0_122 = arith.constant 0 : index
    %560 = memref.load %arg6[%c0_122] : memref<16xf32, #tpu.memory_space<smem>>
    %561 = vector.broadcast %560 : f32 to vector<4x30xf32>
    %562 = arith.addf %559, %561 : vector<4x30xf32>
    %cst_123 = arith.constant 0.00999999977 : f32
    %563 = vector.broadcast %cst_123 : f32 to vector<4x30xf32>
    %564 = arith.mulf %563, %562 : vector<4x30xf32>
    %565 = arith.maximumf %562, %564 : vector<4x30xf32>
    %cst_124 = arith.constant dense<0.000000e+00> : vector<4xf32>
    %566 = vector.multi_reduction <add>, %565, %cst_124 [1] : vector<4x30xf32> to vector<4xf32>
    %567 = vector.shape_cast %566 : vector<4xf32> to vector<4x1xf32>
    %cst_125 = arith.constant 3.000000e+01 : f32
    %568 = vector.broadcast %cst_125 : f32 to vector<4x1xf32>
    %569 = arith.divf %567, %568 : vector<4x1xf32>
    %cst_126 = arith.constant dense<0.000000e+00> : vector<1xf32>
    %570 = vector.multi_reduction <add>, %569, %cst_126 [0] : vector<4x1xf32> to vector<1xf32>
    %571 = vector.shape_cast %570 : vector<1xf32> to vector<1x1xf32>
    %cst_127 = arith.constant 4.000000e+00 : f32
    %572 = vector.broadcast %cst_127 : f32 to vector<1x1xf32>
    %573 = arith.divf %571, %572 : vector<1x1xf32>
    %574 = arith.mulf %565, %565 : vector<4x30xf32>
    %cst_128 = arith.constant dense<0.000000e+00> : vector<4xf32>
    %575 = vector.multi_reduction <add>, %574, %cst_128 [1] : vector<4x30xf32> to vector<4xf32>
    %576 = vector.shape_cast %575 : vector<4xf32> to vector<4x1xf32>
    %cst_129 = arith.constant 3.000000e+01 : f32
    %577 = vector.broadcast %cst_129 : f32 to vector<4x1xf32>
    %578 = arith.divf %576, %577 : vector<4x1xf32>
    %cst_130 = arith.constant dense<0.000000e+00> : vector<1xf32>
    %579 = vector.multi_reduction <add>, %578, %cst_130 [0] : vector<4x1xf32> to vector<1xf32>
    %580 = vector.shape_cast %579 : vector<1xf32> to vector<1x1xf32>
    %cst_131 = arith.constant 4.000000e+00 : f32
    %581 = vector.broadcast %cst_131 : f32 to vector<1x1xf32>
    %582 = arith.divf %580, %581 : vector<1x1xf32>
    %583 = arith.mulf %573, %573 : vector<1x1xf32>
    %584 = arith.subf %582, %583 : vector<1x1xf32>
    %cst_132 = arith.constant 0.000000e+00 : f32
    %585 = vector.broadcast %cst_132 : f32 to vector<1x1xf32>
    %586 = arith.maximumf %584, %585 : vector<1x1xf32>
    %c0_133 = arith.constant 0 : index
    %587 = memref.load %arg7[%c0_133] : memref<16xf32, #tpu.memory_space<smem>>
    %c0_134 = arith.constant 0 : index
    %588 = memref.load %arg8[%c0_134] : memref<16xf32, #tpu.memory_space<smem>>
    %cst_135 = arith.constant 9.99999974E-6 : f32
    %589 = vector.broadcast %cst_135 : f32 to vector<1x1xf32>
    %590 = arith.addf %586, %589 : vector<1x1xf32>
    %591 = math.rsqrt %590 : vector<1x1xf32>
    %592 = vector.broadcast %587 : f32 to vector<1x1xf32>
    %593 = arith.mulf %592, %591 : vector<1x1xf32>
    %594 = arith.mulf %573, %593 : vector<1x1xf32>
    %595 = vector.broadcast %588 : f32 to vector<1x1xf32>
    %596 = arith.subf %595, %594 : vector<1x1xf32>
    %597 = vector.broadcast %593 : vector<1x1xf32> to vector<4x30xf32>
    %598 = arith.mulf %565, %597 : vector<4x30xf32>
    %599 = vector.broadcast %596 : vector<1x1xf32> to vector<4x30xf32>
    %600 = arith.addf %598, %599 : vector<4x30xf32>
    %cst_136 = arith.constant 0.000000e+00 : f32
    %601 = vector.broadcast %cst_136 : f32 to vector<4x30xf32>
    %c1_137 = arith.constant 1 : index
    %602 = memref.load %arg5[%c1_137] : memref<384xf32, #tpu.memory_space<smem>>
    %603 = vector.broadcast %602 : f32 to vector<4x30xf32>
    %604 = arith.mulf %603, %440 : vector<4x30xf32>
    %605 = arith.addf %601, %604 : vector<4x30xf32>
    %c129 = arith.constant 129 : index
    %606 = memref.load %arg5[%c129] : memref<384xf32, #tpu.memory_space<smem>>
    %607 = vector.broadcast %606 : f32 to vector<4x30xf32>
    %608 = arith.mulf %607, %73 : vector<4x30xf32>
    %609 = arith.addf %605, %608 : vector<4x30xf32>
    %c257 = arith.constant 257 : index
    %610 = memref.load %arg5[%c257] : memref<384xf32, #tpu.memory_space<smem>>
    %611 = vector.broadcast %610 : f32 to vector<4x30xf32>
    %612 = arith.mulf %611, %441 : vector<4x30xf32>
    %613 = arith.addf %609, %612 : vector<4x30xf32>
    %c17_138 = arith.constant 17 : index
    %614 = memref.load %arg5[%c17_138] : memref<384xf32, #tpu.memory_space<smem>>
    %615 = vector.broadcast %614 : f32 to vector<4x30xf32>
    %616 = arith.mulf %615, %443 : vector<4x30xf32>
    %617 = arith.addf %613, %616 : vector<4x30xf32>
    %c145 = arith.constant 145 : index
    %618 = memref.load %arg5[%c145] : memref<384xf32, #tpu.memory_space<smem>>
    %619 = vector.broadcast %618 : f32 to vector<4x30xf32>
    %620 = arith.mulf %619, %125 : vector<4x30xf32>
    %621 = arith.addf %617, %620 : vector<4x30xf32>
    %c273 = arith.constant 273 : index
    %622 = memref.load %arg5[%c273] : memref<384xf32, #tpu.memory_space<smem>>
    %623 = vector.broadcast %622 : f32 to vector<4x30xf32>
    %624 = arith.mulf %623, %444 : vector<4x30xf32>
    %625 = arith.addf %621, %624 : vector<4x30xf32>
    %c33 = arith.constant 33 : index
    %626 = memref.load %arg5[%c33] : memref<384xf32, #tpu.memory_space<smem>>
    %627 = vector.broadcast %626 : f32 to vector<4x30xf32>
    %628 = arith.mulf %627, %446 : vector<4x30xf32>
    %629 = arith.addf %625, %628 : vector<4x30xf32>
    %c161 = arith.constant 161 : index
    %630 = memref.load %arg5[%c161] : memref<384xf32, #tpu.memory_space<smem>>
    %631 = vector.broadcast %630 : f32 to vector<4x30xf32>
    %632 = arith.mulf %631, %177 : vector<4x30xf32>
    %633 = arith.addf %629, %632 : vector<4x30xf32>
    %c289 = arith.constant 289 : index
    %634 = memref.load %arg5[%c289] : memref<384xf32, #tpu.memory_space<smem>>
    %635 = vector.broadcast %634 : f32 to vector<4x30xf32>
    %636 = arith.mulf %635, %447 : vector<4x30xf32>
    %637 = arith.addf %633, %636 : vector<4x30xf32>
    %c49 = arith.constant 49 : index
    %638 = memref.load %arg5[%c49] : memref<384xf32, #tpu.memory_space<smem>>
    %639 = vector.broadcast %638 : f32 to vector<4x30xf32>
    %640 = arith.mulf %639, %449 : vector<4x30xf32>
    %641 = arith.addf %637, %640 : vector<4x30xf32>
    %c177 = arith.constant 177 : index
    %642 = memref.load %arg5[%c177] : memref<384xf32, #tpu.memory_space<smem>>
    %643 = vector.broadcast %642 : f32 to vector<4x30xf32>
    %644 = arith.mulf %643, %229 : vector<4x30xf32>
    %645 = arith.addf %641, %644 : vector<4x30xf32>
    %c305 = arith.constant 305 : index
    %646 = memref.load %arg5[%c305] : memref<384xf32, #tpu.memory_space<smem>>
    %647 = vector.broadcast %646 : f32 to vector<4x30xf32>
    %648 = arith.mulf %647, %450 : vector<4x30xf32>
    %649 = arith.addf %645, %648 : vector<4x30xf32>
    %c65 = arith.constant 65 : index
    %650 = memref.load %arg5[%c65] : memref<384xf32, #tpu.memory_space<smem>>
    %651 = vector.broadcast %650 : f32 to vector<4x30xf32>
    %652 = arith.mulf %651, %452 : vector<4x30xf32>
    %653 = arith.addf %649, %652 : vector<4x30xf32>
    %c193 = arith.constant 193 : index
    %654 = memref.load %arg5[%c193] : memref<384xf32, #tpu.memory_space<smem>>
    %655 = vector.broadcast %654 : f32 to vector<4x30xf32>
    %656 = arith.mulf %655, %281 : vector<4x30xf32>
    %657 = arith.addf %653, %656 : vector<4x30xf32>
    %c321 = arith.constant 321 : index
    %658 = memref.load %arg5[%c321] : memref<384xf32, #tpu.memory_space<smem>>
    %659 = vector.broadcast %658 : f32 to vector<4x30xf32>
    %660 = arith.mulf %659, %453 : vector<4x30xf32>
    %661 = arith.addf %657, %660 : vector<4x30xf32>
    %c81 = arith.constant 81 : index
    %662 = memref.load %arg5[%c81] : memref<384xf32, #tpu.memory_space<smem>>
    %663 = vector.broadcast %662 : f32 to vector<4x30xf32>
    %664 = arith.mulf %663, %455 : vector<4x30xf32>
    %665 = arith.addf %661, %664 : vector<4x30xf32>
    %c209 = arith.constant 209 : index
    %666 = memref.load %arg5[%c209] : memref<384xf32, #tpu.memory_space<smem>>
    %667 = vector.broadcast %666 : f32 to vector<4x30xf32>
    %668 = arith.mulf %667, %333 : vector<4x30xf32>
    %669 = arith.addf %665, %668 : vector<4x30xf32>
    %c337 = arith.constant 337 : index
    %670 = memref.load %arg5[%c337] : memref<384xf32, #tpu.memory_space<smem>>
    %671 = vector.broadcast %670 : f32 to vector<4x30xf32>
    %672 = arith.mulf %671, %456 : vector<4x30xf32>
    %673 = arith.addf %669, %672 : vector<4x30xf32>
    %c97 = arith.constant 97 : index
    %674 = memref.load %arg5[%c97] : memref<384xf32, #tpu.memory_space<smem>>
    %675 = vector.broadcast %674 : f32 to vector<4x30xf32>
    %676 = arith.mulf %675, %458 : vector<4x30xf32>
    %677 = arith.addf %673, %676 : vector<4x30xf32>
    %c225 = arith.constant 225 : index
    %678 = memref.load %arg5[%c225] : memref<384xf32, #tpu.memory_space<smem>>
    %679 = vector.broadcast %678 : f32 to vector<4x30xf32>
    %680 = arith.mulf %679, %385 : vector<4x30xf32>
    %681 = arith.addf %677, %680 : vector<4x30xf32>
    %c353 = arith.constant 353 : index
    %682 = memref.load %arg5[%c353] : memref<384xf32, #tpu.memory_space<smem>>
    %683 = vector.broadcast %682 : f32 to vector<4x30xf32>
    %684 = arith.mulf %683, %459 : vector<4x30xf32>
    %685 = arith.addf %681, %684 : vector<4x30xf32>
    %c113 = arith.constant 113 : index
    %686 = memref.load %arg5[%c113] : memref<384xf32, #tpu.memory_space<smem>>
    %687 = vector.broadcast %686 : f32 to vector<4x30xf32>
    %688 = arith.mulf %687, %461 : vector<4x30xf32>
    %689 = arith.addf %685, %688 : vector<4x30xf32>
    %c241 = arith.constant 241 : index
    %690 = memref.load %arg5[%c241] : memref<384xf32, #tpu.memory_space<smem>>
    %691 = vector.broadcast %690 : f32 to vector<4x30xf32>
    %692 = arith.mulf %691, %437 : vector<4x30xf32>
    %693 = arith.addf %689, %692 : vector<4x30xf32>
    %c369 = arith.constant 369 : index
    %694 = memref.load %arg5[%c369] : memref<384xf32, #tpu.memory_space<smem>>
    %695 = vector.broadcast %694 : f32 to vector<4x30xf32>
    %696 = arith.mulf %695, %462 : vector<4x30xf32>
    %697 = arith.addf %693, %696 : vector<4x30xf32>
    %c1_139 = arith.constant 1 : index
    %698 = memref.load %arg6[%c1_139] : memref<16xf32, #tpu.memory_space<smem>>
    %699 = vector.broadcast %698 : f32 to vector<4x30xf32>
    %700 = arith.addf %697, %699 : vector<4x30xf32>
    %cst_140 = arith.constant 0.00999999977 : f32
    %701 = vector.broadcast %cst_140 : f32 to vector<4x30xf32>
    %702 = arith.mulf %701, %700 : vector<4x30xf32>
    %703 = arith.maximumf %700, %702 : vector<4x30xf32>
    %cst_141 = arith.constant dense<0.000000e+00> : vector<4xf32>
    %704 = vector.multi_reduction <add>, %703, %cst_141 [1] : vector<4x30xf32> to vector<4xf32>
    %705 = vector.shape_cast %704 : vector<4xf32> to vector<4x1xf32>
    %cst_142 = arith.constant 3.000000e+01 : f32
    %706 = vector.broadcast %cst_142 : f32 to vector<4x1xf32>
    %707 = arith.divf %705, %706 : vector<4x1xf32>
    %cst_143 = arith.constant dense<0.000000e+00> : vector<1xf32>
    %708 = vector.multi_reduction <add>, %707, %cst_143 [0] : vector<4x1xf32> to vector<1xf32>
    %709 = vector.shape_cast %708 : vector<1xf32> to vector<1x1xf32>
    %cst_144 = arith.constant 4.000000e+00 : f32
    %710 = vector.broadcast %cst_144 : f32 to vector<1x1xf32>
    %711 = arith.divf %709, %710 : vector<1x1xf32>
    %712 = arith.mulf %703, %703 : vector<4x30xf32>
    %cst_145 = arith.constant dense<0.000000e+00> : vector<4xf32>
    %713 = vector.multi_reduction <add>, %712, %cst_145 [1] : vector<4x30xf32> to vector<4xf32>
    %714 = vector.shape_cast %713 : vector<4xf32> to vector<4x1xf32>
    %cst_146 = arith.constant 3.000000e+01 : f32
    %715 = vector.broadcast %cst_146 : f32 to vector<4x1xf32>
    %716 = arith.divf %714, %715 : vector<4x1xf32>
    %cst_147 = arith.constant dense<0.000000e+00> : vector<1xf32>
    %717 = vector.multi_reduction <add>, %716, %cst_147 [0] : vector<4x1xf32> to vector<1xf32>
    %718 = vector.shape_cast %717 : vector<1xf32> to vector<1x1xf32>
    %cst_148 = arith.constant 4.000000e+00 : f32
    %719 = vector.broadcast %cst_148 : f32 to vector<1x1xf32>
    %720 = arith.divf %718, %719 : vector<1x1xf32>
    %721 = arith.mulf %711, %711 : vector<1x1xf32>
    %722 = arith.subf %720, %721 : vector<1x1xf32>
    %cst_149 = arith.constant 0.000000e+00 : f32
    %723 = vector.broadcast %cst_149 : f32 to vector<1x1xf32>
    %724 = arith.maximumf %722, %723 : vector<1x1xf32>
    %c1_150 = arith.constant 1 : index
    %725 = memref.load %arg7[%c1_150] : memref<16xf32, #tpu.memory_space<smem>>
    %c1_151 = arith.constant 1 : index
    %726 = memref.load %arg8[%c1_151] : memref<16xf32, #tpu.memory_space<smem>>
    %cst_152 = arith.constant 9.99999974E-6 : f32
    %727 = vector.broadcast %cst_152 : f32 to vector<1x1xf32>
    %728 = arith.addf %724, %727 : vector<1x1xf32>
    %729 = math.rsqrt %728 : vector<1x1xf32>
    %730 = vector.broadcast %725 : f32 to vector<1x1xf32>
    %731 = arith.mulf %730, %729 : vector<1x1xf32>
    %732 = arith.mulf %711, %731 : vector<1x1xf32>
    %733 = vector.broadcast %726 : f32 to vector<1x1xf32>
    %734 = arith.subf %733, %732 : vector<1x1xf32>
    %735 = vector.broadcast %731 : vector<1x1xf32> to vector<4x30xf32>
    %736 = arith.mulf %703, %735 : vector<4x30xf32>
    %737 = vector.broadcast %734 : vector<1x1xf32> to vector<4x30xf32>
    %738 = arith.addf %736, %737 : vector<4x30xf32>
    %cst_153 = arith.constant 0.000000e+00 : f32
    %739 = vector.broadcast %cst_153 : f32 to vector<4x30xf32>
    %c2_154 = arith.constant 2 : index
    %740 = memref.load %arg5[%c2_154] : memref<384xf32, #tpu.memory_space<smem>>
    %741 = vector.broadcast %740 : f32 to vector<4x30xf32>
    %742 = arith.mulf %741, %440 : vector<4x30xf32>
    %743 = arith.addf %739, %742 : vector<4x30xf32>
    %c130 = arith.constant 130 : index
    %744 = memref.load %arg5[%c130] : memref<384xf32, #tpu.memory_space<smem>>
    %745 = vector.broadcast %744 : f32 to vector<4x30xf32>
    %746 = arith.mulf %745, %73 : vector<4x30xf32>
    %747 = arith.addf %743, %746 : vector<4x30xf32>
    %c258 = arith.constant 258 : index
    %748 = memref.load %arg5[%c258] : memref<384xf32, #tpu.memory_space<smem>>
    %749 = vector.broadcast %748 : f32 to vector<4x30xf32>
    %750 = arith.mulf %749, %441 : vector<4x30xf32>
    %751 = arith.addf %747, %750 : vector<4x30xf32>
    %c18_155 = arith.constant 18 : index
    %752 = memref.load %arg5[%c18_155] : memref<384xf32, #tpu.memory_space<smem>>
    %753 = vector.broadcast %752 : f32 to vector<4x30xf32>
    %754 = arith.mulf %753, %443 : vector<4x30xf32>
    %755 = arith.addf %751, %754 : vector<4x30xf32>
    %c146 = arith.constant 146 : index
    %756 = memref.load %arg5[%c146] : memref<384xf32, #tpu.memory_space<smem>>
    %757 = vector.broadcast %756 : f32 to vector<4x30xf32>
    %758 = arith.mulf %757, %125 : vector<4x30xf32>
    %759 = arith.addf %755, %758 : vector<4x30xf32>
    %c274 = arith.constant 274 : index
    %760 = memref.load %arg5[%c274] : memref<384xf32, #tpu.memory_space<smem>>
    %761 = vector.broadcast %760 : f32 to vector<4x30xf32>
    %762 = arith.mulf %761, %444 : vector<4x30xf32>
    %763 = arith.addf %759, %762 : vector<4x30xf32>
    %c34 = arith.constant 34 : index
    %764 = memref.load %arg5[%c34] : memref<384xf32, #tpu.memory_space<smem>>
    %765 = vector.broadcast %764 : f32 to vector<4x30xf32>
    %766 = arith.mulf %765, %446 : vector<4x30xf32>
    %767 = arith.addf %763, %766 : vector<4x30xf32>
    %c162 = arith.constant 162 : index
    %768 = memref.load %arg5[%c162] : memref<384xf32, #tpu.memory_space<smem>>
    %769 = vector.broadcast %768 : f32 to vector<4x30xf32>
    %770 = arith.mulf %769, %177 : vector<4x30xf32>
    %771 = arith.addf %767, %770 : vector<4x30xf32>
    %c290 = arith.constant 290 : index
    %772 = memref.load %arg5[%c290] : memref<384xf32, #tpu.memory_space<smem>>
    %773 = vector.broadcast %772 : f32 to vector<4x30xf32>
    %774 = arith.mulf %773, %447 : vector<4x30xf32>
    %775 = arith.addf %771, %774 : vector<4x30xf32>
    %c50 = arith.constant 50 : index
    %776 = memref.load %arg5[%c50] : memref<384xf32, #tpu.memory_space<smem>>
    %777 = vector.broadcast %776 : f32 to vector<4x30xf32>
    %778 = arith.mulf %777, %449 : vector<4x30xf32>
    %779 = arith.addf %775, %778 : vector<4x30xf32>
    %c178 = arith.constant 178 : index
    %780 = memref.load %arg5[%c178] : memref<384xf32, #tpu.memory_space<smem>>
    %781 = vector.broadcast %780 : f32 to vector<4x30xf32>
    %782 = arith.mulf %781, %229 : vector<4x30xf32>
    %783 = arith.addf %779, %782 : vector<4x30xf32>
    %c306 = arith.constant 306 : index
    %784 = memref.load %arg5[%c306] : memref<384xf32, #tpu.memory_space<smem>>
    %785 = vector.broadcast %784 : f32 to vector<4x30xf32>
    %786 = arith.mulf %785, %450 : vector<4x30xf32>
    %787 = arith.addf %783, %786 : vector<4x30xf32>
    %c66 = arith.constant 66 : index
    %788 = memref.load %arg5[%c66] : memref<384xf32, #tpu.memory_space<smem>>
    %789 = vector.broadcast %788 : f32 to vector<4x30xf32>
    %790 = arith.mulf %789, %452 : vector<4x30xf32>
    %791 = arith.addf %787, %790 : vector<4x30xf32>
    %c194 = arith.constant 194 : index
    %792 = memref.load %arg5[%c194] : memref<384xf32, #tpu.memory_space<smem>>
    %793 = vector.broadcast %792 : f32 to vector<4x30xf32>
    %794 = arith.mulf %793, %281 : vector<4x30xf32>
    %795 = arith.addf %791, %794 : vector<4x30xf32>
    %c322 = arith.constant 322 : index
    %796 = memref.load %arg5[%c322] : memref<384xf32, #tpu.memory_space<smem>>
    %797 = vector.broadcast %796 : f32 to vector<4x30xf32>
    %798 = arith.mulf %797, %453 : vector<4x30xf32>
    %799 = arith.addf %795, %798 : vector<4x30xf32>
    %c82 = arith.constant 82 : index
    %800 = memref.load %arg5[%c82] : memref<384xf32, #tpu.memory_space<smem>>
    %801 = vector.broadcast %800 : f32 to vector<4x30xf32>
    %802 = arith.mulf %801, %455 : vector<4x30xf32>
    %803 = arith.addf %799, %802 : vector<4x30xf32>
    %c210 = arith.constant 210 : index
    %804 = memref.load %arg5[%c210] : memref<384xf32, #tpu.memory_space<smem>>
    %805 = vector.broadcast %804 : f32 to vector<4x30xf32>
    %806 = arith.mulf %805, %333 : vector<4x30xf32>
    %807 = arith.addf %803, %806 : vector<4x30xf32>
    %c338 = arith.constant 338 : index
    %808 = memref.load %arg5[%c338] : memref<384xf32, #tpu.memory_space<smem>>
    %809 = vector.broadcast %808 : f32 to vector<4x30xf32>
    %810 = arith.mulf %809, %456 : vector<4x30xf32>
    %811 = arith.addf %807, %810 : vector<4x30xf32>
    %c98 = arith.constant 98 : index
    %812 = memref.load %arg5[%c98] : memref<384xf32, #tpu.memory_space<smem>>
    %813 = vector.broadcast %812 : f32 to vector<4x30xf32>
    %814 = arith.mulf %813, %458 : vector<4x30xf32>
    %815 = arith.addf %811, %814 : vector<4x30xf32>
    %c226 = arith.constant 226 : index
    %816 = memref.load %arg5[%c226] : memref<384xf32, #tpu.memory_space<smem>>
    %817 = vector.broadcast %816 : f32 to vector<4x30xf32>
    %818 = arith.mulf %817, %385 : vector<4x30xf32>
    %819 = arith.addf %815, %818 : vector<4x30xf32>
    %c354 = arith.constant 354 : index
    %820 = memref.load %arg5[%c354] : memref<384xf32, #tpu.memory_space<smem>>
    %821 = vector.broadcast %820 : f32 to vector<4x30xf32>
    %822 = arith.mulf %821, %459 : vector<4x30xf32>
    %823 = arith.addf %819, %822 : vector<4x30xf32>
    %c114 = arith.constant 114 : index
    %824 = memref.load %arg5[%c114] : memref<384xf32, #tpu.memory_space<smem>>
    %825 = vector.broadcast %824 : f32 to vector<4x30xf32>
    %826 = arith.mulf %825, %461 : vector<4x30xf32>
    %827 = arith.addf %823, %826 : vector<4x30xf32>
    %c242 = arith.constant 242 : index
    %828 = memref.load %arg5[%c242] : memref<384xf32, #tpu.memory_space<smem>>
    %829 = vector.broadcast %828 : f32 to vector<4x30xf32>
    %830 = arith.mulf %829, %437 : vector<4x30xf32>
    %831 = arith.addf %827, %830 : vector<4x30xf32>
    %c370 = arith.constant 370 : index
    %832 = memref.load %arg5[%c370] : memref<384xf32, #tpu.memory_space<smem>>
    %833 = vector.broadcast %832 : f32 to vector<4x30xf32>
    %834 = arith.mulf %833, %462 : vector<4x30xf32>
    %835 = arith.addf %831, %834 : vector<4x30xf32>
    %c2_156 = arith.constant 2 : index
    %836 = memref.load %arg6[%c2_156] : memref<16xf32, #tpu.memory_space<smem>>
    %837 = vector.broadcast %836 : f32 to vector<4x30xf32>
    %838 = arith.addf %835, %837 : vector<4x30xf32>
    %cst_157 = arith.constant 0.00999999977 : f32
    %839 = vector.broadcast %cst_157 : f32 to vector<4x30xf32>
    %840 = arith.mulf %839, %838 : vector<4x30xf32>
    %841 = arith.maximumf %838, %840 : vector<4x30xf32>
    %cst_158 = arith.constant dense<0.000000e+00> : vector<4xf32>
    %842 = vector.multi_reduction <add>, %841, %cst_158 [1] : vector<4x30xf32> to vector<4xf32>
    %843 = vector.shape_cast %842 : vector<4xf32> to vector<4x1xf32>
    %cst_159 = arith.constant 3.000000e+01 : f32
    %844 = vector.broadcast %cst_159 : f32 to vector<4x1xf32>
    %845 = arith.divf %843, %844 : vector<4x1xf32>
    %cst_160 = arith.constant dense<0.000000e+00> : vector<1xf32>
    %846 = vector.multi_reduction <add>, %845, %cst_160 [0] : vector<4x1xf32> to vector<1xf32>
    %847 = vector.shape_cast %846 : vector<1xf32> to vector<1x1xf32>
    %cst_161 = arith.constant 4.000000e+00 : f32
    %848 = vector.broadcast %cst_161 : f32 to vector<1x1xf32>
    %849 = arith.divf %847, %848 : vector<1x1xf32>
    %850 = arith.mulf %841, %841 : vector<4x30xf32>
    %cst_162 = arith.constant dense<0.000000e+00> : vector<4xf32>
    %851 = vector.multi_reduction <add>, %850, %cst_162 [1] : vector<4x30xf32> to vector<4xf32>
    %852 = vector.shape_cast %851 : vector<4xf32> to vector<4x1xf32>
    %cst_163 = arith.constant 3.000000e+01 : f32
    %853 = vector.broadcast %cst_163 : f32 to vector<4x1xf32>
    %854 = arith.divf %852, %853 : vector<4x1xf32>
    %cst_164 = arith.constant dense<0.000000e+00> : vector<1xf32>
    %855 = vector.multi_reduction <add>, %854, %cst_164 [0] : vector<4x1xf32> to vector<1xf32>
    %856 = vector.shape_cast %855 : vector<1xf32> to vector<1x1xf32>
    %cst_165 = arith.constant 4.000000e+00 : f32
    %857 = vector.broadcast %cst_165 : f32 to vector<1x1xf32>
    %858 = arith.divf %856, %857 : vector<1x1xf32>
    %859 = arith.mulf %849, %849 : vector<1x1xf32>
    %860 = arith.subf %858, %859 : vector<1x1xf32>
    %cst_166 = arith.constant 0.000000e+00 : f32
    %861 = vector.broadcast %cst_166 : f32 to vector<1x1xf32>
    %862 = arith.maximumf %860, %861 : vector<1x1xf32>
    %c2_167 = arith.constant 2 : index
    %863 = memref.load %arg7[%c2_167] : memref<16xf32, #tpu.memory_space<smem>>
    %c2_168 = arith.constant 2 : index
    %864 = memref.load %arg8[%c2_168] : memref<16xf32, #tpu.memory_space<smem>>
    %cst_169 = arith.constant 9.99999974E-6 : f32
    %865 = vector.broadcast %cst_169 : f32 to vector<1x1xf32>
    %866 = arith.addf %862, %865 : vector<1x1xf32>
    %867 = math.rsqrt %866 : vector<1x1xf32>
    %868 = vector.broadcast %863 : f32 to vector<1x1xf32>
    %869 = arith.mulf %868, %867 : vector<1x1xf32>
    %870 = arith.mulf %849, %869 : vector<1x1xf32>
    %871 = vector.broadcast %864 : f32 to vector<1x1xf32>
    %872 = arith.subf %871, %870 : vector<1x1xf32>
    %873 = vector.broadcast %869 : vector<1x1xf32> to vector<4x30xf32>
    %874 = arith.mulf %841, %873 : vector<4x30xf32>
    %875 = vector.broadcast %872 : vector<1x1xf32> to vector<4x30xf32>
    %876 = arith.addf %874, %875 : vector<4x30xf32>
    %cst_170 = arith.constant 0.000000e+00 : f32
    %877 = vector.broadcast %cst_170 : f32 to vector<4x30xf32>
    %c3_171 = arith.constant 3 : index
    %878 = memref.load %arg5[%c3_171] : memref<384xf32, #tpu.memory_space<smem>>
    %879 = vector.broadcast %878 : f32 to vector<4x30xf32>
    %880 = arith.mulf %879, %440 : vector<4x30xf32>
    %881 = arith.addf %877, %880 : vector<4x30xf32>
    %c131 = arith.constant 131 : index
    %882 = memref.load %arg5[%c131] : memref<384xf32, #tpu.memory_space<smem>>
    %883 = vector.broadcast %882 : f32 to vector<4x30xf32>
    %884 = arith.mulf %883, %73 : vector<4x30xf32>
    %885 = arith.addf %881, %884 : vector<4x30xf32>
    %c259 = arith.constant 259 : index
    %886 = memref.load %arg5[%c259] : memref<384xf32, #tpu.memory_space<smem>>
    %887 = vector.broadcast %886 : f32 to vector<4x30xf32>
    %888 = arith.mulf %887, %441 : vector<4x30xf32>
    %889 = arith.addf %885, %888 : vector<4x30xf32>
    %c19_172 = arith.constant 19 : index
    %890 = memref.load %arg5[%c19_172] : memref<384xf32, #tpu.memory_space<smem>>
    %891 = vector.broadcast %890 : f32 to vector<4x30xf32>
    %892 = arith.mulf %891, %443 : vector<4x30xf32>
    %893 = arith.addf %889, %892 : vector<4x30xf32>
    %c147 = arith.constant 147 : index
    %894 = memref.load %arg5[%c147] : memref<384xf32, #tpu.memory_space<smem>>
    %895 = vector.broadcast %894 : f32 to vector<4x30xf32>
    %896 = arith.mulf %895, %125 : vector<4x30xf32>
    %897 = arith.addf %893, %896 : vector<4x30xf32>
    %c275 = arith.constant 275 : index
    %898 = memref.load %arg5[%c275] : memref<384xf32, #tpu.memory_space<smem>>
    %899 = vector.broadcast %898 : f32 to vector<4x30xf32>
    %900 = arith.mulf %899, %444 : vector<4x30xf32>
    %901 = arith.addf %897, %900 : vector<4x30xf32>
    %c35 = arith.constant 35 : index
    %902 = memref.load %arg5[%c35] : memref<384xf32, #tpu.memory_space<smem>>
    %903 = vector.broadcast %902 : f32 to vector<4x30xf32>
    %904 = arith.mulf %903, %446 : vector<4x30xf32>
    %905 = arith.addf %901, %904 : vector<4x30xf32>
    %c163 = arith.constant 163 : index
    %906 = memref.load %arg5[%c163] : memref<384xf32, #tpu.memory_space<smem>>
    %907 = vector.broadcast %906 : f32 to vector<4x30xf32>
    %908 = arith.mulf %907, %177 : vector<4x30xf32>
    %909 = arith.addf %905, %908 : vector<4x30xf32>
    %c291 = arith.constant 291 : index
    %910 = memref.load %arg5[%c291] : memref<384xf32, #tpu.memory_space<smem>>
    %911 = vector.broadcast %910 : f32 to vector<4x30xf32>
    %912 = arith.mulf %911, %447 : vector<4x30xf32>
    %913 = arith.addf %909, %912 : vector<4x30xf32>
    %c51 = arith.constant 51 : index
    %914 = memref.load %arg5[%c51] : memref<384xf32, #tpu.memory_space<smem>>
    %915 = vector.broadcast %914 : f32 to vector<4x30xf32>
    %916 = arith.mulf %915, %449 : vector<4x30xf32>
    %917 = arith.addf %913, %916 : vector<4x30xf32>
    %c179 = arith.constant 179 : index
    %918 = memref.load %arg5[%c179] : memref<384xf32, #tpu.memory_space<smem>>
    %919 = vector.broadcast %918 : f32 to vector<4x30xf32>
    %920 = arith.mulf %919, %229 : vector<4x30xf32>
    %921 = arith.addf %917, %920 : vector<4x30xf32>
    %c307 = arith.constant 307 : index
    %922 = memref.load %arg5[%c307] : memref<384xf32, #tpu.memory_space<smem>>
    %923 = vector.broadcast %922 : f32 to vector<4x30xf32>
    %924 = arith.mulf %923, %450 : vector<4x30xf32>
    %925 = arith.addf %921, %924 : vector<4x30xf32>
    %c67 = arith.constant 67 : index
    %926 = memref.load %arg5[%c67] : memref<384xf32, #tpu.memory_space<smem>>
    %927 = vector.broadcast %926 : f32 to vector<4x30xf32>
    %928 = arith.mulf %927, %452 : vector<4x30xf32>
    %929 = arith.addf %925, %928 : vector<4x30xf32>
    %c195 = arith.constant 195 : index
    %930 = memref.load %arg5[%c195] : memref<384xf32, #tpu.memory_space<smem>>
    %931 = vector.broadcast %930 : f32 to vector<4x30xf32>
    %932 = arith.mulf %931, %281 : vector<4x30xf32>
    %933 = arith.addf %929, %932 : vector<4x30xf32>
    %c323 = arith.constant 323 : index
    %934 = memref.load %arg5[%c323] : memref<384xf32, #tpu.memory_space<smem>>
    %935 = vector.broadcast %934 : f32 to vector<4x30xf32>
    %936 = arith.mulf %935, %453 : vector<4x30xf32>
    %937 = arith.addf %933, %936 : vector<4x30xf32>
    %c83 = arith.constant 83 : index
    %938 = memref.load %arg5[%c83] : memref<384xf32, #tpu.memory_space<smem>>
    %939 = vector.broadcast %938 : f32 to vector<4x30xf32>
    %940 = arith.mulf %939, %455 : vector<4x30xf32>
    %941 = arith.addf %937, %940 : vector<4x30xf32>
    %c211 = arith.constant 211 : index
    %942 = memref.load %arg5[%c211] : memref<384xf32, #tpu.memory_space<smem>>
    %943 = vector.broadcast %942 : f32 to vector<4x30xf32>
    %944 = arith.mulf %943, %333 : vector<4x30xf32>
    %945 = arith.addf %941, %944 : vector<4x30xf32>
    %c339 = arith.constant 339 : index
    %946 = memref.load %arg5[%c339] : memref<384xf32, #tpu.memory_space<smem>>
    %947 = vector.broadcast %946 : f32 to vector<4x30xf32>
    %948 = arith.mulf %947, %456 : vector<4x30xf32>
    %949 = arith.addf %945, %948 : vector<4x30xf32>
    %c99 = arith.constant 99 : index
    %950 = memref.load %arg5[%c99] : memref<384xf32, #tpu.memory_space<smem>>
    %951 = vector.broadcast %950 : f32 to vector<4x30xf32>
    %952 = arith.mulf %951, %458 : vector<4x30xf32>
    %953 = arith.addf %949, %952 : vector<4x30xf32>
    %c227 = arith.constant 227 : index
    %954 = memref.load %arg5[%c227] : memref<384xf32, #tpu.memory_space<smem>>
    %955 = vector.broadcast %954 : f32 to vector<4x30xf32>
    %956 = arith.mulf %955, %385 : vector<4x30xf32>
    %957 = arith.addf %953, %956 : vector<4x30xf32>
    %c355 = arith.constant 355 : index
    %958 = memref.load %arg5[%c355] : memref<384xf32, #tpu.memory_space<smem>>
    %959 = vector.broadcast %958 : f32 to vector<4x30xf32>
    %960 = arith.mulf %959, %459 : vector<4x30xf32>
    %961 = arith.addf %957, %960 : vector<4x30xf32>
    %c115 = arith.constant 115 : index
    %962 = memref.load %arg5[%c115] : memref<384xf32, #tpu.memory_space<smem>>
    %963 = vector.broadcast %962 : f32 to vector<4x30xf32>
    %964 = arith.mulf %963, %461 : vector<4x30xf32>
    %965 = arith.addf %961, %964 : vector<4x30xf32>
    %c243 = arith.constant 243 : index
    %966 = memref.load %arg5[%c243] : memref<384xf32, #tpu.memory_space<smem>>
    %967 = vector.broadcast %966 : f32 to vector<4x30xf32>
    %968 = arith.mulf %967, %437 : vector<4x30xf32>
    %969 = arith.addf %965, %968 : vector<4x30xf32>
    %c371 = arith.constant 371 : index
    %970 = memref.load %arg5[%c371] : memref<384xf32, #tpu.memory_space<smem>>
    %971 = vector.broadcast %970 : f32 to vector<4x30xf32>
    %972 = arith.mulf %971, %462 : vector<4x30xf32>
    %973 = arith.addf %969, %972 : vector<4x30xf32>
    %c3_173 = arith.constant 3 : index
    %974 = memref.load %arg6[%c3_173] : memref<16xf32, #tpu.memory_space<smem>>
    %975 = vector.broadcast %974 : f32 to vector<4x30xf32>
    %976 = arith.addf %973, %975 : vector<4x30xf32>
    %cst_174 = arith.constant 0.00999999977 : f32
    %977 = vector.broadcast %cst_174 : f32 to vector<4x30xf32>
    %978 = arith.mulf %977, %976 : vector<4x30xf32>
    %979 = arith.maximumf %976, %978 : vector<4x30xf32>
    %cst_175 = arith.constant dense<0.000000e+00> : vector<4xf32>
    %980 = vector.multi_reduction <add>, %979, %cst_175 [1] : vector<4x30xf32> to vector<4xf32>
    %981 = vector.shape_cast %980 : vector<4xf32> to vector<4x1xf32>
    %cst_176 = arith.constant 3.000000e+01 : f32
    %982 = vector.broadcast %cst_176 : f32 to vector<4x1xf32>
    %983 = arith.divf %981, %982 : vector<4x1xf32>
    %cst_177 = arith.constant dense<0.000000e+00> : vector<1xf32>
    %984 = vector.multi_reduction <add>, %983, %cst_177 [0] : vector<4x1xf32> to vector<1xf32>
    %985 = vector.shape_cast %984 : vector<1xf32> to vector<1x1xf32>
    %cst_178 = arith.constant 4.000000e+00 : f32
    %986 = vector.broadcast %cst_178 : f32 to vector<1x1xf32>
    %987 = arith.divf %985, %986 : vector<1x1xf32>
    %988 = arith.mulf %979, %979 : vector<4x30xf32>
    %cst_179 = arith.constant dense<0.000000e+00> : vector<4xf32>
    %989 = vector.multi_reduction <add>, %988, %cst_179 [1] : vector<4x30xf32> to vector<4xf32>
    %990 = vector.shape_cast %989 : vector<4xf32> to vector<4x1xf32>
    %cst_180 = arith.constant 3.000000e+01 : f32
    %991 = vector.broadcast %cst_180 : f32 to vector<4x1xf32>
    %992 = arith.divf %990, %991 : vector<4x1xf32>
    %cst_181 = arith.constant dense<0.000000e+00> : vector<1xf32>
    %993 = vector.multi_reduction <add>, %992, %cst_181 [0] : vector<4x1xf32> to vector<1xf32>
    %994 = vector.shape_cast %993 : vector<1xf32> to vector<1x1xf32>
    %cst_182 = arith.constant 4.000000e+00 : f32
    %995 = vector.broadcast %cst_182 : f32 to vector<1x1xf32>
    %996 = arith.divf %994, %995 : vector<1x1xf32>
    %997 = arith.mulf %987, %987 : vector<1x1xf32>
    %998 = arith.subf %996, %997 : vector<1x1xf32>
    %cst_183 = arith.constant 0.000000e+00 : f32
    %999 = vector.broadcast %cst_183 : f32 to vector<1x1xf32>
    %1000 = arith.maximumf %998, %999 : vector<1x1xf32>
    %c3_184 = arith.constant 3 : index
    %1001 = memref.load %arg7[%c3_184] : memref<16xf32, #tpu.memory_space<smem>>
    %c3_185 = arith.constant 3 : index
    %1002 = memref.load %arg8[%c3_185] : memref<16xf32, #tpu.memory_space<smem>>
    %cst_186 = arith.constant 9.99999974E-6 : f32
    %1003 = vector.broadcast %cst_186 : f32 to vector<1x1xf32>
    %1004 = arith.addf %1000, %1003 : vector<1x1xf32>
    %1005 = math.rsqrt %1004 : vector<1x1xf32>
    %1006 = vector.broadcast %1001 : f32 to vector<1x1xf32>
    %1007 = arith.mulf %1006, %1005 : vector<1x1xf32>
    %1008 = arith.mulf %987, %1007 : vector<1x1xf32>
    %1009 = vector.broadcast %1002 : f32 to vector<1x1xf32>
    %1010 = arith.subf %1009, %1008 : vector<1x1xf32>
    %1011 = vector.broadcast %1007 : vector<1x1xf32> to vector<4x30xf32>
    %1012 = arith.mulf %979, %1011 : vector<4x30xf32>
    %1013 = vector.broadcast %1010 : vector<1x1xf32> to vector<4x30xf32>
    %1014 = arith.addf %1012, %1013 : vector<4x30xf32>
    %cst_187 = arith.constant 0.000000e+00 : f32
    %1015 = vector.broadcast %cst_187 : f32 to vector<4x30xf32>
    %c4_188 = arith.constant 4 : index
    %1016 = memref.load %arg5[%c4_188] : memref<384xf32, #tpu.memory_space<smem>>
    %1017 = vector.broadcast %1016 : f32 to vector<4x30xf32>
    %1018 = arith.mulf %1017, %440 : vector<4x30xf32>
    %1019 = arith.addf %1015, %1018 : vector<4x30xf32>
    %c132 = arith.constant 132 : index
    %1020 = memref.load %arg5[%c132] : memref<384xf32, #tpu.memory_space<smem>>
    %1021 = vector.broadcast %1020 : f32 to vector<4x30xf32>
    %1022 = arith.mulf %1021, %73 : vector<4x30xf32>
    %1023 = arith.addf %1019, %1022 : vector<4x30xf32>
    %c260 = arith.constant 260 : index
    %1024 = memref.load %arg5[%c260] : memref<384xf32, #tpu.memory_space<smem>>
    %1025 = vector.broadcast %1024 : f32 to vector<4x30xf32>
    %1026 = arith.mulf %1025, %441 : vector<4x30xf32>
    %1027 = arith.addf %1023, %1026 : vector<4x30xf32>
    %c20_189 = arith.constant 20 : index
    %1028 = memref.load %arg5[%c20_189] : memref<384xf32, #tpu.memory_space<smem>>
    %1029 = vector.broadcast %1028 : f32 to vector<4x30xf32>
    %1030 = arith.mulf %1029, %443 : vector<4x30xf32>
    %1031 = arith.addf %1027, %1030 : vector<4x30xf32>
    %c148 = arith.constant 148 : index
    %1032 = memref.load %arg5[%c148] : memref<384xf32, #tpu.memory_space<smem>>
    %1033 = vector.broadcast %1032 : f32 to vector<4x30xf32>
    %1034 = arith.mulf %1033, %125 : vector<4x30xf32>
    %1035 = arith.addf %1031, %1034 : vector<4x30xf32>
    %c276 = arith.constant 276 : index
    %1036 = memref.load %arg5[%c276] : memref<384xf32, #tpu.memory_space<smem>>
    %1037 = vector.broadcast %1036 : f32 to vector<4x30xf32>
    %1038 = arith.mulf %1037, %444 : vector<4x30xf32>
    %1039 = arith.addf %1035, %1038 : vector<4x30xf32>
    %c36 = arith.constant 36 : index
    %1040 = memref.load %arg5[%c36] : memref<384xf32, #tpu.memory_space<smem>>
    %1041 = vector.broadcast %1040 : f32 to vector<4x30xf32>
    %1042 = arith.mulf %1041, %446 : vector<4x30xf32>
    %1043 = arith.addf %1039, %1042 : vector<4x30xf32>
    %c164 = arith.constant 164 : index
    %1044 = memref.load %arg5[%c164] : memref<384xf32, #tpu.memory_space<smem>>
    %1045 = vector.broadcast %1044 : f32 to vector<4x30xf32>
    %1046 = arith.mulf %1045, %177 : vector<4x30xf32>
    %1047 = arith.addf %1043, %1046 : vector<4x30xf32>
    %c292 = arith.constant 292 : index
    %1048 = memref.load %arg5[%c292] : memref<384xf32, #tpu.memory_space<smem>>
    %1049 = vector.broadcast %1048 : f32 to vector<4x30xf32>
    %1050 = arith.mulf %1049, %447 : vector<4x30xf32>
    %1051 = arith.addf %1047, %1050 : vector<4x30xf32>
    %c52 = arith.constant 52 : index
    %1052 = memref.load %arg5[%c52] : memref<384xf32, #tpu.memory_space<smem>>
    %1053 = vector.broadcast %1052 : f32 to vector<4x30xf32>
    %1054 = arith.mulf %1053, %449 : vector<4x30xf32>
    %1055 = arith.addf %1051, %1054 : vector<4x30xf32>
    %c180 = arith.constant 180 : index
    %1056 = memref.load %arg5[%c180] : memref<384xf32, #tpu.memory_space<smem>>
    %1057 = vector.broadcast %1056 : f32 to vector<4x30xf32>
    %1058 = arith.mulf %1057, %229 : vector<4x30xf32>
    %1059 = arith.addf %1055, %1058 : vector<4x30xf32>
    %c308 = arith.constant 308 : index
    %1060 = memref.load %arg5[%c308] : memref<384xf32, #tpu.memory_space<smem>>
    %1061 = vector.broadcast %1060 : f32 to vector<4x30xf32>
    %1062 = arith.mulf %1061, %450 : vector<4x30xf32>
    %1063 = arith.addf %1059, %1062 : vector<4x30xf32>
    %c68 = arith.constant 68 : index
    %1064 = memref.load %arg5[%c68] : memref<384xf32, #tpu.memory_space<smem>>
    %1065 = vector.broadcast %1064 : f32 to vector<4x30xf32>
    %1066 = arith.mulf %1065, %452 : vector<4x30xf32>
    %1067 = arith.addf %1063, %1066 : vector<4x30xf32>
    %c196 = arith.constant 196 : index
    %1068 = memref.load %arg5[%c196] : memref<384xf32, #tpu.memory_space<smem>>
    %1069 = vector.broadcast %1068 : f32 to vector<4x30xf32>
    %1070 = arith.mulf %1069, %281 : vector<4x30xf32>
    %1071 = arith.addf %1067, %1070 : vector<4x30xf32>
    %c324 = arith.constant 324 : index
    %1072 = memref.load %arg5[%c324] : memref<384xf32, #tpu.memory_space<smem>>
    %1073 = vector.broadcast %1072 : f32 to vector<4x30xf32>
    %1074 = arith.mulf %1073, %453 : vector<4x30xf32>
    %1075 = arith.addf %1071, %1074 : vector<4x30xf32>
    %c84 = arith.constant 84 : index
    %1076 = memref.load %arg5[%c84] : memref<384xf32, #tpu.memory_space<smem>>
    %1077 = vector.broadcast %1076 : f32 to vector<4x30xf32>
    %1078 = arith.mulf %1077, %455 : vector<4x30xf32>
    %1079 = arith.addf %1075, %1078 : vector<4x30xf32>
    %c212 = arith.constant 212 : index
    %1080 = memref.load %arg5[%c212] : memref<384xf32, #tpu.memory_space<smem>>
    %1081 = vector.broadcast %1080 : f32 to vector<4x30xf32>
    %1082 = arith.mulf %1081, %333 : vector<4x30xf32>
    %1083 = arith.addf %1079, %1082 : vector<4x30xf32>
    %c340 = arith.constant 340 : index
    %1084 = memref.load %arg5[%c340] : memref<384xf32, #tpu.memory_space<smem>>
    %1085 = vector.broadcast %1084 : f32 to vector<4x30xf32>
    %1086 = arith.mulf %1085, %456 : vector<4x30xf32>
    %1087 = arith.addf %1083, %1086 : vector<4x30xf32>
    %c100 = arith.constant 100 : index
    %1088 = memref.load %arg5[%c100] : memref<384xf32, #tpu.memory_space<smem>>
    %1089 = vector.broadcast %1088 : f32 to vector<4x30xf32>
    %1090 = arith.mulf %1089, %458 : vector<4x30xf32>
    %1091 = arith.addf %1087, %1090 : vector<4x30xf32>
    %c228 = arith.constant 228 : index
    %1092 = memref.load %arg5[%c228] : memref<384xf32, #tpu.memory_space<smem>>
    %1093 = vector.broadcast %1092 : f32 to vector<4x30xf32>
    %1094 = arith.mulf %1093, %385 : vector<4x30xf32>
    %1095 = arith.addf %1091, %1094 : vector<4x30xf32>
    %c356 = arith.constant 356 : index
    %1096 = memref.load %arg5[%c356] : memref<384xf32, #tpu.memory_space<smem>>
    %1097 = vector.broadcast %1096 : f32 to vector<4x30xf32>
    %1098 = arith.mulf %1097, %459 : vector<4x30xf32>
    %1099 = arith.addf %1095, %1098 : vector<4x30xf32>
    %c116 = arith.constant 116 : index
    %1100 = memref.load %arg5[%c116] : memref<384xf32, #tpu.memory_space<smem>>
    %1101 = vector.broadcast %1100 : f32 to vector<4x30xf32>
    %1102 = arith.mulf %1101, %461 : vector<4x30xf32>
    %1103 = arith.addf %1099, %1102 : vector<4x30xf32>
    %c244 = arith.constant 244 : index
    %1104 = memref.load %arg5[%c244] : memref<384xf32, #tpu.memory_space<smem>>
    %1105 = vector.broadcast %1104 : f32 to vector<4x30xf32>
    %1106 = arith.mulf %1105, %437 : vector<4x30xf32>
    %1107 = arith.addf %1103, %1106 : vector<4x30xf32>
    %c372 = arith.constant 372 : index
    %1108 = memref.load %arg5[%c372] : memref<384xf32, #tpu.memory_space<smem>>
    %1109 = vector.broadcast %1108 : f32 to vector<4x30xf32>
    %1110 = arith.mulf %1109, %462 : vector<4x30xf32>
    %1111 = arith.addf %1107, %1110 : vector<4x30xf32>
    %c4_190 = arith.constant 4 : index
    %1112 = memref.load %arg6[%c4_190] : memref<16xf32, #tpu.memory_space<smem>>
    %1113 = vector.broadcast %1112 : f32 to vector<4x30xf32>
    %1114 = arith.addf %1111, %1113 : vector<4x30xf32>
    %cst_191 = arith.constant 0.00999999977 : f32
    %1115 = vector.broadcast %cst_191 : f32 to vector<4x30xf32>
    %1116 = arith.mulf %1115, %1114 : vector<4x30xf32>
    %1117 = arith.maximumf %1114, %1116 : vector<4x30xf32>
    %cst_192 = arith.constant dense<0.000000e+00> : vector<4xf32>
    %1118 = vector.multi_reduction <add>, %1117, %cst_192 [1] : vector<4x30xf32> to vector<4xf32>
    %1119 = vector.shape_cast %1118 : vector<4xf32> to vector<4x1xf32>
    %cst_193 = arith.constant 3.000000e+01 : f32
    %1120 = vector.broadcast %cst_193 : f32 to vector<4x1xf32>
    %1121 = arith.divf %1119, %1120 : vector<4x1xf32>
    %cst_194 = arith.constant dense<0.000000e+00> : vector<1xf32>
    %1122 = vector.multi_reduction <add>, %1121, %cst_194 [0] : vector<4x1xf32> to vector<1xf32>
    %1123 = vector.shape_cast %1122 : vector<1xf32> to vector<1x1xf32>
    %cst_195 = arith.constant 4.000000e+00 : f32
    %1124 = vector.broadcast %cst_195 : f32 to vector<1x1xf32>
    %1125 = arith.divf %1123, %1124 : vector<1x1xf32>
    %1126 = arith.mulf %1117, %1117 : vector<4x30xf32>
    %cst_196 = arith.constant dense<0.000000e+00> : vector<4xf32>
    %1127 = vector.multi_reduction <add>, %1126, %cst_196 [1] : vector<4x30xf32> to vector<4xf32>
    %1128 = vector.shape_cast %1127 : vector<4xf32> to vector<4x1xf32>
    %cst_197 = arith.constant 3.000000e+01 : f32
    %1129 = vector.broadcast %cst_197 : f32 to vector<4x1xf32>
    %1130 = arith.divf %1128, %1129 : vector<4x1xf32>
    %cst_198 = arith.constant dense<0.000000e+00> : vector<1xf32>
    %1131 = vector.multi_reduction <add>, %1130, %cst_198 [0] : vector<4x1xf32> to vector<1xf32>
    %1132 = vector.shape_cast %1131 : vector<1xf32> to vector<1x1xf32>
    %cst_199 = arith.constant 4.000000e+00 : f32
    %1133 = vector.broadcast %cst_199 : f32 to vector<1x1xf32>
    %1134 = arith.divf %1132, %1133 : vector<1x1xf32>
    %1135 = arith.mulf %1125, %1125 : vector<1x1xf32>
    %1136 = arith.subf %1134, %1135 : vector<1x1xf32>
    %cst_200 = arith.constant 0.000000e+00 : f32
    %1137 = vector.broadcast %cst_200 : f32 to vector<1x1xf32>
    %1138 = arith.maximumf %1136, %1137 : vector<1x1xf32>
    %c4_201 = arith.constant 4 : index
    %1139 = memref.load %arg7[%c4_201] : memref<16xf32, #tpu.memory_space<smem>>
    %c4_202 = arith.constant 4 : index
    %1140 = memref.load %arg8[%c4_202] : memref<16xf32, #tpu.memory_space<smem>>
    %cst_203 = arith.constant 9.99999974E-6 : f32
    %1141 = vector.broadcast %cst_203 : f32 to vector<1x1xf32>
    %1142 = arith.addf %1138, %1141 : vector<1x1xf32>
    %1143 = math.rsqrt %1142 : vector<1x1xf32>
    %1144 = vector.broadcast %1139 : f32 to vector<1x1xf32>
    %1145 = arith.mulf %1144, %1143 : vector<1x1xf32>
    %1146 = arith.mulf %1125, %1145 : vector<1x1xf32>
    %1147 = vector.broadcast %1140 : f32 to vector<1x1xf32>
    %1148 = arith.subf %1147, %1146 : vector<1x1xf32>
    %1149 = vector.broadcast %1145 : vector<1x1xf32> to vector<4x30xf32>
    %1150 = arith.mulf %1117, %1149 : vector<4x30xf32>
    %1151 = vector.broadcast %1148 : vector<1x1xf32> to vector<4x30xf32>
    %1152 = arith.addf %1150, %1151 : vector<4x30xf32>
    %cst_204 = arith.constant 0.000000e+00 : f32
    %1153 = vector.broadcast %cst_204 : f32 to vector<4x30xf32>
    %c5_205 = arith.constant 5 : index
    %1154 = memref.load %arg5[%c5_205] : memref<384xf32, #tpu.memory_space<smem>>
    %1155 = vector.broadcast %1154 : f32 to vector<4x30xf32>
    %1156 = arith.mulf %1155, %440 : vector<4x30xf32>
    %1157 = arith.addf %1153, %1156 : vector<4x30xf32>
    %c133 = arith.constant 133 : index
    %1158 = memref.load %arg5[%c133] : memref<384xf32, #tpu.memory_space<smem>>
    %1159 = vector.broadcast %1158 : f32 to vector<4x30xf32>
    %1160 = arith.mulf %1159, %73 : vector<4x30xf32>
    %1161 = arith.addf %1157, %1160 : vector<4x30xf32>
    %c261 = arith.constant 261 : index
    %1162 = memref.load %arg5[%c261] : memref<384xf32, #tpu.memory_space<smem>>
    %1163 = vector.broadcast %1162 : f32 to vector<4x30xf32>
    %1164 = arith.mulf %1163, %441 : vector<4x30xf32>
    %1165 = arith.addf %1161, %1164 : vector<4x30xf32>
    %c21_206 = arith.constant 21 : index
    %1166 = memref.load %arg5[%c21_206] : memref<384xf32, #tpu.memory_space<smem>>
    %1167 = vector.broadcast %1166 : f32 to vector<4x30xf32>
    %1168 = arith.mulf %1167, %443 : vector<4x30xf32>
    %1169 = arith.addf %1165, %1168 : vector<4x30xf32>
    %c149 = arith.constant 149 : index
    %1170 = memref.load %arg5[%c149] : memref<384xf32, #tpu.memory_space<smem>>
    %1171 = vector.broadcast %1170 : f32 to vector<4x30xf32>
    %1172 = arith.mulf %1171, %125 : vector<4x30xf32>
    %1173 = arith.addf %1169, %1172 : vector<4x30xf32>
    %c277 = arith.constant 277 : index
    %1174 = memref.load %arg5[%c277] : memref<384xf32, #tpu.memory_space<smem>>
    %1175 = vector.broadcast %1174 : f32 to vector<4x30xf32>
    %1176 = arith.mulf %1175, %444 : vector<4x30xf32>
    %1177 = arith.addf %1173, %1176 : vector<4x30xf32>
    %c37 = arith.constant 37 : index
    %1178 = memref.load %arg5[%c37] : memref<384xf32, #tpu.memory_space<smem>>
    %1179 = vector.broadcast %1178 : f32 to vector<4x30xf32>
    %1180 = arith.mulf %1179, %446 : vector<4x30xf32>
    %1181 = arith.addf %1177, %1180 : vector<4x30xf32>
    %c165 = arith.constant 165 : index
    %1182 = memref.load %arg5[%c165] : memref<384xf32, #tpu.memory_space<smem>>
    %1183 = vector.broadcast %1182 : f32 to vector<4x30xf32>
    %1184 = arith.mulf %1183, %177 : vector<4x30xf32>
    %1185 = arith.addf %1181, %1184 : vector<4x30xf32>
    %c293 = arith.constant 293 : index
    %1186 = memref.load %arg5[%c293] : memref<384xf32, #tpu.memory_space<smem>>
    %1187 = vector.broadcast %1186 : f32 to vector<4x30xf32>
    %1188 = arith.mulf %1187, %447 : vector<4x30xf32>
    %1189 = arith.addf %1185, %1188 : vector<4x30xf32>
    %c53 = arith.constant 53 : index
    %1190 = memref.load %arg5[%c53] : memref<384xf32, #tpu.memory_space<smem>>
    %1191 = vector.broadcast %1190 : f32 to vector<4x30xf32>
    %1192 = arith.mulf %1191, %449 : vector<4x30xf32>
    %1193 = arith.addf %1189, %1192 : vector<4x30xf32>
    %c181 = arith.constant 181 : index
    %1194 = memref.load %arg5[%c181] : memref<384xf32, #tpu.memory_space<smem>>
    %1195 = vector.broadcast %1194 : f32 to vector<4x30xf32>
    %1196 = arith.mulf %1195, %229 : vector<4x30xf32>
    %1197 = arith.addf %1193, %1196 : vector<4x30xf32>
    %c309 = arith.constant 309 : index
    %1198 = memref.load %arg5[%c309] : memref<384xf32, #tpu.memory_space<smem>>
    %1199 = vector.broadcast %1198 : f32 to vector<4x30xf32>
    %1200 = arith.mulf %1199, %450 : vector<4x30xf32>
    %1201 = arith.addf %1197, %1200 : vector<4x30xf32>
    %c69 = arith.constant 69 : index
    %1202 = memref.load %arg5[%c69] : memref<384xf32, #tpu.memory_space<smem>>
    %1203 = vector.broadcast %1202 : f32 to vector<4x30xf32>
    %1204 = arith.mulf %1203, %452 : vector<4x30xf32>
    %1205 = arith.addf %1201, %1204 : vector<4x30xf32>
    %c197 = arith.constant 197 : index
    %1206 = memref.load %arg5[%c197] : memref<384xf32, #tpu.memory_space<smem>>
    %1207 = vector.broadcast %1206 : f32 to vector<4x30xf32>
    %1208 = arith.mulf %1207, %281 : vector<4x30xf32>
    %1209 = arith.addf %1205, %1208 : vector<4x30xf32>
    %c325 = arith.constant 325 : index
    %1210 = memref.load %arg5[%c325] : memref<384xf32, #tpu.memory_space<smem>>
    %1211 = vector.broadcast %1210 : f32 to vector<4x30xf32>
    %1212 = arith.mulf %1211, %453 : vector<4x30xf32>
    %1213 = arith.addf %1209, %1212 : vector<4x30xf32>
    %c85 = arith.constant 85 : index
    %1214 = memref.load %arg5[%c85] : memref<384xf32, #tpu.memory_space<smem>>
    %1215 = vector.broadcast %1214 : f32 to vector<4x30xf32>
    %1216 = arith.mulf %1215, %455 : vector<4x30xf32>
    %1217 = arith.addf %1213, %1216 : vector<4x30xf32>
    %c213 = arith.constant 213 : index
    %1218 = memref.load %arg5[%c213] : memref<384xf32, #tpu.memory_space<smem>>
    %1219 = vector.broadcast %1218 : f32 to vector<4x30xf32>
    %1220 = arith.mulf %1219, %333 : vector<4x30xf32>
    %1221 = arith.addf %1217, %1220 : vector<4x30xf32>
    %c341 = arith.constant 341 : index
    %1222 = memref.load %arg5[%c341] : memref<384xf32, #tpu.memory_space<smem>>
    %1223 = vector.broadcast %1222 : f32 to vector<4x30xf32>
    %1224 = arith.mulf %1223, %456 : vector<4x30xf32>
    %1225 = arith.addf %1221, %1224 : vector<4x30xf32>
    %c101 = arith.constant 101 : index
    %1226 = memref.load %arg5[%c101] : memref<384xf32, #tpu.memory_space<smem>>
    %1227 = vector.broadcast %1226 : f32 to vector<4x30xf32>
    %1228 = arith.mulf %1227, %458 : vector<4x30xf32>
    %1229 = arith.addf %1225, %1228 : vector<4x30xf32>
    %c229 = arith.constant 229 : index
    %1230 = memref.load %arg5[%c229] : memref<384xf32, #tpu.memory_space<smem>>
    %1231 = vector.broadcast %1230 : f32 to vector<4x30xf32>
    %1232 = arith.mulf %1231, %385 : vector<4x30xf32>
    %1233 = arith.addf %1229, %1232 : vector<4x30xf32>
    %c357 = arith.constant 357 : index
    %1234 = memref.load %arg5[%c357] : memref<384xf32, #tpu.memory_space<smem>>
    %1235 = vector.broadcast %1234 : f32 to vector<4x30xf32>
    %1236 = arith.mulf %1235, %459 : vector<4x30xf32>
    %1237 = arith.addf %1233, %1236 : vector<4x30xf32>
    %c117 = arith.constant 117 : index
    %1238 = memref.load %arg5[%c117] : memref<384xf32, #tpu.memory_space<smem>>
    %1239 = vector.broadcast %1238 : f32 to vector<4x30xf32>
    %1240 = arith.mulf %1239, %461 : vector<4x30xf32>
    %1241 = arith.addf %1237, %1240 : vector<4x30xf32>
    %c245 = arith.constant 245 : index
    %1242 = memref.load %arg5[%c245] : memref<384xf32, #tpu.memory_space<smem>>
    %1243 = vector.broadcast %1242 : f32 to vector<4x30xf32>
    %1244 = arith.mulf %1243, %437 : vector<4x30xf32>
    %1245 = arith.addf %1241, %1244 : vector<4x30xf32>
    %c373 = arith.constant 373 : index
    %1246 = memref.load %arg5[%c373] : memref<384xf32, #tpu.memory_space<smem>>
    %1247 = vector.broadcast %1246 : f32 to vector<4x30xf32>
    %1248 = arith.mulf %1247, %462 : vector<4x30xf32>
    %1249 = arith.addf %1245, %1248 : vector<4x30xf32>
    %c5_207 = arith.constant 5 : index
    %1250 = memref.load %arg6[%c5_207] : memref<16xf32, #tpu.memory_space<smem>>
    %1251 = vector.broadcast %1250 : f32 to vector<4x30xf32>
    %1252 = arith.addf %1249, %1251 : vector<4x30xf32>
    %cst_208 = arith.constant 0.00999999977 : f32
    %1253 = vector.broadcast %cst_208 : f32 to vector<4x30xf32>
    %1254 = arith.mulf %1253, %1252 : vector<4x30xf32>
    %1255 = arith.maximumf %1252, %1254 : vector<4x30xf32>
    %cst_209 = arith.constant dense<0.000000e+00> : vector<4xf32>
    %1256 = vector.multi_reduction <add>, %1255, %cst_209 [1] : vector<4x30xf32> to vector<4xf32>
    %1257 = vector.shape_cast %1256 : vector<4xf32> to vector<4x1xf32>
    %cst_210 = arith.constant 3.000000e+01 : f32
    %1258 = vector.broadcast %cst_210 : f32 to vector<4x1xf32>
    %1259 = arith.divf %1257, %1258 : vector<4x1xf32>
    %cst_211 = arith.constant dense<0.000000e+00> : vector<1xf32>
    %1260 = vector.multi_reduction <add>, %1259, %cst_211 [0] : vector<4x1xf32> to vector<1xf32>
    %1261 = vector.shape_cast %1260 : vector<1xf32> to vector<1x1xf32>
    %cst_212 = arith.constant 4.000000e+00 : f32
    %1262 = vector.broadcast %cst_212 : f32 to vector<1x1xf32>
    %1263 = arith.divf %1261, %1262 : vector<1x1xf32>
    %1264 = arith.mulf %1255, %1255 : vector<4x30xf32>
    %cst_213 = arith.constant dense<0.000000e+00> : vector<4xf32>
    %1265 = vector.multi_reduction <add>, %1264, %cst_213 [1] : vector<4x30xf32> to vector<4xf32>
    %1266 = vector.shape_cast %1265 : vector<4xf32> to vector<4x1xf32>
    %cst_214 = arith.constant 3.000000e+01 : f32
    %1267 = vector.broadcast %cst_214 : f32 to vector<4x1xf32>
    %1268 = arith.divf %1266, %1267 : vector<4x1xf32>
    %cst_215 = arith.constant dense<0.000000e+00> : vector<1xf32>
    %1269 = vector.multi_reduction <add>, %1268, %cst_215 [0] : vector<4x1xf32> to vector<1xf32>
    %1270 = vector.shape_cast %1269 : vector<1xf32> to vector<1x1xf32>
    %cst_216 = arith.constant 4.000000e+00 : f32
    %1271 = vector.broadcast %cst_216 : f32 to vector<1x1xf32>
    %1272 = arith.divf %1270, %1271 : vector<1x1xf32>
    %1273 = arith.mulf %1263, %1263 : vector<1x1xf32>
    %1274 = arith.subf %1272, %1273 : vector<1x1xf32>
    %cst_217 = arith.constant 0.000000e+00 : f32
    %1275 = vector.broadcast %cst_217 : f32 to vector<1x1xf32>
    %1276 = arith.maximumf %1274, %1275 : vector<1x1xf32>
    %c5_218 = arith.constant 5 : index
    %1277 = memref.load %arg7[%c5_218] : memref<16xf32, #tpu.memory_space<smem>>
    %c5_219 = arith.constant 5 : index
    %1278 = memref.load %arg8[%c5_219] : memref<16xf32, #tpu.memory_space<smem>>
    %cst_220 = arith.constant 9.99999974E-6 : f32
    %1279 = vector.broadcast %cst_220 : f32 to vector<1x1xf32>
    %1280 = arith.addf %1276, %1279 : vector<1x1xf32>
    %1281 = math.rsqrt %1280 : vector<1x1xf32>
    %1282 = vector.broadcast %1277 : f32 to vector<1x1xf32>
    %1283 = arith.mulf %1282, %1281 : vector<1x1xf32>
    %1284 = arith.mulf %1263, %1283 : vector<1x1xf32>
    %1285 = vector.broadcast %1278 : f32 to vector<1x1xf32>
    %1286 = arith.subf %1285, %1284 : vector<1x1xf32>
    %1287 = vector.broadcast %1283 : vector<1x1xf32> to vector<4x30xf32>
    %1288 = arith.mulf %1255, %1287 : vector<4x30xf32>
    %1289 = vector.broadcast %1286 : vector<1x1xf32> to vector<4x30xf32>
    %1290 = arith.addf %1288, %1289 : vector<4x30xf32>
    %cst_221 = arith.constant 0.000000e+00 : f32
    %1291 = vector.broadcast %cst_221 : f32 to vector<4x30xf32>
    %c6_222 = arith.constant 6 : index
    %1292 = memref.load %arg5[%c6_222] : memref<384xf32, #tpu.memory_space<smem>>
    %1293 = vector.broadcast %1292 : f32 to vector<4x30xf32>
    %1294 = arith.mulf %1293, %440 : vector<4x30xf32>
    %1295 = arith.addf %1291, %1294 : vector<4x30xf32>
    %c134 = arith.constant 134 : index
    %1296 = memref.load %arg5[%c134] : memref<384xf32, #tpu.memory_space<smem>>
    %1297 = vector.broadcast %1296 : f32 to vector<4x30xf32>
    %1298 = arith.mulf %1297, %73 : vector<4x30xf32>
    %1299 = arith.addf %1295, %1298 : vector<4x30xf32>
    %c262 = arith.constant 262 : index
    %1300 = memref.load %arg5[%c262] : memref<384xf32, #tpu.memory_space<smem>>
    %1301 = vector.broadcast %1300 : f32 to vector<4x30xf32>
    %1302 = arith.mulf %1301, %441 : vector<4x30xf32>
    %1303 = arith.addf %1299, %1302 : vector<4x30xf32>
    %c22_223 = arith.constant 22 : index
    %1304 = memref.load %arg5[%c22_223] : memref<384xf32, #tpu.memory_space<smem>>
    %1305 = vector.broadcast %1304 : f32 to vector<4x30xf32>
    %1306 = arith.mulf %1305, %443 : vector<4x30xf32>
    %1307 = arith.addf %1303, %1306 : vector<4x30xf32>
    %c150 = arith.constant 150 : index
    %1308 = memref.load %arg5[%c150] : memref<384xf32, #tpu.memory_space<smem>>
    %1309 = vector.broadcast %1308 : f32 to vector<4x30xf32>
    %1310 = arith.mulf %1309, %125 : vector<4x30xf32>
    %1311 = arith.addf %1307, %1310 : vector<4x30xf32>
    %c278 = arith.constant 278 : index
    %1312 = memref.load %arg5[%c278] : memref<384xf32, #tpu.memory_space<smem>>
    %1313 = vector.broadcast %1312 : f32 to vector<4x30xf32>
    %1314 = arith.mulf %1313, %444 : vector<4x30xf32>
    %1315 = arith.addf %1311, %1314 : vector<4x30xf32>
    %c38 = arith.constant 38 : index
    %1316 = memref.load %arg5[%c38] : memref<384xf32, #tpu.memory_space<smem>>
    %1317 = vector.broadcast %1316 : f32 to vector<4x30xf32>
    %1318 = arith.mulf %1317, %446 : vector<4x30xf32>
    %1319 = arith.addf %1315, %1318 : vector<4x30xf32>
    %c166 = arith.constant 166 : index
    %1320 = memref.load %arg5[%c166] : memref<384xf32, #tpu.memory_space<smem>>
    %1321 = vector.broadcast %1320 : f32 to vector<4x30xf32>
    %1322 = arith.mulf %1321, %177 : vector<4x30xf32>
    %1323 = arith.addf %1319, %1322 : vector<4x30xf32>
    %c294 = arith.constant 294 : index
    %1324 = memref.load %arg5[%c294] : memref<384xf32, #tpu.memory_space<smem>>
    %1325 = vector.broadcast %1324 : f32 to vector<4x30xf32>
    %1326 = arith.mulf %1325, %447 : vector<4x30xf32>
    %1327 = arith.addf %1323, %1326 : vector<4x30xf32>
    %c54 = arith.constant 54 : index
    %1328 = memref.load %arg5[%c54] : memref<384xf32, #tpu.memory_space<smem>>
    %1329 = vector.broadcast %1328 : f32 to vector<4x30xf32>
    %1330 = arith.mulf %1329, %449 : vector<4x30xf32>
    %1331 = arith.addf %1327, %1330 : vector<4x30xf32>
    %c182 = arith.constant 182 : index
    %1332 = memref.load %arg5[%c182] : memref<384xf32, #tpu.memory_space<smem>>
    %1333 = vector.broadcast %1332 : f32 to vector<4x30xf32>
    %1334 = arith.mulf %1333, %229 : vector<4x30xf32>
    %1335 = arith.addf %1331, %1334 : vector<4x30xf32>
    %c310 = arith.constant 310 : index
    %1336 = memref.load %arg5[%c310] : memref<384xf32, #tpu.memory_space<smem>>
    %1337 = vector.broadcast %1336 : f32 to vector<4x30xf32>
    %1338 = arith.mulf %1337, %450 : vector<4x30xf32>
    %1339 = arith.addf %1335, %1338 : vector<4x30xf32>
    %c70 = arith.constant 70 : index
    %1340 = memref.load %arg5[%c70] : memref<384xf32, #tpu.memory_space<smem>>
    %1341 = vector.broadcast %1340 : f32 to vector<4x30xf32>
    %1342 = arith.mulf %1341, %452 : vector<4x30xf32>
    %1343 = arith.addf %1339, %1342 : vector<4x30xf32>
    %c198 = arith.constant 198 : index
    %1344 = memref.load %arg5[%c198] : memref<384xf32, #tpu.memory_space<smem>>
    %1345 = vector.broadcast %1344 : f32 to vector<4x30xf32>
    %1346 = arith.mulf %1345, %281 : vector<4x30xf32>
    %1347 = arith.addf %1343, %1346 : vector<4x30xf32>
    %c326 = arith.constant 326 : index
    %1348 = memref.load %arg5[%c326] : memref<384xf32, #tpu.memory_space<smem>>
    %1349 = vector.broadcast %1348 : f32 to vector<4x30xf32>
    %1350 = arith.mulf %1349, %453 : vector<4x30xf32>
    %1351 = arith.addf %1347, %1350 : vector<4x30xf32>
    %c86 = arith.constant 86 : index
    %1352 = memref.load %arg5[%c86] : memref<384xf32, #tpu.memory_space<smem>>
    %1353 = vector.broadcast %1352 : f32 to vector<4x30xf32>
    %1354 = arith.mulf %1353, %455 : vector<4x30xf32>
    %1355 = arith.addf %1351, %1354 : vector<4x30xf32>
    %c214 = arith.constant 214 : index
    %1356 = memref.load %arg5[%c214] : memref<384xf32, #tpu.memory_space<smem>>
    %1357 = vector.broadcast %1356 : f32 to vector<4x30xf32>
    %1358 = arith.mulf %1357, %333 : vector<4x30xf32>
    %1359 = arith.addf %1355, %1358 : vector<4x30xf32>
    %c342 = arith.constant 342 : index
    %1360 = memref.load %arg5[%c342] : memref<384xf32, #tpu.memory_space<smem>>
    %1361 = vector.broadcast %1360 : f32 to vector<4x30xf32>
    %1362 = arith.mulf %1361, %456 : vector<4x30xf32>
    %1363 = arith.addf %1359, %1362 : vector<4x30xf32>
    %c102 = arith.constant 102 : index
    %1364 = memref.load %arg5[%c102] : memref<384xf32, #tpu.memory_space<smem>>
    %1365 = vector.broadcast %1364 : f32 to vector<4x30xf32>
    %1366 = arith.mulf %1365, %458 : vector<4x30xf32>
    %1367 = arith.addf %1363, %1366 : vector<4x30xf32>
    %c230 = arith.constant 230 : index
    %1368 = memref.load %arg5[%c230] : memref<384xf32, #tpu.memory_space<smem>>
    %1369 = vector.broadcast %1368 : f32 to vector<4x30xf32>
    %1370 = arith.mulf %1369, %385 : vector<4x30xf32>
    %1371 = arith.addf %1367, %1370 : vector<4x30xf32>
    %c358 = arith.constant 358 : index
    %1372 = memref.load %arg5[%c358] : memref<384xf32, #tpu.memory_space<smem>>
    %1373 = vector.broadcast %1372 : f32 to vector<4x30xf32>
    %1374 = arith.mulf %1373, %459 : vector<4x30xf32>
    %1375 = arith.addf %1371, %1374 : vector<4x30xf32>
    %c118 = arith.constant 118 : index
    %1376 = memref.load %arg5[%c118] : memref<384xf32, #tpu.memory_space<smem>>
    %1377 = vector.broadcast %1376 : f32 to vector<4x30xf32>
    %1378 = arith.mulf %1377, %461 : vector<4x30xf32>
    %1379 = arith.addf %1375, %1378 : vector<4x30xf32>
    %c246 = arith.constant 246 : index
    %1380 = memref.load %arg5[%c246] : memref<384xf32, #tpu.memory_space<smem>>
    %1381 = vector.broadcast %1380 : f32 to vector<4x30xf32>
    %1382 = arith.mulf %1381, %437 : vector<4x30xf32>
    %1383 = arith.addf %1379, %1382 : vector<4x30xf32>
    %c374 = arith.constant 374 : index
    %1384 = memref.load %arg5[%c374] : memref<384xf32, #tpu.memory_space<smem>>
    %1385 = vector.broadcast %1384 : f32 to vector<4x30xf32>
    %1386 = arith.mulf %1385, %462 : vector<4x30xf32>
    %1387 = arith.addf %1383, %1386 : vector<4x30xf32>
    %c6_224 = arith.constant 6 : index
    %1388 = memref.load %arg6[%c6_224] : memref<16xf32, #tpu.memory_space<smem>>
    %1389 = vector.broadcast %1388 : f32 to vector<4x30xf32>
    %1390 = arith.addf %1387, %1389 : vector<4x30xf32>
    %cst_225 = arith.constant 0.00999999977 : f32
    %1391 = vector.broadcast %cst_225 : f32 to vector<4x30xf32>
    %1392 = arith.mulf %1391, %1390 : vector<4x30xf32>
    %1393 = arith.maximumf %1390, %1392 : vector<4x30xf32>
    %cst_226 = arith.constant dense<0.000000e+00> : vector<4xf32>
    %1394 = vector.multi_reduction <add>, %1393, %cst_226 [1] : vector<4x30xf32> to vector<4xf32>
    %1395 = vector.shape_cast %1394 : vector<4xf32> to vector<4x1xf32>
    %cst_227 = arith.constant 3.000000e+01 : f32
    %1396 = vector.broadcast %cst_227 : f32 to vector<4x1xf32>
    %1397 = arith.divf %1395, %1396 : vector<4x1xf32>
    %cst_228 = arith.constant dense<0.000000e+00> : vector<1xf32>
    %1398 = vector.multi_reduction <add>, %1397, %cst_228 [0] : vector<4x1xf32> to vector<1xf32>
    %1399 = vector.shape_cast %1398 : vector<1xf32> to vector<1x1xf32>
    %cst_229 = arith.constant 4.000000e+00 : f32
    %1400 = vector.broadcast %cst_229 : f32 to vector<1x1xf32>
    %1401 = arith.divf %1399, %1400 : vector<1x1xf32>
    %1402 = arith.mulf %1393, %1393 : vector<4x30xf32>
    %cst_230 = arith.constant dense<0.000000e+00> : vector<4xf32>
    %1403 = vector.multi_reduction <add>, %1402, %cst_230 [1] : vector<4x30xf32> to vector<4xf32>
    %1404 = vector.shape_cast %1403 : vector<4xf32> to vector<4x1xf32>
    %cst_231 = arith.constant 3.000000e+01 : f32
    %1405 = vector.broadcast %cst_231 : f32 to vector<4x1xf32>
    %1406 = arith.divf %1404, %1405 : vector<4x1xf32>
    %cst_232 = arith.constant dense<0.000000e+00> : vector<1xf32>
    %1407 = vector.multi_reduction <add>, %1406, %cst_232 [0] : vector<4x1xf32> to vector<1xf32>
    %1408 = vector.shape_cast %1407 : vector<1xf32> to vector<1x1xf32>
    %cst_233 = arith.constant 4.000000e+00 : f32
    %1409 = vector.broadcast %cst_233 : f32 to vector<1x1xf32>
    %1410 = arith.divf %1408, %1409 : vector<1x1xf32>
    %1411 = arith.mulf %1401, %1401 : vector<1x1xf32>
    %1412 = arith.subf %1410, %1411 : vector<1x1xf32>
    %cst_234 = arith.constant 0.000000e+00 : f32
    %1413 = vector.broadcast %cst_234 : f32 to vector<1x1xf32>
    %1414 = arith.maximumf %1412, %1413 : vector<1x1xf32>
    %c6_235 = arith.constant 6 : index
    %1415 = memref.load %arg7[%c6_235] : memref<16xf32, #tpu.memory_space<smem>>
    %c6_236 = arith.constant 6 : index
    %1416 = memref.load %arg8[%c6_236] : memref<16xf32, #tpu.memory_space<smem>>
    %cst_237 = arith.constant 9.99999974E-6 : f32
    %1417 = vector.broadcast %cst_237 : f32 to vector<1x1xf32>
    %1418 = arith.addf %1414, %1417 : vector<1x1xf32>
    %1419 = math.rsqrt %1418 : vector<1x1xf32>
    %1420 = vector.broadcast %1415 : f32 to vector<1x1xf32>
    %1421 = arith.mulf %1420, %1419 : vector<1x1xf32>
    %1422 = arith.mulf %1401, %1421 : vector<1x1xf32>
    %1423 = vector.broadcast %1416 : f32 to vector<1x1xf32>
    %1424 = arith.subf %1423, %1422 : vector<1x1xf32>
    %1425 = vector.broadcast %1421 : vector<1x1xf32> to vector<4x30xf32>
    %1426 = arith.mulf %1393, %1425 : vector<4x30xf32>
    %1427 = vector.broadcast %1424 : vector<1x1xf32> to vector<4x30xf32>
    %1428 = arith.addf %1426, %1427 : vector<4x30xf32>
    %cst_238 = arith.constant 0.000000e+00 : f32
    %1429 = vector.broadcast %cst_238 : f32 to vector<4x30xf32>
    %c7_239 = arith.constant 7 : index
    %1430 = memref.load %arg5[%c7_239] : memref<384xf32, #tpu.memory_space<smem>>
    %1431 = vector.broadcast %1430 : f32 to vector<4x30xf32>
    %1432 = arith.mulf %1431, %440 : vector<4x30xf32>
    %1433 = arith.addf %1429, %1432 : vector<4x30xf32>
    %c135 = arith.constant 135 : index
    %1434 = memref.load %arg5[%c135] : memref<384xf32, #tpu.memory_space<smem>>
    %1435 = vector.broadcast %1434 : f32 to vector<4x30xf32>
    %1436 = arith.mulf %1435, %73 : vector<4x30xf32>
    %1437 = arith.addf %1433, %1436 : vector<4x30xf32>
    %c263 = arith.constant 263 : index
    %1438 = memref.load %arg5[%c263] : memref<384xf32, #tpu.memory_space<smem>>
    %1439 = vector.broadcast %1438 : f32 to vector<4x30xf32>
    %1440 = arith.mulf %1439, %441 : vector<4x30xf32>
    %1441 = arith.addf %1437, %1440 : vector<4x30xf32>
    %c23_240 = arith.constant 23 : index
    %1442 = memref.load %arg5[%c23_240] : memref<384xf32, #tpu.memory_space<smem>>
    %1443 = vector.broadcast %1442 : f32 to vector<4x30xf32>
    %1444 = arith.mulf %1443, %443 : vector<4x30xf32>
    %1445 = arith.addf %1441, %1444 : vector<4x30xf32>
    %c151 = arith.constant 151 : index
    %1446 = memref.load %arg5[%c151] : memref<384xf32, #tpu.memory_space<smem>>
    %1447 = vector.broadcast %1446 : f32 to vector<4x30xf32>
    %1448 = arith.mulf %1447, %125 : vector<4x30xf32>
    %1449 = arith.addf %1445, %1448 : vector<4x30xf32>
    %c279 = arith.constant 279 : index
    %1450 = memref.load %arg5[%c279] : memref<384xf32, #tpu.memory_space<smem>>
    %1451 = vector.broadcast %1450 : f32 to vector<4x30xf32>
    %1452 = arith.mulf %1451, %444 : vector<4x30xf32>
    %1453 = arith.addf %1449, %1452 : vector<4x30xf32>
    %c39 = arith.constant 39 : index
    %1454 = memref.load %arg5[%c39] : memref<384xf32, #tpu.memory_space<smem>>
    %1455 = vector.broadcast %1454 : f32 to vector<4x30xf32>
    %1456 = arith.mulf %1455, %446 : vector<4x30xf32>
    %1457 = arith.addf %1453, %1456 : vector<4x30xf32>
    %c167 = arith.constant 167 : index
    %1458 = memref.load %arg5[%c167] : memref<384xf32, #tpu.memory_space<smem>>
    %1459 = vector.broadcast %1458 : f32 to vector<4x30xf32>
    %1460 = arith.mulf %1459, %177 : vector<4x30xf32>
    %1461 = arith.addf %1457, %1460 : vector<4x30xf32>
    %c295 = arith.constant 295 : index
    %1462 = memref.load %arg5[%c295] : memref<384xf32, #tpu.memory_space<smem>>
    %1463 = vector.broadcast %1462 : f32 to vector<4x30xf32>
    %1464 = arith.mulf %1463, %447 : vector<4x30xf32>
    %1465 = arith.addf %1461, %1464 : vector<4x30xf32>
    %c55 = arith.constant 55 : index
    %1466 = memref.load %arg5[%c55] : memref<384xf32, #tpu.memory_space<smem>>
    %1467 = vector.broadcast %1466 : f32 to vector<4x30xf32>
    %1468 = arith.mulf %1467, %449 : vector<4x30xf32>
    %1469 = arith.addf %1465, %1468 : vector<4x30xf32>
    %c183 = arith.constant 183 : index
    %1470 = memref.load %arg5[%c183] : memref<384xf32, #tpu.memory_space<smem>>
    %1471 = vector.broadcast %1470 : f32 to vector<4x30xf32>
    %1472 = arith.mulf %1471, %229 : vector<4x30xf32>
    %1473 = arith.addf %1469, %1472 : vector<4x30xf32>
    %c311 = arith.constant 311 : index
    %1474 = memref.load %arg5[%c311] : memref<384xf32, #tpu.memory_space<smem>>
    %1475 = vector.broadcast %1474 : f32 to vector<4x30xf32>
    %1476 = arith.mulf %1475, %450 : vector<4x30xf32>
    %1477 = arith.addf %1473, %1476 : vector<4x30xf32>
    %c71 = arith.constant 71 : index
    %1478 = memref.load %arg5[%c71] : memref<384xf32, #tpu.memory_space<smem>>
    %1479 = vector.broadcast %1478 : f32 to vector<4x30xf32>
    %1480 = arith.mulf %1479, %452 : vector<4x30xf32>
    %1481 = arith.addf %1477, %1480 : vector<4x30xf32>
    %c199 = arith.constant 199 : index
    %1482 = memref.load %arg5[%c199] : memref<384xf32, #tpu.memory_space<smem>>
    %1483 = vector.broadcast %1482 : f32 to vector<4x30xf32>
    %1484 = arith.mulf %1483, %281 : vector<4x30xf32>
    %1485 = arith.addf %1481, %1484 : vector<4x30xf32>
    %c327 = arith.constant 327 : index
    %1486 = memref.load %arg5[%c327] : memref<384xf32, #tpu.memory_space<smem>>
    %1487 = vector.broadcast %1486 : f32 to vector<4x30xf32>
    %1488 = arith.mulf %1487, %453 : vector<4x30xf32>
    %1489 = arith.addf %1485, %1488 : vector<4x30xf32>
    %c87 = arith.constant 87 : index
    %1490 = memref.load %arg5[%c87] : memref<384xf32, #tpu.memory_space<smem>>
    %1491 = vector.broadcast %1490 : f32 to vector<4x30xf32>
    %1492 = arith.mulf %1491, %455 : vector<4x30xf32>
    %1493 = arith.addf %1489, %1492 : vector<4x30xf32>
    %c215 = arith.constant 215 : index
    %1494 = memref.load %arg5[%c215] : memref<384xf32, #tpu.memory_space<smem>>
    %1495 = vector.broadcast %1494 : f32 to vector<4x30xf32>
    %1496 = arith.mulf %1495, %333 : vector<4x30xf32>
    %1497 = arith.addf %1493, %1496 : vector<4x30xf32>
    %c343 = arith.constant 343 : index
    %1498 = memref.load %arg5[%c343] : memref<384xf32, #tpu.memory_space<smem>>
    %1499 = vector.broadcast %1498 : f32 to vector<4x30xf32>
    %1500 = arith.mulf %1499, %456 : vector<4x30xf32>
    %1501 = arith.addf %1497, %1500 : vector<4x30xf32>
    %c103 = arith.constant 103 : index
    %1502 = memref.load %arg5[%c103] : memref<384xf32, #tpu.memory_space<smem>>
    %1503 = vector.broadcast %1502 : f32 to vector<4x30xf32>
    %1504 = arith.mulf %1503, %458 : vector<4x30xf32>
    %1505 = arith.addf %1501, %1504 : vector<4x30xf32>
    %c231 = arith.constant 231 : index
    %1506 = memref.load %arg5[%c231] : memref<384xf32, #tpu.memory_space<smem>>
    %1507 = vector.broadcast %1506 : f32 to vector<4x30xf32>
    %1508 = arith.mulf %1507, %385 : vector<4x30xf32>
    %1509 = arith.addf %1505, %1508 : vector<4x30xf32>
    %c359 = arith.constant 359 : index
    %1510 = memref.load %arg5[%c359] : memref<384xf32, #tpu.memory_space<smem>>
    %1511 = vector.broadcast %1510 : f32 to vector<4x30xf32>
    %1512 = arith.mulf %1511, %459 : vector<4x30xf32>
    %1513 = arith.addf %1509, %1512 : vector<4x30xf32>
    %c119 = arith.constant 119 : index
    %1514 = memref.load %arg5[%c119] : memref<384xf32, #tpu.memory_space<smem>>
    %1515 = vector.broadcast %1514 : f32 to vector<4x30xf32>
    %1516 = arith.mulf %1515, %461 : vector<4x30xf32>
    %1517 = arith.addf %1513, %1516 : vector<4x30xf32>
    %c247 = arith.constant 247 : index
    %1518 = memref.load %arg5[%c247] : memref<384xf32, #tpu.memory_space<smem>>
    %1519 = vector.broadcast %1518 : f32 to vector<4x30xf32>
    %1520 = arith.mulf %1519, %437 : vector<4x30xf32>
    %1521 = arith.addf %1517, %1520 : vector<4x30xf32>
    %c375 = arith.constant 375 : index
    %1522 = memref.load %arg5[%c375] : memref<384xf32, #tpu.memory_space<smem>>
    %1523 = vector.broadcast %1522 : f32 to vector<4x30xf32>
    %1524 = arith.mulf %1523, %462 : vector<4x30xf32>
    %1525 = arith.addf %1521, %1524 : vector<4x30xf32>
    %c7_241 = arith.constant 7 : index
    %1526 = memref.load %arg6[%c7_241] : memref<16xf32, #tpu.memory_space<smem>>
    %1527 = vector.broadcast %1526 : f32 to vector<4x30xf32>
    %1528 = arith.addf %1525, %1527 : vector<4x30xf32>
    %cst_242 = arith.constant 0.00999999977 : f32
    %1529 = vector.broadcast %cst_242 : f32 to vector<4x30xf32>
    %1530 = arith.mulf %1529, %1528 : vector<4x30xf32>
    %1531 = arith.maximumf %1528, %1530 : vector<4x30xf32>
    %cst_243 = arith.constant dense<0.000000e+00> : vector<4xf32>
    %1532 = vector.multi_reduction <add>, %1531, %cst_243 [1] : vector<4x30xf32> to vector<4xf32>
    %1533 = vector.shape_cast %1532 : vector<4xf32> to vector<4x1xf32>
    %cst_244 = arith.constant 3.000000e+01 : f32
    %1534 = vector.broadcast %cst_244 : f32 to vector<4x1xf32>
    %1535 = arith.divf %1533, %1534 : vector<4x1xf32>
    %cst_245 = arith.constant dense<0.000000e+00> : vector<1xf32>
    %1536 = vector.multi_reduction <add>, %1535, %cst_245 [0] : vector<4x1xf32> to vector<1xf32>
    %1537 = vector.shape_cast %1536 : vector<1xf32> to vector<1x1xf32>
    %cst_246 = arith.constant 4.000000e+00 : f32
    %1538 = vector.broadcast %cst_246 : f32 to vector<1x1xf32>
    %1539 = arith.divf %1537, %1538 : vector<1x1xf32>
    %1540 = arith.mulf %1531, %1531 : vector<4x30xf32>
    %cst_247 = arith.constant dense<0.000000e+00> : vector<4xf32>
    %1541 = vector.multi_reduction <add>, %1540, %cst_247 [1] : vector<4x30xf32> to vector<4xf32>
    %1542 = vector.shape_cast %1541 : vector<4xf32> to vector<4x1xf32>
    %cst_248 = arith.constant 3.000000e+01 : f32
    %1543 = vector.broadcast %cst_248 : f32 to vector<4x1xf32>
    %1544 = arith.divf %1542, %1543 : vector<4x1xf32>
    %cst_249 = arith.constant dense<0.000000e+00> : vector<1xf32>
    %1545 = vector.multi_reduction <add>, %1544, %cst_249 [0] : vector<4x1xf32> to vector<1xf32>
    %1546 = vector.shape_cast %1545 : vector<1xf32> to vector<1x1xf32>
    %cst_250 = arith.constant 4.000000e+00 : f32
    %1547 = vector.broadcast %cst_250 : f32 to vector<1x1xf32>
    %1548 = arith.divf %1546, %1547 : vector<1x1xf32>
    %1549 = arith.mulf %1539, %1539 : vector<1x1xf32>
    %1550 = arith.subf %1548, %1549 : vector<1x1xf32>
    %cst_251 = arith.constant 0.000000e+00 : f32
    %1551 = vector.broadcast %cst_251 : f32 to vector<1x1xf32>
    %1552 = arith.maximumf %1550, %1551 : vector<1x1xf32>
    %c7_252 = arith.constant 7 : index
    %1553 = memref.load %arg7[%c7_252] : memref<16xf32, #tpu.memory_space<smem>>
    %c7_253 = arith.constant 7 : index
    %1554 = memref.load %arg8[%c7_253] : memref<16xf32, #tpu.memory_space<smem>>
    %cst_254 = arith.constant 9.99999974E-6 : f32
    %1555 = vector.broadcast %cst_254 : f32 to vector<1x1xf32>
    %1556 = arith.addf %1552, %1555 : vector<1x1xf32>
    %1557 = math.rsqrt %1556 : vector<1x1xf32>
    %1558 = vector.broadcast %1553 : f32 to vector<1x1xf32>
    %1559 = arith.mulf %1558, %1557 : vector<1x1xf32>
    %1560 = arith.mulf %1539, %1559 : vector<1x1xf32>
    %1561 = vector.broadcast %1554 : f32 to vector<1x1xf32>
    %1562 = arith.subf %1561, %1560 : vector<1x1xf32>
    %1563 = vector.broadcast %1559 : vector<1x1xf32> to vector<4x30xf32>
    %1564 = arith.mulf %1531, %1563 : vector<4x30xf32>
    %1565 = vector.broadcast %1562 : vector<1x1xf32> to vector<4x30xf32>
    %1566 = arith.addf %1564, %1565 : vector<4x30xf32>
    %cst_255 = arith.constant 0.000000e+00 : f32
    %1567 = vector.broadcast %cst_255 : f32 to vector<4x30xf32>
    %c8_256 = arith.constant 8 : index
    %1568 = memref.load %arg5[%c8_256] : memref<384xf32, #tpu.memory_space<smem>>
    %1569 = vector.broadcast %1568 : f32 to vector<4x30xf32>
    %1570 = arith.mulf %1569, %440 : vector<4x30xf32>
    %1571 = arith.addf %1567, %1570 : vector<4x30xf32>
    %c136 = arith.constant 136 : index
    %1572 = memref.load %arg5[%c136] : memref<384xf32, #tpu.memory_space<smem>>
    %1573 = vector.broadcast %1572 : f32 to vector<4x30xf32>
    %1574 = arith.mulf %1573, %73 : vector<4x30xf32>
    %1575 = arith.addf %1571, %1574 : vector<4x30xf32>
    %c264 = arith.constant 264 : index
    %1576 = memref.load %arg5[%c264] : memref<384xf32, #tpu.memory_space<smem>>
    %1577 = vector.broadcast %1576 : f32 to vector<4x30xf32>
    %1578 = arith.mulf %1577, %441 : vector<4x30xf32>
    %1579 = arith.addf %1575, %1578 : vector<4x30xf32>
    %c24 = arith.constant 24 : index
    %1580 = memref.load %arg5[%c24] : memref<384xf32, #tpu.memory_space<smem>>
    %1581 = vector.broadcast %1580 : f32 to vector<4x30xf32>
    %1582 = arith.mulf %1581, %443 : vector<4x30xf32>
    %1583 = arith.addf %1579, %1582 : vector<4x30xf32>
    %c152 = arith.constant 152 : index
    %1584 = memref.load %arg5[%c152] : memref<384xf32, #tpu.memory_space<smem>>
    %1585 = vector.broadcast %1584 : f32 to vector<4x30xf32>
    %1586 = arith.mulf %1585, %125 : vector<4x30xf32>
    %1587 = arith.addf %1583, %1586 : vector<4x30xf32>
    %c280 = arith.constant 280 : index
    %1588 = memref.load %arg5[%c280] : memref<384xf32, #tpu.memory_space<smem>>
    %1589 = vector.broadcast %1588 : f32 to vector<4x30xf32>
    %1590 = arith.mulf %1589, %444 : vector<4x30xf32>
    %1591 = arith.addf %1587, %1590 : vector<4x30xf32>
    %c40 = arith.constant 40 : index
    %1592 = memref.load %arg5[%c40] : memref<384xf32, #tpu.memory_space<smem>>
    %1593 = vector.broadcast %1592 : f32 to vector<4x30xf32>
    %1594 = arith.mulf %1593, %446 : vector<4x30xf32>
    %1595 = arith.addf %1591, %1594 : vector<4x30xf32>
    %c168 = arith.constant 168 : index
    %1596 = memref.load %arg5[%c168] : memref<384xf32, #tpu.memory_space<smem>>
    %1597 = vector.broadcast %1596 : f32 to vector<4x30xf32>
    %1598 = arith.mulf %1597, %177 : vector<4x30xf32>
    %1599 = arith.addf %1595, %1598 : vector<4x30xf32>
    %c296 = arith.constant 296 : index
    %1600 = memref.load %arg5[%c296] : memref<384xf32, #tpu.memory_space<smem>>
    %1601 = vector.broadcast %1600 : f32 to vector<4x30xf32>
    %1602 = arith.mulf %1601, %447 : vector<4x30xf32>
    %1603 = arith.addf %1599, %1602 : vector<4x30xf32>
    %c56 = arith.constant 56 : index
    %1604 = memref.load %arg5[%c56] : memref<384xf32, #tpu.memory_space<smem>>
    %1605 = vector.broadcast %1604 : f32 to vector<4x30xf32>
    %1606 = arith.mulf %1605, %449 : vector<4x30xf32>
    %1607 = arith.addf %1603, %1606 : vector<4x30xf32>
    %c184 = arith.constant 184 : index
    %1608 = memref.load %arg5[%c184] : memref<384xf32, #tpu.memory_space<smem>>
    %1609 = vector.broadcast %1608 : f32 to vector<4x30xf32>
    %1610 = arith.mulf %1609, %229 : vector<4x30xf32>
    %1611 = arith.addf %1607, %1610 : vector<4x30xf32>
    %c312 = arith.constant 312 : index
    %1612 = memref.load %arg5[%c312] : memref<384xf32, #tpu.memory_space<smem>>
    %1613 = vector.broadcast %1612 : f32 to vector<4x30xf32>
    %1614 = arith.mulf %1613, %450 : vector<4x30xf32>
    %1615 = arith.addf %1611, %1614 : vector<4x30xf32>
    %c72 = arith.constant 72 : index
    %1616 = memref.load %arg5[%c72] : memref<384xf32, #tpu.memory_space<smem>>
    %1617 = vector.broadcast %1616 : f32 to vector<4x30xf32>
    %1618 = arith.mulf %1617, %452 : vector<4x30xf32>
    %1619 = arith.addf %1615, %1618 : vector<4x30xf32>
    %c200 = arith.constant 200 : index
    %1620 = memref.load %arg5[%c200] : memref<384xf32, #tpu.memory_space<smem>>
    %1621 = vector.broadcast %1620 : f32 to vector<4x30xf32>
    %1622 = arith.mulf %1621, %281 : vector<4x30xf32>
    %1623 = arith.addf %1619, %1622 : vector<4x30xf32>
    %c328 = arith.constant 328 : index
    %1624 = memref.load %arg5[%c328] : memref<384xf32, #tpu.memory_space<smem>>
    %1625 = vector.broadcast %1624 : f32 to vector<4x30xf32>
    %1626 = arith.mulf %1625, %453 : vector<4x30xf32>
    %1627 = arith.addf %1623, %1626 : vector<4x30xf32>
    %c88 = arith.constant 88 : index
    %1628 = memref.load %arg5[%c88] : memref<384xf32, #tpu.memory_space<smem>>
    %1629 = vector.broadcast %1628 : f32 to vector<4x30xf32>
    %1630 = arith.mulf %1629, %455 : vector<4x30xf32>
    %1631 = arith.addf %1627, %1630 : vector<4x30xf32>
    %c216 = arith.constant 216 : index
    %1632 = memref.load %arg5[%c216] : memref<384xf32, #tpu.memory_space<smem>>
    %1633 = vector.broadcast %1632 : f32 to vector<4x30xf32>
    %1634 = arith.mulf %1633, %333 : vector<4x30xf32>
    %1635 = arith.addf %1631, %1634 : vector<4x30xf32>
    %c344 = arith.constant 344 : index
    %1636 = memref.load %arg5[%c344] : memref<384xf32, #tpu.memory_space<smem>>
    %1637 = vector.broadcast %1636 : f32 to vector<4x30xf32>
    %1638 = arith.mulf %1637, %456 : vector<4x30xf32>
    %1639 = arith.addf %1635, %1638 : vector<4x30xf32>
    %c104 = arith.constant 104 : index
    %1640 = memref.load %arg5[%c104] : memref<384xf32, #tpu.memory_space<smem>>
    %1641 = vector.broadcast %1640 : f32 to vector<4x30xf32>
    %1642 = arith.mulf %1641, %458 : vector<4x30xf32>
    %1643 = arith.addf %1639, %1642 : vector<4x30xf32>
    %c232 = arith.constant 232 : index
    %1644 = memref.load %arg5[%c232] : memref<384xf32, #tpu.memory_space<smem>>
    %1645 = vector.broadcast %1644 : f32 to vector<4x30xf32>
    %1646 = arith.mulf %1645, %385 : vector<4x30xf32>
    %1647 = arith.addf %1643, %1646 : vector<4x30xf32>
    %c360 = arith.constant 360 : index
    %1648 = memref.load %arg5[%c360] : memref<384xf32, #tpu.memory_space<smem>>
    %1649 = vector.broadcast %1648 : f32 to vector<4x30xf32>
    %1650 = arith.mulf %1649, %459 : vector<4x30xf32>
    %1651 = arith.addf %1647, %1650 : vector<4x30xf32>
    %c120 = arith.constant 120 : index
    %1652 = memref.load %arg5[%c120] : memref<384xf32, #tpu.memory_space<smem>>
    %1653 = vector.broadcast %1652 : f32 to vector<4x30xf32>
    %1654 = arith.mulf %1653, %461 : vector<4x30xf32>
    %1655 = arith.addf %1651, %1654 : vector<4x30xf32>
    %c248 = arith.constant 248 : index
    %1656 = memref.load %arg5[%c248] : memref<384xf32, #tpu.memory_space<smem>>
    %1657 = vector.broadcast %1656 : f32 to vector<4x30xf32>
    %1658 = arith.mulf %1657, %437 : vector<4x30xf32>
    %1659 = arith.addf %1655, %1658 : vector<4x30xf32>
    %c376 = arith.constant 376 : index
    %1660 = memref.load %arg5[%c376] : memref<384xf32, #tpu.memory_space<smem>>
    %1661 = vector.broadcast %1660 : f32 to vector<4x30xf32>
    %1662 = arith.mulf %1661, %462 : vector<4x30xf32>
    %1663 = arith.addf %1659, %1662 : vector<4x30xf32>
    %c8_257 = arith.constant 8 : index
    %1664 = memref.load %arg6[%c8_257] : memref<16xf32, #tpu.memory_space<smem>>
    %1665 = vector.broadcast %1664 : f32 to vector<4x30xf32>
    %1666 = arith.addf %1663, %1665 : vector<4x30xf32>
    %cst_258 = arith.constant 0.00999999977 : f32
    %1667 = vector.broadcast %cst_258 : f32 to vector<4x30xf32>
    %1668 = arith.mulf %1667, %1666 : vector<4x30xf32>
    %1669 = arith.maximumf %1666, %1668 : vector<4x30xf32>
    %cst_259 = arith.constant dense<0.000000e+00> : vector<4xf32>
    %1670 = vector.multi_reduction <add>, %1669, %cst_259 [1] : vector<4x30xf32> to vector<4xf32>
    %1671 = vector.shape_cast %1670 : vector<4xf32> to vector<4x1xf32>
    %cst_260 = arith.constant 3.000000e+01 : f32
    %1672 = vector.broadcast %cst_260 : f32 to vector<4x1xf32>
    %1673 = arith.divf %1671, %1672 : vector<4x1xf32>
    %cst_261 = arith.constant dense<0.000000e+00> : vector<1xf32>
    %1674 = vector.multi_reduction <add>, %1673, %cst_261 [0] : vector<4x1xf32> to vector<1xf32>
    %1675 = vector.shape_cast %1674 : vector<1xf32> to vector<1x1xf32>
    %cst_262 = arith.constant 4.000000e+00 : f32
    %1676 = vector.broadcast %cst_262 : f32 to vector<1x1xf32>
    %1677 = arith.divf %1675, %1676 : vector<1x1xf32>
    %1678 = arith.mulf %1669, %1669 : vector<4x30xf32>
    %cst_263 = arith.constant dense<0.000000e+00> : vector<4xf32>
    %1679 = vector.multi_reduction <add>, %1678, %cst_263 [1] : vector<4x30xf32> to vector<4xf32>
    %1680 = vector.shape_cast %1679 : vector<4xf32> to vector<4x1xf32>
    %cst_264 = arith.constant 3.000000e+01 : f32
    %1681 = vector.broadcast %cst_264 : f32 to vector<4x1xf32>
    %1682 = arith.divf %1680, %1681 : vector<4x1xf32>
    %cst_265 = arith.constant dense<0.000000e+00> : vector<1xf32>
    %1683 = vector.multi_reduction <add>, %1682, %cst_265 [0] : vector<4x1xf32> to vector<1xf32>
    %1684 = vector.shape_cast %1683 : vector<1xf32> to vector<1x1xf32>
    %cst_266 = arith.constant 4.000000e+00 : f32
    %1685 = vector.broadcast %cst_266 : f32 to vector<1x1xf32>
    %1686 = arith.divf %1684, %1685 : vector<1x1xf32>
    %1687 = arith.mulf %1677, %1677 : vector<1x1xf32>
    %1688 = arith.subf %1686, %1687 : vector<1x1xf32>
    %cst_267 = arith.constant 0.000000e+00 : f32
    %1689 = vector.broadcast %cst_267 : f32 to vector<1x1xf32>
    %1690 = arith.maximumf %1688, %1689 : vector<1x1xf32>
    %c8_268 = arith.constant 8 : index
    %1691 = memref.load %arg7[%c8_268] : memref<16xf32, #tpu.memory_space<smem>>
    %c8_269 = arith.constant 8 : index
    %1692 = memref.load %arg8[%c8_269] : memref<16xf32, #tpu.memory_space<smem>>
    %cst_270 = arith.constant 9.99999974E-6 : f32
    %1693 = vector.broadcast %cst_270 : f32 to vector<1x1xf32>
    %1694 = arith.addf %1690, %1693 : vector<1x1xf32>
    %1695 = math.rsqrt %1694 : vector<1x1xf32>
    %1696 = vector.broadcast %1691 : f32 to vector<1x1xf32>
    %1697 = arith.mulf %1696, %1695 : vector<1x1xf32>
    %1698 = arith.mulf %1677, %1697 : vector<1x1xf32>
    %1699 = vector.broadcast %1692 : f32 to vector<1x1xf32>
    %1700 = arith.subf %1699, %1698 : vector<1x1xf32>
    %1701 = vector.broadcast %1697 : vector<1x1xf32> to vector<4x30xf32>
    %1702 = arith.mulf %1669, %1701 : vector<4x30xf32>
    %1703 = vector.broadcast %1700 : vector<1x1xf32> to vector<4x30xf32>
    %1704 = arith.addf %1702, %1703 : vector<4x30xf32>
    %cst_271 = arith.constant 0.000000e+00 : f32
    %1705 = vector.broadcast %cst_271 : f32 to vector<4x30xf32>
    %c9_272 = arith.constant 9 : index
    %1706 = memref.load %arg5[%c9_272] : memref<384xf32, #tpu.memory_space<smem>>
    %1707 = vector.broadcast %1706 : f32 to vector<4x30xf32>
    %1708 = arith.mulf %1707, %440 : vector<4x30xf32>
    %1709 = arith.addf %1705, %1708 : vector<4x30xf32>
    %c137 = arith.constant 137 : index
    %1710 = memref.load %arg5[%c137] : memref<384xf32, #tpu.memory_space<smem>>
    %1711 = vector.broadcast %1710 : f32 to vector<4x30xf32>
    %1712 = arith.mulf %1711, %73 : vector<4x30xf32>
    %1713 = arith.addf %1709, %1712 : vector<4x30xf32>
    %c265 = arith.constant 265 : index
    %1714 = memref.load %arg5[%c265] : memref<384xf32, #tpu.memory_space<smem>>
    %1715 = vector.broadcast %1714 : f32 to vector<4x30xf32>
    %1716 = arith.mulf %1715, %441 : vector<4x30xf32>
    %1717 = arith.addf %1713, %1716 : vector<4x30xf32>
    %c25 = arith.constant 25 : index
    %1718 = memref.load %arg5[%c25] : memref<384xf32, #tpu.memory_space<smem>>
    %1719 = vector.broadcast %1718 : f32 to vector<4x30xf32>
    %1720 = arith.mulf %1719, %443 : vector<4x30xf32>
    %1721 = arith.addf %1717, %1720 : vector<4x30xf32>
    %c153 = arith.constant 153 : index
    %1722 = memref.load %arg5[%c153] : memref<384xf32, #tpu.memory_space<smem>>
    %1723 = vector.broadcast %1722 : f32 to vector<4x30xf32>
    %1724 = arith.mulf %1723, %125 : vector<4x30xf32>
    %1725 = arith.addf %1721, %1724 : vector<4x30xf32>
    %c281 = arith.constant 281 : index
    %1726 = memref.load %arg5[%c281] : memref<384xf32, #tpu.memory_space<smem>>
    %1727 = vector.broadcast %1726 : f32 to vector<4x30xf32>
    %1728 = arith.mulf %1727, %444 : vector<4x30xf32>
    %1729 = arith.addf %1725, %1728 : vector<4x30xf32>
    %c41 = arith.constant 41 : index
    %1730 = memref.load %arg5[%c41] : memref<384xf32, #tpu.memory_space<smem>>
    %1731 = vector.broadcast %1730 : f32 to vector<4x30xf32>
    %1732 = arith.mulf %1731, %446 : vector<4x30xf32>
    %1733 = arith.addf %1729, %1732 : vector<4x30xf32>
    %c169 = arith.constant 169 : index
    %1734 = memref.load %arg5[%c169] : memref<384xf32, #tpu.memory_space<smem>>
    %1735 = vector.broadcast %1734 : f32 to vector<4x30xf32>
    %1736 = arith.mulf %1735, %177 : vector<4x30xf32>
    %1737 = arith.addf %1733, %1736 : vector<4x30xf32>
    %c297 = arith.constant 297 : index
    %1738 = memref.load %arg5[%c297] : memref<384xf32, #tpu.memory_space<smem>>
    %1739 = vector.broadcast %1738 : f32 to vector<4x30xf32>
    %1740 = arith.mulf %1739, %447 : vector<4x30xf32>
    %1741 = arith.addf %1737, %1740 : vector<4x30xf32>
    %c57 = arith.constant 57 : index
    %1742 = memref.load %arg5[%c57] : memref<384xf32, #tpu.memory_space<smem>>
    %1743 = vector.broadcast %1742 : f32 to vector<4x30xf32>
    %1744 = arith.mulf %1743, %449 : vector<4x30xf32>
    %1745 = arith.addf %1741, %1744 : vector<4x30xf32>
    %c185 = arith.constant 185 : index
    %1746 = memref.load %arg5[%c185] : memref<384xf32, #tpu.memory_space<smem>>
    %1747 = vector.broadcast %1746 : f32 to vector<4x30xf32>
    %1748 = arith.mulf %1747, %229 : vector<4x30xf32>
    %1749 = arith.addf %1745, %1748 : vector<4x30xf32>
    %c313 = arith.constant 313 : index
    %1750 = memref.load %arg5[%c313] : memref<384xf32, #tpu.memory_space<smem>>
    %1751 = vector.broadcast %1750 : f32 to vector<4x30xf32>
    %1752 = arith.mulf %1751, %450 : vector<4x30xf32>
    %1753 = arith.addf %1749, %1752 : vector<4x30xf32>
    %c73 = arith.constant 73 : index
    %1754 = memref.load %arg5[%c73] : memref<384xf32, #tpu.memory_space<smem>>
    %1755 = vector.broadcast %1754 : f32 to vector<4x30xf32>
    %1756 = arith.mulf %1755, %452 : vector<4x30xf32>
    %1757 = arith.addf %1753, %1756 : vector<4x30xf32>
    %c201 = arith.constant 201 : index
    %1758 = memref.load %arg5[%c201] : memref<384xf32, #tpu.memory_space<smem>>
    %1759 = vector.broadcast %1758 : f32 to vector<4x30xf32>
    %1760 = arith.mulf %1759, %281 : vector<4x30xf32>
    %1761 = arith.addf %1757, %1760 : vector<4x30xf32>
    %c329 = arith.constant 329 : index
    %1762 = memref.load %arg5[%c329] : memref<384xf32, #tpu.memory_space<smem>>
    %1763 = vector.broadcast %1762 : f32 to vector<4x30xf32>
    %1764 = arith.mulf %1763, %453 : vector<4x30xf32>
    %1765 = arith.addf %1761, %1764 : vector<4x30xf32>
    %c89 = arith.constant 89 : index
    %1766 = memref.load %arg5[%c89] : memref<384xf32, #tpu.memory_space<smem>>
    %1767 = vector.broadcast %1766 : f32 to vector<4x30xf32>
    %1768 = arith.mulf %1767, %455 : vector<4x30xf32>
    %1769 = arith.addf %1765, %1768 : vector<4x30xf32>
    %c217 = arith.constant 217 : index
    %1770 = memref.load %arg5[%c217] : memref<384xf32, #tpu.memory_space<smem>>
    %1771 = vector.broadcast %1770 : f32 to vector<4x30xf32>
    %1772 = arith.mulf %1771, %333 : vector<4x30xf32>
    %1773 = arith.addf %1769, %1772 : vector<4x30xf32>
    %c345 = arith.constant 345 : index
    %1774 = memref.load %arg5[%c345] : memref<384xf32, #tpu.memory_space<smem>>
    %1775 = vector.broadcast %1774 : f32 to vector<4x30xf32>
    %1776 = arith.mulf %1775, %456 : vector<4x30xf32>
    %1777 = arith.addf %1773, %1776 : vector<4x30xf32>
    %c105 = arith.constant 105 : index
    %1778 = memref.load %arg5[%c105] : memref<384xf32, #tpu.memory_space<smem>>
    %1779 = vector.broadcast %1778 : f32 to vector<4x30xf32>
    %1780 = arith.mulf %1779, %458 : vector<4x30xf32>
    %1781 = arith.addf %1777, %1780 : vector<4x30xf32>
    %c233 = arith.constant 233 : index
    %1782 = memref.load %arg5[%c233] : memref<384xf32, #tpu.memory_space<smem>>
    %1783 = vector.broadcast %1782 : f32 to vector<4x30xf32>
    %1784 = arith.mulf %1783, %385 : vector<4x30xf32>
    %1785 = arith.addf %1781, %1784 : vector<4x30xf32>
    %c361 = arith.constant 361 : index
    %1786 = memref.load %arg5[%c361] : memref<384xf32, #tpu.memory_space<smem>>
    %1787 = vector.broadcast %1786 : f32 to vector<4x30xf32>
    %1788 = arith.mulf %1787, %459 : vector<4x30xf32>
    %1789 = arith.addf %1785, %1788 : vector<4x30xf32>
    %c121 = arith.constant 121 : index
    %1790 = memref.load %arg5[%c121] : memref<384xf32, #tpu.memory_space<smem>>
    %1791 = vector.broadcast %1790 : f32 to vector<4x30xf32>
    %1792 = arith.mulf %1791, %461 : vector<4x30xf32>
    %1793 = arith.addf %1789, %1792 : vector<4x30xf32>
    %c249 = arith.constant 249 : index
    %1794 = memref.load %arg5[%c249] : memref<384xf32, #tpu.memory_space<smem>>
    %1795 = vector.broadcast %1794 : f32 to vector<4x30xf32>
    %1796 = arith.mulf %1795, %437 : vector<4x30xf32>
    %1797 = arith.addf %1793, %1796 : vector<4x30xf32>
    %c377 = arith.constant 377 : index
    %1798 = memref.load %arg5[%c377] : memref<384xf32, #tpu.memory_space<smem>>
    %1799 = vector.broadcast %1798 : f32 to vector<4x30xf32>
    %1800 = arith.mulf %1799, %462 : vector<4x30xf32>
    %1801 = arith.addf %1797, %1800 : vector<4x30xf32>
    %c9_273 = arith.constant 9 : index
    %1802 = memref.load %arg6[%c9_273] : memref<16xf32, #tpu.memory_space<smem>>
    %1803 = vector.broadcast %1802 : f32 to vector<4x30xf32>
    %1804 = arith.addf %1801, %1803 : vector<4x30xf32>
    %cst_274 = arith.constant 0.00999999977 : f32
    %1805 = vector.broadcast %cst_274 : f32 to vector<4x30xf32>
    %1806 = arith.mulf %1805, %1804 : vector<4x30xf32>
    %1807 = arith.maximumf %1804, %1806 : vector<4x30xf32>
    %cst_275 = arith.constant dense<0.000000e+00> : vector<4xf32>
    %1808 = vector.multi_reduction <add>, %1807, %cst_275 [1] : vector<4x30xf32> to vector<4xf32>
    %1809 = vector.shape_cast %1808 : vector<4xf32> to vector<4x1xf32>
    %cst_276 = arith.constant 3.000000e+01 : f32
    %1810 = vector.broadcast %cst_276 : f32 to vector<4x1xf32>
    %1811 = arith.divf %1809, %1810 : vector<4x1xf32>
    %cst_277 = arith.constant dense<0.000000e+00> : vector<1xf32>
    %1812 = vector.multi_reduction <add>, %1811, %cst_277 [0] : vector<4x1xf32> to vector<1xf32>
    %1813 = vector.shape_cast %1812 : vector<1xf32> to vector<1x1xf32>
    %cst_278 = arith.constant 4.000000e+00 : f32
    %1814 = vector.broadcast %cst_278 : f32 to vector<1x1xf32>
    %1815 = arith.divf %1813, %1814 : vector<1x1xf32>
    %1816 = arith.mulf %1807, %1807 : vector<4x30xf32>
    %cst_279 = arith.constant dense<0.000000e+00> : vector<4xf32>
    %1817 = vector.multi_reduction <add>, %1816, %cst_279 [1] : vector<4x30xf32> to vector<4xf32>
    %1818 = vector.shape_cast %1817 : vector<4xf32> to vector<4x1xf32>
    %cst_280 = arith.constant 3.000000e+01 : f32
    %1819 = vector.broadcast %cst_280 : f32 to vector<4x1xf32>
    %1820 = arith.divf %1818, %1819 : vector<4x1xf32>
    %cst_281 = arith.constant dense<0.000000e+00> : vector<1xf32>
    %1821 = vector.multi_reduction <add>, %1820, %cst_281 [0] : vector<4x1xf32> to vector<1xf32>
    %1822 = vector.shape_cast %1821 : vector<1xf32> to vector<1x1xf32>
    %cst_282 = arith.constant 4.000000e+00 : f32
    %1823 = vector.broadcast %cst_282 : f32 to vector<1x1xf32>
    %1824 = arith.divf %1822, %1823 : vector<1x1xf32>
    %1825 = arith.mulf %1815, %1815 : vector<1x1xf32>
    %1826 = arith.subf %1824, %1825 : vector<1x1xf32>
    %cst_283 = arith.constant 0.000000e+00 : f32
    %1827 = vector.broadcast %cst_283 : f32 to vector<1x1xf32>
    %1828 = arith.maximumf %1826, %1827 : vector<1x1xf32>
    %c9_284 = arith.constant 9 : index
    %1829 = memref.load %arg7[%c9_284] : memref<16xf32, #tpu.memory_space<smem>>
    %c9_285 = arith.constant 9 : index
    %1830 = memref.load %arg8[%c9_285] : memref<16xf32, #tpu.memory_space<smem>>
    %cst_286 = arith.constant 9.99999974E-6 : f32
    %1831 = vector.broadcast %cst_286 : f32 to vector<1x1xf32>
    %1832 = arith.addf %1828, %1831 : vector<1x1xf32>
    %1833 = math.rsqrt %1832 : vector<1x1xf32>
    %1834 = vector.broadcast %1829 : f32 to vector<1x1xf32>
    %1835 = arith.mulf %1834, %1833 : vector<1x1xf32>
    %1836 = arith.mulf %1815, %1835 : vector<1x1xf32>
    %1837 = vector.broadcast %1830 : f32 to vector<1x1xf32>
    %1838 = arith.subf %1837, %1836 : vector<1x1xf32>
    %1839 = vector.broadcast %1835 : vector<1x1xf32> to vector<4x30xf32>
    %1840 = arith.mulf %1807, %1839 : vector<4x30xf32>
    %1841 = vector.broadcast %1838 : vector<1x1xf32> to vector<4x30xf32>
    %1842 = arith.addf %1840, %1841 : vector<4x30xf32>
    %cst_287 = arith.constant 0.000000e+00 : f32
    %1843 = vector.broadcast %cst_287 : f32 to vector<4x30xf32>
    %c10_288 = arith.constant 10 : index
    %1844 = memref.load %arg5[%c10_288] : memref<384xf32, #tpu.memory_space<smem>>
    %1845 = vector.broadcast %1844 : f32 to vector<4x30xf32>
    %1846 = arith.mulf %1845, %440 : vector<4x30xf32>
    %1847 = arith.addf %1843, %1846 : vector<4x30xf32>
    %c138 = arith.constant 138 : index
    %1848 = memref.load %arg5[%c138] : memref<384xf32, #tpu.memory_space<smem>>
    %1849 = vector.broadcast %1848 : f32 to vector<4x30xf32>
    %1850 = arith.mulf %1849, %73 : vector<4x30xf32>
    %1851 = arith.addf %1847, %1850 : vector<4x30xf32>
    %c266 = arith.constant 266 : index
    %1852 = memref.load %arg5[%c266] : memref<384xf32, #tpu.memory_space<smem>>
    %1853 = vector.broadcast %1852 : f32 to vector<4x30xf32>
    %1854 = arith.mulf %1853, %441 : vector<4x30xf32>
    %1855 = arith.addf %1851, %1854 : vector<4x30xf32>
    %c26 = arith.constant 26 : index
    %1856 = memref.load %arg5[%c26] : memref<384xf32, #tpu.memory_space<smem>>
    %1857 = vector.broadcast %1856 : f32 to vector<4x30xf32>
    %1858 = arith.mulf %1857, %443 : vector<4x30xf32>
    %1859 = arith.addf %1855, %1858 : vector<4x30xf32>
    %c154 = arith.constant 154 : index
    %1860 = memref.load %arg5[%c154] : memref<384xf32, #tpu.memory_space<smem>>
    %1861 = vector.broadcast %1860 : f32 to vector<4x30xf32>
    %1862 = arith.mulf %1861, %125 : vector<4x30xf32>
    %1863 = arith.addf %1859, %1862 : vector<4x30xf32>
    %c282 = arith.constant 282 : index
    %1864 = memref.load %arg5[%c282] : memref<384xf32, #tpu.memory_space<smem>>
    %1865 = vector.broadcast %1864 : f32 to vector<4x30xf32>
    %1866 = arith.mulf %1865, %444 : vector<4x30xf32>
    %1867 = arith.addf %1863, %1866 : vector<4x30xf32>
    %c42 = arith.constant 42 : index
    %1868 = memref.load %arg5[%c42] : memref<384xf32, #tpu.memory_space<smem>>
    %1869 = vector.broadcast %1868 : f32 to vector<4x30xf32>
    %1870 = arith.mulf %1869, %446 : vector<4x30xf32>
    %1871 = arith.addf %1867, %1870 : vector<4x30xf32>
    %c170 = arith.constant 170 : index
    %1872 = memref.load %arg5[%c170] : memref<384xf32, #tpu.memory_space<smem>>
    %1873 = vector.broadcast %1872 : f32 to vector<4x30xf32>
    %1874 = arith.mulf %1873, %177 : vector<4x30xf32>
    %1875 = arith.addf %1871, %1874 : vector<4x30xf32>
    %c298 = arith.constant 298 : index
    %1876 = memref.load %arg5[%c298] : memref<384xf32, #tpu.memory_space<smem>>
    %1877 = vector.broadcast %1876 : f32 to vector<4x30xf32>
    %1878 = arith.mulf %1877, %447 : vector<4x30xf32>
    %1879 = arith.addf %1875, %1878 : vector<4x30xf32>
    %c58 = arith.constant 58 : index
    %1880 = memref.load %arg5[%c58] : memref<384xf32, #tpu.memory_space<smem>>
    %1881 = vector.broadcast %1880 : f32 to vector<4x30xf32>
    %1882 = arith.mulf %1881, %449 : vector<4x30xf32>
    %1883 = arith.addf %1879, %1882 : vector<4x30xf32>
    %c186 = arith.constant 186 : index
    %1884 = memref.load %arg5[%c186] : memref<384xf32, #tpu.memory_space<smem>>
    %1885 = vector.broadcast %1884 : f32 to vector<4x30xf32>
    %1886 = arith.mulf %1885, %229 : vector<4x30xf32>
    %1887 = arith.addf %1883, %1886 : vector<4x30xf32>
    %c314 = arith.constant 314 : index
    %1888 = memref.load %arg5[%c314] : memref<384xf32, #tpu.memory_space<smem>>
    %1889 = vector.broadcast %1888 : f32 to vector<4x30xf32>
    %1890 = arith.mulf %1889, %450 : vector<4x30xf32>
    %1891 = arith.addf %1887, %1890 : vector<4x30xf32>
    %c74 = arith.constant 74 : index
    %1892 = memref.load %arg5[%c74] : memref<384xf32, #tpu.memory_space<smem>>
    %1893 = vector.broadcast %1892 : f32 to vector<4x30xf32>
    %1894 = arith.mulf %1893, %452 : vector<4x30xf32>
    %1895 = arith.addf %1891, %1894 : vector<4x30xf32>
    %c202 = arith.constant 202 : index
    %1896 = memref.load %arg5[%c202] : memref<384xf32, #tpu.memory_space<smem>>
    %1897 = vector.broadcast %1896 : f32 to vector<4x30xf32>
    %1898 = arith.mulf %1897, %281 : vector<4x30xf32>
    %1899 = arith.addf %1895, %1898 : vector<4x30xf32>
    %c330 = arith.constant 330 : index
    %1900 = memref.load %arg5[%c330] : memref<384xf32, #tpu.memory_space<smem>>
    %1901 = vector.broadcast %1900 : f32 to vector<4x30xf32>
    %1902 = arith.mulf %1901, %453 : vector<4x30xf32>
    %1903 = arith.addf %1899, %1902 : vector<4x30xf32>
    %c90 = arith.constant 90 : index
    %1904 = memref.load %arg5[%c90] : memref<384xf32, #tpu.memory_space<smem>>
    %1905 = vector.broadcast %1904 : f32 to vector<4x30xf32>
    %1906 = arith.mulf %1905, %455 : vector<4x30xf32>
    %1907 = arith.addf %1903, %1906 : vector<4x30xf32>
    %c218 = arith.constant 218 : index
    %1908 = memref.load %arg5[%c218] : memref<384xf32, #tpu.memory_space<smem>>
    %1909 = vector.broadcast %1908 : f32 to vector<4x30xf32>
    %1910 = arith.mulf %1909, %333 : vector<4x30xf32>
    %1911 = arith.addf %1907, %1910 : vector<4x30xf32>
    %c346 = arith.constant 346 : index
    %1912 = memref.load %arg5[%c346] : memref<384xf32, #tpu.memory_space<smem>>
    %1913 = vector.broadcast %1912 : f32 to vector<4x30xf32>
    %1914 = arith.mulf %1913, %456 : vector<4x30xf32>
    %1915 = arith.addf %1911, %1914 : vector<4x30xf32>
    %c106 = arith.constant 106 : index
    %1916 = memref.load %arg5[%c106] : memref<384xf32, #tpu.memory_space<smem>>
    %1917 = vector.broadcast %1916 : f32 to vector<4x30xf32>
    %1918 = arith.mulf %1917, %458 : vector<4x30xf32>
    %1919 = arith.addf %1915, %1918 : vector<4x30xf32>
    %c234 = arith.constant 234 : index
    %1920 = memref.load %arg5[%c234] : memref<384xf32, #tpu.memory_space<smem>>
    %1921 = vector.broadcast %1920 : f32 to vector<4x30xf32>
    %1922 = arith.mulf %1921, %385 : vector<4x30xf32>
    %1923 = arith.addf %1919, %1922 : vector<4x30xf32>
    %c362 = arith.constant 362 : index
    %1924 = memref.load %arg5[%c362] : memref<384xf32, #tpu.memory_space<smem>>
    %1925 = vector.broadcast %1924 : f32 to vector<4x30xf32>
    %1926 = arith.mulf %1925, %459 : vector<4x30xf32>
    %1927 = arith.addf %1923, %1926 : vector<4x30xf32>
    %c122 = arith.constant 122 : index
    %1928 = memref.load %arg5[%c122] : memref<384xf32, #tpu.memory_space<smem>>
    %1929 = vector.broadcast %1928 : f32 to vector<4x30xf32>
    %1930 = arith.mulf %1929, %461 : vector<4x30xf32>
    %1931 = arith.addf %1927, %1930 : vector<4x30xf32>
    %c250 = arith.constant 250 : index
    %1932 = memref.load %arg5[%c250] : memref<384xf32, #tpu.memory_space<smem>>
    %1933 = vector.broadcast %1932 : f32 to vector<4x30xf32>
    %1934 = arith.mulf %1933, %437 : vector<4x30xf32>
    %1935 = arith.addf %1931, %1934 : vector<4x30xf32>
    %c378 = arith.constant 378 : index
    %1936 = memref.load %arg5[%c378] : memref<384xf32, #tpu.memory_space<smem>>
    %1937 = vector.broadcast %1936 : f32 to vector<4x30xf32>
    %1938 = arith.mulf %1937, %462 : vector<4x30xf32>
    %1939 = arith.addf %1935, %1938 : vector<4x30xf32>
    %c10_289 = arith.constant 10 : index
    %1940 = memref.load %arg6[%c10_289] : memref<16xf32, #tpu.memory_space<smem>>
    %1941 = vector.broadcast %1940 : f32 to vector<4x30xf32>
    %1942 = arith.addf %1939, %1941 : vector<4x30xf32>
    %cst_290 = arith.constant 0.00999999977 : f32
    %1943 = vector.broadcast %cst_290 : f32 to vector<4x30xf32>
    %1944 = arith.mulf %1943, %1942 : vector<4x30xf32>
    %1945 = arith.maximumf %1942, %1944 : vector<4x30xf32>
    %cst_291 = arith.constant dense<0.000000e+00> : vector<4xf32>
    %1946 = vector.multi_reduction <add>, %1945, %cst_291 [1] : vector<4x30xf32> to vector<4xf32>
    %1947 = vector.shape_cast %1946 : vector<4xf32> to vector<4x1xf32>
    %cst_292 = arith.constant 3.000000e+01 : f32
    %1948 = vector.broadcast %cst_292 : f32 to vector<4x1xf32>
    %1949 = arith.divf %1947, %1948 : vector<4x1xf32>
    %cst_293 = arith.constant dense<0.000000e+00> : vector<1xf32>
    %1950 = vector.multi_reduction <add>, %1949, %cst_293 [0] : vector<4x1xf32> to vector<1xf32>
    %1951 = vector.shape_cast %1950 : vector<1xf32> to vector<1x1xf32>
    %cst_294 = arith.constant 4.000000e+00 : f32
    %1952 = vector.broadcast %cst_294 : f32 to vector<1x1xf32>
    %1953 = arith.divf %1951, %1952 : vector<1x1xf32>
    %1954 = arith.mulf %1945, %1945 : vector<4x30xf32>
    %cst_295 = arith.constant dense<0.000000e+00> : vector<4xf32>
    %1955 = vector.multi_reduction <add>, %1954, %cst_295 [1] : vector<4x30xf32> to vector<4xf32>
    %1956 = vector.shape_cast %1955 : vector<4xf32> to vector<4x1xf32>
    %cst_296 = arith.constant 3.000000e+01 : f32
    %1957 = vector.broadcast %cst_296 : f32 to vector<4x1xf32>
    %1958 = arith.divf %1956, %1957 : vector<4x1xf32>
    %cst_297 = arith.constant dense<0.000000e+00> : vector<1xf32>
    %1959 = vector.multi_reduction <add>, %1958, %cst_297 [0] : vector<4x1xf32> to vector<1xf32>
    %1960 = vector.shape_cast %1959 : vector<1xf32> to vector<1x1xf32>
    %cst_298 = arith.constant 4.000000e+00 : f32
    %1961 = vector.broadcast %cst_298 : f32 to vector<1x1xf32>
    %1962 = arith.divf %1960, %1961 : vector<1x1xf32>
    %1963 = arith.mulf %1953, %1953 : vector<1x1xf32>
    %1964 = arith.subf %1962, %1963 : vector<1x1xf32>
    %cst_299 = arith.constant 0.000000e+00 : f32
    %1965 = vector.broadcast %cst_299 : f32 to vector<1x1xf32>
    %1966 = arith.maximumf %1964, %1965 : vector<1x1xf32>
    %c10_300 = arith.constant 10 : index
    %1967 = memref.load %arg7[%c10_300] : memref<16xf32, #tpu.memory_space<smem>>
    %c10_301 = arith.constant 10 : index
    %1968 = memref.load %arg8[%c10_301] : memref<16xf32, #tpu.memory_space<smem>>
    %cst_302 = arith.constant 9.99999974E-6 : f32
    %1969 = vector.broadcast %cst_302 : f32 to vector<1x1xf32>
    %1970 = arith.addf %1966, %1969 : vector<1x1xf32>
    %1971 = math.rsqrt %1970 : vector<1x1xf32>
    %1972 = vector.broadcast %1967 : f32 to vector<1x1xf32>
    %1973 = arith.mulf %1972, %1971 : vector<1x1xf32>
    %1974 = arith.mulf %1953, %1973 : vector<1x1xf32>
    %1975 = vector.broadcast %1968 : f32 to vector<1x1xf32>
    %1976 = arith.subf %1975, %1974 : vector<1x1xf32>
    %1977 = vector.broadcast %1973 : vector<1x1xf32> to vector<4x30xf32>
    %1978 = arith.mulf %1945, %1977 : vector<4x30xf32>
    %1979 = vector.broadcast %1976 : vector<1x1xf32> to vector<4x30xf32>
    %1980 = arith.addf %1978, %1979 : vector<4x30xf32>
    %cst_303 = arith.constant 0.000000e+00 : f32
    %1981 = vector.broadcast %cst_303 : f32 to vector<4x30xf32>
    %c11_304 = arith.constant 11 : index
    %1982 = memref.load %arg5[%c11_304] : memref<384xf32, #tpu.memory_space<smem>>
    %1983 = vector.broadcast %1982 : f32 to vector<4x30xf32>
    %1984 = arith.mulf %1983, %440 : vector<4x30xf32>
    %1985 = arith.addf %1981, %1984 : vector<4x30xf32>
    %c139 = arith.constant 139 : index
    %1986 = memref.load %arg5[%c139] : memref<384xf32, #tpu.memory_space<smem>>
    %1987 = vector.broadcast %1986 : f32 to vector<4x30xf32>
    %1988 = arith.mulf %1987, %73 : vector<4x30xf32>
    %1989 = arith.addf %1985, %1988 : vector<4x30xf32>
    %c267 = arith.constant 267 : index
    %1990 = memref.load %arg5[%c267] : memref<384xf32, #tpu.memory_space<smem>>
    %1991 = vector.broadcast %1990 : f32 to vector<4x30xf32>
    %1992 = arith.mulf %1991, %441 : vector<4x30xf32>
    %1993 = arith.addf %1989, %1992 : vector<4x30xf32>
    %c27 = arith.constant 27 : index
    %1994 = memref.load %arg5[%c27] : memref<384xf32, #tpu.memory_space<smem>>
    %1995 = vector.broadcast %1994 : f32 to vector<4x30xf32>
    %1996 = arith.mulf %1995, %443 : vector<4x30xf32>
    %1997 = arith.addf %1993, %1996 : vector<4x30xf32>
    %c155 = arith.constant 155 : index
    %1998 = memref.load %arg5[%c155] : memref<384xf32, #tpu.memory_space<smem>>
    %1999 = vector.broadcast %1998 : f32 to vector<4x30xf32>
    %2000 = arith.mulf %1999, %125 : vector<4x30xf32>
    %2001 = arith.addf %1997, %2000 : vector<4x30xf32>
    %c283 = arith.constant 283 : index
    %2002 = memref.load %arg5[%c283] : memref<384xf32, #tpu.memory_space<smem>>
    %2003 = vector.broadcast %2002 : f32 to vector<4x30xf32>
    %2004 = arith.mulf %2003, %444 : vector<4x30xf32>
    %2005 = arith.addf %2001, %2004 : vector<4x30xf32>
    %c43 = arith.constant 43 : index
    %2006 = memref.load %arg5[%c43] : memref<384xf32, #tpu.memory_space<smem>>
    %2007 = vector.broadcast %2006 : f32 to vector<4x30xf32>
    %2008 = arith.mulf %2007, %446 : vector<4x30xf32>
    %2009 = arith.addf %2005, %2008 : vector<4x30xf32>
    %c171 = arith.constant 171 : index
    %2010 = memref.load %arg5[%c171] : memref<384xf32, #tpu.memory_space<smem>>
    %2011 = vector.broadcast %2010 : f32 to vector<4x30xf32>
    %2012 = arith.mulf %2011, %177 : vector<4x30xf32>
    %2013 = arith.addf %2009, %2012 : vector<4x30xf32>
    %c299 = arith.constant 299 : index
    %2014 = memref.load %arg5[%c299] : memref<384xf32, #tpu.memory_space<smem>>
    %2015 = vector.broadcast %2014 : f32 to vector<4x30xf32>
    %2016 = arith.mulf %2015, %447 : vector<4x30xf32>
    %2017 = arith.addf %2013, %2016 : vector<4x30xf32>
    %c59 = arith.constant 59 : index
    %2018 = memref.load %arg5[%c59] : memref<384xf32, #tpu.memory_space<smem>>
    %2019 = vector.broadcast %2018 : f32 to vector<4x30xf32>
    %2020 = arith.mulf %2019, %449 : vector<4x30xf32>
    %2021 = arith.addf %2017, %2020 : vector<4x30xf32>
    %c187 = arith.constant 187 : index
    %2022 = memref.load %arg5[%c187] : memref<384xf32, #tpu.memory_space<smem>>
    %2023 = vector.broadcast %2022 : f32 to vector<4x30xf32>
    %2024 = arith.mulf %2023, %229 : vector<4x30xf32>
    %2025 = arith.addf %2021, %2024 : vector<4x30xf32>
    %c315 = arith.constant 315 : index
    %2026 = memref.load %arg5[%c315] : memref<384xf32, #tpu.memory_space<smem>>
    %2027 = vector.broadcast %2026 : f32 to vector<4x30xf32>
    %2028 = arith.mulf %2027, %450 : vector<4x30xf32>
    %2029 = arith.addf %2025, %2028 : vector<4x30xf32>
    %c75 = arith.constant 75 : index
    %2030 = memref.load %arg5[%c75] : memref<384xf32, #tpu.memory_space<smem>>
    %2031 = vector.broadcast %2030 : f32 to vector<4x30xf32>
    %2032 = arith.mulf %2031, %452 : vector<4x30xf32>
    %2033 = arith.addf %2029, %2032 : vector<4x30xf32>
    %c203 = arith.constant 203 : index
    %2034 = memref.load %arg5[%c203] : memref<384xf32, #tpu.memory_space<smem>>
    %2035 = vector.broadcast %2034 : f32 to vector<4x30xf32>
    %2036 = arith.mulf %2035, %281 : vector<4x30xf32>
    %2037 = arith.addf %2033, %2036 : vector<4x30xf32>
    %c331 = arith.constant 331 : index
    %2038 = memref.load %arg5[%c331] : memref<384xf32, #tpu.memory_space<smem>>
    %2039 = vector.broadcast %2038 : f32 to vector<4x30xf32>
    %2040 = arith.mulf %2039, %453 : vector<4x30xf32>
    %2041 = arith.addf %2037, %2040 : vector<4x30xf32>
    %c91 = arith.constant 91 : index
    %2042 = memref.load %arg5[%c91] : memref<384xf32, #tpu.memory_space<smem>>
    %2043 = vector.broadcast %2042 : f32 to vector<4x30xf32>
    %2044 = arith.mulf %2043, %455 : vector<4x30xf32>
    %2045 = arith.addf %2041, %2044 : vector<4x30xf32>
    %c219 = arith.constant 219 : index
    %2046 = memref.load %arg5[%c219] : memref<384xf32, #tpu.memory_space<smem>>
    %2047 = vector.broadcast %2046 : f32 to vector<4x30xf32>
    %2048 = arith.mulf %2047, %333 : vector<4x30xf32>
    %2049 = arith.addf %2045, %2048 : vector<4x30xf32>
    %c347 = arith.constant 347 : index
    %2050 = memref.load %arg5[%c347] : memref<384xf32, #tpu.memory_space<smem>>
    %2051 = vector.broadcast %2050 : f32 to vector<4x30xf32>
    %2052 = arith.mulf %2051, %456 : vector<4x30xf32>
    %2053 = arith.addf %2049, %2052 : vector<4x30xf32>
    %c107 = arith.constant 107 : index
    %2054 = memref.load %arg5[%c107] : memref<384xf32, #tpu.memory_space<smem>>
    %2055 = vector.broadcast %2054 : f32 to vector<4x30xf32>
    %2056 = arith.mulf %2055, %458 : vector<4x30xf32>
    %2057 = arith.addf %2053, %2056 : vector<4x30xf32>
    %c235 = arith.constant 235 : index
    %2058 = memref.load %arg5[%c235] : memref<384xf32, #tpu.memory_space<smem>>
    %2059 = vector.broadcast %2058 : f32 to vector<4x30xf32>
    %2060 = arith.mulf %2059, %385 : vector<4x30xf32>
    %2061 = arith.addf %2057, %2060 : vector<4x30xf32>
    %c363 = arith.constant 363 : index
    %2062 = memref.load %arg5[%c363] : memref<384xf32, #tpu.memory_space<smem>>
    %2063 = vector.broadcast %2062 : f32 to vector<4x30xf32>
    %2064 = arith.mulf %2063, %459 : vector<4x30xf32>
    %2065 = arith.addf %2061, %2064 : vector<4x30xf32>
    %c123 = arith.constant 123 : index
    %2066 = memref.load %arg5[%c123] : memref<384xf32, #tpu.memory_space<smem>>
    %2067 = vector.broadcast %2066 : f32 to vector<4x30xf32>
    %2068 = arith.mulf %2067, %461 : vector<4x30xf32>
    %2069 = arith.addf %2065, %2068 : vector<4x30xf32>
    %c251 = arith.constant 251 : index
    %2070 = memref.load %arg5[%c251] : memref<384xf32, #tpu.memory_space<smem>>
    %2071 = vector.broadcast %2070 : f32 to vector<4x30xf32>
    %2072 = arith.mulf %2071, %437 : vector<4x30xf32>
    %2073 = arith.addf %2069, %2072 : vector<4x30xf32>
    %c379 = arith.constant 379 : index
    %2074 = memref.load %arg5[%c379] : memref<384xf32, #tpu.memory_space<smem>>
    %2075 = vector.broadcast %2074 : f32 to vector<4x30xf32>
    %2076 = arith.mulf %2075, %462 : vector<4x30xf32>
    %2077 = arith.addf %2073, %2076 : vector<4x30xf32>
    %c11_305 = arith.constant 11 : index
    %2078 = memref.load %arg6[%c11_305] : memref<16xf32, #tpu.memory_space<smem>>
    %2079 = vector.broadcast %2078 : f32 to vector<4x30xf32>
    %2080 = arith.addf %2077, %2079 : vector<4x30xf32>
    %cst_306 = arith.constant 0.00999999977 : f32
    %2081 = vector.broadcast %cst_306 : f32 to vector<4x30xf32>
    %2082 = arith.mulf %2081, %2080 : vector<4x30xf32>
    %2083 = arith.maximumf %2080, %2082 : vector<4x30xf32>
    %cst_307 = arith.constant dense<0.000000e+00> : vector<4xf32>
    %2084 = vector.multi_reduction <add>, %2083, %cst_307 [1] : vector<4x30xf32> to vector<4xf32>
    %2085 = vector.shape_cast %2084 : vector<4xf32> to vector<4x1xf32>
    %cst_308 = arith.constant 3.000000e+01 : f32
    %2086 = vector.broadcast %cst_308 : f32 to vector<4x1xf32>
    %2087 = arith.divf %2085, %2086 : vector<4x1xf32>
    %cst_309 = arith.constant dense<0.000000e+00> : vector<1xf32>
    %2088 = vector.multi_reduction <add>, %2087, %cst_309 [0] : vector<4x1xf32> to vector<1xf32>
    %2089 = vector.shape_cast %2088 : vector<1xf32> to vector<1x1xf32>
    %cst_310 = arith.constant 4.000000e+00 : f32
    %2090 = vector.broadcast %cst_310 : f32 to vector<1x1xf32>
    %2091 = arith.divf %2089, %2090 : vector<1x1xf32>
    %2092 = arith.mulf %2083, %2083 : vector<4x30xf32>
    %cst_311 = arith.constant dense<0.000000e+00> : vector<4xf32>
    %2093 = vector.multi_reduction <add>, %2092, %cst_311 [1] : vector<4x30xf32> to vector<4xf32>
    %2094 = vector.shape_cast %2093 : vector<4xf32> to vector<4x1xf32>
    %cst_312 = arith.constant 3.000000e+01 : f32
    %2095 = vector.broadcast %cst_312 : f32 to vector<4x1xf32>
    %2096 = arith.divf %2094, %2095 : vector<4x1xf32>
    %cst_313 = arith.constant dense<0.000000e+00> : vector<1xf32>
    %2097 = vector.multi_reduction <add>, %2096, %cst_313 [0] : vector<4x1xf32> to vector<1xf32>
    %2098 = vector.shape_cast %2097 : vector<1xf32> to vector<1x1xf32>
    %cst_314 = arith.constant 4.000000e+00 : f32
    %2099 = vector.broadcast %cst_314 : f32 to vector<1x1xf32>
    %2100 = arith.divf %2098, %2099 : vector<1x1xf32>
    %2101 = arith.mulf %2091, %2091 : vector<1x1xf32>
    %2102 = arith.subf %2100, %2101 : vector<1x1xf32>
    %cst_315 = arith.constant 0.000000e+00 : f32
    %2103 = vector.broadcast %cst_315 : f32 to vector<1x1xf32>
    %2104 = arith.maximumf %2102, %2103 : vector<1x1xf32>
    %c11_316 = arith.constant 11 : index
    %2105 = memref.load %arg7[%c11_316] : memref<16xf32, #tpu.memory_space<smem>>
    %c11_317 = arith.constant 11 : index
    %2106 = memref.load %arg8[%c11_317] : memref<16xf32, #tpu.memory_space<smem>>
    %cst_318 = arith.constant 9.99999974E-6 : f32
    %2107 = vector.broadcast %cst_318 : f32 to vector<1x1xf32>
    %2108 = arith.addf %2104, %2107 : vector<1x1xf32>
    %2109 = math.rsqrt %2108 : vector<1x1xf32>
    %2110 = vector.broadcast %2105 : f32 to vector<1x1xf32>
    %2111 = arith.mulf %2110, %2109 : vector<1x1xf32>
    %2112 = arith.mulf %2091, %2111 : vector<1x1xf32>
    %2113 = vector.broadcast %2106 : f32 to vector<1x1xf32>
    %2114 = arith.subf %2113, %2112 : vector<1x1xf32>
    %2115 = vector.broadcast %2111 : vector<1x1xf32> to vector<4x30xf32>
    %2116 = arith.mulf %2083, %2115 : vector<4x30xf32>
    %2117 = vector.broadcast %2114 : vector<1x1xf32> to vector<4x30xf32>
    %2118 = arith.addf %2116, %2117 : vector<4x30xf32>
    %cst_319 = arith.constant 0.000000e+00 : f32
    %2119 = vector.broadcast %cst_319 : f32 to vector<4x30xf32>
    %c12_320 = arith.constant 12 : index
    %2120 = memref.load %arg5[%c12_320] : memref<384xf32, #tpu.memory_space<smem>>
    %2121 = vector.broadcast %2120 : f32 to vector<4x30xf32>
    %2122 = arith.mulf %2121, %440 : vector<4x30xf32>
    %2123 = arith.addf %2119, %2122 : vector<4x30xf32>
    %c140 = arith.constant 140 : index
    %2124 = memref.load %arg5[%c140] : memref<384xf32, #tpu.memory_space<smem>>
    %2125 = vector.broadcast %2124 : f32 to vector<4x30xf32>
    %2126 = arith.mulf %2125, %73 : vector<4x30xf32>
    %2127 = arith.addf %2123, %2126 : vector<4x30xf32>
    %c268 = arith.constant 268 : index
    %2128 = memref.load %arg5[%c268] : memref<384xf32, #tpu.memory_space<smem>>
    %2129 = vector.broadcast %2128 : f32 to vector<4x30xf32>
    %2130 = arith.mulf %2129, %441 : vector<4x30xf32>
    %2131 = arith.addf %2127, %2130 : vector<4x30xf32>
    %c28 = arith.constant 28 : index
    %2132 = memref.load %arg5[%c28] : memref<384xf32, #tpu.memory_space<smem>>
    %2133 = vector.broadcast %2132 : f32 to vector<4x30xf32>
    %2134 = arith.mulf %2133, %443 : vector<4x30xf32>
    %2135 = arith.addf %2131, %2134 : vector<4x30xf32>
    %c156 = arith.constant 156 : index
    %2136 = memref.load %arg5[%c156] : memref<384xf32, #tpu.memory_space<smem>>
    %2137 = vector.broadcast %2136 : f32 to vector<4x30xf32>
    %2138 = arith.mulf %2137, %125 : vector<4x30xf32>
    %2139 = arith.addf %2135, %2138 : vector<4x30xf32>
    %c284 = arith.constant 284 : index
    %2140 = memref.load %arg5[%c284] : memref<384xf32, #tpu.memory_space<smem>>
    %2141 = vector.broadcast %2140 : f32 to vector<4x30xf32>
    %2142 = arith.mulf %2141, %444 : vector<4x30xf32>
    %2143 = arith.addf %2139, %2142 : vector<4x30xf32>
    %c44 = arith.constant 44 : index
    %2144 = memref.load %arg5[%c44] : memref<384xf32, #tpu.memory_space<smem>>
    %2145 = vector.broadcast %2144 : f32 to vector<4x30xf32>
    %2146 = arith.mulf %2145, %446 : vector<4x30xf32>
    %2147 = arith.addf %2143, %2146 : vector<4x30xf32>
    %c172 = arith.constant 172 : index
    %2148 = memref.load %arg5[%c172] : memref<384xf32, #tpu.memory_space<smem>>
    %2149 = vector.broadcast %2148 : f32 to vector<4x30xf32>
    %2150 = arith.mulf %2149, %177 : vector<4x30xf32>
    %2151 = arith.addf %2147, %2150 : vector<4x30xf32>
    %c300 = arith.constant 300 : index
    %2152 = memref.load %arg5[%c300] : memref<384xf32, #tpu.memory_space<smem>>
    %2153 = vector.broadcast %2152 : f32 to vector<4x30xf32>
    %2154 = arith.mulf %2153, %447 : vector<4x30xf32>
    %2155 = arith.addf %2151, %2154 : vector<4x30xf32>
    %c60 = arith.constant 60 : index
    %2156 = memref.load %arg5[%c60] : memref<384xf32, #tpu.memory_space<smem>>
    %2157 = vector.broadcast %2156 : f32 to vector<4x30xf32>
    %2158 = arith.mulf %2157, %449 : vector<4x30xf32>
    %2159 = arith.addf %2155, %2158 : vector<4x30xf32>
    %c188 = arith.constant 188 : index
    %2160 = memref.load %arg5[%c188] : memref<384xf32, #tpu.memory_space<smem>>
    %2161 = vector.broadcast %2160 : f32 to vector<4x30xf32>
    %2162 = arith.mulf %2161, %229 : vector<4x30xf32>
    %2163 = arith.addf %2159, %2162 : vector<4x30xf32>
    %c316 = arith.constant 316 : index
    %2164 = memref.load %arg5[%c316] : memref<384xf32, #tpu.memory_space<smem>>
    %2165 = vector.broadcast %2164 : f32 to vector<4x30xf32>
    %2166 = arith.mulf %2165, %450 : vector<4x30xf32>
    %2167 = arith.addf %2163, %2166 : vector<4x30xf32>
    %c76 = arith.constant 76 : index
    %2168 = memref.load %arg5[%c76] : memref<384xf32, #tpu.memory_space<smem>>
    %2169 = vector.broadcast %2168 : f32 to vector<4x30xf32>
    %2170 = arith.mulf %2169, %452 : vector<4x30xf32>
    %2171 = arith.addf %2167, %2170 : vector<4x30xf32>
    %c204 = arith.constant 204 : index
    %2172 = memref.load %arg5[%c204] : memref<384xf32, #tpu.memory_space<smem>>
    %2173 = vector.broadcast %2172 : f32 to vector<4x30xf32>
    %2174 = arith.mulf %2173, %281 : vector<4x30xf32>
    %2175 = arith.addf %2171, %2174 : vector<4x30xf32>
    %c332 = arith.constant 332 : index
    %2176 = memref.load %arg5[%c332] : memref<384xf32, #tpu.memory_space<smem>>
    %2177 = vector.broadcast %2176 : f32 to vector<4x30xf32>
    %2178 = arith.mulf %2177, %453 : vector<4x30xf32>
    %2179 = arith.addf %2175, %2178 : vector<4x30xf32>
    %c92 = arith.constant 92 : index
    %2180 = memref.load %arg5[%c92] : memref<384xf32, #tpu.memory_space<smem>>
    %2181 = vector.broadcast %2180 : f32 to vector<4x30xf32>
    %2182 = arith.mulf %2181, %455 : vector<4x30xf32>
    %2183 = arith.addf %2179, %2182 : vector<4x30xf32>
    %c220 = arith.constant 220 : index
    %2184 = memref.load %arg5[%c220] : memref<384xf32, #tpu.memory_space<smem>>
    %2185 = vector.broadcast %2184 : f32 to vector<4x30xf32>
    %2186 = arith.mulf %2185, %333 : vector<4x30xf32>
    %2187 = arith.addf %2183, %2186 : vector<4x30xf32>
    %c348 = arith.constant 348 : index
    %2188 = memref.load %arg5[%c348] : memref<384xf32, #tpu.memory_space<smem>>
    %2189 = vector.broadcast %2188 : f32 to vector<4x30xf32>
    %2190 = arith.mulf %2189, %456 : vector<4x30xf32>
    %2191 = arith.addf %2187, %2190 : vector<4x30xf32>
    %c108 = arith.constant 108 : index
    %2192 = memref.load %arg5[%c108] : memref<384xf32, #tpu.memory_space<smem>>
    %2193 = vector.broadcast %2192 : f32 to vector<4x30xf32>
    %2194 = arith.mulf %2193, %458 : vector<4x30xf32>
    %2195 = arith.addf %2191, %2194 : vector<4x30xf32>
    %c236 = arith.constant 236 : index
    %2196 = memref.load %arg5[%c236] : memref<384xf32, #tpu.memory_space<smem>>
    %2197 = vector.broadcast %2196 : f32 to vector<4x30xf32>
    %2198 = arith.mulf %2197, %385 : vector<4x30xf32>
    %2199 = arith.addf %2195, %2198 : vector<4x30xf32>
    %c364 = arith.constant 364 : index
    %2200 = memref.load %arg5[%c364] : memref<384xf32, #tpu.memory_space<smem>>
    %2201 = vector.broadcast %2200 : f32 to vector<4x30xf32>
    %2202 = arith.mulf %2201, %459 : vector<4x30xf32>
    %2203 = arith.addf %2199, %2202 : vector<4x30xf32>
    %c124 = arith.constant 124 : index
    %2204 = memref.load %arg5[%c124] : memref<384xf32, #tpu.memory_space<smem>>
    %2205 = vector.broadcast %2204 : f32 to vector<4x30xf32>
    %2206 = arith.mulf %2205, %461 : vector<4x30xf32>
    %2207 = arith.addf %2203, %2206 : vector<4x30xf32>
    %c252 = arith.constant 252 : index
    %2208 = memref.load %arg5[%c252] : memref<384xf32, #tpu.memory_space<smem>>
    %2209 = vector.broadcast %2208 : f32 to vector<4x30xf32>
    %2210 = arith.mulf %2209, %437 : vector<4x30xf32>
    %2211 = arith.addf %2207, %2210 : vector<4x30xf32>
    %c380 = arith.constant 380 : index
    %2212 = memref.load %arg5[%c380] : memref<384xf32, #tpu.memory_space<smem>>
    %2213 = vector.broadcast %2212 : f32 to vector<4x30xf32>
    %2214 = arith.mulf %2213, %462 : vector<4x30xf32>
    %2215 = arith.addf %2211, %2214 : vector<4x30xf32>
    %c12_321 = arith.constant 12 : index
    %2216 = memref.load %arg6[%c12_321] : memref<16xf32, #tpu.memory_space<smem>>
    %2217 = vector.broadcast %2216 : f32 to vector<4x30xf32>
    %2218 = arith.addf %2215, %2217 : vector<4x30xf32>
    %cst_322 = arith.constant 0.00999999977 : f32
    %2219 = vector.broadcast %cst_322 : f32 to vector<4x30xf32>
    %2220 = arith.mulf %2219, %2218 : vector<4x30xf32>
    %2221 = arith.maximumf %2218, %2220 : vector<4x30xf32>
    %cst_323 = arith.constant dense<0.000000e+00> : vector<4xf32>
    %2222 = vector.multi_reduction <add>, %2221, %cst_323 [1] : vector<4x30xf32> to vector<4xf32>
    %2223 = vector.shape_cast %2222 : vector<4xf32> to vector<4x1xf32>
    %cst_324 = arith.constant 3.000000e+01 : f32
    %2224 = vector.broadcast %cst_324 : f32 to vector<4x1xf32>
    %2225 = arith.divf %2223, %2224 : vector<4x1xf32>
    %cst_325 = arith.constant dense<0.000000e+00> : vector<1xf32>
    %2226 = vector.multi_reduction <add>, %2225, %cst_325 [0] : vector<4x1xf32> to vector<1xf32>
    %2227 = vector.shape_cast %2226 : vector<1xf32> to vector<1x1xf32>
    %cst_326 = arith.constant 4.000000e+00 : f32
    %2228 = vector.broadcast %cst_326 : f32 to vector<1x1xf32>
    %2229 = arith.divf %2227, %2228 : vector<1x1xf32>
    %2230 = arith.mulf %2221, %2221 : vector<4x30xf32>
    %cst_327 = arith.constant dense<0.000000e+00> : vector<4xf32>
    %2231 = vector.multi_reduction <add>, %2230, %cst_327 [1] : vector<4x30xf32> to vector<4xf32>
    %2232 = vector.shape_cast %2231 : vector<4xf32> to vector<4x1xf32>
    %cst_328 = arith.constant 3.000000e+01 : f32
    %2233 = vector.broadcast %cst_328 : f32 to vector<4x1xf32>
    %2234 = arith.divf %2232, %2233 : vector<4x1xf32>
    %cst_329 = arith.constant dense<0.000000e+00> : vector<1xf32>
    %2235 = vector.multi_reduction <add>, %2234, %cst_329 [0] : vector<4x1xf32> to vector<1xf32>
    %2236 = vector.shape_cast %2235 : vector<1xf32> to vector<1x1xf32>
    %cst_330 = arith.constant 4.000000e+00 : f32
    %2237 = vector.broadcast %cst_330 : f32 to vector<1x1xf32>
    %2238 = arith.divf %2236, %2237 : vector<1x1xf32>
    %2239 = arith.mulf %2229, %2229 : vector<1x1xf32>
    %2240 = arith.subf %2238, %2239 : vector<1x1xf32>
    %cst_331 = arith.constant 0.000000e+00 : f32
    %2241 = vector.broadcast %cst_331 : f32 to vector<1x1xf32>
    %2242 = arith.maximumf %2240, %2241 : vector<1x1xf32>
    %c12_332 = arith.constant 12 : index
    %2243 = memref.load %arg7[%c12_332] : memref<16xf32, #tpu.memory_space<smem>>
    %c12_333 = arith.constant 12 : index
    %2244 = memref.load %arg8[%c12_333] : memref<16xf32, #tpu.memory_space<smem>>
    %cst_334 = arith.constant 9.99999974E-6 : f32
    %2245 = vector.broadcast %cst_334 : f32 to vector<1x1xf32>
    %2246 = arith.addf %2242, %2245 : vector<1x1xf32>
    %2247 = math.rsqrt %2246 : vector<1x1xf32>
    %2248 = vector.broadcast %2243 : f32 to vector<1x1xf32>
    %2249 = arith.mulf %2248, %2247 : vector<1x1xf32>
    %2250 = arith.mulf %2229, %2249 : vector<1x1xf32>
    %2251 = vector.broadcast %2244 : f32 to vector<1x1xf32>
    %2252 = arith.subf %2251, %2250 : vector<1x1xf32>
    %2253 = vector.broadcast %2249 : vector<1x1xf32> to vector<4x30xf32>
    %2254 = arith.mulf %2221, %2253 : vector<4x30xf32>
    %2255 = vector.broadcast %2252 : vector<1x1xf32> to vector<4x30xf32>
    %2256 = arith.addf %2254, %2255 : vector<4x30xf32>
    %cst_335 = arith.constant 0.000000e+00 : f32
    %2257 = vector.broadcast %cst_335 : f32 to vector<4x30xf32>
    %c13_336 = arith.constant 13 : index
    %2258 = memref.load %arg5[%c13_336] : memref<384xf32, #tpu.memory_space<smem>>
    %2259 = vector.broadcast %2258 : f32 to vector<4x30xf32>
    %2260 = arith.mulf %2259, %440 : vector<4x30xf32>
    %2261 = arith.addf %2257, %2260 : vector<4x30xf32>
    %c141 = arith.constant 141 : index
    %2262 = memref.load %arg5[%c141] : memref<384xf32, #tpu.memory_space<smem>>
    %2263 = vector.broadcast %2262 : f32 to vector<4x30xf32>
    %2264 = arith.mulf %2263, %73 : vector<4x30xf32>
    %2265 = arith.addf %2261, %2264 : vector<4x30xf32>
    %c269 = arith.constant 269 : index
    %2266 = memref.load %arg5[%c269] : memref<384xf32, #tpu.memory_space<smem>>
    %2267 = vector.broadcast %2266 : f32 to vector<4x30xf32>
    %2268 = arith.mulf %2267, %441 : vector<4x30xf32>
    %2269 = arith.addf %2265, %2268 : vector<4x30xf32>
    %c29 = arith.constant 29 : index
    %2270 = memref.load %arg5[%c29] : memref<384xf32, #tpu.memory_space<smem>>
    %2271 = vector.broadcast %2270 : f32 to vector<4x30xf32>
    %2272 = arith.mulf %2271, %443 : vector<4x30xf32>
    %2273 = arith.addf %2269, %2272 : vector<4x30xf32>
    %c157 = arith.constant 157 : index
    %2274 = memref.load %arg5[%c157] : memref<384xf32, #tpu.memory_space<smem>>
    %2275 = vector.broadcast %2274 : f32 to vector<4x30xf32>
    %2276 = arith.mulf %2275, %125 : vector<4x30xf32>
    %2277 = arith.addf %2273, %2276 : vector<4x30xf32>
    %c285 = arith.constant 285 : index
    %2278 = memref.load %arg5[%c285] : memref<384xf32, #tpu.memory_space<smem>>
    %2279 = vector.broadcast %2278 : f32 to vector<4x30xf32>
    %2280 = arith.mulf %2279, %444 : vector<4x30xf32>
    %2281 = arith.addf %2277, %2280 : vector<4x30xf32>
    %c45 = arith.constant 45 : index
    %2282 = memref.load %arg5[%c45] : memref<384xf32, #tpu.memory_space<smem>>
    %2283 = vector.broadcast %2282 : f32 to vector<4x30xf32>
    %2284 = arith.mulf %2283, %446 : vector<4x30xf32>
    %2285 = arith.addf %2281, %2284 : vector<4x30xf32>
    %c173 = arith.constant 173 : index
    %2286 = memref.load %arg5[%c173] : memref<384xf32, #tpu.memory_space<smem>>
    %2287 = vector.broadcast %2286 : f32 to vector<4x30xf32>
    %2288 = arith.mulf %2287, %177 : vector<4x30xf32>
    %2289 = arith.addf %2285, %2288 : vector<4x30xf32>
    %c301 = arith.constant 301 : index
    %2290 = memref.load %arg5[%c301] : memref<384xf32, #tpu.memory_space<smem>>
    %2291 = vector.broadcast %2290 : f32 to vector<4x30xf32>
    %2292 = arith.mulf %2291, %447 : vector<4x30xf32>
    %2293 = arith.addf %2289, %2292 : vector<4x30xf32>
    %c61 = arith.constant 61 : index
    %2294 = memref.load %arg5[%c61] : memref<384xf32, #tpu.memory_space<smem>>
    %2295 = vector.broadcast %2294 : f32 to vector<4x30xf32>
    %2296 = arith.mulf %2295, %449 : vector<4x30xf32>
    %2297 = arith.addf %2293, %2296 : vector<4x30xf32>
    %c189 = arith.constant 189 : index
    %2298 = memref.load %arg5[%c189] : memref<384xf32, #tpu.memory_space<smem>>
    %2299 = vector.broadcast %2298 : f32 to vector<4x30xf32>
    %2300 = arith.mulf %2299, %229 : vector<4x30xf32>
    %2301 = arith.addf %2297, %2300 : vector<4x30xf32>
    %c317 = arith.constant 317 : index
    %2302 = memref.load %arg5[%c317] : memref<384xf32, #tpu.memory_space<smem>>
    %2303 = vector.broadcast %2302 : f32 to vector<4x30xf32>
    %2304 = arith.mulf %2303, %450 : vector<4x30xf32>
    %2305 = arith.addf %2301, %2304 : vector<4x30xf32>
    %c77 = arith.constant 77 : index
    %2306 = memref.load %arg5[%c77] : memref<384xf32, #tpu.memory_space<smem>>
    %2307 = vector.broadcast %2306 : f32 to vector<4x30xf32>
    %2308 = arith.mulf %2307, %452 : vector<4x30xf32>
    %2309 = arith.addf %2305, %2308 : vector<4x30xf32>
    %c205 = arith.constant 205 : index
    %2310 = memref.load %arg5[%c205] : memref<384xf32, #tpu.memory_space<smem>>
    %2311 = vector.broadcast %2310 : f32 to vector<4x30xf32>
    %2312 = arith.mulf %2311, %281 : vector<4x30xf32>
    %2313 = arith.addf %2309, %2312 : vector<4x30xf32>
    %c333 = arith.constant 333 : index
    %2314 = memref.load %arg5[%c333] : memref<384xf32, #tpu.memory_space<smem>>
    %2315 = vector.broadcast %2314 : f32 to vector<4x30xf32>
    %2316 = arith.mulf %2315, %453 : vector<4x30xf32>
    %2317 = arith.addf %2313, %2316 : vector<4x30xf32>
    %c93 = arith.constant 93 : index
    %2318 = memref.load %arg5[%c93] : memref<384xf32, #tpu.memory_space<smem>>
    %2319 = vector.broadcast %2318 : f32 to vector<4x30xf32>
    %2320 = arith.mulf %2319, %455 : vector<4x30xf32>
    %2321 = arith.addf %2317, %2320 : vector<4x30xf32>
    %c221 = arith.constant 221 : index
    %2322 = memref.load %arg5[%c221] : memref<384xf32, #tpu.memory_space<smem>>
    %2323 = vector.broadcast %2322 : f32 to vector<4x30xf32>
    %2324 = arith.mulf %2323, %333 : vector<4x30xf32>
    %2325 = arith.addf %2321, %2324 : vector<4x30xf32>
    %c349 = arith.constant 349 : index
    %2326 = memref.load %arg5[%c349] : memref<384xf32, #tpu.memory_space<smem>>
    %2327 = vector.broadcast %2326 : f32 to vector<4x30xf32>
    %2328 = arith.mulf %2327, %456 : vector<4x30xf32>
    %2329 = arith.addf %2325, %2328 : vector<4x30xf32>
    %c109 = arith.constant 109 : index
    %2330 = memref.load %arg5[%c109] : memref<384xf32, #tpu.memory_space<smem>>
    %2331 = vector.broadcast %2330 : f32 to vector<4x30xf32>
    %2332 = arith.mulf %2331, %458 : vector<4x30xf32>
    %2333 = arith.addf %2329, %2332 : vector<4x30xf32>
    %c237 = arith.constant 237 : index
    %2334 = memref.load %arg5[%c237] : memref<384xf32, #tpu.memory_space<smem>>
    %2335 = vector.broadcast %2334 : f32 to vector<4x30xf32>
    %2336 = arith.mulf %2335, %385 : vector<4x30xf32>
    %2337 = arith.addf %2333, %2336 : vector<4x30xf32>
    %c365 = arith.constant 365 : index
    %2338 = memref.load %arg5[%c365] : memref<384xf32, #tpu.memory_space<smem>>
    %2339 = vector.broadcast %2338 : f32 to vector<4x30xf32>
    %2340 = arith.mulf %2339, %459 : vector<4x30xf32>
    %2341 = arith.addf %2337, %2340 : vector<4x30xf32>
    %c125 = arith.constant 125 : index
    %2342 = memref.load %arg5[%c125] : memref<384xf32, #tpu.memory_space<smem>>
    %2343 = vector.broadcast %2342 : f32 to vector<4x30xf32>
    %2344 = arith.mulf %2343, %461 : vector<4x30xf32>
    %2345 = arith.addf %2341, %2344 : vector<4x30xf32>
    %c253 = arith.constant 253 : index
    %2346 = memref.load %arg5[%c253] : memref<384xf32, #tpu.memory_space<smem>>
    %2347 = vector.broadcast %2346 : f32 to vector<4x30xf32>
    %2348 = arith.mulf %2347, %437 : vector<4x30xf32>
    %2349 = arith.addf %2345, %2348 : vector<4x30xf32>
    %c381 = arith.constant 381 : index
    %2350 = memref.load %arg5[%c381] : memref<384xf32, #tpu.memory_space<smem>>
    %2351 = vector.broadcast %2350 : f32 to vector<4x30xf32>
    %2352 = arith.mulf %2351, %462 : vector<4x30xf32>
    %2353 = arith.addf %2349, %2352 : vector<4x30xf32>
    %c13_337 = arith.constant 13 : index
    %2354 = memref.load %arg6[%c13_337] : memref<16xf32, #tpu.memory_space<smem>>
    %2355 = vector.broadcast %2354 : f32 to vector<4x30xf32>
    %2356 = arith.addf %2353, %2355 : vector<4x30xf32>
    %cst_338 = arith.constant 0.00999999977 : f32
    %2357 = vector.broadcast %cst_338 : f32 to vector<4x30xf32>
    %2358 = arith.mulf %2357, %2356 : vector<4x30xf32>
    %2359 = arith.maximumf %2356, %2358 : vector<4x30xf32>
    %cst_339 = arith.constant dense<0.000000e+00> : vector<4xf32>
    %2360 = vector.multi_reduction <add>, %2359, %cst_339 [1] : vector<4x30xf32> to vector<4xf32>
    %2361 = vector.shape_cast %2360 : vector<4xf32> to vector<4x1xf32>
    %cst_340 = arith.constant 3.000000e+01 : f32
    %2362 = vector.broadcast %cst_340 : f32 to vector<4x1xf32>
    %2363 = arith.divf %2361, %2362 : vector<4x1xf32>
    %cst_341 = arith.constant dense<0.000000e+00> : vector<1xf32>
    %2364 = vector.multi_reduction <add>, %2363, %cst_341 [0] : vector<4x1xf32> to vector<1xf32>
    %2365 = vector.shape_cast %2364 : vector<1xf32> to vector<1x1xf32>
    %cst_342 = arith.constant 4.000000e+00 : f32
    %2366 = vector.broadcast %cst_342 : f32 to vector<1x1xf32>
    %2367 = arith.divf %2365, %2366 : vector<1x1xf32>
    %2368 = arith.mulf %2359, %2359 : vector<4x30xf32>
    %cst_343 = arith.constant dense<0.000000e+00> : vector<4xf32>
    %2369 = vector.multi_reduction <add>, %2368, %cst_343 [1] : vector<4x30xf32> to vector<4xf32>
    %2370 = vector.shape_cast %2369 : vector<4xf32> to vector<4x1xf32>
    %cst_344 = arith.constant 3.000000e+01 : f32
    %2371 = vector.broadcast %cst_344 : f32 to vector<4x1xf32>
    %2372 = arith.divf %2370, %2371 : vector<4x1xf32>
    %cst_345 = arith.constant dense<0.000000e+00> : vector<1xf32>
    %2373 = vector.multi_reduction <add>, %2372, %cst_345 [0] : vector<4x1xf32> to vector<1xf32>
    %2374 = vector.shape_cast %2373 : vector<1xf32> to vector<1x1xf32>
    %cst_346 = arith.constant 4.000000e+00 : f32
    %2375 = vector.broadcast %cst_346 : f32 to vector<1x1xf32>
    %2376 = arith.divf %2374, %2375 : vector<1x1xf32>
    %2377 = arith.mulf %2367, %2367 : vector<1x1xf32>
    %2378 = arith.subf %2376, %2377 : vector<1x1xf32>
    %cst_347 = arith.constant 0.000000e+00 : f32
    %2379 = vector.broadcast %cst_347 : f32 to vector<1x1xf32>
    %2380 = arith.maximumf %2378, %2379 : vector<1x1xf32>
    %c13_348 = arith.constant 13 : index
    %2381 = memref.load %arg7[%c13_348] : memref<16xf32, #tpu.memory_space<smem>>
    %c13_349 = arith.constant 13 : index
    %2382 = memref.load %arg8[%c13_349] : memref<16xf32, #tpu.memory_space<smem>>
    %cst_350 = arith.constant 9.99999974E-6 : f32
    %2383 = vector.broadcast %cst_350 : f32 to vector<1x1xf32>
    %2384 = arith.addf %2380, %2383 : vector<1x1xf32>
    %2385 = math.rsqrt %2384 : vector<1x1xf32>
    %2386 = vector.broadcast %2381 : f32 to vector<1x1xf32>
    %2387 = arith.mulf %2386, %2385 : vector<1x1xf32>
    %2388 = arith.mulf %2367, %2387 : vector<1x1xf32>
    %2389 = vector.broadcast %2382 : f32 to vector<1x1xf32>
    %2390 = arith.subf %2389, %2388 : vector<1x1xf32>
    %2391 = vector.broadcast %2387 : vector<1x1xf32> to vector<4x30xf32>
    %2392 = arith.mulf %2359, %2391 : vector<4x30xf32>
    %2393 = vector.broadcast %2390 : vector<1x1xf32> to vector<4x30xf32>
    %2394 = arith.addf %2392, %2393 : vector<4x30xf32>
    %cst_351 = arith.constant 0.000000e+00 : f32
    %2395 = vector.broadcast %cst_351 : f32 to vector<4x30xf32>
    %c14_352 = arith.constant 14 : index
    %2396 = memref.load %arg5[%c14_352] : memref<384xf32, #tpu.memory_space<smem>>
    %2397 = vector.broadcast %2396 : f32 to vector<4x30xf32>
    %2398 = arith.mulf %2397, %440 : vector<4x30xf32>
    %2399 = arith.addf %2395, %2398 : vector<4x30xf32>
    %c142 = arith.constant 142 : index
    %2400 = memref.load %arg5[%c142] : memref<384xf32, #tpu.memory_space<smem>>
    %2401 = vector.broadcast %2400 : f32 to vector<4x30xf32>
    %2402 = arith.mulf %2401, %73 : vector<4x30xf32>
    %2403 = arith.addf %2399, %2402 : vector<4x30xf32>
    %c270 = arith.constant 270 : index
    %2404 = memref.load %arg5[%c270] : memref<384xf32, #tpu.memory_space<smem>>
    %2405 = vector.broadcast %2404 : f32 to vector<4x30xf32>
    %2406 = arith.mulf %2405, %441 : vector<4x30xf32>
    %2407 = arith.addf %2403, %2406 : vector<4x30xf32>
    %c30 = arith.constant 30 : index
    %2408 = memref.load %arg5[%c30] : memref<384xf32, #tpu.memory_space<smem>>
    %2409 = vector.broadcast %2408 : f32 to vector<4x30xf32>
    %2410 = arith.mulf %2409, %443 : vector<4x30xf32>
    %2411 = arith.addf %2407, %2410 : vector<4x30xf32>
    %c158 = arith.constant 158 : index
    %2412 = memref.load %arg5[%c158] : memref<384xf32, #tpu.memory_space<smem>>
    %2413 = vector.broadcast %2412 : f32 to vector<4x30xf32>
    %2414 = arith.mulf %2413, %125 : vector<4x30xf32>
    %2415 = arith.addf %2411, %2414 : vector<4x30xf32>
    %c286 = arith.constant 286 : index
    %2416 = memref.load %arg5[%c286] : memref<384xf32, #tpu.memory_space<smem>>
    %2417 = vector.broadcast %2416 : f32 to vector<4x30xf32>
    %2418 = arith.mulf %2417, %444 : vector<4x30xf32>
    %2419 = arith.addf %2415, %2418 : vector<4x30xf32>
    %c46 = arith.constant 46 : index
    %2420 = memref.load %arg5[%c46] : memref<384xf32, #tpu.memory_space<smem>>
    %2421 = vector.broadcast %2420 : f32 to vector<4x30xf32>
    %2422 = arith.mulf %2421, %446 : vector<4x30xf32>
    %2423 = arith.addf %2419, %2422 : vector<4x30xf32>
    %c174 = arith.constant 174 : index
    %2424 = memref.load %arg5[%c174] : memref<384xf32, #tpu.memory_space<smem>>
    %2425 = vector.broadcast %2424 : f32 to vector<4x30xf32>
    %2426 = arith.mulf %2425, %177 : vector<4x30xf32>
    %2427 = arith.addf %2423, %2426 : vector<4x30xf32>
    %c302 = arith.constant 302 : index
    %2428 = memref.load %arg5[%c302] : memref<384xf32, #tpu.memory_space<smem>>
    %2429 = vector.broadcast %2428 : f32 to vector<4x30xf32>
    %2430 = arith.mulf %2429, %447 : vector<4x30xf32>
    %2431 = arith.addf %2427, %2430 : vector<4x30xf32>
    %c62 = arith.constant 62 : index
    %2432 = memref.load %arg5[%c62] : memref<384xf32, #tpu.memory_space<smem>>
    %2433 = vector.broadcast %2432 : f32 to vector<4x30xf32>
    %2434 = arith.mulf %2433, %449 : vector<4x30xf32>
    %2435 = arith.addf %2431, %2434 : vector<4x30xf32>
    %c190 = arith.constant 190 : index
    %2436 = memref.load %arg5[%c190] : memref<384xf32, #tpu.memory_space<smem>>
    %2437 = vector.broadcast %2436 : f32 to vector<4x30xf32>
    %2438 = arith.mulf %2437, %229 : vector<4x30xf32>
    %2439 = arith.addf %2435, %2438 : vector<4x30xf32>
    %c318 = arith.constant 318 : index
    %2440 = memref.load %arg5[%c318] : memref<384xf32, #tpu.memory_space<smem>>
    %2441 = vector.broadcast %2440 : f32 to vector<4x30xf32>
    %2442 = arith.mulf %2441, %450 : vector<4x30xf32>
    %2443 = arith.addf %2439, %2442 : vector<4x30xf32>
    %c78 = arith.constant 78 : index
    %2444 = memref.load %arg5[%c78] : memref<384xf32, #tpu.memory_space<smem>>
    %2445 = vector.broadcast %2444 : f32 to vector<4x30xf32>
    %2446 = arith.mulf %2445, %452 : vector<4x30xf32>
    %2447 = arith.addf %2443, %2446 : vector<4x30xf32>
    %c206 = arith.constant 206 : index
    %2448 = memref.load %arg5[%c206] : memref<384xf32, #tpu.memory_space<smem>>
    %2449 = vector.broadcast %2448 : f32 to vector<4x30xf32>
    %2450 = arith.mulf %2449, %281 : vector<4x30xf32>
    %2451 = arith.addf %2447, %2450 : vector<4x30xf32>
    %c334 = arith.constant 334 : index
    %2452 = memref.load %arg5[%c334] : memref<384xf32, #tpu.memory_space<smem>>
    %2453 = vector.broadcast %2452 : f32 to vector<4x30xf32>
    %2454 = arith.mulf %2453, %453 : vector<4x30xf32>
    %2455 = arith.addf %2451, %2454 : vector<4x30xf32>
    %c94 = arith.constant 94 : index
    %2456 = memref.load %arg5[%c94] : memref<384xf32, #tpu.memory_space<smem>>
    %2457 = vector.broadcast %2456 : f32 to vector<4x30xf32>
    %2458 = arith.mulf %2457, %455 : vector<4x30xf32>
    %2459 = arith.addf %2455, %2458 : vector<4x30xf32>
    %c222 = arith.constant 222 : index
    %2460 = memref.load %arg5[%c222] : memref<384xf32, #tpu.memory_space<smem>>
    %2461 = vector.broadcast %2460 : f32 to vector<4x30xf32>
    %2462 = arith.mulf %2461, %333 : vector<4x30xf32>
    %2463 = arith.addf %2459, %2462 : vector<4x30xf32>
    %c350 = arith.constant 350 : index
    %2464 = memref.load %arg5[%c350] : memref<384xf32, #tpu.memory_space<smem>>
    %2465 = vector.broadcast %2464 : f32 to vector<4x30xf32>
    %2466 = arith.mulf %2465, %456 : vector<4x30xf32>
    %2467 = arith.addf %2463, %2466 : vector<4x30xf32>
    %c110 = arith.constant 110 : index
    %2468 = memref.load %arg5[%c110] : memref<384xf32, #tpu.memory_space<smem>>
    %2469 = vector.broadcast %2468 : f32 to vector<4x30xf32>
    %2470 = arith.mulf %2469, %458 : vector<4x30xf32>
    %2471 = arith.addf %2467, %2470 : vector<4x30xf32>
    %c238 = arith.constant 238 : index
    %2472 = memref.load %arg5[%c238] : memref<384xf32, #tpu.memory_space<smem>>
    %2473 = vector.broadcast %2472 : f32 to vector<4x30xf32>
    %2474 = arith.mulf %2473, %385 : vector<4x30xf32>
    %2475 = arith.addf %2471, %2474 : vector<4x30xf32>
    %c366 = arith.constant 366 : index
    %2476 = memref.load %arg5[%c366] : memref<384xf32, #tpu.memory_space<smem>>
    %2477 = vector.broadcast %2476 : f32 to vector<4x30xf32>
    %2478 = arith.mulf %2477, %459 : vector<4x30xf32>
    %2479 = arith.addf %2475, %2478 : vector<4x30xf32>
    %c126 = arith.constant 126 : index
    %2480 = memref.load %arg5[%c126] : memref<384xf32, #tpu.memory_space<smem>>
    %2481 = vector.broadcast %2480 : f32 to vector<4x30xf32>
    %2482 = arith.mulf %2481, %461 : vector<4x30xf32>
    %2483 = arith.addf %2479, %2482 : vector<4x30xf32>
    %c254 = arith.constant 254 : index
    %2484 = memref.load %arg5[%c254] : memref<384xf32, #tpu.memory_space<smem>>
    %2485 = vector.broadcast %2484 : f32 to vector<4x30xf32>
    %2486 = arith.mulf %2485, %437 : vector<4x30xf32>
    %2487 = arith.addf %2483, %2486 : vector<4x30xf32>
    %c382 = arith.constant 382 : index
    %2488 = memref.load %arg5[%c382] : memref<384xf32, #tpu.memory_space<smem>>
    %2489 = vector.broadcast %2488 : f32 to vector<4x30xf32>
    %2490 = arith.mulf %2489, %462 : vector<4x30xf32>
    %2491 = arith.addf %2487, %2490 : vector<4x30xf32>
    %c14_353 = arith.constant 14 : index
    %2492 = memref.load %arg6[%c14_353] : memref<16xf32, #tpu.memory_space<smem>>
    %2493 = vector.broadcast %2492 : f32 to vector<4x30xf32>
    %2494 = arith.addf %2491, %2493 : vector<4x30xf32>
    %cst_354 = arith.constant 0.00999999977 : f32
    %2495 = vector.broadcast %cst_354 : f32 to vector<4x30xf32>
    %2496 = arith.mulf %2495, %2494 : vector<4x30xf32>
    %2497 = arith.maximumf %2494, %2496 : vector<4x30xf32>
    %cst_355 = arith.constant dense<0.000000e+00> : vector<4xf32>
    %2498 = vector.multi_reduction <add>, %2497, %cst_355 [1] : vector<4x30xf32> to vector<4xf32>
    %2499 = vector.shape_cast %2498 : vector<4xf32> to vector<4x1xf32>
    %cst_356 = arith.constant 3.000000e+01 : f32
    %2500 = vector.broadcast %cst_356 : f32 to vector<4x1xf32>
    %2501 = arith.divf %2499, %2500 : vector<4x1xf32>
    %cst_357 = arith.constant dense<0.000000e+00> : vector<1xf32>
    %2502 = vector.multi_reduction <add>, %2501, %cst_357 [0] : vector<4x1xf32> to vector<1xf32>
    %2503 = vector.shape_cast %2502 : vector<1xf32> to vector<1x1xf32>
    %cst_358 = arith.constant 4.000000e+00 : f32
    %2504 = vector.broadcast %cst_358 : f32 to vector<1x1xf32>
    %2505 = arith.divf %2503, %2504 : vector<1x1xf32>
    %2506 = arith.mulf %2497, %2497 : vector<4x30xf32>
    %cst_359 = arith.constant dense<0.000000e+00> : vector<4xf32>
    %2507 = vector.multi_reduction <add>, %2506, %cst_359 [1] : vector<4x30xf32> to vector<4xf32>
    %2508 = vector.shape_cast %2507 : vector<4xf32> to vector<4x1xf32>
    %cst_360 = arith.constant 3.000000e+01 : f32
    %2509 = vector.broadcast %cst_360 : f32 to vector<4x1xf32>
    %2510 = arith.divf %2508, %2509 : vector<4x1xf32>
    %cst_361 = arith.constant dense<0.000000e+00> : vector<1xf32>
    %2511 = vector.multi_reduction <add>, %2510, %cst_361 [0] : vector<4x1xf32> to vector<1xf32>
    %2512 = vector.shape_cast %2511 : vector<1xf32> to vector<1x1xf32>
    %cst_362 = arith.constant 4.000000e+00 : f32
    %2513 = vector.broadcast %cst_362 : f32 to vector<1x1xf32>
    %2514 = arith.divf %2512, %2513 : vector<1x1xf32>
    %2515 = arith.mulf %2505, %2505 : vector<1x1xf32>
    %2516 = arith.subf %2514, %2515 : vector<1x1xf32>
    %cst_363 = arith.constant 0.000000e+00 : f32
    %2517 = vector.broadcast %cst_363 : f32 to vector<1x1xf32>
    %2518 = arith.maximumf %2516, %2517 : vector<1x1xf32>
    %c14_364 = arith.constant 14 : index
    %2519 = memref.load %arg7[%c14_364] : memref<16xf32, #tpu.memory_space<smem>>
    %c14_365 = arith.constant 14 : index
    %2520 = memref.load %arg8[%c14_365] : memref<16xf32, #tpu.memory_space<smem>>
    %cst_366 = arith.constant 9.99999974E-6 : f32
    %2521 = vector.broadcast %cst_366 : f32 to vector<1x1xf32>
    %2522 = arith.addf %2518, %2521 : vector<1x1xf32>
    %2523 = math.rsqrt %2522 : vector<1x1xf32>
    %2524 = vector.broadcast %2519 : f32 to vector<1x1xf32>
    %2525 = arith.mulf %2524, %2523 : vector<1x1xf32>
    %2526 = arith.mulf %2505, %2525 : vector<1x1xf32>
    %2527 = vector.broadcast %2520 : f32 to vector<1x1xf32>
    %2528 = arith.subf %2527, %2526 : vector<1x1xf32>
    %2529 = vector.broadcast %2525 : vector<1x1xf32> to vector<4x30xf32>
    %2530 = arith.mulf %2497, %2529 : vector<4x30xf32>
    %2531 = vector.broadcast %2528 : vector<1x1xf32> to vector<4x30xf32>
    %2532 = arith.addf %2530, %2531 : vector<4x30xf32>
    %cst_367 = arith.constant 0.000000e+00 : f32
    %2533 = vector.broadcast %cst_367 : f32 to vector<4x30xf32>
    %c15_368 = arith.constant 15 : index
    %2534 = memref.load %arg5[%c15_368] : memref<384xf32, #tpu.memory_space<smem>>
    %2535 = vector.broadcast %2534 : f32 to vector<4x30xf32>
    %2536 = arith.mulf %2535, %440 : vector<4x30xf32>
    %2537 = arith.addf %2533, %2536 : vector<4x30xf32>
    %c143 = arith.constant 143 : index
    %2538 = memref.load %arg5[%c143] : memref<384xf32, #tpu.memory_space<smem>>
    %2539 = vector.broadcast %2538 : f32 to vector<4x30xf32>
    %2540 = arith.mulf %2539, %73 : vector<4x30xf32>
    %2541 = arith.addf %2537, %2540 : vector<4x30xf32>
    %c271 = arith.constant 271 : index
    %2542 = memref.load %arg5[%c271] : memref<384xf32, #tpu.memory_space<smem>>
    %2543 = vector.broadcast %2542 : f32 to vector<4x30xf32>
    %2544 = arith.mulf %2543, %441 : vector<4x30xf32>
    %2545 = arith.addf %2541, %2544 : vector<4x30xf32>
    %c31 = arith.constant 31 : index
    %2546 = memref.load %arg5[%c31] : memref<384xf32, #tpu.memory_space<smem>>
    %2547 = vector.broadcast %2546 : f32 to vector<4x30xf32>
    %2548 = arith.mulf %2547, %443 : vector<4x30xf32>
    %2549 = arith.addf %2545, %2548 : vector<4x30xf32>
    %c159 = arith.constant 159 : index
    %2550 = memref.load %arg5[%c159] : memref<384xf32, #tpu.memory_space<smem>>
    %2551 = vector.broadcast %2550 : f32 to vector<4x30xf32>
    %2552 = arith.mulf %2551, %125 : vector<4x30xf32>
    %2553 = arith.addf %2549, %2552 : vector<4x30xf32>
    %c287 = arith.constant 287 : index
    %2554 = memref.load %arg5[%c287] : memref<384xf32, #tpu.memory_space<smem>>
    %2555 = vector.broadcast %2554 : f32 to vector<4x30xf32>
    %2556 = arith.mulf %2555, %444 : vector<4x30xf32>
    %2557 = arith.addf %2553, %2556 : vector<4x30xf32>
    %c47 = arith.constant 47 : index
    %2558 = memref.load %arg5[%c47] : memref<384xf32, #tpu.memory_space<smem>>
    %2559 = vector.broadcast %2558 : f32 to vector<4x30xf32>
    %2560 = arith.mulf %2559, %446 : vector<4x30xf32>
    %2561 = arith.addf %2557, %2560 : vector<4x30xf32>
    %c175 = arith.constant 175 : index
    %2562 = memref.load %arg5[%c175] : memref<384xf32, #tpu.memory_space<smem>>
    %2563 = vector.broadcast %2562 : f32 to vector<4x30xf32>
    %2564 = arith.mulf %2563, %177 : vector<4x30xf32>
    %2565 = arith.addf %2561, %2564 : vector<4x30xf32>
    %c303 = arith.constant 303 : index
    %2566 = memref.load %arg5[%c303] : memref<384xf32, #tpu.memory_space<smem>>
    %2567 = vector.broadcast %2566 : f32 to vector<4x30xf32>
    %2568 = arith.mulf %2567, %447 : vector<4x30xf32>
    %2569 = arith.addf %2565, %2568 : vector<4x30xf32>
    %c63 = arith.constant 63 : index
    %2570 = memref.load %arg5[%c63] : memref<384xf32, #tpu.memory_space<smem>>
    %2571 = vector.broadcast %2570 : f32 to vector<4x30xf32>
    %2572 = arith.mulf %2571, %449 : vector<4x30xf32>
    %2573 = arith.addf %2569, %2572 : vector<4x30xf32>
    %c191 = arith.constant 191 : index
    %2574 = memref.load %arg5[%c191] : memref<384xf32, #tpu.memory_space<smem>>
    %2575 = vector.broadcast %2574 : f32 to vector<4x30xf32>
    %2576 = arith.mulf %2575, %229 : vector<4x30xf32>
    %2577 = arith.addf %2573, %2576 : vector<4x30xf32>
    %c319 = arith.constant 319 : index
    %2578 = memref.load %arg5[%c319] : memref<384xf32, #tpu.memory_space<smem>>
    %2579 = vector.broadcast %2578 : f32 to vector<4x30xf32>
    %2580 = arith.mulf %2579, %450 : vector<4x30xf32>
    %2581 = arith.addf %2577, %2580 : vector<4x30xf32>
    %c79 = arith.constant 79 : index
    %2582 = memref.load %arg5[%c79] : memref<384xf32, #tpu.memory_space<smem>>
    %2583 = vector.broadcast %2582 : f32 to vector<4x30xf32>
    %2584 = arith.mulf %2583, %452 : vector<4x30xf32>
    %2585 = arith.addf %2581, %2584 : vector<4x30xf32>
    %c207 = arith.constant 207 : index
    %2586 = memref.load %arg5[%c207] : memref<384xf32, #tpu.memory_space<smem>>
    %2587 = vector.broadcast %2586 : f32 to vector<4x30xf32>
    %2588 = arith.mulf %2587, %281 : vector<4x30xf32>
    %2589 = arith.addf %2585, %2588 : vector<4x30xf32>
    %c335 = arith.constant 335 : index
    %2590 = memref.load %arg5[%c335] : memref<384xf32, #tpu.memory_space<smem>>
    %2591 = vector.broadcast %2590 : f32 to vector<4x30xf32>
    %2592 = arith.mulf %2591, %453 : vector<4x30xf32>
    %2593 = arith.addf %2589, %2592 : vector<4x30xf32>
    %c95 = arith.constant 95 : index
    %2594 = memref.load %arg5[%c95] : memref<384xf32, #tpu.memory_space<smem>>
    %2595 = vector.broadcast %2594 : f32 to vector<4x30xf32>
    %2596 = arith.mulf %2595, %455 : vector<4x30xf32>
    %2597 = arith.addf %2593, %2596 : vector<4x30xf32>
    %c223 = arith.constant 223 : index
    %2598 = memref.load %arg5[%c223] : memref<384xf32, #tpu.memory_space<smem>>
    %2599 = vector.broadcast %2598 : f32 to vector<4x30xf32>
    %2600 = arith.mulf %2599, %333 : vector<4x30xf32>
    %2601 = arith.addf %2597, %2600 : vector<4x30xf32>
    %c351 = arith.constant 351 : index
    %2602 = memref.load %arg5[%c351] : memref<384xf32, #tpu.memory_space<smem>>
    %2603 = vector.broadcast %2602 : f32 to vector<4x30xf32>
    %2604 = arith.mulf %2603, %456 : vector<4x30xf32>
    %2605 = arith.addf %2601, %2604 : vector<4x30xf32>
    %c111 = arith.constant 111 : index
    %2606 = memref.load %arg5[%c111] : memref<384xf32, #tpu.memory_space<smem>>
    %2607 = vector.broadcast %2606 : f32 to vector<4x30xf32>
    %2608 = arith.mulf %2607, %458 : vector<4x30xf32>
    %2609 = arith.addf %2605, %2608 : vector<4x30xf32>
    %c239 = arith.constant 239 : index
    %2610 = memref.load %arg5[%c239] : memref<384xf32, #tpu.memory_space<smem>>
    %2611 = vector.broadcast %2610 : f32 to vector<4x30xf32>
    %2612 = arith.mulf %2611, %385 : vector<4x30xf32>
    %2613 = arith.addf %2609, %2612 : vector<4x30xf32>
    %c367 = arith.constant 367 : index
    %2614 = memref.load %arg5[%c367] : memref<384xf32, #tpu.memory_space<smem>>
    %2615 = vector.broadcast %2614 : f32 to vector<4x30xf32>
    %2616 = arith.mulf %2615, %459 : vector<4x30xf32>
    %2617 = arith.addf %2613, %2616 : vector<4x30xf32>
    %c127 = arith.constant 127 : index
    %2618 = memref.load %arg5[%c127] : memref<384xf32, #tpu.memory_space<smem>>
    %2619 = vector.broadcast %2618 : f32 to vector<4x30xf32>
    %2620 = arith.mulf %2619, %461 : vector<4x30xf32>
    %2621 = arith.addf %2617, %2620 : vector<4x30xf32>
    %c255 = arith.constant 255 : index
    %2622 = memref.load %arg5[%c255] : memref<384xf32, #tpu.memory_space<smem>>
    %2623 = vector.broadcast %2622 : f32 to vector<4x30xf32>
    %2624 = arith.mulf %2623, %437 : vector<4x30xf32>
    %2625 = arith.addf %2621, %2624 : vector<4x30xf32>
    %c383 = arith.constant 383 : index
    %2626 = memref.load %arg5[%c383] : memref<384xf32, #tpu.memory_space<smem>>
    %2627 = vector.broadcast %2626 : f32 to vector<4x30xf32>
    %2628 = arith.mulf %2627, %462 : vector<4x30xf32>
    %2629 = arith.addf %2625, %2628 : vector<4x30xf32>
    %c15_369 = arith.constant 15 : index
    %2630 = memref.load %arg6[%c15_369] : memref<16xf32, #tpu.memory_space<smem>>
    %2631 = vector.broadcast %2630 : f32 to vector<4x30xf32>
    %2632 = arith.addf %2629, %2631 : vector<4x30xf32>
    %cst_370 = arith.constant 0.00999999977 : f32
    %2633 = vector.broadcast %cst_370 : f32 to vector<4x30xf32>
    %2634 = arith.mulf %2633, %2632 : vector<4x30xf32>
    %2635 = arith.maximumf %2632, %2634 : vector<4x30xf32>
    %cst_371 = arith.constant dense<0.000000e+00> : vector<4xf32>
    %2636 = vector.multi_reduction <add>, %2635, %cst_371 [1] : vector<4x30xf32> to vector<4xf32>
    %2637 = vector.shape_cast %2636 : vector<4xf32> to vector<4x1xf32>
    %cst_372 = arith.constant 3.000000e+01 : f32
    %2638 = vector.broadcast %cst_372 : f32 to vector<4x1xf32>
    %2639 = arith.divf %2637, %2638 : vector<4x1xf32>
    %cst_373 = arith.constant dense<0.000000e+00> : vector<1xf32>
    %2640 = vector.multi_reduction <add>, %2639, %cst_373 [0] : vector<4x1xf32> to vector<1xf32>
    %2641 = vector.shape_cast %2640 : vector<1xf32> to vector<1x1xf32>
    %cst_374 = arith.constant 4.000000e+00 : f32
    %2642 = vector.broadcast %cst_374 : f32 to vector<1x1xf32>
    %2643 = arith.divf %2641, %2642 : vector<1x1xf32>
    %2644 = arith.mulf %2635, %2635 : vector<4x30xf32>
    %cst_375 = arith.constant dense<0.000000e+00> : vector<4xf32>
    %2645 = vector.multi_reduction <add>, %2644, %cst_375 [1] : vector<4x30xf32> to vector<4xf32>
    %2646 = vector.shape_cast %2645 : vector<4xf32> to vector<4x1xf32>
    %cst_376 = arith.constant 3.000000e+01 : f32
    %2647 = vector.broadcast %cst_376 : f32 to vector<4x1xf32>
    %2648 = arith.divf %2646, %2647 : vector<4x1xf32>
    %cst_377 = arith.constant dense<0.000000e+00> : vector<1xf32>
    %2649 = vector.multi_reduction <add>, %2648, %cst_377 [0] : vector<4x1xf32> to vector<1xf32>
    %2650 = vector.shape_cast %2649 : vector<1xf32> to vector<1x1xf32>
    %cst_378 = arith.constant 4.000000e+00 : f32
    %2651 = vector.broadcast %cst_378 : f32 to vector<1x1xf32>
    %2652 = arith.divf %2650, %2651 : vector<1x1xf32>
    %2653 = arith.mulf %2643, %2643 : vector<1x1xf32>
    %2654 = arith.subf %2652, %2653 : vector<1x1xf32>
    %cst_379 = arith.constant 0.000000e+00 : f32
    %2655 = vector.broadcast %cst_379 : f32 to vector<1x1xf32>
    %2656 = arith.maximumf %2654, %2655 : vector<1x1xf32>
    %c15_380 = arith.constant 15 : index
    %2657 = memref.load %arg7[%c15_380] : memref<16xf32, #tpu.memory_space<smem>>
    %c15_381 = arith.constant 15 : index
    %2658 = memref.load %arg8[%c15_381] : memref<16xf32, #tpu.memory_space<smem>>
    %cst_382 = arith.constant 9.99999974E-6 : f32
    %2659 = vector.broadcast %cst_382 : f32 to vector<1x1xf32>
    %2660 = arith.addf %2656, %2659 : vector<1x1xf32>
    %2661 = math.rsqrt %2660 : vector<1x1xf32>
    %2662 = vector.broadcast %2657 : f32 to vector<1x1xf32>
    %2663 = arith.mulf %2662, %2661 : vector<1x1xf32>
    %2664 = arith.mulf %2643, %2663 : vector<1x1xf32>
    %2665 = vector.broadcast %2658 : f32 to vector<1x1xf32>
    %2666 = arith.subf %2665, %2664 : vector<1x1xf32>
    %2667 = vector.broadcast %2663 : vector<1x1xf32> to vector<4x30xf32>
    %2668 = arith.mulf %2635, %2667 : vector<4x30xf32>
    %2669 = vector.broadcast %2666 : vector<1x1xf32> to vector<4x30xf32>
    %2670 = arith.addf %2668, %2669 : vector<4x30xf32>
    %cst_383 = arith.constant 0.000000e+00 : f32
    %2671 = vector.broadcast %cst_383 : f32 to vector<4x16xf32>
    %2672 = arith.truncf %600 : vector<4x30xf32> to vector<4x30xbf16>
    %c0_384 = arith.constant 0 : index
    %c0_385 = arith.constant 0 : index
    %c0_386 = arith.constant 0 : index
    %2673 = vector.load %arg9[%c0_384, %c0_385, %c0_386] : memref<16x30x16xbf16, #tpu.memory_space<vmem>>, vector<1x30x16xbf16>
    %2674 = vector.shape_cast %2673 : vector<1x30x16xbf16> to vector<30x16xbf16>
    %cst_387 = arith.constant dense<0.000000e+00> : vector<4x16xf32>
    %2675 = tpu.matmul %2672, %2674, %cst_387 {dimension_numbers = #tpu.dot_dimension_numbers<[1], [0], [0], [1], [0, 0, 1, 1], [], []>} : vector<4x30xbf16>, vector<30x16xbf16>, vector<4x16xf32> -> vector<4x16xf32>
    %2676 = arith.addf %2671, %2675 : vector<4x16xf32>
    %2677 = arith.truncf %738 : vector<4x30xf32> to vector<4x30xbf16>
    %c1_388 = arith.constant 1 : index
    %c0_389 = arith.constant 0 : index
    %c0_390 = arith.constant 0 : index
    %2678 = vector.load %arg9[%c1_388, %c0_389, %c0_390] : memref<16x30x16xbf16, #tpu.memory_space<vmem>>, vector<1x30x16xbf16>
    %2679 = vector.shape_cast %2678 : vector<1x30x16xbf16> to vector<30x16xbf16>
    %cst_391 = arith.constant dense<0.000000e+00> : vector<4x16xf32>
    %2680 = tpu.matmul %2677, %2679, %cst_391 {dimension_numbers = #tpu.dot_dimension_numbers<[1], [0], [0], [1], [0, 0, 1, 1], [], []>} : vector<4x30xbf16>, vector<30x16xbf16>, vector<4x16xf32> -> vector<4x16xf32>
    %2681 = arith.addf %2676, %2680 : vector<4x16xf32>
    %2682 = arith.truncf %876 : vector<4x30xf32> to vector<4x30xbf16>
    %c2_392 = arith.constant 2 : index
    %c0_393 = arith.constant 0 : index
    %c0_394 = arith.constant 0 : index
    %2683 = vector.load %arg9[%c2_392, %c0_393, %c0_394] : memref<16x30x16xbf16, #tpu.memory_space<vmem>>, vector<1x30x16xbf16>
    %2684 = vector.shape_cast %2683 : vector<1x30x16xbf16> to vector<30x16xbf16>
    %cst_395 = arith.constant dense<0.000000e+00> : vector<4x16xf32>
    %2685 = tpu.matmul %2682, %2684, %cst_395 {dimension_numbers = #tpu.dot_dimension_numbers<[1], [0], [0], [1], [0, 0, 1, 1], [], []>} : vector<4x30xbf16>, vector<30x16xbf16>, vector<4x16xf32> -> vector<4x16xf32>
    %2686 = arith.addf %2681, %2685 : vector<4x16xf32>
    %2687 = arith.truncf %1014 : vector<4x30xf32> to vector<4x30xbf16>
    %c3_396 = arith.constant 3 : index
    %c0_397 = arith.constant 0 : index
    %c0_398 = arith.constant 0 : index
    %2688 = vector.load %arg9[%c3_396, %c0_397, %c0_398] : memref<16x30x16xbf16, #tpu.memory_space<vmem>>, vector<1x30x16xbf16>
    %2689 = vector.shape_cast %2688 : vector<1x30x16xbf16> to vector<30x16xbf16>
    %cst_399 = arith.constant dense<0.000000e+00> : vector<4x16xf32>
    %2690 = tpu.matmul %2687, %2689, %cst_399 {dimension_numbers = #tpu.dot_dimension_numbers<[1], [0], [0], [1], [0, 0, 1, 1], [], []>} : vector<4x30xbf16>, vector<30x16xbf16>, vector<4x16xf32> -> vector<4x16xf32>
    %2691 = arith.addf %2686, %2690 : vector<4x16xf32>
    %2692 = arith.truncf %1152 : vector<4x30xf32> to vector<4x30xbf16>
    %c4_400 = arith.constant 4 : index
    %c0_401 = arith.constant 0 : index
    %c0_402 = arith.constant 0 : index
    %2693 = vector.load %arg9[%c4_400, %c0_401, %c0_402] : memref<16x30x16xbf16, #tpu.memory_space<vmem>>, vector<1x30x16xbf16>
    %2694 = vector.shape_cast %2693 : vector<1x30x16xbf16> to vector<30x16xbf16>
    %cst_403 = arith.constant dense<0.000000e+00> : vector<4x16xf32>
    %2695 = tpu.matmul %2692, %2694, %cst_403 {dimension_numbers = #tpu.dot_dimension_numbers<[1], [0], [0], [1], [0, 0, 1, 1], [], []>} : vector<4x30xbf16>, vector<30x16xbf16>, vector<4x16xf32> -> vector<4x16xf32>
    %2696 = arith.addf %2691, %2695 : vector<4x16xf32>
    %2697 = arith.truncf %1290 : vector<4x30xf32> to vector<4x30xbf16>
    %c5_404 = arith.constant 5 : index
    %c0_405 = arith.constant 0 : index
    %c0_406 = arith.constant 0 : index
    %2698 = vector.load %arg9[%c5_404, %c0_405, %c0_406] : memref<16x30x16xbf16, #tpu.memory_space<vmem>>, vector<1x30x16xbf16>
    %2699 = vector.shape_cast %2698 : vector<1x30x16xbf16> to vector<30x16xbf16>
    %cst_407 = arith.constant dense<0.000000e+00> : vector<4x16xf32>
    %2700 = tpu.matmul %2697, %2699, %cst_407 {dimension_numbers = #tpu.dot_dimension_numbers<[1], [0], [0], [1], [0, 0, 1, 1], [], []>} : vector<4x30xbf16>, vector<30x16xbf16>, vector<4x16xf32> -> vector<4x16xf32>
    %2701 = arith.addf %2696, %2700 : vector<4x16xf32>
    %2702 = arith.truncf %1428 : vector<4x30xf32> to vector<4x30xbf16>
    %c6_408 = arith.constant 6 : index
    %c0_409 = arith.constant 0 : index
    %c0_410 = arith.constant 0 : index
    %2703 = vector.load %arg9[%c6_408, %c0_409, %c0_410] : memref<16x30x16xbf16, #tpu.memory_space<vmem>>, vector<1x30x16xbf16>
    %2704 = vector.shape_cast %2703 : vector<1x30x16xbf16> to vector<30x16xbf16>
    %cst_411 = arith.constant dense<0.000000e+00> : vector<4x16xf32>
    %2705 = tpu.matmul %2702, %2704, %cst_411 {dimension_numbers = #tpu.dot_dimension_numbers<[1], [0], [0], [1], [0, 0, 1, 1], [], []>} : vector<4x30xbf16>, vector<30x16xbf16>, vector<4x16xf32> -> vector<4x16xf32>
    %2706 = arith.addf %2701, %2705 : vector<4x16xf32>
    %2707 = arith.truncf %1566 : vector<4x30xf32> to vector<4x30xbf16>
    %c7_412 = arith.constant 7 : index
    %c0_413 = arith.constant 0 : index
    %c0_414 = arith.constant 0 : index
    %2708 = vector.load %arg9[%c7_412, %c0_413, %c0_414] : memref<16x30x16xbf16, #tpu.memory_space<vmem>>, vector<1x30x16xbf16>
    %2709 = vector.shape_cast %2708 : vector<1x30x16xbf16> to vector<30x16xbf16>
    %cst_415 = arith.constant dense<0.000000e+00> : vector<4x16xf32>
    %2710 = tpu.matmul %2707, %2709, %cst_415 {dimension_numbers = #tpu.dot_dimension_numbers<[1], [0], [0], [1], [0, 0, 1, 1], [], []>} : vector<4x30xbf16>, vector<30x16xbf16>, vector<4x16xf32> -> vector<4x16xf32>
    %2711 = arith.addf %2706, %2710 : vector<4x16xf32>
    %2712 = arith.truncf %1704 : vector<4x30xf32> to vector<4x30xbf16>
    %c8_416 = arith.constant 8 : index
    %c0_417 = arith.constant 0 : index
    %c0_418 = arith.constant 0 : index
    %2713 = vector.load %arg9[%c8_416, %c0_417, %c0_418] : memref<16x30x16xbf16, #tpu.memory_space<vmem>>, vector<1x30x16xbf16>
    %2714 = vector.shape_cast %2713 : vector<1x30x16xbf16> to vector<30x16xbf16>
    %cst_419 = arith.constant dense<0.000000e+00> : vector<4x16xf32>
    %2715 = tpu.matmul %2712, %2714, %cst_419 {dimension_numbers = #tpu.dot_dimension_numbers<[1], [0], [0], [1], [0, 0, 1, 1], [], []>} : vector<4x30xbf16>, vector<30x16xbf16>, vector<4x16xf32> -> vector<4x16xf32>
    %2716 = arith.addf %2711, %2715 : vector<4x16xf32>
    %2717 = arith.truncf %1842 : vector<4x30xf32> to vector<4x30xbf16>
    %c9_420 = arith.constant 9 : index
    %c0_421 = arith.constant 0 : index
    %c0_422 = arith.constant 0 : index
    %2718 = vector.load %arg9[%c9_420, %c0_421, %c0_422] : memref<16x30x16xbf16, #tpu.memory_space<vmem>>, vector<1x30x16xbf16>
    %2719 = vector.shape_cast %2718 : vector<1x30x16xbf16> to vector<30x16xbf16>
    %cst_423 = arith.constant dense<0.000000e+00> : vector<4x16xf32>
    %2720 = tpu.matmul %2717, %2719, %cst_423 {dimension_numbers = #tpu.dot_dimension_numbers<[1], [0], [0], [1], [0, 0, 1, 1], [], []>} : vector<4x30xbf16>, vector<30x16xbf16>, vector<4x16xf32> -> vector<4x16xf32>
    %2721 = arith.addf %2716, %2720 : vector<4x16xf32>
    %2722 = arith.truncf %1980 : vector<4x30xf32> to vector<4x30xbf16>
    %c10_424 = arith.constant 10 : index
    %c0_425 = arith.constant 0 : index
    %c0_426 = arith.constant 0 : index
    %2723 = vector.load %arg9[%c10_424, %c0_425, %c0_426] : memref<16x30x16xbf16, #tpu.memory_space<vmem>>, vector<1x30x16xbf16>
    %2724 = vector.shape_cast %2723 : vector<1x30x16xbf16> to vector<30x16xbf16>
    %cst_427 = arith.constant dense<0.000000e+00> : vector<4x16xf32>
    %2725 = tpu.matmul %2722, %2724, %cst_427 {dimension_numbers = #tpu.dot_dimension_numbers<[1], [0], [0], [1], [0, 0, 1, 1], [], []>} : vector<4x30xbf16>, vector<30x16xbf16>, vector<4x16xf32> -> vector<4x16xf32>
    %2726 = arith.addf %2721, %2725 : vector<4x16xf32>
    %2727 = arith.truncf %2118 : vector<4x30xf32> to vector<4x30xbf16>
    %c11_428 = arith.constant 11 : index
    %c0_429 = arith.constant 0 : index
    %c0_430 = arith.constant 0 : index
    %2728 = vector.load %arg9[%c11_428, %c0_429, %c0_430] : memref<16x30x16xbf16, #tpu.memory_space<vmem>>, vector<1x30x16xbf16>
    %2729 = vector.shape_cast %2728 : vector<1x30x16xbf16> to vector<30x16xbf16>
    %cst_431 = arith.constant dense<0.000000e+00> : vector<4x16xf32>
    %2730 = tpu.matmul %2727, %2729, %cst_431 {dimension_numbers = #tpu.dot_dimension_numbers<[1], [0], [0], [1], [0, 0, 1, 1], [], []>} : vector<4x30xbf16>, vector<30x16xbf16>, vector<4x16xf32> -> vector<4x16xf32>
    %2731 = arith.addf %2726, %2730 : vector<4x16xf32>
    %2732 = arith.truncf %2256 : vector<4x30xf32> to vector<4x30xbf16>
    %c12_432 = arith.constant 12 : index
    %c0_433 = arith.constant 0 : index
    %c0_434 = arith.constant 0 : index
    %2733 = vector.load %arg9[%c12_432, %c0_433, %c0_434] : memref<16x30x16xbf16, #tpu.memory_space<vmem>>, vector<1x30x16xbf16>
    %2734 = vector.shape_cast %2733 : vector<1x30x16xbf16> to vector<30x16xbf16>
    %cst_435 = arith.constant dense<0.000000e+00> : vector<4x16xf32>
    %2735 = tpu.matmul %2732, %2734, %cst_435 {dimension_numbers = #tpu.dot_dimension_numbers<[1], [0], [0], [1], [0, 0, 1, 1], [], []>} : vector<4x30xbf16>, vector<30x16xbf16>, vector<4x16xf32> -> vector<4x16xf32>
    %2736 = arith.addf %2731, %2735 : vector<4x16xf32>
    %2737 = arith.truncf %2394 : vector<4x30xf32> to vector<4x30xbf16>
    %c13_436 = arith.constant 13 : index
    %c0_437 = arith.constant 0 : index
    %c0_438 = arith.constant 0 : index
    %2738 = vector.load %arg9[%c13_436, %c0_437, %c0_438] : memref<16x30x16xbf16, #tpu.memory_space<vmem>>, vector<1x30x16xbf16>
    %2739 = vector.shape_cast %2738 : vector<1x30x16xbf16> to vector<30x16xbf16>
    %cst_439 = arith.constant dense<0.000000e+00> : vector<4x16xf32>
    %2740 = tpu.matmul %2737, %2739, %cst_439 {dimension_numbers = #tpu.dot_dimension_numbers<[1], [0], [0], [1], [0, 0, 1, 1], [], []>} : vector<4x30xbf16>, vector<30x16xbf16>, vector<4x16xf32> -> vector<4x16xf32>
    %2741 = arith.addf %2736, %2740 : vector<4x16xf32>
    %2742 = arith.truncf %2532 : vector<4x30xf32> to vector<4x30xbf16>
    %c14_440 = arith.constant 14 : index
    %c0_441 = arith.constant 0 : index
    %c0_442 = arith.constant 0 : index
    %2743 = vector.load %arg9[%c14_440, %c0_441, %c0_442] : memref<16x30x16xbf16, #tpu.memory_space<vmem>>, vector<1x30x16xbf16>
    %2744 = vector.shape_cast %2743 : vector<1x30x16xbf16> to vector<30x16xbf16>
    %cst_443 = arith.constant dense<0.000000e+00> : vector<4x16xf32>
    %2745 = tpu.matmul %2742, %2744, %cst_443 {dimension_numbers = #tpu.dot_dimension_numbers<[1], [0], [0], [1], [0, 0, 1, 1], [], []>} : vector<4x30xbf16>, vector<30x16xbf16>, vector<4x16xf32> -> vector<4x16xf32>
    %2746 = arith.addf %2741, %2745 : vector<4x16xf32>
    %2747 = arith.truncf %2670 : vector<4x30xf32> to vector<4x30xbf16>
    %c15_444 = arith.constant 15 : index
    %c0_445 = arith.constant 0 : index
    %c0_446 = arith.constant 0 : index
    %2748 = vector.load %arg9[%c15_444, %c0_445, %c0_446] : memref<16x30x16xbf16, #tpu.memory_space<vmem>>, vector<1x30x16xbf16>
    %2749 = vector.shape_cast %2748 : vector<1x30x16xbf16> to vector<30x16xbf16>
    %cst_447 = arith.constant dense<0.000000e+00> : vector<4x16xf32>
    %2750 = tpu.matmul %2747, %2749, %cst_447 {dimension_numbers = #tpu.dot_dimension_numbers<[1], [0], [0], [1], [0, 0, 1, 1], [], []>} : vector<4x30xbf16>, vector<30x16xbf16>, vector<4x16xf32> -> vector<4x16xf32>
    %2751 = arith.addf %2746, %2750 : vector<4x16xf32>
    %c0_448 = arith.constant 0 : index
    %c0_449 = arith.constant 0 : index
    %2752 = vector.load %arg10[%c0_448, %c0_449] : memref<1x16xf32, #tpu.memory_space<vmem>>, vector<1x16xf32>
    %2753 = vector.broadcast %2752 : vector<1x16xf32> to vector<4x16xf32>
    %2754 = arith.addf %2751, %2753 : vector<4x16xf32>
    %cst_450 = arith.constant 0.00999999977 : f32
    %2755 = vector.broadcast %cst_450 : f32 to vector<4x16xf32>
    %2756 = arith.mulf %2755, %2754 : vector<4x16xf32>
    %2757 = arith.maximumf %2754, %2756 : vector<4x16xf32>
    %cst_451 = arith.constant dense<0.000000e+00> : vector<16xf32>
    %2758 = vector.multi_reduction <add>, %2757, %cst_451 [0] : vector<4x16xf32> to vector<16xf32>
    %2759 = vector.shape_cast %2758 : vector<16xf32> to vector<1x16xf32>
    %cst_452 = arith.constant 4.000000e+00 : f32
    %2760 = vector.broadcast %cst_452 : f32 to vector<1x16xf32>
    %2761 = arith.divf %2759, %2760 : vector<1x16xf32>
    %2762 = arith.mulf %2757, %2757 : vector<4x16xf32>
    %cst_453 = arith.constant dense<0.000000e+00> : vector<16xf32>
    %2763 = vector.multi_reduction <add>, %2762, %cst_453 [0] : vector<4x16xf32> to vector<16xf32>
    %2764 = vector.shape_cast %2763 : vector<16xf32> to vector<1x16xf32>
    %cst_454 = arith.constant 4.000000e+00 : f32
    %2765 = vector.broadcast %cst_454 : f32 to vector<1x16xf32>
    %2766 = arith.divf %2764, %2765 : vector<1x16xf32>
    %2767 = arith.mulf %2761, %2761 : vector<1x16xf32>
    %2768 = arith.subf %2766, %2767 : vector<1x16xf32>
    %cst_455 = arith.constant 0.000000e+00 : f32
    %2769 = vector.broadcast %cst_455 : f32 to vector<1x16xf32>
    %2770 = arith.maximumf %2768, %2769 : vector<1x16xf32>
    %c0_456 = arith.constant 0 : index
    %c0_457 = arith.constant 0 : index
    %2771 = vector.load %arg11[%c0_456, %c0_457] : memref<1x16xf32, #tpu.memory_space<vmem>>, vector<1x16xf32>
    %cst_458 = arith.constant 9.99999974E-6 : f32
    %2772 = vector.broadcast %cst_458 : f32 to vector<1x16xf32>
    %2773 = arith.addf %2770, %2772 : vector<1x16xf32>
    %2774 = math.rsqrt %2773 : vector<1x16xf32>
    %2775 = arith.mulf %2771, %2774 : vector<1x16xf32>
    %c0_459 = arith.constant 0 : index
    %c0_460 = arith.constant 0 : index
    %2776 = vector.load %arg12[%c0_459, %c0_460] : memref<1x16xf32, #tpu.memory_space<vmem>>, vector<1x16xf32>
    %2777 = arith.mulf %2761, %2775 : vector<1x16xf32>
    %2778 = arith.subf %2776, %2777 : vector<1x16xf32>
    %2779 = vector.broadcast %2775 : vector<1x16xf32> to vector<4x16xf32>
    %2780 = arith.mulf %2757, %2779 : vector<4x16xf32>
    %2781 = vector.broadcast %2778 : vector<1x16xf32> to vector<4x16xf32>
    %2782 = arith.addf %2780, %2781 : vector<4x16xf32>
    %2783 = arith.truncf %2782 : vector<4x16xf32> to vector<4x16xbf16>
    %c0_461 = arith.constant 0 : index
    %c0_462 = arith.constant 0 : index
    %2784 = vector.load %arg13[%c0_461, %c0_462] : memref<16x8xbf16, #tpu.memory_space<vmem>>, vector<16x8xbf16>
    %cst_463 = arith.constant dense<0.000000e+00> : vector<4x8xf32>
    %2785 = tpu.matmul %2783, %2784, %cst_463 {dimension_numbers = #tpu.dot_dimension_numbers<[1], [0], [0], [1], [0, 0, 1, 1], [], []>} : vector<4x16xbf16>, vector<16x8xbf16>, vector<4x8xf32> -> vector<4x8xf32>
    %c0_464 = arith.constant 0 : index
    %c0_465 = arith.constant 0 : index
    %2786 = vector.load %arg14[%c0_464, %c0_465] : memref<1x8xf32, #tpu.memory_space<vmem>>, vector<1x8xf32>
    %2787 = vector.broadcast %2786 : vector<1x8xf32> to vector<4x8xf32>
    %2788 = arith.addf %2785, %2787 : vector<4x8xf32>
    %c0_466 = arith.constant 0 : index
    %c0_467 = arith.constant 0 : index
    %2789 = vector.load %arg15[%c0_466, %c0_467] : memref<4x8xf32, #tpu.memory_space<vmem>>, vector<4x8xf32>
    tpu.vector_store %arg15[%c0_466, %c0_467], %2788 {strides = array<i32>} : memref<4x8xf32, #tpu.memory_space<vmem>>, vector<4x8xf32>,
    return
  }
}

</mosaic_0001>

<llo_original>
// kernel: tpu_custom_call.1
$region0: #{tpu_custom_call.1}
  #allocation0 [shape = 'u32[]', space=smem, size = 0x4, offset = 0x4, fixed_abs, tag = 'smem constant byte address 0x4 - core index']
  #allocation1 [shape = 'u32[144,128]{1,0:T(1,128)}', space=vmem, size = 0x12000, scoped, tag = 'internal scratch']
  %s0 = inlined_call_operand.vmem [shape: f32[4,32], index: 0, kind: input, shape index: {}]
  %s1 = inlined_call_operand.vmem [shape: f32[24], index: 1, kind: input, shape index: {}]
  %s2 = inlined_call_operand.vmem [shape: f32[8], index: 2, kind: input, shape index: {}]
  %s3 = inlined_call_operand.vmem [shape: f32[8], index: 3, kind: input, shape index: {}]
  %s4 = inlined_call_operand.vmem [shape: f32[8], index: 4, kind: input, shape index: {}]
  %s5 = inlined_call_operand.vmem [shape: f32[384], index: 5, kind: input, shape index: {}]
  %s6 = inlined_call_operand.vmem [shape: f32[16], index: 6, kind: input, shape index: {}]
  %s7 = inlined_call_operand.vmem [shape: f32[16], index: 7, kind: input, shape index: {}]
  %s8 = inlined_call_operand.vmem [shape: f32[16], index: 8, kind: input, shape index: {}]
  %s9 = inlined_call_operand.vmem [shape: bf16[16,30,16], index: 9, kind: input, shape index: {}]
  %s10 = inlined_call_operand.vmem [shape: f32[1,16], index: 10, kind: input, shape index: {}]
  %s11 = inlined_call_operand.vmem [shape: f32[1,16], index: 11, kind: input, shape index: {}]
  %s12 = inlined_call_operand.vmem [shape: f32[1,16], index: 12, kind: input, shape index: {}]
  %s13 = inlined_call_operand.vmem [shape: bf16[16,8], index: 13, kind: input, shape index: {}]
  %s14 = inlined_call_operand.vmem [shape: f32[1,8], index: 14, kind: input, shape index: {}]
  %s15 = inlined_call_operand.hbm [shape: f32[4,8], index: 15, kind: output, shape index: {}]
  %s16 = sld [smem:[#allocation0]]
  $region102: #{tpu_custom_call.1} parent=0
    _
  %s18 = ssub.s32 1, %s16
  %s19 = scalar_select 0, %s18, %s16
  $region1: #{tpu_custom_call.1} parent=0
    #allocation2 [shape = 'u8[512]{0}', space=smem, size = 0x200, scoped, tag = 'input window, operand 1, single buffered']
    #allocation3 [shape = 's32[1]{0}', space=sflag, size = 0x4, scoped, tag = 'scoped memory for tpu_custom_call.1']
    #allocation4 [shape = 's32[1]{0}', space=sflag, size = 0x4, scoped, tag = 'scoped memory for tpu_custom_call.1']
    #allocation5 [shape = 'u8[512]{0}', space=smem, size = 0x200, scoped, tag = 'input window, operand 2, single buffered']
    #allocation6 [shape = 's32[1]{0}', space=sflag, size = 0x4, scoped, tag = 'scoped memory for tpu_custom_call.1']
    #allocation7 [shape = 'u8[512]{0}', space=smem, size = 0x200, scoped, tag = 'input window, operand 3, single buffered']
    #allocation8 [shape = 'u8[512]{0}', space=smem, size = 0x200, scoped, tag = 'input window, operand 4, single buffered']
    #allocation9 [shape = 's32[1]{0}', space=sflag, size = 0x4, scoped, tag = 'scoped memory for tpu_custom_call.1']
    #allocation10 [shape = 'u8[1536]{0}', space=smem, size = 0x600, scoped, tag = 'input window, operand 5, single buffered']
    #allocation11 [shape = 'u8[512]{0}', space=smem, size = 0x200, scoped, tag = 'input window, operand 6, single buffered']
    #allocation12 [shape = 's32[1]{0}', space=sflag, size = 0x4, scoped, tag = 'scoped memory for tpu_custom_call.1']
    #allocation13 [shape = 'u8[512]{0}', space=smem, size = 0x200, scoped, tag = 'input window, operand 7, single buffered']
    #allocation14 [shape = 'u8[512]{0}', space=smem, size = 0x200, scoped, tag = 'input window, operand 8, single buffered']
    #allocation15 [shape = 's32[1]{0}', space=sflag, size = 0x4, scoped, tag = 'scoped memory for tpu_custom_call.1']
    #allocation16 [shape = 'u8[2048]{0}', space=vmem, size = 0x800, scoped, tag = 'output window, operand 0, single buffered']
    %20 = vsyncpa [#allocation4], 0
    %21 = vsyncpa [#allocation6], 0
    %22 = vsyncpa [#allocation9], 0
    %23 = vsyncpa [#allocation12], 0
    %24 = vsyncpa [#allocation15], 0
    %25 = vsyncpa [#allocation3], 0
    // Predicated region
    $region2: #{tpu_custom_call.1} parent=1 // pred_check
      _
    $region3: #{tpu_custom_call.1} parent=1 // pred_check_branch
      %27 = sbr.rel (0) target = $region5
    $region4: #{tpu_custom_call.1} parent=1 // pred_region
      _
    $region5: #{tpu_custom_call.1} parent=1 // pred_fallthru
      _
    // Predicated region
    $region6: #{tpu_custom_call.1} parent=1 // pred_check
      _
    $region7: #{tpu_custom_call.1} parent=1 // pred_check_branch
      %29 = sbr.rel (0) target = $region9
    $region8: #{tpu_custom_call.1} parent=1 // pred_region
      %s31 = ssub.s32 16, 16
      %32 = vsyncadd [#allocation4], %s31
      %s34 = sshll.u32 %s1, 4
      %s35 = int_to_ptr.vmem [resolvable:$true] %s34
      %37 = dma.vmem_to_smem %s35, 16, [#allocation2], [#allocation4]
    $region9: #{tpu_custom_call.1} parent=1 // pred_fallthru
      _
    // Predicated region
    $region10: #{tpu_custom_call.1} parent=1 // pred_check
      _
    $region11: #{tpu_custom_call.1} parent=1 // pred_check_branch
      %39 = sbr.rel (0) target = $region13
    $region12: #{tpu_custom_call.1} parent=1 // pred_region
      %s41 = ssub.s32 16, 16
      %42 = vsyncadd [#allocation6], %s41
      %s44 = sshll.u32 %s2, 4
      %s45 = int_to_ptr.vmem [resolvable:$true] %s44
      %47 = dma.vmem_to_smem %s45, 16, [#allocation5], [#allocation6]
    $region13: #{tpu_custom_call.1} parent=1 // pred_fallthru
      _
    // Predicated region
    $region14: #{tpu_custom_call.1} parent=1 // pred_check
      _
    $region15: #{tpu_custom_call.1} parent=1 // pred_check_branch
      %49 = sbr.rel (0) target = $region17
    $region16: #{tpu_custom_call.1} parent=1 // pred_region
      %s51 = ssub.s32 16, 16
      %52 = vsyncadd [#allocation6], %s51
      %s54 = sshll.u32 %s3, 4
      %s55 = int_to_ptr.vmem [resolvable:$true] %s54
      %57 = dma.vmem_to_smem %s55, 16, [#allocation7], [#allocation6]
    $region17: #{tpu_custom_call.1} parent=1 // pred_fallthru
      _
    // Predicated region
    $region18: #{tpu_custom_call.1} parent=1 // pred_check
      _
    $region19: #{tpu_custom_call.1} parent=1 // pred_check_branch
      %59 = sbr.rel (0) target = $region21
    $region20: #{tpu_custom_call.1} parent=1 // pred_region
      %s61 = ssub.s32 16, 16
      %62 = vsyncadd [#allocation9], %s61
      %s64 = sshll.u32 %s4, 4
      %s65 = int_to_ptr.vmem [resolvable:$true] %s64
      %67 = dma.vmem_to_smem %s65, 16, [#allocation8], [#allocation9]
    $region21: #{tpu_custom_call.1} parent=1 // pred_fallthru
      _
    // Predicated region
    $region22: #{tpu_custom_call.1} parent=1 // pred_check
      _
    $region23: #{tpu_custom_call.1} parent=1 // pred_check_branch
      %69 = sbr.rel (0) target = $region25
    $region24: #{tpu_custom_call.1} parent=1 // pred_region
      %s71 = ssub.s32 48, 48
      %72 = vsyncadd [#allocation9], %s71
      %s74 = sshll.u32 %s5, 4
      %s75 = int_to_ptr.vmem [resolvable:$true] %s74
      %77 = dma.vmem_to_smem %s75, 48, [#allocation10], [#allocation9]
    $region25: #{tpu_custom_call.1} parent=1 // pred_fallthru
      _
    // Predicated region
    $region26: #{tpu_custom_call.1} parent=1 // pred_check
      _
    $region27: #{tpu_custom_call.1} parent=1 // pred_check_branch
      %79 = sbr.rel (0) target = $region29
    $region28: #{tpu_custom_call.1} parent=1 // pred_region
      %s81 = ssub.s32 16, 16
      %82 = vsyncadd [#allocation12], %s81
      %s84 = sshll.u32 %s6, 4
      %s85 = int_to_ptr.vmem [resolvable:$true] %s84
      %87 = dma.vmem_to_smem %s85, 16, [#allocation11], [#allocation12]
    $region29: #{tpu_custom_call.1} parent=1 // pred_fallthru
      _
    // Predicated region
    $region30: #{tpu_custom_call.1} parent=1 // pred_check
      _
    $region31: #{tpu_custom_call.1} parent=1 // pred_check_branch
      %89 = sbr.rel (0) target = $region33
    $region32: #{tpu_custom_call.1} parent=1 // pred_region
      %s91 = ssub.s32 16, 16
      %92 = vsyncadd [#allocation12], %s91
      %s94 = sshll.u32 %s7, 4
      %s95 = int_to_ptr.vmem [resolvable:$true] %s94
      %97 = dma.vmem_to_smem %s95, 16, [#allocation13], [#allocation12]
    $region33: #{tpu_custom_call.1} parent=1 // pred_fallthru
      _
    // Predicated region
    $region34: #{tpu_custom_call.1} parent=1 // pred_check
      _
    $region35: #{tpu_custom_call.1} parent=1 // pred_check_branch
      %99 = sbr.rel (0) target = $region37
    $region36: #{tpu_custom_call.1} parent=1 // pred_region
      %s101 = ssub.s32 16, 16
      %102 = vsyncadd [#allocation15], %s101
      %s104 = sshll.u32 %s8, 4
      %s105 = int_to_ptr.vmem [resolvable:$true] %s104
      %107 = dma.vmem_to_smem %s105, 16, [#allocation14], [#allocation15]
    $region37: #{tpu_custom_call.1} parent=1 // pred_fallthru
      _
    // Predicated region
    $region38: #{tpu_custom_call.1} parent=1 // pred_check
      _
    $region39: #{tpu_custom_call.1} parent=1 // pred_check_branch
      %109 = sbr.rel (0) target = $region41
    $region40: #{tpu_custom_call.1} parent=1 // pred_region
      _
    $region41: #{tpu_custom_call.1} parent=1 // pred_fallthru
      _
    // Predicated region
    $region42: #{tpu_custom_call.1} parent=1 // pred_check
      _
    $region43: #{tpu_custom_call.1} parent=1 // pred_check_branch
      %111 = sbr.rel (0) target = $region45
    $region44: #{tpu_custom_call.1} parent=1 // pred_region
      _
    $region45: #{tpu_custom_call.1} parent=1 // pred_fallthru
      _
    // Predicated region
    $region46: #{tpu_custom_call.1} parent=1 // pred_check
      _
    $region47: #{tpu_custom_call.1} parent=1 // pred_check_branch
      %113 = sbr.rel (0) target = $region49
    $region48: #{tpu_custom_call.1} parent=1 // pred_region
      _
    $region49: #{tpu_custom_call.1} parent=1 // pred_fallthru
      _
    // Predicated region
    $region50: #{tpu_custom_call.1} parent=1 // pred_check
      _
    $region51: #{tpu_custom_call.1} parent=1 // pred_check_branch
      %115 = sbr.rel (0) target = $region53
    $region52: #{tpu_custom_call.1} parent=1 // pred_region
      _
    $region53: #{tpu_custom_call.1} parent=1 // pred_fallthru
      _
    // Predicated region
    $region54: #{tpu_custom_call.1} parent=1 // pred_check
      _
    $region55: #{tpu_custom_call.1} parent=1 // pred_check_branch
      %117 = sbr.rel (0) target = $region57
    $region56: #{tpu_custom_call.1} parent=1 // pred_region
      _
    $region57: #{tpu_custom_call.1} parent=1 // pred_fallthru
      _
    // Predicated region
    $region58: #{tpu_custom_call.1} parent=1 // pred_check
      _
    $region59: #{tpu_custom_call.1} parent=1 // pred_check_branch
      %119 = sbr.rel (0) target = $region61
    $region60: #{tpu_custom_call.1} parent=1 // pred_region
      _
    $region61: #{tpu_custom_call.1} parent=1 // pred_fallthru
      _
    // Predicated region
    $region62: #{tpu_custom_call.1} parent=1 // pred_check
      _
    $region63: #{tpu_custom_call.1} parent=1 // pred_check_branch
      %121 = sbr.rel (0) target = $region65
    $region64: #{tpu_custom_call.1} parent=1 // pred_region
      %122 = dma.done [#allocation4], 16
    $region65: #{tpu_custom_call.1} parent=1 // pred_fallthru
      _
    // Predicated region
    $region66: #{tpu_custom_call.1} parent=1 // pred_check
      _
    $region67: #{tpu_custom_call.1} parent=1 // pred_check_branch
      %124 = sbr.rel (0) target = $region69
    $region68: #{tpu_custom_call.1} parent=1 // pred_region
      %125 = dma.done [#allocation6], 16
    $region69: #{tpu_custom_call.1} parent=1 // pred_fallthru
      _
    // Predicated region
    $region70: #{tpu_custom_call.1} parent=1 // pred_check
      _
    $region71: #{tpu_custom_call.1} parent=1 // pred_check_branch
      %127 = sbr.rel (0) target = $region73
    $region72: #{tpu_custom_call.1} parent=1 // pred_region
      %128 = dma.done [#allocation6], 16
    $region73: #{tpu_custom_call.1} parent=1 // pred_fallthru
      _
    // Predicated region
    $region74: #{tpu_custom_call.1} parent=1 // pred_check
      _
    $region75: #{tpu_custom_call.1} parent=1 // pred_check_branch
      %130 = sbr.rel (0) target = $region77
    $region76: #{tpu_custom_call.1} parent=1 // pred_region
      %131 = dma.done [#allocation9], 16
    $region77: #{tpu_custom_call.1} parent=1 // pred_fallthru
      _
    // Predicated region
    $region78: #{tpu_custom_call.1} parent=1 // pred_check
      _
    $region79: #{tpu_custom_call.1} parent=1 // pred_check_branch
      %133 = sbr.rel (0) target = $region81
    $region80: #{tpu_custom_call.1} parent=1 // pred_region
      %134 = dma.done [#allocation9], 48
    $region81: #{tpu_custom_call.1} parent=1 // pred_fallthru
      _
    // Predicated region
    $region82: #{tpu_custom_call.1} parent=1 // pred_check
      _
    $region83: #{tpu_custom_call.1} parent=1 // pred_check_branch
      %136 = sbr.rel (0) target = $region85
    $region84: #{tpu_custom_call.1} parent=1 // pred_region
      %137 = dma.done [#allocation12], 16
    $region85: #{tpu_custom_call.1} parent=1 // pred_fallthru
      _
    // Predicated region
    $region86: #{tpu_custom_call.1} parent=1 // pred_check
      _
    $region87: #{tpu_custom_call.1} parent=1 // pred_check_branch
      %139 = sbr.rel (0) target = $region89
    $region88: #{tpu_custom_call.1} parent=1 // pred_region
      %140 = dma.done [#allocation12], 16
    $region89: #{tpu_custom_call.1} parent=1 // pred_fallthru
      _
    // Predicated region
    $region90: #{tpu_custom_call.1} parent=1 // pred_check
      _
    $region91: #{tpu_custom_call.1} parent=1 // pred_check_branch
      %142 = sbr.rel (0) target = $region93
    $region92: #{tpu_custom_call.1} parent=1 // pred_region
      %143 = dma.done [#allocation15], 16
    $region93: #{tpu_custom_call.1} parent=1 // pred_fallthru
      _
    %144 = sfence
    %v146 = vld [vmem:[%s0] sm:$0xf]
    %vm147 = vcmask 257024
    %v148 = vsel %vm147, %v146, 0.0
    %149 = vadd.xlane.f32.xlu0 %v148
    %v150 = vpop.xlane.xlu0 %149
    %v151 = vrcp.pop 32.0
    %v152 = vmul.f32 %v150, %v151
    %v153 = vsub.f32 %v146, %v152
    %v154 = vmul.f32 %v153, %v153
    %v155 = vsel %vm147, %v154, 0.0
    %156 = vadd.xlane.f32.xlu0 %v155
    %v157 = vpop.xlane.xlu0 %156
    %v158 = vmul.f32 %v157, %v151
    %v159 = vadd.f32 %v158, 1e-05
    %v160 = vrsqrt.pop %v159
    %v161 = vmul.f32 %v153, %v160
    %s162 = sld [smem:[#allocation2]]
    %v163 = vstv %s162
    %v164 = vmul.f32 %v163, %v161
    %s165 = sld [smem:[#allocation2 + $0x8]]
    %v166 = vstv %s165
    %v167 = vmul.f32 %v166, %v161
    %169 = vrot.lane.b32.xlu0 %v167, 127
    %v170 = vpop.permute.xlu0 %169
    %v172 = vadd.f32 %v164, %v170
    %s173 = sld [smem:[#allocation2 + $0x10]]
    %v174 = vstv %s173
    %v175 = vmul.f32 %v174, %v161
    %177 = vrot.lane.b32.xlu0 %v175, 126
    %v178 = vpop.permute.xlu0 %177
    %v180 = vadd.f32 %v172, %v178
    %s181 = sld [smem:[#allocation5]]
    %v182 = vstv %s181
    %v183 = vadd.f32 %v180, %v182
    %v184 = vmul.f32 %v183, 0.01
    %v185 = vmax.f32 %v183, %v184
    %vm186 = vcmask 240640
    %v187 = vsel %vm186, %v185, 0.0
    %188 = vadd.xlane.f32.xlu0 %v187
    %v189 = vpop.xlane.xlu0 %188
    %v190 = vrcp.pop 30.0
    %v191 = vmul.f32 %v189, %v190
    %vm192 = vcmask 1043456
    %v193 = vsel %vm192, %v191, 0.0
    %v194 = vrot.slane %v193, 4
    %v195 = vadd.f32 %v193, %v194
    %v196 = vrot.slane %v195, 2
    %v197 = vadd.f32 %v195, %v196
    %v198 = vrot.slane %v197, 1
    %v199 = vadd.f32 %v197, %v198
    %v200 = vrcp.pop 4.0
    %v201 = vmul.f32 %v199, %v200
    %v202 = vmul.f32 %v185, %v185
    %v203 = vsel %vm186, %v202, 0.0
    %204 = vadd.xlane.f32.xlu0 %v203
    %v205 = vpop.xlane.xlu0 %204
    %v206 = vmul.f32 %v205, %v190
    %v207 = vsel %vm192, %v206, 0.0
    %v208 = vrot.slane %v207, 4
    %v209 = vadd.f32 %v207, %v208
    %v210 = vrot.slane %v209, 2
    %v211 = vadd.f32 %v209, %v210
    %v212 = vrot.slane %v211, 1
    %v213 = vadd.f32 %v211, %v212
    %v214 = vmul.f32 %v213, %v200
    %v215 = vmul.f32 %v201, %v201
    %v216 = vsub.f32 %v214, %v215
    %v217 = vmax.f32 %v216, 0.0
    %s218 = sld [smem:[#allocation7]]
    %s219 = sld [smem:[#allocation8]]
    %v220 = vadd.f32 %v217, 1e-05
    %v221 = vrsqrt.pop %v220
    %v222 = vstv %s218
    %v223 = vmul.f32 %v222, %v221
    %v224 = vmul.f32 %v201, %v223
    %v225 = vstv %s219
    %v226 = vsub.f32 %v225, %v224
    %v227 = vmul.f32 %v185, %v223
    %v228 = vadd.f32 %v227, %v226
    %s229 = sld [smem:[#allocation2 + $0x1]]
    %v230 = vstv %s229
    %v231 = vmul.f32 %v230, %v161
    %s232 = sld [smem:[#allocation2 + $0x9]]
    %v233 = vstv %s232
    %v234 = vmul.f32 %v233, %v161
    %236 = vrot.lane.b32.xlu0 %v234, 127
    %v237 = vpop.permute.xlu0 %236
    %v239 = vadd.f32 %v231, %v237
    %s240 = sld [smem:[#allocation2 + $0x11]]
    %v241 = vstv %s240
    %v242 = vmul.f32 %v241, %v161
    %244 = vrot.lane.b32.xlu0 %v242, 126
    %v245 = vpop.permute.xlu0 %244
    %v247 = vadd.f32 %v239, %v245
    %s248 = sld [smem:[#allocation5 + $0x1]]
    %v249 = vstv %s248
    %v250 = vadd.f32 %v247, %v249
    %v251 = vmul.f32 %v250, 0.01
    %v252 = vmax.f32 %v250, %v251
    %v253 = vsel %vm186, %v252, 0.0
    %254 = vadd.xlane.f32.xlu0 %v253
    %v255 = vpop.xlane.xlu0 %254
    %v256 = vmul.f32 %v255, %v190
    %v257 = vsel %vm192, %v256, 0.0
    %v258 = vrot.slane %v257, 4
    %v259 = vadd.f32 %v257, %v258
    %v260 = vrot.slane %v259, 2
    %v261 = vadd.f32 %v259, %v260
    %v262 = vrot.slane %v261, 1
    %v263 = vadd.f32 %v261, %v262
    %v264 = vmul.f32 %v263, %v200
    %v265 = vmul.f32 %v252, %v252
    %v266 = vsel %vm186, %v265, 0.0
    %267 = vadd.xlane.f32.xlu0 %v266
    %v268 = vpop.xlane.xlu0 %267
    %v269 = vmul.f32 %v268, %v190
    %v270 = vsel %vm192, %v269, 0.0
    %v271 = vrot.slane %v270, 4
    %v272 = vadd.f32 %v270, %v271
    %v273 = vrot.slane %v272, 2
    %v274 = vadd.f32 %v272, %v273
    %v275 = vrot.slane %v274, 1
    %v276 = vadd.f32 %v274, %v275
    %v277 = vmul.f32 %v276, %v200
    %v278 = vmul.f32 %v264, %v264
    %v279 = vsub.f32 %v277, %v278
    %v280 = vmax.f32 %v279, 0.0
    %s281 = sld [smem:[#allocation7 + $0x1]]
    %s282 = sld [smem:[#allocation8 + $0x1]]
    %v283 = vadd.f32 %v280, 1e-05
    %v284 = vrsqrt.pop %v283
    %v285 = vstv %s281
    %v286 = vmul.f32 %v285, %v284
    %v287 = vmul.f32 %v264, %v286
    %v288 = vstv %s282
    %v289 = vsub.f32 %v288, %v287
    %v290 = vmul.f32 %v252, %v286
    %v291 = vadd.f32 %v290, %v289
    %s292 = sld [smem:[#allocation2 + $0x2]]
    %v293 = vstv %s292
    %v294 = vmul.f32 %v293, %v161
    %s295 = sld [smem:[#allocation2 + $0xa]]
    %v296 = vstv %s295
    %v297 = vmul.f32 %v296, %v161
    %299 = vrot.lane.b32.xlu0 %v297, 127
    %v300 = vpop.permute.xlu0 %299
    %v302 = vadd.f32 %v294, %v300
    %s303 = sld [smem:[#allocation2 + $0x12]]
    %v304 = vstv %s303
    %v305 = vmul.f32 %v304, %v161
    %307 = vrot.lane.b32.xlu0 %v305, 126
    %v308 = vpop.permute.xlu0 %307
    %v310 = vadd.f32 %v302, %v308
    %s311 = sld [smem:[#allocation5 + $0x2]]
    %v312 = vstv %s311
    %v313 = vadd.f32 %v310, %v312
    %v314 = vmul.f32 %v313, 0.01
    %v315 = vmax.f32 %v313, %v314
    %v316 = vsel %vm186, %v315, 0.0
    %317 = vadd.xlane.f32.xlu0 %v316
    %v318 = vpop.xlane.xlu0 %317
    %v319 = vmul.f32 %v318, %v190
    %v320 = vsel %vm192, %v319, 0.0
    %v321 = vrot.slane %v320, 4
    %v322 = vadd.f32 %v320, %v321
    %v323 = vrot.slane %v322, 2
    %v324 = vadd.f32 %v322, %v323
    %v325 = vrot.slane %v324, 1
    %v326 = vadd.f32 %v324, %v325
    %v327 = vmul.f32 %v326, %v200
    %v328 = vmul.f32 %v315, %v315
    %v329 = vsel %vm186, %v328, 0.0
    %330 = vadd.xlane.f32.xlu0 %v329
    %v331 = vpop.xlane.xlu0 %330
    %v332 = vmul.f32 %v331, %v190
    %v333 = vsel %vm192, %v332, 0.0
    %v334 = vrot.slane %v333, 4
    %v335 = vadd.f32 %v333, %v334
    %v336 = vrot.slane %v335, 2
    %v337 = vadd.f32 %v335, %v336
    %v338 = vrot.slane %v337, 1
    %v339 = vadd.f32 %v337, %v338
    %v340 = vmul.f32 %v339, %v200
    %v341 = vmul.f32 %v327, %v327
    %v342 = vsub.f32 %v340, %v341
    %v343 = vmax.f32 %v342, 0.0
    %s344 = sld [smem:[#allocation7 + $0x2]]
    %s345 = sld [smem:[#allocation8 + $0x2]]
    %v346 = vadd.f32 %v343, 1e-05
    %v347 = vrsqrt.pop %v346
    %v348 = vstv %s344
    %v349 = vmul.f32 %v348, %v347
    %v350 = vmul.f32 %v327, %v349
    %v351 = vstv %s345
    %v352 = vsub.f32 %v351, %v350
    %v353 = vmul.f32 %v315, %v349
    %v354 = vadd.f32 %v353, %v352
    %s355 = sld [smem:[#allocation2 + $0x3]]
    %v356 = vstv %s355
    %v357 = vmul.f32 %v356, %v161
    %s358 = sld [smem:[#allocation2 + $0xb]]
    %v359 = vstv %s358
    %v360 = vmul.f32 %v359, %v161
    %362 = vrot.lane.b32.xlu0 %v360, 127
    %v363 = vpop.permute.xlu0 %362
    %v365 = vadd.f32 %v357, %v363
    %s366 = sld [smem:[#allocation2 + $0x13]]
    %v367 = vstv %s366
    %v368 = vmul.f32 %v367, %v161
    %370 = vrot.lane.b32.xlu0 %v368, 126
    %v371 = vpop.permute.xlu0 %370
    %v373 = vadd.f32 %v365, %v371
    %s374 = sld [smem:[#allocation5 + $0x3]]
    %v375 = vstv %s374
    %v376 = vadd.f32 %v373, %v375
    %v377 = vmul.f32 %v376, 0.01
    %v378 = vmax.f32 %v376, %v377
    %v379 = vsel %vm186, %v378, 0.0
    %380 = vadd.xlane.f32.xlu0 %v379
    %v381 = vpop.xlane.xlu0 %380
    %v382 = vmul.f32 %v381, %v190
    %v383 = vsel %vm192, %v382, 0.0
    %v384 = vrot.slane %v383, 4
    %v385 = vadd.f32 %v383, %v384
    %v386 = vrot.slane %v385, 2
    %v387 = vadd.f32 %v385, %v386
    %v388 = vrot.slane %v387, 1
    %v389 = vadd.f32 %v387, %v388
    %v390 = vmul.f32 %v389, %v200
    %v391 = vmul.f32 %v378, %v378
    %v392 = vsel %vm186, %v391, 0.0
    %393 = vadd.xlane.f32.xlu0 %v392
    %v394 = vpop.xlane.xlu0 %393
    %v395 = vmul.f32 %v394, %v190
    %v396 = vsel %vm192, %v395, 0.0
    %v397 = vrot.slane %v396, 4
    %v398 = vadd.f32 %v396, %v397
    %v399 = vrot.slane %v398, 2
    %v400 = vadd.f32 %v398, %v399
    %v401 = vrot.slane %v400, 1
    %v402 = vadd.f32 %v400, %v401
    %v403 = vmul.f32 %v402, %v200
    %v404 = vmul.f32 %v390, %v390
    %v405 = vsub.f32 %v403, %v404
    %v406 = vmax.f32 %v405, 0.0
    %s407 = sld [smem:[#allocation7 + $0x3]]
    %s408 = sld [smem:[#allocation8 + $0x3]]
    %v409 = vadd.f32 %v406, 1e-05
    %v410 = vrsqrt.pop %v409
    %v411 = vstv %s407
    %v412 = vmul.f32 %v411, %v410
    %v413 = vmul.f32 %v390, %v412
    %v414 = vstv %s408
    %v415 = vsub.f32 %v414, %v413
    %v416 = vmul.f32 %v378, %v412
    %v417 = vadd.f32 %v416, %v415
    %s418 = sld [smem:[#allocation2 + $0x4]]
    %v419 = vstv %s418
    %v420 = vmul.f32 %v419, %v161
    %s421 = sld [smem:[#allocation2 + $0xc]]
    %v422 = vstv %s421
    %v423 = vmul.f32 %v422, %v161
    %425 = vrot.lane.b32.xlu0 %v423, 127
    %v426 = vpop.permute.xlu0 %425
    %v428 = vadd.f32 %v420, %v426
    %s429 = sld [smem:[#allocation2 + $0x14]]
    %v430 = vstv %s429
    %v431 = vmul.f32 %v430, %v161
    %433 = vrot.lane.b32.xlu0 %v431, 126
    %v434 = vpop.permute.xlu0 %433
    %v436 = vadd.f32 %v428, %v434
    %s437 = sld [smem:[#allocation5 + $0x4]]
    %v438 = vstv %s437
    %v439 = vadd.f32 %v436, %v438
    %v440 = vmul.f32 %v439, 0.01
    %v441 = vmax.f32 %v439, %v440
    %v442 = vsel %vm186, %v441, 0.0
    %443 = vadd.xlane.f32.xlu0 %v442
    %v444 = vpop.xlane.xlu0 %443
    %v445 = vmul.f32 %v444, %v190
    %v446 = vsel %vm192, %v445, 0.0
    %v447 = vrot.slane %v446, 4
    %v448 = vadd.f32 %v446, %v447
    %v449 = vrot.slane %v448, 2
    %v450 = vadd.f32 %v448, %v449
    %v451 = vrot.slane %v450, 1
    %v452 = vadd.f32 %v450, %v451
    %v453 = vmul.f32 %v452, %v200
    %v454 = vmul.f32 %v441, %v441
    %v455 = vsel %vm186, %v454, 0.0
    %456 = vadd.xlane.f32.xlu0 %v455
    %v457 = vpop.xlane.xlu0 %456
    %v458 = vmul.f32 %v457, %v190
    %v459 = vsel %vm192, %v458, 0.0
    %v460 = vrot.slane %v459, 4
    %v461 = vadd.f32 %v459, %v460
    %v462 = vrot.slane %v461, 2
    %v463 = vadd.f32 %v461, %v462
    %v464 = vrot.slane %v463, 1
    %v465 = vadd.f32 %v463, %v464
    %v466 = vmul.f32 %v465, %v200
    %v467 = vmul.f32 %v453, %v453
    %v468 = vsub.f32 %v466, %v467
    %v469 = vmax.f32 %v468, 0.0
    %s470 = sld [smem:[#allocation7 + $0x4]]
    %s471 = sld [smem:[#allocation8 + $0x4]]
    %v472 = vadd.f32 %v469, 1e-05
    %v473 = vrsqrt.pop %v472
    %v474 = vstv %s470
    %v475 = vmul.f32 %v474, %v473
    %v476 = vmul.f32 %v453, %v475
    %v477 = vstv %s471
    %v478 = vsub.f32 %v477, %v476
    %v479 = vmul.f32 %v441, %v475
    %v480 = vadd.f32 %v479, %v478
    %s481 = sld [smem:[#allocation2 + $0x5]]
    %v482 = vstv %s481
    %v483 = vmul.f32 %v482, %v161
    %s484 = sld [smem:[#allocation2 + $0xd]]
    %v485 = vstv %s484
    %v486 = vmul.f32 %v485, %v161
    %488 = vrot.lane.b32.xlu0 %v486, 127
    %v489 = vpop.permute.xlu0 %488
    %v491 = vadd.f32 %v483, %v489
    %s492 = sld [smem:[#allocation2 + $0x15]]
    %v493 = vstv %s492
    %v494 = vmul.f32 %v493, %v161
    %496 = vrot.lane.b32.xlu0 %v494, 126
    %v497 = vpop.permute.xlu0 %496
    %v499 = vadd.f32 %v491, %v497
    %s500 = sld [smem:[#allocation5 + $0x5]]
    %v501 = vstv %s500
    %v502 = vadd.f32 %v499, %v501
    %v503 = vmul.f32 %v502, 0.01
    %v504 = vmax.f32 %v502, %v503
    %v505 = vsel %vm186, %v504, 0.0
    %506 = vadd.xlane.f32.xlu0 %v505
    %v507 = vpop.xlane.xlu0 %506
    %v508 = vmul.f32 %v507, %v190
    %v509 = vsel %vm192, %v508, 0.0
    %v510 = vrot.slane %v509, 4
    %v511 = vadd.f32 %v509, %v510
    %v512 = vrot.slane %v511, 2
    %v513 = vadd.f32 %v511, %v512
    %v514 = vrot.slane %v513, 1
    %v515 = vadd.f32 %v513, %v514
    %v516 = vmul.f32 %v515, %v200
    %v517 = vmul.f32 %v504, %v504
    %v518 = vsel %vm186, %v517, 0.0
    %519 = vadd.xlane.f32.xlu0 %v518
    %v520 = vpop.xlane.xlu0 %519
    %v521 = vmul.f32 %v520, %v190
    %v522 = vsel %vm192, %v521, 0.0
    %v523 = vrot.slane %v522, 4
    %v524 = vadd.f32 %v522, %v523
    %v525 = vrot.slane %v524, 2
    %v526 = vadd.f32 %v524, %v525
    %v527 = vrot.slane %v526, 1
    %v528 = vadd.f32 %v526, %v527
    %v529 = vmul.f32 %v528, %v200
    %v530 = vmul.f32 %v516, %v516
    %v531 = vsub.f32 %v529, %v530
    %v532 = vmax.f32 %v531, 0.0
    %s533 = sld [smem:[#allocation7 + $0x5]]
    %s534 = sld [smem:[#allocation8 + $0x5]]
    %v535 = vadd.f32 %v532, 1e-05
    %v536 = vrsqrt.pop %v535
    %v537 = vstv %s533
    %v538 = vmul.f32 %v537, %v536
    %v539 = vmul.f32 %v516, %v538
    %v540 = vstv %s534
    %v541 = vsub.f32 %v540, %v539
    %v542 = vmul.f32 %v504, %v538
    %v543 = vadd.f32 %v542, %v541
    %s544 = sld [smem:[#allocation2 + $0x6]]
    %v545 = vstv %s544
    %v546 = vmul.f32 %v545, %v161
    %s547 = sld [smem:[#allocation2 + $0xe]]
    %v548 = vstv %s547
    %v549 = vmul.f32 %v548, %v161
    %551 = vrot.lane.b32.xlu0 %v549, 127
    %v552 = vpop.permute.xlu0 %551
    %v554 = vadd.f32 %v546, %v552
    %s555 = sld [smem:[#allocation2 + $0x16]]
    %v556 = vstv %s555
    %v557 = vmul.f32 %v556, %v161
    %559 = vrot.lane.b32.xlu0 %v557, 126
    %v560 = vpop.permute.xlu0 %559
    %v562 = vadd.f32 %v554, %v560
    %s563 = sld [smem:[#allocation5 + $0x6]]
    %v564 = vstv %s563
    %v565 = vadd.f32 %v562, %v564
    %v566 = vmul.f32 %v565, 0.01
    %v567 = vmax.f32 %v565, %v566
    %v568 = vsel %vm186, %v567, 0.0
    %569 = vadd.xlane.f32.xlu0 %v568
    %v570 = vpop.xlane.xlu0 %569
    %v571 = vmul.f32 %v570, %v190
    %v572 = vsel %vm192, %v571, 0.0
    %v573 = vrot.slane %v572, 4
    %v574 = vadd.f32 %v572, %v573
    %v575 = vrot.slane %v574, 2
    %v576 = vadd.f32 %v574, %v575
    %v577 = vrot.slane %v576, 1
    %v578 = vadd.f32 %v576, %v577
    %v579 = vmul.f32 %v578, %v200
    %v580 = vmul.f32 %v567, %v567
    %v581 = vsel %vm186, %v580, 0.0
    %582 = vadd.xlane.f32.xlu0 %v581
    %v583 = vpop.xlane.xlu0 %582
    %v584 = vmul.f32 %v583, %v190
    %v585 = vsel %vm192, %v584, 0.0
    %v586 = vrot.slane %v585, 4
    %v587 = vadd.f32 %v585, %v586
    %v588 = vrot.slane %v587, 2
    %v589 = vadd.f32 %v587, %v588
    %v590 = vrot.slane %v589, 1
    %v591 = vadd.f32 %v589, %v590
    %v592 = vmul.f32 %v591, %v200
    %v593 = vmul.f32 %v579, %v579
    %v594 = vsub.f32 %v592, %v593
    %v595 = vmax.f32 %v594, 0.0
    %s596 = sld [smem:[#allocation7 + $0x6]]
    %s597 = sld [smem:[#allocation8 + $0x6]]
    %v598 = vadd.f32 %v595, 1e-05
    %v599 = vrsqrt.pop %v598
    %v600 = vstv %s596
    %v601 = vmul.f32 %v600, %v599
    %v602 = vmul.f32 %v579, %v601
    %v603 = vstv %s597
    %v604 = vsub.f32 %v603, %v602
    %v605 = vmul.f32 %v567, %v601
    %v606 = vadd.f32 %v605, %v604
    %s607 = sld [smem:[#allocation2 + $0x7]]
    %v608 = vstv %s607
    %v609 = vmul.f32 %v608, %v161
    %s610 = sld [smem:[#allocation2 + $0xf]]
    %v611 = vstv %s610
    %v612 = vmul.f32 %v611, %v161
    %614 = vrot.lane.b32.xlu0 %v612, 127
    %v615 = vpop.permute.xlu0 %614
    %v617 = vadd.f32 %v609, %v615
    %s618 = sld [smem:[#allocation2 + $0x17]]
    %v619 = vstv %s618
    %v620 = vmul.f32 %v619, %v161
    %622 = vrot.lane.b32.xlu0 %v620, 126
    %v623 = vpop.permute.xlu0 %622
    %v625 = vadd.f32 %v617, %v623
    %s626 = sld [smem:[#allocation5 + $0x7]]
    %v627 = vstv %s626
    %v628 = vadd.f32 %v625, %v627
    %v629 = vmul.f32 %v628, 0.01
    %v630 = vmax.f32 %v628, %v629
    %v631 = vsel %vm186, %v630, 0.0
    %632 = vadd.xlane.f32.xlu0 %v631
    %v633 = vpop.xlane.xlu0 %632
    %v634 = vmul.f32 %v633, %v190
    %v635 = vsel %vm192, %v634, 0.0
    %v636 = vrot.slane %v635, 4
    %v637 = vadd.f32 %v635, %v636
    %v638 = vrot.slane %v637, 2
    %v639 = vadd.f32 %v637, %v638
    %v640 = vrot.slane %v639, 1
    %v641 = vadd.f32 %v639, %v640
    %v642 = vmul.f32 %v641, %v200
    %v643 = vmul.f32 %v630, %v630
    %v644 = vsel %vm186, %v643, 0.0
    %645 = vadd.xlane.f32.xlu0 %v644
    %v646 = vpop.xlane.xlu0 %645
    %v647 = vmul.f32 %v646, %v190
    %v648 = vsel %vm192, %v647, 0.0
    %v649 = vrot.slane %v648, 4
    %v650 = vadd.f32 %v648, %v649
    %v651 = vrot.slane %v650, 2
    %v652 = vadd.f32 %v650, %v651
    %v653 = vrot.slane %v652, 1
    %v654 = vadd.f32 %v652, %v653
    %v655 = vmul.f32 %v654, %v200
    %v656 = vmul.f32 %v642, %v642
    %v657 = vsub.f32 %v655, %v656
    %v658 = vmax.f32 %v657, 0.0
    %s659 = sld [smem:[#allocation7 + $0x7]]
    %s660 = sld [smem:[#allocation8 + $0x7]]
    %v661 = vadd.f32 %v658, 1e-05
    %v662 = vrsqrt.pop %v661
    %v663 = vstv %s659
    %v664 = vmul.f32 %v663, %v662
    %v665 = vmul.f32 %v642, %v664
    %v666 = vstv %s660
    %v667 = vsub.f32 %v666, %v665
    %v668 = vmul.f32 %v630, %v664
    %v669 = vadd.f32 %v668, %v667
    %671 = vrot.lane.b32.xlu0 %v228, 1
    %v672 = vpop.permute.xlu0 %671
    %vm674 = vcmask 7168
    %v675 = vsel %vm674, 0.0, %v672
    %vm676 = vcmask 252928
    %v677 = vsel %vm676, %v675, 0.0
    %679 = vrot.lane.b32.xlu0 %v291, 1
    %v680 = vpop.permute.xlu0 %679
    %v682 = vsel %vm674, 0.0, %v680
    %v683 = vsel %vm676, %v682, 0.0
    %685 = vrot.lane.b32.xlu0 %v354, 1
    %v686 = vpop.permute.xlu0 %685
    %v688 = vsel %vm674, 0.0, %v686
    %v689 = vsel %vm676, %v688, 0.0
    %691 = vrot.lane.b32.xlu0 %v417, 1
    %v692 = vpop.permute.xlu0 %691
    %v694 = vsel %vm674, 0.0, %v692
    %v695 = vsel %vm676, %v694, 0.0
    %697 = vrot.lane.b32.xlu0 %v480, 1
    %v698 = vpop.permute.xlu0 %697
    %v700 = vsel %vm674, 0.0, %v698
    %v701 = vsel %vm676, %v700, 0.0
    %703 = vrot.lane.b32.xlu0 %v543, 1
    %v704 = vpop.permute.xlu0 %703
    %v706 = vsel %vm674, 0.0, %v704
    %v707 = vsel %vm676, %v706, 0.0
    %709 = vrot.lane.b32.xlu0 %v606, 1
    %v710 = vpop.permute.xlu0 %709
    %v712 = vsel %vm674, 0.0, %v710
    %v713 = vsel %vm676, %v712, 0.0
    %715 = vrot.lane.b32.xlu0 %v669, 1
    %v716 = vpop.permute.xlu0 %715
    %v718 = vsel %vm674, 0.0, %v716
    %v719 = vsel %vm676, %v718, 0.0
    %s720 = sld [smem:[#allocation10]]
    %v721 = vstv %s720
    %v722 = vmul.f32 %v721, %v677
    %v723 = vadd.f32 %v722, 0.0
    %s724 = sld [smem:[#allocation10 + $0x80]]
    %v725 = vstv %s724
    %v726 = vmul.f32 %v725, %v228
    %v727 = vadd.f32 %v723, %v726
    %s728 = sld [smem:[#allocation10 + $0x100]]
    %v729 = vstv %s728
    %v730 = vmul.f32 %v729, %v677
    %732 = vrot.lane.b32.xlu0 %v730, 126
    %v733 = vpop.permute.xlu0 %732
    %v735 = vadd.f32 %v727, %v733
    %s736 = sld [smem:[#allocation10 + $0x10]]
    %v737 = vstv %s736
    %v738 = vmul.f32 %v737, %v683
    %v739 = vadd.f32 %v735, %v738
    %s740 = sld [smem:[#allocation10 + $0x90]]
    %v741 = vstv %s740
    %v742 = vmul.f32 %v741, %v291
    %v743 = vadd.f32 %v739, %v742
    %s744 = sld [smem:[#allocation10 + $0x110]]
    %v745 = vstv %s744
    %v746 = vmul.f32 %v745, %v683
    %748 = vrot.lane.b32.xlu0 %v746, 126
    %v749 = vpop.permute.xlu0 %748
    %v751 = vadd.f32 %v743, %v749
    %s752 = sld [smem:[#allocation10 + $0x20]]
    %v753 = vstv %s752
    %v754 = vmul.f32 %v753, %v689
    %v755 = vadd.f32 %v751, %v754
    %s756 = sld [smem:[#allocation10 + $0xa0]]
    %v757 = vstv %s756
    %v758 = vmul.f32 %v757, %v354
    %v759 = vadd.f32 %v755, %v758
    %s760 = sld [smem:[#allocation10 + $0x120]]
    %v761 = vstv %s760
    %v762 = vmul.f32 %v761, %v689
    %764 = vrot.lane.b32.xlu0 %v762, 126
    %v765 = vpop.permute.xlu0 %764
    %v767 = vadd.f32 %v759, %v765
    %s768 = sld [smem:[#allocation10 + $0x30]]
    %v769 = vstv %s768
    %v770 = vmul.f32 %v769, %v695
    %v771 = vadd.f32 %v767, %v770
    %s772 = sld [smem:[#allocation10 + $0xb0]]
    %v773 = vstv %s772
    %v774 = vmul.f32 %v773, %v417
    %v775 = vadd.f32 %v771, %v774
    %s776 = sld [smem:[#allocation10 + $0x130]]
    %v777 = vstv %s776
    %v778 = vmul.f32 %v777, %v695
    %780 = vrot.lane.b32.xlu0 %v778, 126
    %v781 = vpop.permute.xlu0 %780
    %v783 = vadd.f32 %v775, %v781
    %s784 = sld [smem:[#allocation10 + $0x40]]
    %v785 = vstv %s784
    %v786 = vmul.f32 %v785, %v701
    %v787 = vadd.f32 %v783, %v786
    %s788 = sld [smem:[#allocation10 + $0xc0]]
    %v789 = vstv %s788
    %v790 = vmul.f32 %v789, %v480
    %v791 = vadd.f32 %v787, %v790
    %s792 = sld [smem:[#allocation10 + $0x140]]
    %v793 = vstv %s792
    %v794 = vmul.f32 %v793, %v701
    %796 = vrot.lane.b32.xlu0 %v794, 126
    %v797 = vpop.permute.xlu0 %796
    %v799 = vadd.f32 %v791, %v797
    %s800 = sld [smem:[#allocation10 + $0x50]]
    %v801 = vstv %s800
    %v802 = vmul.f32 %v801, %v707
    %v803 = vadd.f32 %v799, %v802
    %s804 = sld [smem:[#allocation10 + $0xd0]]
    %v805 = vstv %s804
    %v806 = vmul.f32 %v805, %v543
    %v807 = vadd.f32 %v803, %v806
    %s808 = sld [smem:[#allocation10 + $0x150]]
    %v809 = vstv %s808
    %v810 = vmul.f32 %v809, %v707
    %812 = vrot.lane.b32.xlu0 %v810, 126
    %v813 = vpop.permute.xlu0 %812
    %v815 = vadd.f32 %v807, %v813
    %s816 = sld [smem:[#allocation10 + $0x60]]
    %v817 = vstv %s816
    %v818 = vmul.f32 %v817, %v713
    %v819 = vadd.f32 %v815, %v818
    %s820 = sld [smem:[#allocation10 + $0xe0]]
    %v821 = vstv %s820
    %v822 = vmul.f32 %v821, %v606
    %v823 = vadd.f32 %v819, %v822
    %s824 = sld [smem:[#allocation10 + $0x160]]
    %v825 = vstv %s824
    %v826 = vmul.f32 %v825, %v713
    %828 = vrot.lane.b32.xlu0 %v826, 126
    %v829 = vpop.permute.xlu0 %828
    %v831 = vadd.f32 %v823, %v829
    %s832 = sld [smem:[#allocation10 + $0x70]]
    %v833 = vstv %s832
    %v834 = vmul.f32 %v833, %v719
    %v835 = vadd.f32 %v831, %v834
    %s836 = sld [smem:[#allocation10 + $0xf0]]
    %v837 = vstv %s836
    %v838 = vmul.f32 %v837, %v669
    %v839 = vadd.f32 %v835, %v838
    %s840 = sld [smem:[#allocation10 + $0x170]]
    %v841 = vstv %s840
    %v842 = vmul.f32 %v841, %v719
    %844 = vrot.lane.b32.xlu0 %v842, 126
    %v845 = vpop.permute.xlu0 %844
    %v847 = vadd.f32 %v839, %v845
    %s848 = sld [smem:[#allocation11]]
    %v849 = vstv %s848
    %v850 = vadd.f32 %v847, %v849
    %v851 = vmul.f32 %v850, 0.01
    %v852 = vmax.f32 %v850, %v851
    %v853 = vsel %vm186, %v852, 0.0
    %854 = vadd.xlane.f32.xlu0 %v853
    %v855 = vpop.xlane.xlu0 %854
    %v856 = vmul.f32 %v855, %v190
    %v857 = vsel %vm192, %v856, 0.0
    %v858 = vrot.slane %v857, 4
    %v859 = vadd.f32 %v857, %v858
    %v860 = vrot.slane %v859, 2
    %v861 = vadd.f32 %v859, %v860
    %v862 = vrot.slane %v861, 1
    %v863 = vadd.f32 %v861, %v862
    %v864 = vmul.f32 %v863, %v200
    %v865 = vmul.f32 %v852, %v852
    %v866 = vsel %vm186, %v865, 0.0
    %867 = vadd.xlane.f32.xlu0 %v866
    %v868 = vpop.xlane.xlu0 %867
    %v869 = vmul.f32 %v868, %v190
    %v870 = vsel %vm192, %v869, 0.0
    %v871 = vrot.slane %v870, 4
    %v872 = vadd.f32 %v870, %v871
    %v873 = vrot.slane %v872, 2
    %v874 = vadd.f32 %v872, %v873
    %v875 = vrot.slane %v874, 1
    %v876 = vadd.f32 %v874, %v875
    %v877 = vmul.f32 %v876, %v200
    %v878 = vmul.f32 %v864, %v864
    %v879 = vsub.f32 %v877, %v878
    %v880 = vmax.f32 %v879, 0.0
    %s881 = sld [smem:[#allocation13]]
    %s882 = sld [smem:[#allocation14]]
    %v883 = vadd.f32 %v880, 1e-05
    %v884 = vrsqrt.pop %v883
    %v885 = vstv %s881
    %v886 = vmul.f32 %v885, %v884
    %v887 = vmul.f32 %v864, %v886
    %v888 = vstv %s882
    %v889 = vsub.f32 %v888, %v887
    %v890 = vmul.f32 %v852, %v886
    %v891 = vadd.f32 %v890, %v889
    %s892 = sld [smem:[#allocation10 + $0x1]]
    %v893 = vstv %s892
    %v894 = vmul.f32 %v893, %v677
    %v895 = vadd.f32 %v894, 0.0
    %s896 = sld [smem:[#allocation10 + $0x81]]
    %v897 = vstv %s896
    %v898 = vmul.f32 %v897, %v228
    %v899 = vadd.f32 %v895, %v898
    %s900 = sld [smem:[#allocation10 + $0x101]]
    %v901 = vstv %s900
    %v902 = vmul.f32 %v901, %v677
    %904 = vrot.lane.b32.xlu0 %v902, 126
    %v905 = vpop.permute.xlu0 %904
    %v907 = vadd.f32 %v899, %v905
    %s908 = sld [smem:[#allocation10 + $0x11]]
    %v909 = vstv %s908
    %v910 = vmul.f32 %v909, %v683
    %v911 = vadd.f32 %v907, %v910
    %s912 = sld [smem:[#allocation10 + $0x91]]
    %v913 = vstv %s912
    %v914 = vmul.f32 %v913, %v291
    %v915 = vadd.f32 %v911, %v914
    %s916 = sld [smem:[#allocation10 + $0x111]]
    %v917 = vstv %s916
    %v918 = vmul.f32 %v917, %v683
    %920 = vrot.lane.b32.xlu0 %v918, 126
    %v921 = vpop.permute.xlu0 %920
    %v923 = vadd.f32 %v915, %v921
    %s924 = sld [smem:[#allocation10 + $0x21]]
    %v925 = vstv %s924
    %v926 = vmul.f32 %v925, %v689
    %v927 = vadd.f32 %v923, %v926
    %s928 = sld [smem:[#allocation10 + $0xa1]]
    %v929 = vstv %s928
    %v930 = vmul.f32 %v929, %v354
    %v931 = vadd.f32 %v927, %v930
    %s932 = sld [smem:[#allocation10 + $0x121]]
    %v933 = vstv %s932
    %v934 = vmul.f32 %v933, %v689
    %936 = vrot.lane.b32.xlu0 %v934, 126
    %v937 = vpop.permute.xlu0 %936
    %v939 = vadd.f32 %v931, %v937
    %s940 = sld [smem:[#allocation10 + $0x31]]
    %v941 = vstv %s940
    %v942 = vmul.f32 %v941, %v695
    %v943 = vadd.f32 %v939, %v942
    %s944 = sld [smem:[#allocation10 + $0xb1]]
    %v945 = vstv %s944
    %v946 = vmul.f32 %v945, %v417
    %v947 = vadd.f32 %v943, %v946
    %s948 = sld [smem:[#allocation10 + $0x131]]
    %v949 = vstv %s948
    %v950 = vmul.f32 %v949, %v695
    %952 = vrot.lane.b32.xlu0 %v950, 126
    %v953 = vpop.permute.xlu0 %952
    %v955 = vadd.f32 %v947, %v953
    %s956 = sld [smem:[#allocation10 + $0x41]]
    %v957 = vstv %s956
    %v958 = vmul.f32 %v957, %v701
    %v959 = vadd.f32 %v955, %v958
    %s960 = sld [smem:[#allocation10 + $0xc1]]
    %v961 = vstv %s960
    %v962 = vmul.f32 %v961, %v480
    %v963 = vadd.f32 %v959, %v962
    %s964 = sld [smem:[#allocation10 + $0x141]]
    %v965 = vstv %s964
    %v966 = vmul.f32 %v965, %v701
    %968 = vrot.lane.b32.xlu0 %v966, 126
    %v969 = vpop.permute.xlu0 %968
    %v971 = vadd.f32 %v963, %v969
    %s972 = sld [smem:[#allocation10 + $0x51]]
    %v973 = vstv %s972
    %v974 = vmul.f32 %v973, %v707
    %v975 = vadd.f32 %v971, %v974
    %s976 = sld [smem:[#allocation10 + $0xd1]]
    %v977 = vstv %s976
    %v978 = vmul.f32 %v977, %v543
    %v979 = vadd.f32 %v975, %v978
    %s980 = sld [smem:[#allocation10 + $0x151]]
    %v981 = vstv %s980
    %v982 = vmul.f32 %v981, %v707
    %984 = vrot.lane.b32.xlu0 %v982, 126
    %v985 = vpop.permute.xlu0 %984
    %v987 = vadd.f32 %v979, %v985
    %s988 = sld [smem:[#allocation10 + $0x61]]
    %v989 = vstv %s988
    %v990 = vmul.f32 %v989, %v713
    %v991 = vadd.f32 %v987, %v990
    %s992 = sld [smem:[#allocation10 + $0xe1]]
    %v993 = vstv %s992
    %v994 = vmul.f32 %v993, %v606
    %v995 = vadd.f32 %v991, %v994
    %s996 = sld [smem:[#allocation10 + $0x161]]
    %v997 = vstv %s996
    %v998 = vmul.f32 %v997, %v713
    %1000 = vrot.lane.b32.xlu0 %v998, 126
    %v1001 = vpop.permute.xlu0 %1000
    %v1003 = vadd.f32 %v995, %v1001
    %s1004 = sld [smem:[#allocation10 + $0x71]]
    %v1005 = vstv %s1004
    %v1006 = vmul.f32 %v1005, %v719
    %v1007 = vadd.f32 %v1003, %v1006
    %s1008 = sld [smem:[#allocation10 + $0xf1]]
    %v1009 = vstv %s1008
    %v1010 = vmul.f32 %v1009, %v669
    %v1011 = vadd.f32 %v1007, %v1010
    %s1012 = sld [smem:[#allocation10 + $0x171]]
    %v1013 = vstv %s1012
    %v1014 = vmul.f32 %v1013, %v719
    %1016 = vrot.lane.b32.xlu0 %v1014, 126
    %v1017 = vpop.permute.xlu0 %1016
    %v1019 = vadd.f32 %v1011, %v1017
    %s1020 = sld [smem:[#allocation11 + $0x1]]
    %v1021 = vstv %s1020
    %v1022 = vadd.f32 %v1019, %v1021
    %v1023 = vmul.f32 %v1022, 0.01
    %v1024 = vmax.f32 %v1022, %v1023
    %v1025 = vsel %vm186, %v1024, 0.0
    %1026 = vadd.xlane.f32.xlu0 %v1025
    %v1027 = vpop.xlane.xlu0 %1026
    %v1028 = vmul.f32 %v1027, %v190
    %v1029 = vsel %vm192, %v1028, 0.0
    %v1030 = vrot.slane %v1029, 4
    %v1031 = vadd.f32 %v1029, %v1030
    %v1032 = vrot.slane %v1031, 2
    %v1033 = vadd.f32 %v1031, %v1032
    %v1034 = vrot.slane %v1033, 1
    %v1035 = vadd.f32 %v1033, %v1034
    %v1036 = vmul.f32 %v1035, %v200
    %v1037 = vmul.f32 %v1024, %v1024
    %v1038 = vsel %vm186, %v1037, 0.0
    %1039 = vadd.xlane.f32.xlu0 %v1038
    %v1040 = vpop.xlane.xlu0 %1039
    %v1041 = vmul.f32 %v1040, %v190
    %v1042 = vsel %vm192, %v1041, 0.0
    %v1043 = vrot.slane %v1042, 4
    %v1044 = vadd.f32 %v1042, %v1043
    %v1045 = vrot.slane %v1044, 2
    %v1046 = vadd.f32 %v1044, %v1045
    %v1047 = vrot.slane %v1046, 1
    %v1048 = vadd.f32 %v1046, %v1047
    %v1049 = vmul.f32 %v1048, %v200
    %v1050 = vmul.f32 %v1036, %v1036
    %v1051 = vsub.f32 %v1049, %v1050
    %v1052 = vmax.f32 %v1051, 0.0
    %s1053 = sld [smem:[#allocation13 + $0x1]]
    %s1054 = sld [smem:[#allocation14 + $0x1]]
    %v1055 = vadd.f32 %v1052, 1e-05
    %v1056 = vrsqrt.pop %v1055
    %v1057 = vstv %s1053
    %v1058 = vmul.f32 %v1057, %v1056
    %v1059 = vmul.f32 %v1036, %v1058
    %v1060 = vstv %s1054
    %v1061 = vsub.f32 %v1060, %v1059
    %v1062 = vmul.f32 %v1024, %v1058
    %v1063 = vadd.f32 %v1062, %v1061
    %s1064 = sld [smem:[#allocation10 + $0x2]]
    %v1065 = vstv %s1064
    %v1066 = vmul.f32 %v1065, %v677
    %v1067 = vadd.f32 %v1066, 0.0
    %s1068 = sld [smem:[#allocation10 + $0x82]]
    %v1069 = vstv %s1068
    %v1070 = vmul.f32 %v1069, %v228
    %v1071 = vadd.f32 %v1067, %v1070
    %s1072 = sld [smem:[#allocation10 + $0x102]]
    %v1073 = vstv %s1072
    %v1074 = vmul.f32 %v1073, %v677
    %1076 = vrot.lane.b32.xlu0 %v1074, 126
    %v1077 = vpop.permute.xlu0 %1076
    %v1079 = vadd.f32 %v1071, %v1077
    %s1080 = sld [smem:[#allocation10 + $0x12]]
    %v1081 = vstv %s1080
    %v1082 = vmul.f32 %v1081, %v683
    %v1083 = vadd.f32 %v1079, %v1082
    %s1084 = sld [smem:[#allocation10 + $0x92]]
    %v1085 = vstv %s1084
    %v1086 = vmul.f32 %v1085, %v291
    %v1087 = vadd.f32 %v1083, %v1086
    %s1088 = sld [smem:[#allocation10 + $0x112]]
    %v1089 = vstv %s1088
    %v1090 = vmul.f32 %v1089, %v683
    %1092 = vrot.lane.b32.xlu0 %v1090, 126
    %v1093 = vpop.permute.xlu0 %1092
    %v1095 = vadd.f32 %v1087, %v1093
    %s1096 = sld [smem:[#allocation10 + $0x22]]
    %v1097 = vstv %s1096
    %v1098 = vmul.f32 %v1097, %v689
    %v1099 = vadd.f32 %v1095, %v1098
    %s1100 = sld [smem:[#allocation10 + $0xa2]]
    %v1101 = vstv %s1100
    %v1102 = vmul.f32 %v1101, %v354
    %v1103 = vadd.f32 %v1099, %v1102
    %s1104 = sld [smem:[#allocation10 + $0x122]]
    %v1105 = vstv %s1104
    %v1106 = vmul.f32 %v1105, %v689
    %1108 = vrot.lane.b32.xlu0 %v1106, 126
    %v1109 = vpop.permute.xlu0 %1108
    %v1111 = vadd.f32 %v1103, %v1109
    %s1112 = sld [smem:[#allocation10 + $0x32]]
    %v1113 = vstv %s1112
    %v1114 = vmul.f32 %v1113, %v695
    %v1115 = vadd.f32 %v1111, %v1114
    %s1116 = sld [smem:[#allocation10 + $0xb2]]
    %v1117 = vstv %s1116
    %v1118 = vmul.f32 %v1117, %v417
    %v1119 = vadd.f32 %v1115, %v1118
    %s1120 = sld [smem:[#allocation10 + $0x132]]
    %v1121 = vstv %s1120
    %v1122 = vmul.f32 %v1121, %v695
    %1124 = vrot.lane.b32.xlu0 %v1122, 126
    %v1125 = vpop.permute.xlu0 %1124
    %v1127 = vadd.f32 %v1119, %v1125
    %s1128 = sld [smem:[#allocation10 + $0x42]]
    %v1129 = vstv %s1128
    %v1130 = vmul.f32 %v1129, %v701
    %v1131 = vadd.f32 %v1127, %v1130
    %s1132 = sld [smem:[#allocation10 + $0xc2]]
    %v1133 = vstv %s1132
    %v1134 = vmul.f32 %v1133, %v480
    %v1135 = vadd.f32 %v1131, %v1134
    %s1136 = sld [smem:[#allocation10 + $0x142]]
    %v1137 = vstv %s1136
    %v1138 = vmul.f32 %v1137, %v701
    %1140 = vrot.lane.b32.xlu0 %v1138, 126
    %v1141 = vpop.permute.xlu0 %1140
    %v1143 = vadd.f32 %v1135, %v1141
    %s1144 = sld [smem:[#allocation10 + $0x52]]
    %v1145 = vstv %s1144
    %v1146 = vmul.f32 %v1145, %v707
    %v1147 = vadd.f32 %v1143, %v1146
    %s1148 = sld [smem:[#allocation10 + $0xd2]]
    %v1149 = vstv %s1148
    %v1150 = vmul.f32 %v1149, %v543
    %v1151 = vadd.f32 %v1147, %v1150
    %s1152 = sld [smem:[#allocation10 + $0x152]]
    %v1153 = vstv %s1152
    %v1154 = vmul.f32 %v1153, %v707
    %1156 = vrot.lane.b32.xlu0 %v1154, 126
    %v1157 = vpop.permute.xlu0 %1156
    %v1159 = vadd.f32 %v1151, %v1157
    %s1160 = sld [smem:[#allocation10 + $0x62]]
    %v1161 = vstv %s1160
    %v1162 = vmul.f32 %v1161, %v713
    %v1163 = vadd.f32 %v1159, %v1162
    %s1164 = sld [smem:[#allocation10 + $0xe2]]
    %v1165 = vstv %s1164
    %v1166 = vmul.f32 %v1165, %v606
    %v1167 = vadd.f32 %v1163, %v1166
    %s1168 = sld [smem:[#allocation10 + $0x162]]
    %v1169 = vstv %s1168
    %v1170 = vmul.f32 %v1169, %v713
    %1172 = vrot.lane.b32.xlu0 %v1170, 126
    %v1173 = vpop.permute.xlu0 %1172
    %v1175 = vadd.f32 %v1167, %v1173
    %s1176 = sld [smem:[#allocation10 + $0x72]]
    %v1177 = vstv %s1176
    %v1178 = vmul.f32 %v1177, %v719
    %v1179 = vadd.f32 %v1175, %v1178
    %s1180 = sld [smem:[#allocation10 + $0xf2]]
    %v1181 = vstv %s1180
    %v1182 = vmul.f32 %v1181, %v669
    %v1183 = vadd.f32 %v1179, %v1182
    %s1184 = sld [smem:[#allocation10 + $0x172]]
    %v1185 = vstv %s1184
    %v1186 = vmul.f32 %v1185, %v719
    %1188 = vrot.lane.b32.xlu0 %v1186, 126
    %v1189 = vpop.permute.xlu0 %1188
    %v1191 = vadd.f32 %v1183, %v1189
    %s1192 = sld [smem:[#allocation11 + $0x2]]
    %v1193 = vstv %s1192
    %v1194 = vadd.f32 %v1191, %v1193
    %v1195 = vmul.f32 %v1194, 0.01
    %v1196 = vmax.f32 %v1194, %v1195
    %v1197 = vsel %vm186, %v1196, 0.0
    %1198 = vadd.xlane.f32.xlu0 %v1197
    %v1199 = vpop.xlane.xlu0 %1198
    %v1200 = vmul.f32 %v1199, %v190
    %v1201 = vsel %vm192, %v1200, 0.0
    %v1202 = vrot.slane %v1201, 4
    %v1203 = vadd.f32 %v1201, %v1202
    %v1204 = vrot.slane %v1203, 2
    %v1205 = vadd.f32 %v1203, %v1204
    %v1206 = vrot.slane %v1205, 1
    %v1207 = vadd.f32 %v1205, %v1206
    %v1208 = vmul.f32 %v1207, %v200
    %v1209 = vmul.f32 %v1196, %v1196
    %v1210 = vsel %vm186, %v1209, 0.0
    %1211 = vadd.xlane.f32.xlu0 %v1210
    %v1212 = vpop.xlane.xlu0 %1211
    %v1213 = vmul.f32 %v1212, %v190
    %v1214 = vsel %vm192, %v1213, 0.0
    %v1215 = vrot.slane %v1214, 4
    %v1216 = vadd.f32 %v1214, %v1215
    %v1217 = vrot.slane %v1216, 2
    %v1218 = vadd.f32 %v1216, %v1217
    %v1219 = vrot.slane %v1218, 1
    %v1220 = vadd.f32 %v1218, %v1219
    %v1221 = vmul.f32 %v1220, %v200
    %v1222 = vmul.f32 %v1208, %v1208
    %v1223 = vsub.f32 %v1221, %v1222
    %v1224 = vmax.f32 %v1223, 0.0
    %s1225 = sld [smem:[#allocation13 + $0x2]]
    %s1226 = sld [smem:[#allocation14 + $0x2]]
    %v1227 = vadd.f32 %v1224, 1e-05
    %v1228 = vrsqrt.pop %v1227
    %v1229 = vstv %s1225
    %v1230 = vmul.f32 %v1229, %v1228
    %v1231 = vmul.f32 %v1208, %v1230
    %v1232 = vstv %s1226
    %v1233 = vsub.f32 %v1232, %v1231
    %v1234 = vmul.f32 %v1196, %v1230
    %v1235 = vadd.f32 %v1234, %v1233
    %s1236 = sld [smem:[#allocation10 + $0x3]]
    %v1237 = vstv %s1236
    %v1238 = vmul.f32 %v1237, %v677
    %v1239 = vadd.f32 %v1238, 0.0
    %s1240 = sld [smem:[#allocation10 + $0x83]]
    %v1241 = vstv %s1240
    %v1242 = vmul.f32 %v1241, %v228
    %v1243 = vadd.f32 %v1239, %v1242
    %s1244 = sld [smem:[#allocation10 + $0x103]]
    %v1245 = vstv %s1244
    %v1246 = vmul.f32 %v1245, %v677
    %1248 = vrot.lane.b32.xlu0 %v1246, 126
    %v1249 = vpop.permute.xlu0 %1248
    %v1251 = vadd.f32 %v1243, %v1249
    %s1252 = sld [smem:[#allocation10 + $0x13]]
    %v1253 = vstv %s1252
    %v1254 = vmul.f32 %v1253, %v683
    %v1255 = vadd.f32 %v1251, %v1254
    %s1256 = sld [smem:[#allocation10 + $0x93]]
    %v1257 = vstv %s1256
    %v1258 = vmul.f32 %v1257, %v291
    %v1259 = vadd.f32 %v1255, %v1258
    %s1260 = sld [smem:[#allocation10 + $0x113]]
    %v1261 = vstv %s1260
    %v1262 = vmul.f32 %v1261, %v683
    %1264 = vrot.lane.b32.xlu0 %v1262, 126
    %v1265 = vpop.permute.xlu0 %1264
    %v1267 = vadd.f32 %v1259, %v1265
    %s1268 = sld [smem:[#allocation10 + $0x23]]
    %v1269 = vstv %s1268
    %v1270 = vmul.f32 %v1269, %v689
    %v1271 = vadd.f32 %v1267, %v1270
    %s1272 = sld [smem:[#allocation10 + $0xa3]]
    %v1273 = vstv %s1272
    %v1274 = vmul.f32 %v1273, %v354
    %v1275 = vadd.f32 %v1271, %v1274
    %s1276 = sld [smem:[#allocation10 + $0x123]]
    %v1277 = vstv %s1276
    %v1278 = vmul.f32 %v1277, %v689
    %1280 = vrot.lane.b32.xlu0 %v1278, 126
    %v1281 = vpop.permute.xlu0 %1280
    %v1283 = vadd.f32 %v1275, %v1281
    %s1284 = sld [smem:[#allocation10 + $0x33]]
    %v1285 = vstv %s1284
    %v1286 = vmul.f32 %v1285, %v695
    %v1287 = vadd.f32 %v1283, %v1286
    %s1288 = sld [smem:[#allocation10 + $0xb3]]
    %v1289 = vstv %s1288
    %v1290 = vmul.f32 %v1289, %v417
    %v1291 = vadd.f32 %v1287, %v1290
    %s1292 = sld [smem:[#allocation10 + $0x133]]
    %v1293 = vstv %s1292
    %v1294 = vmul.f32 %v1293, %v695
    %1296 = vrot.lane.b32.xlu0 %v1294, 126
    %v1297 = vpop.permute.xlu0 %1296
    %v1299 = vadd.f32 %v1291, %v1297
    %s1300 = sld [smem:[#allocation10 + $0x43]]
    %v1301 = vstv %s1300
    %v1302 = vmul.f32 %v1301, %v701
    %v1303 = vadd.f32 %v1299, %v1302
    %s1304 = sld [smem:[#allocation10 + $0xc3]]
    %v1305 = vstv %s1304
    %v1306 = vmul.f32 %v1305, %v480
    %v1307 = vadd.f32 %v1303, %v1306
    %s1308 = sld [smem:[#allocation10 + $0x143]]
    %v1309 = vstv %s1308
    %v1310 = vmul.f32 %v1309, %v701
    %1312 = vrot.lane.b32.xlu0 %v1310, 126
    %v1313 = vpop.permute.xlu0 %1312
    %v1315 = vadd.f32 %v1307, %v1313
    %s1316 = sld [smem:[#allocation10 + $0x53]]
    %v1317 = vstv %s1316
    %v1318 = vmul.f32 %v1317, %v707
    %v1319 = vadd.f32 %v1315, %v1318
    %s1320 = sld [smem:[#allocation10 + $0xd3]]
    %v1321 = vstv %s1320
    %v1322 = vmul.f32 %v1321, %v543
    %v1323 = vadd.f32 %v1319, %v1322
    %s1324 = sld [smem:[#allocation10 + $0x153]]
    %v1325 = vstv %s1324
    %v1326 = vmul.f32 %v1325, %v707
    %1328 = vrot.lane.b32.xlu0 %v1326, 126
    %v1329 = vpop.permute.xlu0 %1328
    %v1331 = vadd.f32 %v1323, %v1329
    %s1332 = sld [smem:[#allocation10 + $0x63]]
    %v1333 = vstv %s1332
    %v1334 = vmul.f32 %v1333, %v713
    %v1335 = vadd.f32 %v1331, %v1334
    %s1336 = sld [smem:[#allocation10 + $0xe3]]
    %v1337 = vstv %s1336
    %v1338 = vmul.f32 %v1337, %v606
    %v1339 = vadd.f32 %v1335, %v1338
    %s1340 = sld [smem:[#allocation10 + $0x163]]
    %v1341 = vstv %s1340
    %v1342 = vmul.f32 %v1341, %v713
    %1344 = vrot.lane.b32.xlu0 %v1342, 126
    %v1345 = vpop.permute.xlu0 %1344
    %v1347 = vadd.f32 %v1339, %v1345
    %s1348 = sld [smem:[#allocation10 + $0x73]]
    %v1349 = vstv %s1348
    %v1350 = vmul.f32 %v1349, %v719
    %v1351 = vadd.f32 %v1347, %v1350
    %s1352 = sld [smem:[#allocation10 + $0xf3]]
    %v1353 = vstv %s1352
    %v1354 = vmul.f32 %v1353, %v669
    %v1355 = vadd.f32 %v1351, %v1354
    %s1356 = sld [smem:[#allocation10 + $0x173]]
    %v1357 = vstv %s1356
    %v1358 = vmul.f32 %v1357, %v719
    %1360 = vrot.lane.b32.xlu0 %v1358, 126
    %v1361 = vpop.permute.xlu0 %1360
    %v1363 = vadd.f32 %v1355, %v1361
    %s1364 = sld [smem:[#allocation11 + $0x3]]
    %v1365 = vstv %s1364
    %v1366 = vadd.f32 %v1363, %v1365
    %v1367 = vmul.f32 %v1366, 0.01
    %v1368 = vmax.f32 %v1366, %v1367
    %v1369 = vsel %vm186, %v1368, 0.0
    %1370 = vadd.xlane.f32.xlu0 %v1369
    %v1371 = vpop.xlane.xlu0 %1370
    %v1372 = vmul.f32 %v1371, %v190
    %v1373 = vsel %vm192, %v1372, 0.0
    %v1374 = vrot.slane %v1373, 4
    %v1375 = vadd.f32 %v1373, %v1374
    %v1376 = vrot.slane %v1375, 2
    %v1377 = vadd.f32 %v1375, %v1376
    %v1378 = vrot.slane %v1377, 1
    %v1379 = vadd.f32 %v1377, %v1378
    %v1380 = vmul.f32 %v1379, %v200
    %v1381 = vmul.f32 %v1368, %v1368
    %v1382 = vsel %vm186, %v1381, 0.0
    %1383 = vadd.xlane.f32.xlu0 %v1382
    %v1384 = vpop.xlane.xlu0 %1383
    %v1385 = vmul.f32 %v1384, %v190
    %v1386 = vsel %vm192, %v1385, 0.0
    %v1387 = vrot.slane %v1386, 4
    %v1388 = vadd.f32 %v1386, %v1387
    %v1389 = vrot.slane %v1388, 2
    %v1390 = vadd.f32 %v1388, %v1389
    %v1391 = vrot.slane %v1390, 1
    %v1392 = vadd.f32 %v1390, %v1391
    %v1393 = vmul.f32 %v1392, %v200
    %v1394 = vmul.f32 %v1380, %v1380
    %v1395 = vsub.f32 %v1393, %v1394
    %v1396 = vmax.f32 %v1395, 0.0
    %s1397 = sld [smem:[#allocation13 + $0x3]]
    %s1398 = sld [smem:[#allocation14 + $0x3]]
    %v1399 = vadd.f32 %v1396, 1e-05
    %v1400 = vrsqrt.pop %v1399
    %v1401 = vstv %s1397
    %v1402 = vmul.f32 %v1401, %v1400
    %v1403 = vmul.f32 %v1380, %v1402
    %v1404 = vstv %s1398
    %v1405 = vsub.f32 %v1404, %v1403
    %v1406 = vmul.f32 %v1368, %v1402
    %v1407 = vadd.f32 %v1406, %v1405
    %s1408 = sld [smem:[#allocation10 + $0x4]]
    %v1409 = vstv %s1408
    %v1410 = vmul.f32 %v1409, %v677
    %v1411 = vadd.f32 %v1410, 0.0
    %s1412 = sld [smem:[#allocation10 + $0x84]]
    %v1413 = vstv %s1412
    %v1414 = vmul.f32 %v1413, %v228
    %v1415 = vadd.f32 %v1411, %v1414
    %s1416 = sld [smem:[#allocation10 + $0x104]]
    %v1417 = vstv %s1416
    %v1418 = vmul.f32 %v1417, %v677
    %1420 = vrot.lane.b32.xlu0 %v1418, 126
    %v1421 = vpop.permute.xlu0 %1420
    %v1423 = vadd.f32 %v1415, %v1421
    %s1424 = sld [smem:[#allocation10 + $0x14]]
    %v1425 = vstv %s1424
    %v1426 = vmul.f32 %v1425, %v683
    %v1427 = vadd.f32 %v1423, %v1426
    %s1428 = sld [smem:[#allocation10 + $0x94]]
    %v1429 = vstv %s1428
    %v1430 = vmul.f32 %v1429, %v291
    %v1431 = vadd.f32 %v1427, %v1430
    %s1432 = sld [smem:[#allocation10 + $0x114]]
    %v1433 = vstv %s1432
    %v1434 = vmul.f32 %v1433, %v683
    %1436 = vrot.lane.b32.xlu0 %v1434, 126
    %v1437 = vpop.permute.xlu0 %1436
    %v1439 = vadd.f32 %v1431, %v1437
    %s1440 = sld [smem:[#allocation10 + $0x24]]
    %v1441 = vstv %s1440
    %v1442 = vmul.f32 %v1441, %v689
    %v1443 = vadd.f32 %v1439, %v1442
    %s1444 = sld [smem:[#allocation10 + $0xa4]]
    %v1445 = vstv %s1444
    %v1446 = vmul.f32 %v1445, %v354
    %v1447 = vadd.f32 %v1443, %v1446
    %s1448 = sld [smem:[#allocation10 + $0x124]]
    %v1449 = vstv %s1448
    %v1450 = vmul.f32 %v1449, %v689
    %1452 = vrot.lane.b32.xlu0 %v1450, 126
    %v1453 = vpop.permute.xlu0 %1452
    %v1455 = vadd.f32 %v1447, %v1453
    %s1456 = sld [smem:[#allocation10 + $0x34]]
    %v1457 = vstv %s1456
    %v1458 = vmul.f32 %v1457, %v695
    %v1459 = vadd.f32 %v1455, %v1458
    %s1460 = sld [smem:[#allocation10 + $0xb4]]
    %v1461 = vstv %s1460
    %v1462 = vmul.f32 %v1461, %v417
    %v1463 = vadd.f32 %v1459, %v1462
    %s1464 = sld [smem:[#allocation10 + $0x134]]
    %v1465 = vstv %s1464
    %v1466 = vmul.f32 %v1465, %v695
    %1468 = vrot.lane.b32.xlu0 %v1466, 126
    %v1469 = vpop.permute.xlu0 %1468
    %v1471 = vadd.f32 %v1463, %v1469
    %s1472 = sld [smem:[#allocation10 + $0x44]]
    %v1473 = vstv %s1472
    %v1474 = vmul.f32 %v1473, %v701
    %v1475 = vadd.f32 %v1471, %v1474
    %s1476 = sld [smem:[#allocation10 + $0xc4]]
    %v1477 = vstv %s1476
    %v1478 = vmul.f32 %v1477, %v480
    %v1479 = vadd.f32 %v1475, %v1478
    %s1480 = sld [smem:[#allocation10 + $0x144]]
    %v1481 = vstv %s1480
    %v1482 = vmul.f32 %v1481, %v701
    %1484 = vrot.lane.b32.xlu0 %v1482, 126
    %v1485 = vpop.permute.xlu0 %1484
    %v1487 = vadd.f32 %v1479, %v1485
    %s1488 = sld [smem:[#allocation10 + $0x54]]
    %v1489 = vstv %s1488
    %v1490 = vmul.f32 %v1489, %v707
    %v1491 = vadd.f32 %v1487, %v1490
    %s1492 = sld [smem:[#allocation10 + $0xd4]]
    %v1493 = vstv %s1492
    %v1494 = vmul.f32 %v1493, %v543
    %v1495 = vadd.f32 %v1491, %v1494
    %s1496 = sld [smem:[#allocation10 + $0x154]]
    %v1497 = vstv %s1496
    %v1498 = vmul.f32 %v1497, %v707
    %1500 = vrot.lane.b32.xlu0 %v1498, 126
    %v1501 = vpop.permute.xlu0 %1500
    %v1503 = vadd.f32 %v1495, %v1501
    %s1504 = sld [smem:[#allocation10 + $0x64]]
    %v1505 = vstv %s1504
    %v1506 = vmul.f32 %v1505, %v713
    %v1507 = vadd.f32 %v1503, %v1506
    %s1508 = sld [smem:[#allocation10 + $0xe4]]
    %v1509 = vstv %s1508
    %v1510 = vmul.f32 %v1509, %v606
    %v1511 = vadd.f32 %v1507, %v1510
    %s1512 = sld [smem:[#allocation10 + $0x164]]
    %v1513 = vstv %s1512
    %v1514 = vmul.f32 %v1513, %v713
    %1516 = vrot.lane.b32.xlu0 %v1514, 126
    %v1517 = vpop.permute.xlu0 %1516
    %v1519 = vadd.f32 %v1511, %v1517
    %s1520 = sld [smem:[#allocation10 + $0x74]]
    %v1521 = vstv %s1520
    %v1522 = vmul.f32 %v1521, %v719
    %v1523 = vadd.f32 %v1519, %v1522
    %s1524 = sld [smem:[#allocation10 + $0xf4]]
    %v1525 = vstv %s1524
    %v1526 = vmul.f32 %v1525, %v669
    %v1527 = vadd.f32 %v1523, %v1526
    %s1528 = sld [smem:[#allocation10 + $0x174]]
    %v1529 = vstv %s1528
    %v1530 = vmul.f32 %v1529, %v719
    %1532 = vrot.lane.b32.xlu0 %v1530, 126
    %v1533 = vpop.permute.xlu0 %1532
    %v1535 = vadd.f32 %v1527, %v1533
    %s1536 = sld [smem:[#allocation11 + $0x4]]
    %v1537 = vstv %s1536
    %v1538 = vadd.f32 %v1535, %v1537
    %v1539 = vmul.f32 %v1538, 0.01
    %v1540 = vmax.f32 %v1538, %v1539
    %v1541 = vsel %vm186, %v1540, 0.0
    %1542 = vadd.xlane.f32.xlu0 %v1541
    %v1543 = vpop.xlane.xlu0 %1542
    %v1544 = vmul.f32 %v1543, %v190
    %v1545 = vsel %vm192, %v1544, 0.0
    %v1546 = vrot.slane %v1545, 4
    %v1547 = vadd.f32 %v1545, %v1546
    %v1548 = vrot.slane %v1547, 2
    %v1549 = vadd.f32 %v1547, %v1548
    %v1550 = vrot.slane %v1549, 1
    %v1551 = vadd.f32 %v1549, %v1550
    %v1552 = vmul.f32 %v1551, %v200
    %v1553 = vmul.f32 %v1540, %v1540
    %v1554 = vsel %vm186, %v1553, 0.0
    %1555 = vadd.xlane.f32.xlu0 %v1554
    %v1556 = vpop.xlane.xlu0 %1555
    %v1557 = vmul.f32 %v1556, %v190
    %v1558 = vsel %vm192, %v1557, 0.0
    %v1559 = vrot.slane %v1558, 4
    %v1560 = vadd.f32 %v1558, %v1559
    %v1561 = vrot.slane %v1560, 2
    %v1562 = vadd.f32 %v1560, %v1561
    %v1563 = vrot.slane %v1562, 1
    %v1564 = vadd.f32 %v1562, %v1563
    %v1565 = vmul.f32 %v1564, %v200
    %v1566 = vmul.f32 %v1552, %v1552
    %v1567 = vsub.f32 %v1565, %v1566
    %v1568 = vmax.f32 %v1567, 0.0
    %s1569 = sld [smem:[#allocation13 + $0x4]]
    %s1570 = sld [smem:[#allocation14 + $0x4]]
    %v1571 = vadd.f32 %v1568, 1e-05
    %v1572 = vrsqrt.pop %v1571
    %v1573 = vstv %s1569
    %v1574 = vmul.f32 %v1573, %v1572
    %v1575 = vmul.f32 %v1552, %v1574
    %v1576 = vstv %s1570
    %v1577 = vsub.f32 %v1576, %v1575
    %v1578 = vmul.f32 %v1540, %v1574
    %v1579 = vadd.f32 %v1578, %v1577
    %s1580 = sld [smem:[#allocation10 + $0x5]]
    %v1581 = vstv %s1580
    %v1582 = vmul.f32 %v1581, %v677
    %v1583 = vadd.f32 %v1582, 0.0
    %s1584 = sld [smem:[#allocation10 + $0x85]]
    %v1585 = vstv %s1584
    %v1586 = vmul.f32 %v1585, %v228
    %v1587 = vadd.f32 %v1583, %v1586
    %s1588 = sld [smem:[#allocation10 + $0x105]]
    %v1589 = vstv %s1588
    %v1590 = vmul.f32 %v1589, %v677
    %1592 = vrot.lane.b32.xlu0 %v1590, 126
    %v1593 = vpop.permute.xlu0 %1592
    %v1595 = vadd.f32 %v1587, %v1593
    %s1596 = sld [smem:[#allocation10 + $0x15]]
    %v1597 = vstv %s1596
    %v1598 = vmul.f32 %v1597, %v683
    %v1599 = vadd.f32 %v1595, %v1598
    %s1600 = sld [smem:[#allocation10 + $0x95]]
    %v1601 = vstv %s1600
    %v1602 = vmul.f32 %v1601, %v291
    %v1603 = vadd.f32 %v1599, %v1602
    %s1604 = sld [smem:[#allocation10 + $0x115]]
    %v1605 = vstv %s1604
    %v1606 = vmul.f32 %v1605, %v683
    %1608 = vrot.lane.b32.xlu0 %v1606, 126
    %v1609 = vpop.permute.xlu0 %1608
    %v1611 = vadd.f32 %v1603, %v1609
    %s1612 = sld [smem:[#allocation10 + $0x25]]
    %v1613 = vstv %s1612
    %v1614 = vmul.f32 %v1613, %v689
    %v1615 = vadd.f32 %v1611, %v1614
    %s1616 = sld [smem:[#allocation10 + $0xa5]]
    %v1617 = vstv %s1616
    %v1618 = vmul.f32 %v1617, %v354
    %v1619 = vadd.f32 %v1615, %v1618
    %s1620 = sld [smem:[#allocation10 + $0x125]]
    %v1621 = vstv %s1620
    %v1622 = vmul.f32 %v1621, %v689
    %1624 = vrot.lane.b32.xlu0 %v1622, 126
    %v1625 = vpop.permute.xlu0 %1624
    %v1627 = vadd.f32 %v1619, %v1625
    %s1628 = sld [smem:[#allocation10 + $0x35]]
    %v1629 = vstv %s1628
    %v1630 = vmul.f32 %v1629, %v695
    %v1631 = vadd.f32 %v1627, %v1630
    %s1632 = sld [smem:[#allocation10 + $0xb5]]
    %v1633 = vstv %s1632
    %v1634 = vmul.f32 %v1633, %v417
    %v1635 = vadd.f32 %v1631, %v1634
    %s1636 = sld [smem:[#allocation10 + $0x135]]
    %v1637 = vstv %s1636
    %v1638 = vmul.f32 %v1637, %v695
    %1640 = vrot.lane.b32.xlu0 %v1638, 126
    %v1641 = vpop.permute.xlu0 %1640
    %v1643 = vadd.f32 %v1635, %v1641
    %s1644 = sld [smem:[#allocation10 + $0x45]]
    %v1645 = vstv %s1644
    %v1646 = vmul.f32 %v1645, %v701
    %v1647 = vadd.f32 %v1643, %v1646
    %s1648 = sld [smem:[#allocation10 + $0xc5]]
    %v1649 = vstv %s1648
    %v1650 = vmul.f32 %v1649, %v480
    %v1651 = vadd.f32 %v1647, %v1650
    %s1652 = sld [smem:[#allocation10 + $0x145]]
    %v1653 = vstv %s1652
    %v1654 = vmul.f32 %v1653, %v701
    %1656 = vrot.lane.b32.xlu0 %v1654, 126
    %v1657 = vpop.permute.xlu0 %1656
    %v1659 = vadd.f32 %v1651, %v1657
    %s1660 = sld [smem:[#allocation10 + $0x55]]
    %v1661 = vstv %s1660
    %v1662 = vmul.f32 %v1661, %v707
    %v1663 = vadd.f32 %v1659, %v1662
    %s1664 = sld [smem:[#allocation10 + $0xd5]]
    %v1665 = vstv %s1664
    %v1666 = vmul.f32 %v1665, %v543
    %v1667 = vadd.f32 %v1663, %v1666
    %s1668 = sld [smem:[#allocation10 + $0x155]]
    %v1669 = vstv %s1668
    %v1670 = vmul.f32 %v1669, %v707
    %1672 = vrot.lane.b32.xlu0 %v1670, 126
    %v1673 = vpop.permute.xlu0 %1672
    %v1675 = vadd.f32 %v1667, %v1673
    %s1676 = sld [smem:[#allocation10 + $0x65]]
    %v1677 = vstv %s1676
    %v1678 = vmul.f32 %v1677, %v713
    %v1679 = vadd.f32 %v1675, %v1678
    %s1680 = sld [smem:[#allocation10 + $0xe5]]
    %v1681 = vstv %s1680
    %v1682 = vmul.f32 %v1681, %v606
    %v1683 = vadd.f32 %v1679, %v1682
    %s1684 = sld [smem:[#allocation10 + $0x165]]
    %v1685 = vstv %s1684
    %v1686 = vmul.f32 %v1685, %v713
    %1688 = vrot.lane.b32.xlu0 %v1686, 126
    %v1689 = vpop.permute.xlu0 %1688
    %v1691 = vadd.f32 %v1683, %v1689
    %s1692 = sld [smem:[#allocation10 + $0x75]]
    %v1693 = vstv %s1692
    %v1694 = vmul.f32 %v1693, %v719
    %v1695 = vadd.f32 %v1691, %v1694
    %s1696 = sld [smem:[#allocation10 + $0xf5]]
    %v1697 = vstv %s1696
    %v1698 = vmul.f32 %v1697, %v669
    %v1699 = vadd.f32 %v1695, %v1698
    %s1700 = sld [smem:[#allocation10 + $0x175]]
    %v1701 = vstv %s1700
    %v1702 = vmul.f32 %v1701, %v719
    %1704 = vrot.lane.b32.xlu0 %v1702, 126
    %v1705 = vpop.permute.xlu0 %1704
    %v1707 = vadd.f32 %v1699, %v1705
    %s1708 = sld [smem:[#allocation11 + $0x5]]
    %v1709 = vstv %s1708
    %v1710 = vadd.f32 %v1707, %v1709
    %v1711 = vmul.f32 %v1710, 0.01
    %v1712 = vmax.f32 %v1710, %v1711
    %v1713 = vsel %vm186, %v1712, 0.0
    %1714 = vadd.xlane.f32.xlu0 %v1713
    %v1715 = vpop.xlane.xlu0 %1714
    %v1716 = vmul.f32 %v1715, %v190
    %v1717 = vsel %vm192, %v1716, 0.0
    %v1718 = vrot.slane %v1717, 4
    %v1719 = vadd.f32 %v1717, %v1718
    %v1720 = vrot.slane %v1719, 2
    %v1721 = vadd.f32 %v1719, %v1720
    %v1722 = vrot.slane %v1721, 1
    %v1723 = vadd.f32 %v1721, %v1722
    %v1724 = vmul.f32 %v1723, %v200
    %v1725 = vmul.f32 %v1712, %v1712
    %v1726 = vsel %vm186, %v1725, 0.0
    %1727 = vadd.xlane.f32.xlu0 %v1726
    %v1728 = vpop.xlane.xlu0 %1727
    %v1729 = vmul.f32 %v1728, %v190
    %v1730 = vsel %vm192, %v1729, 0.0
    %v1731 = vrot.slane %v1730, 4
    %v1732 = vadd.f32 %v1730, %v1731
    %v1733 = vrot.slane %v1732, 2
    %v1734 = vadd.f32 %v1732, %v1733
    %v1735 = vrot.slane %v1734, 1
    %v1736 = vadd.f32 %v1734, %v1735
    %v1737 = vmul.f32 %v1736, %v200
    %v1738 = vmul.f32 %v1724, %v1724
    %v1739 = vsub.f32 %v1737, %v1738
    %v1740 = vmax.f32 %v1739, 0.0
    %s1741 = sld [smem:[#allocation13 + $0x5]]
    %s1742 = sld [smem:[#allocation14 + $0x5]]
    %v1743 = vadd.f32 %v1740, 1e-05
    %v1744 = vrsqrt.pop %v1743
    %v1745 = vstv %s1741
    %v1746 = vmul.f32 %v1745, %v1744
    %v1747 = vmul.f32 %v1724, %v1746
    %v1748 = vstv %s1742
    %v1749 = vsub.f32 %v1748, %v1747
    %v1750 = vmul.f32 %v1712, %v1746
    %v1751 = vadd.f32 %v1750, %v1749
    %s1752 = sld [smem:[#allocation10 + $0x6]]
    %v1753 = vstv %s1752
    %v1754 = vmul.f32 %v1753, %v677
    %v1755 = vadd.f32 %v1754, 0.0
    %s1756 = sld [smem:[#allocation10 + $0x86]]
    %v1757 = vstv %s1756
    %v1758 = vmul.f32 %v1757, %v228
    %v1759 = vadd.f32 %v1755, %v1758
    %s1760 = sld [smem:[#allocation10 + $0x106]]
    %v1761 = vstv %s1760
    %v1762 = vmul.f32 %v1761, %v677
    %1764 = vrot.lane.b32.xlu0 %v1762, 126
    %v1765 = vpop.permute.xlu0 %1764
    %v1767 = vadd.f32 %v1759, %v1765
    %s1768 = sld [smem:[#allocation10 + $0x16]]
    %v1769 = vstv %s1768
    %v1770 = vmul.f32 %v1769, %v683
    %v1771 = vadd.f32 %v1767, %v1770
    %s1772 = sld [smem:[#allocation10 + $0x96]]
    %v1773 = vstv %s1772
    %v1774 = vmul.f32 %v1773, %v291
    %v1775 = vadd.f32 %v1771, %v1774
    %s1776 = sld [smem:[#allocation10 + $0x116]]
    %v1777 = vstv %s1776
    %v1778 = vmul.f32 %v1777, %v683
    %1780 = vrot.lane.b32.xlu0 %v1778, 126
    %v1781 = vpop.permute.xlu0 %1780
    %v1783 = vadd.f32 %v1775, %v1781
    %s1784 = sld [smem:[#allocation10 + $0x26]]
    %v1785 = vstv %s1784
    %v1786 = vmul.f32 %v1785, %v689
    %v1787 = vadd.f32 %v1783, %v1786
    %s1788 = sld [smem:[#allocation10 + $0xa6]]
    %v1789 = vstv %s1788
    %v1790 = vmul.f32 %v1789, %v354
    %v1791 = vadd.f32 %v1787, %v1790
    %s1792 = sld [smem:[#allocation10 + $0x126]]
    %v1793 = vstv %s1792
    %v1794 = vmul.f32 %v1793, %v689
    %1796 = vrot.lane.b32.xlu0 %v1794, 126
    %v1797 = vpop.permute.xlu0 %1796
    %v1799 = vadd.f32 %v1791, %v1797
    %s1800 = sld [smem:[#allocation10 + $0x36]]
    %v1801 = vstv %s1800
    %v1802 = vmul.f32 %v1801, %v695
    %v1803 = vadd.f32 %v1799, %v1802
    %s1804 = sld [smem:[#allocation10 + $0xb6]]
    %v1805 = vstv %s1804
    %v1806 = vmul.f32 %v1805, %v417
    %v1807 = vadd.f32 %v1803, %v1806
    %s1808 = sld [smem:[#allocation10 + $0x136]]
    %v1809 = vstv %s1808
    %v1810 = vmul.f32 %v1809, %v695
    %1812 = vrot.lane.b32.xlu0 %v1810, 126
    %v1813 = vpop.permute.xlu0 %1812
    %v1815 = vadd.f32 %v1807, %v1813
    %s1816 = sld [smem:[#allocation10 + $0x46]]
    %v1817 = vstv %s1816
    %v1818 = vmul.f32 %v1817, %v701
    %v1819 = vadd.f32 %v1815, %v1818
    %s1820 = sld [smem:[#allocation10 + $0xc6]]
    %v1821 = vstv %s1820
    %v1822 = vmul.f32 %v1821, %v480
    %v1823 = vadd.f32 %v1819, %v1822
    %s1824 = sld [smem:[#allocation10 + $0x146]]
    %v1825 = vstv %s1824
    %v1826 = vmul.f32 %v1825, %v701
    %1828 = vrot.lane.b32.xlu0 %v1826, 126
    %v1829 = vpop.permute.xlu0 %1828
    %v1831 = vadd.f32 %v1823, %v1829
    %s1832 = sld [smem:[#allocation10 + $0x56]]
    %v1833 = vstv %s1832
    %v1834 = vmul.f32 %v1833, %v707
    %v1835 = vadd.f32 %v1831, %v1834
    %s1836 = sld [smem:[#allocation10 + $0xd6]]
    %v1837 = vstv %s1836
    %v1838 = vmul.f32 %v1837, %v543
    %v1839 = vadd.f32 %v1835, %v1838
    %s1840 = sld [smem:[#allocation10 + $0x156]]
    %v1841 = vstv %s1840
    %v1842 = vmul.f32 %v1841, %v707
    %1844 = vrot.lane.b32.xlu0 %v1842, 126
    %v1845 = vpop.permute.xlu0 %1844
    %v1847 = vadd.f32 %v1839, %v1845
    %s1848 = sld [smem:[#allocation10 + $0x66]]
    %v1849 = vstv %s1848
    %v1850 = vmul.f32 %v1849, %v713
    %v1851 = vadd.f32 %v1847, %v1850
    %s1852 = sld [smem:[#allocation10 + $0xe6]]
    %v1853 = vstv %s1852
    %v1854 = vmul.f32 %v1853, %v606
    %v1855 = vadd.f32 %v1851, %v1854
    %s1856 = sld [smem:[#allocation10 + $0x166]]
    %v1857 = vstv %s1856
    %v1858 = vmul.f32 %v1857, %v713
    %1860 = vrot.lane.b32.xlu0 %v1858, 126
    %v1861 = vpop.permute.xlu0 %1860
    %v1863 = vadd.f32 %v1855, %v1861
    %s1864 = sld [smem:[#allocation10 + $0x76]]
    %v1865 = vstv %s1864
    %v1866 = vmul.f32 %v1865, %v719
    %v1867 = vadd.f32 %v1863, %v1866
    %s1868 = sld [smem:[#allocation10 + $0xf6]]
    %v1869 = vstv %s1868
    %v1870 = vmul.f32 %v1869, %v669
    %v1871 = vadd.f32 %v1867, %v1870
    %s1872 = sld [smem:[#allocation10 + $0x176]]
    %v1873 = vstv %s1872
    %v1874 = vmul.f32 %v1873, %v719
    %1876 = vrot.lane.b32.xlu0 %v1874, 126
    %v1877 = vpop.permute.xlu0 %1876
    %v1879 = vadd.f32 %v1871, %v1877
    %s1880 = sld [smem:[#allocation11 + $0x6]]
    %v1881 = vstv %s1880
    %v1882 = vadd.f32 %v1879, %v1881
    %v1883 = vmul.f32 %v1882, 0.01
    %v1884 = vmax.f32 %v1882, %v1883
    %v1885 = vsel %vm186, %v1884, 0.0
    %1886 = vadd.xlane.f32.xlu0 %v1885
    %v1887 = vpop.xlane.xlu0 %1886
    %v1888 = vmul.f32 %v1887, %v190
    %v1889 = vsel %vm192, %v1888, 0.0
    %v1890 = vrot.slane %v1889, 4
    %v1891 = vadd.f32 %v1889, %v1890
    %v1892 = vrot.slane %v1891, 2
    %v1893 = vadd.f32 %v1891, %v1892
    %v1894 = vrot.slane %v1893, 1
    %v1895 = vadd.f32 %v1893, %v1894
    %v1896 = vmul.f32 %v1895, %v200
    %v1897 = vmul.f32 %v1884, %v1884
    %v1898 = vsel %vm186, %v1897, 0.0
    %1899 = vadd.xlane.f32.xlu0 %v1898
    %v1900 = vpop.xlane.xlu0 %1899
    %v1901 = vmul.f32 %v1900, %v190
    %v1902 = vsel %vm192, %v1901, 0.0
    %v1903 = vrot.slane %v1902, 4
    %v1904 = vadd.f32 %v1902, %v1903
    %v1905 = vrot.slane %v1904, 2
    %v1906 = vadd.f32 %v1904, %v1905
    %v1907 = vrot.slane %v1906, 1
    %v1908 = vadd.f32 %v1906, %v1907
    %v1909 = vmul.f32 %v1908, %v200
    %v1910 = vmul.f32 %v1896, %v1896
    %v1911 = vsub.f32 %v1909, %v1910
    %v1912 = vmax.f32 %v1911, 0.0
    %s1913 = sld [smem:[#allocation13 + $0x6]]
    %s1914 = sld [smem:[#allocation14 + $0x6]]
    %v1915 = vadd.f32 %v1912, 1e-05
    %v1916 = vrsqrt.pop %v1915
    %v1917 = vstv %s1913
    %v1918 = vmul.f32 %v1917, %v1916
    %v1919 = vmul.f32 %v1896, %v1918
    %v1920 = vstv %s1914
    %v1921 = vsub.f32 %v1920, %v1919
    %v1922 = vmul.f32 %v1884, %v1918
    %v1923 = vadd.f32 %v1922, %v1921
    %s1924 = sld [smem:[#allocation10 + $0x7]]
    %v1925 = vstv %s1924
    %v1926 = vmul.f32 %v1925, %v677
    %v1927 = vadd.f32 %v1926, 0.0
    %s1928 = sld [smem:[#allocation10 + $0x87]]
    %v1929 = vstv %s1928
    %v1930 = vmul.f32 %v1929, %v228
    %v1931 = vadd.f32 %v1927, %v1930
    %s1932 = sld [smem:[#allocation10 + $0x107]]
    %v1933 = vstv %s1932
    %v1934 = vmul.f32 %v1933, %v677
    %1936 = vrot.lane.b32.xlu0 %v1934, 126
    %v1937 = vpop.permute.xlu0 %1936
    %v1939 = vadd.f32 %v1931, %v1937
    %s1940 = sld [smem:[#allocation10 + $0x17]]
    %v1941 = vstv %s1940
    %v1942 = vmul.f32 %v1941, %v683
    %v1943 = vadd.f32 %v1939, %v1942
    %s1944 = sld [smem:[#allocation10 + $0x97]]
    %v1945 = vstv %s1944
    %v1946 = vmul.f32 %v1945, %v291
    %v1947 = vadd.f32 %v1943, %v1946
    %s1948 = sld [smem:[#allocation10 + $0x117]]
    %v1949 = vstv %s1948
    %v1950 = vmul.f32 %v1949, %v683
    %1952 = vrot.lane.b32.xlu0 %v1950, 126
    %v1953 = vpop.permute.xlu0 %1952
    %v1955 = vadd.f32 %v1947, %v1953
    %s1956 = sld [smem:[#allocation10 + $0x27]]
    %v1957 = vstv %s1956
    %v1958 = vmul.f32 %v1957, %v689
    %v1959 = vadd.f32 %v1955, %v1958
    %s1960 = sld [smem:[#allocation10 + $0xa7]]
    %v1961 = vstv %s1960
    %v1962 = vmul.f32 %v1961, %v354
    %v1963 = vadd.f32 %v1959, %v1962
    %s1964 = sld [smem:[#allocation10 + $0x127]]
    %v1965 = vstv %s1964
    %v1966 = vmul.f32 %v1965, %v689
    %1968 = vrot.lane.b32.xlu0 %v1966, 126
    %v1969 = vpop.permute.xlu0 %1968
    %v1971 = vadd.f32 %v1963, %v1969
    %s1972 = sld [smem:[#allocation10 + $0x37]]
    %v1973 = vstv %s1972
    %v1974 = vmul.f32 %v1973, %v695
    %v1975 = vadd.f32 %v1971, %v1974
    %s1976 = sld [smem:[#allocation10 + $0xb7]]
    %v1977 = vstv %s1976
    %v1978 = vmul.f32 %v1977, %v417
    %v1979 = vadd.f32 %v1975, %v1978
    %s1980 = sld [smem:[#allocation10 + $0x137]]
    %v1981 = vstv %s1980
    %v1982 = vmul.f32 %v1981, %v695
    %1984 = vrot.lane.b32.xlu0 %v1982, 126
    %v1985 = vpop.permute.xlu0 %1984
    %v1987 = vadd.f32 %v1979, %v1985
    %s1988 = sld [smem:[#allocation10 + $0x47]]
    %v1989 = vstv %s1988
    %v1990 = vmul.f32 %v1989, %v701
    %v1991 = vadd.f32 %v1987, %v1990
    %s1992 = sld [smem:[#allocation10 + $0xc7]]
    %v1993 = vstv %s1992
    %v1994 = vmul.f32 %v1993, %v480
    %v1995 = vadd.f32 %v1991, %v1994
    %s1996 = sld [smem:[#allocation10 + $0x147]]
    %v1997 = vstv %s1996
    %v1998 = vmul.f32 %v1997, %v701
    %2000 = vrot.lane.b32.xlu0 %v1998, 126
    %v2001 = vpop.permute.xlu0 %2000
    %v2003 = vadd.f32 %v1995, %v2001
    %s2004 = sld [smem:[#allocation10 + $0x57]]
    %v2005 = vstv %s2004
    %v2006 = vmul.f32 %v2005, %v707
    %v2007 = vadd.f32 %v2003, %v2006
    %s2008 = sld [smem:[#allocation10 + $0xd7]]
    %v2009 = vstv %s2008
    %v2010 = vmul.f32 %v2009, %v543
    %v2011 = vadd.f32 %v2007, %v2010
    %s2012 = sld [smem:[#allocation10 + $0x157]]
    %v2013 = vstv %s2012
    %v2014 = vmul.f32 %v2013, %v707
    %2016 = vrot.lane.b32.xlu0 %v2014, 126
    %v2017 = vpop.permute.xlu0 %2016
    %v2019 = vadd.f32 %v2011, %v2017
    %s2020 = sld [smem:[#allocation10 + $0x67]]
    %v2021 = vstv %s2020
    %v2022 = vmul.f32 %v2021, %v713
    %v2023 = vadd.f32 %v2019, %v2022
    %s2024 = sld [smem:[#allocation10 + $0xe7]]
    %v2025 = vstv %s2024
    %v2026 = vmul.f32 %v2025, %v606
    %v2027 = vadd.f32 %v2023, %v2026
    %s2028 = sld [smem:[#allocation10 + $0x167]]
    %v2029 = vstv %s2028
    %v2030 = vmul.f32 %v2029, %v713
    %2032 = vrot.lane.b32.xlu0 %v2030, 126
    %v2033 = vpop.permute.xlu0 %2032
    %v2035 = vadd.f32 %v2027, %v2033
    %s2036 = sld [smem:[#allocation10 + $0x77]]
    %v2037 = vstv %s2036
    %v2038 = vmul.f32 %v2037, %v719
    %v2039 = vadd.f32 %v2035, %v2038
    %s2040 = sld [smem:[#allocation10 + $0xf7]]
    %v2041 = vstv %s2040
    %v2042 = vmul.f32 %v2041, %v669
    %v2043 = vadd.f32 %v2039, %v2042
    %s2044 = sld [smem:[#allocation10 + $0x177]]
    %v2045 = vstv %s2044
    %v2046 = vmul.f32 %v2045, %v719
    %2048 = vrot.lane.b32.xlu0 %v2046, 126
    %v2049 = vpop.permute.xlu0 %2048
    %v2051 = vadd.f32 %v2043, %v2049
    %s2052 = sld [smem:[#allocation11 + $0x7]]
    %v2053 = vstv %s2052
    %v2054 = vadd.f32 %v2051, %v2053
    %v2055 = vmul.f32 %v2054, 0.01
    %v2056 = vmax.f32 %v2054, %v2055
    %v2057 = vsel %vm186, %v2056, 0.0
    %2058 = vadd.xlane.f32.xlu0 %v2057
    %v2059 = vpop.xlane.xlu0 %2058
    %v2060 = vmul.f32 %v2059, %v190
    %v2061 = vsel %vm192, %v2060, 0.0
    %v2062 = vrot.slane %v2061, 4
    %v2063 = vadd.f32 %v2061, %v2062
    %v2064 = vrot.slane %v2063, 2
    %v2065 = vadd.f32 %v2063, %v2064
    %v2066 = vrot.slane %v2065, 1
    %v2067 = vadd.f32 %v2065, %v2066
    %v2068 = vmul.f32 %v2067, %v200
    %v2069 = vmul.f32 %v2056, %v2056
    %v2070 = vsel %vm186, %v2069, 0.0
    %2071 = vadd.xlane.f32.xlu0 %v2070
    %v2072 = vpop.xlane.xlu0 %2071
    %v2073 = vmul.f32 %v2072, %v190
    %v2074 = vsel %vm192, %v2073, 0.0
    %v2075 = vrot.slane %v2074, 4
    %v2076 = vadd.f32 %v2074, %v2075
    %v2077 = vrot.slane %v2076, 2
    %v2078 = vadd.f32 %v2076, %v2077
    %v2079 = vrot.slane %v2078, 1
    %v2080 = vadd.f32 %v2078, %v2079
    %v2081 = vmul.f32 %v2080, %v200
    %v2082 = vmul.f32 %v2068, %v2068
    %v2083 = vsub.f32 %v2081, %v2082
    %v2084 = vmax.f32 %v2083, 0.0
    %s2085 = sld [smem:[#allocation13 + $0x7]]
    %s2086 = sld [smem:[#allocation14 + $0x7]]
    %v2087 = vadd.f32 %v2084, 1e-05
    %v2088 = vrsqrt.pop %v2087
    %v2089 = vstv %s2085
    %v2090 = vmul.f32 %v2089, %v2088
    %v2091 = vmul.f32 %v2068, %v2090
    %v2092 = vstv %s2086
    %v2093 = vsub.f32 %v2092, %v2091
    %v2094 = vmul.f32 %v2056, %v2090
    %v2095 = vadd.f32 %v2094, %v2093
    %s2096 = sld [smem:[#allocation10 + $0x8]]
    %v2097 = vstv %s2096
    %v2098 = vmul.f32 %v2097, %v677
    %v2099 = vadd.f32 %v2098, 0.0
    %s2100 = sld [smem:[#allocation10 + $0x88]]
    %v2101 = vstv %s2100
    %v2102 = vmul.f32 %v2101, %v228
    %v2103 = vadd.f32 %v2099, %v2102
    %s2104 = sld [smem:[#allocation10 + $0x108]]
    %v2105 = vstv %s2104
    %v2106 = vmul.f32 %v2105, %v677
    %2108 = vrot.lane.b32.xlu0 %v2106, 126
    %v2109 = vpop.permute.xlu0 %2108
    %v2111 = vadd.f32 %v2103, %v2109
    %s2112 = sld [smem:[#allocation10 + $0x18]]
    %v2113 = vstv %s2112
    %v2114 = vmul.f32 %v2113, %v683
    %v2115 = vadd.f32 %v2111, %v2114
    %s2116 = sld [smem:[#allocation10 + $0x98]]
    %v2117 = vstv %s2116
    %v2118 = vmul.f32 %v2117, %v291
    %v2119 = vadd.f32 %v2115, %v2118
    %s2120 = sld [smem:[#allocation10 + $0x118]]
    %v2121 = vstv %s2120
    %v2122 = vmul.f32 %v2121, %v683
    %2124 = vrot.lane.b32.xlu0 %v2122, 126
    %v2125 = vpop.permute.xlu0 %2124
    %v2127 = vadd.f32 %v2119, %v2125
    %s2128 = sld [smem:[#allocation10 + $0x28]]
    %v2129 = vstv %s2128
    %v2130 = vmul.f32 %v2129, %v689
    %v2131 = vadd.f32 %v2127, %v2130
    %s2132 = sld [smem:[#allocation10 + $0xa8]]
    %v2133 = vstv %s2132
    %v2134 = vmul.f32 %v2133, %v354
    %v2135 = vadd.f32 %v2131, %v2134
    %s2136 = sld [smem:[#allocation10 + $0x128]]
    %v2137 = vstv %s2136
    %v2138 = vmul.f32 %v2137, %v689
    %2140 = vrot.lane.b32.xlu0 %v2138, 126
    %v2141 = vpop.permute.xlu0 %2140
    %v2143 = vadd.f32 %v2135, %v2141
    %s2144 = sld [smem:[#allocation10 + $0x38]]
    %v2145 = vstv %s2144
    %v2146 = vmul.f32 %v2145, %v695
    %v2147 = vadd.f32 %v2143, %v2146
    %s2148 = sld [smem:[#allocation10 + $0xb8]]
    %v2149 = vstv %s2148
    %v2150 = vmul.f32 %v2149, %v417
    %v2151 = vadd.f32 %v2147, %v2150
    %s2152 = sld [smem:[#allocation10 + $0x138]]
    %v2153 = vstv %s2152
    %v2154 = vmul.f32 %v2153, %v695
    %2156 = vrot.lane.b32.xlu0 %v2154, 126
    %v2157 = vpop.permute.xlu0 %2156
    %v2159 = vadd.f32 %v2151, %v2157
    %s2160 = sld [smem:[#allocation10 + $0x48]]
    %v2161 = vstv %s2160
    %v2162 = vmul.f32 %v2161, %v701
    %v2163 = vadd.f32 %v2159, %v2162
    %s2164 = sld [smem:[#allocation10 + $0xc8]]
    %v2165 = vstv %s2164
    %v2166 = vmul.f32 %v2165, %v480
    %v2167 = vadd.f32 %v2163, %v2166
    %s2168 = sld [smem:[#allocation10 + $0x148]]
    %v2169 = vstv %s2168
    %v2170 = vmul.f32 %v2169, %v701
    %2172 = vrot.lane.b32.xlu0 %v2170, 126
    %v2173 = vpop.permute.xlu0 %2172
    %v2175 = vadd.f32 %v2167, %v2173
    %s2176 = sld [smem:[#allocation10 + $0x58]]
    %v2177 = vstv %s2176
    %v2178 = vmul.f32 %v2177, %v707
    %v2179 = vadd.f32 %v2175, %v2178
    %s2180 = sld [smem:[#allocation10 + $0xd8]]
    %v2181 = vstv %s2180
    %v2182 = vmul.f32 %v2181, %v543
    %v2183 = vadd.f32 %v2179, %v2182
    %s2184 = sld [smem:[#allocation10 + $0x158]]
    %v2185 = vstv %s2184
    %v2186 = vmul.f32 %v2185, %v707
    %2188 = vrot.lane.b32.xlu0 %v2186, 126
    %v2189 = vpop.permute.xlu0 %2188
    %v2191 = vadd.f32 %v2183, %v2189
    %s2192 = sld [smem:[#allocation10 + $0x68]]
    %v2193 = vstv %s2192
    %v2194 = vmul.f32 %v2193, %v713
    %v2195 = vadd.f32 %v2191, %v2194
    %s2196 = sld [smem:[#allocation10 + $0xe8]]
    %v2197 = vstv %s2196
    %v2198 = vmul.f32 %v2197, %v606
    %v2199 = vadd.f32 %v2195, %v2198
    %s2200 = sld [smem:[#allocation10 + $0x168]]
    %v2201 = vstv %s2200
    %v2202 = vmul.f32 %v2201, %v713
    %2204 = vrot.lane.b32.xlu0 %v2202, 126
    %v2205 = vpop.permute.xlu0 %2204
    %v2207 = vadd.f32 %v2199, %v2205
    %s2208 = sld [smem:[#allocation10 + $0x78]]
    %v2209 = vstv %s2208
    %v2210 = vmul.f32 %v2209, %v719
    %v2211 = vadd.f32 %v2207, %v2210
    %s2212 = sld [smem:[#allocation10 + $0xf8]]
    %v2213 = vstv %s2212
    %v2214 = vmul.f32 %v2213, %v669
    %v2215 = vadd.f32 %v2211, %v2214
    %s2216 = sld [smem:[#allocation10 + $0x178]]
    %v2217 = vstv %s2216
    %v2218 = vmul.f32 %v2217, %v719
    %2220 = vrot.lane.b32.xlu0 %v2218, 126
    %v2221 = vpop.permute.xlu0 %2220
    %v2223 = vadd.f32 %v2215, %v2221
    %s2224 = sld [smem:[#allocation11 + $0x8]]
    %v2225 = vstv %s2224
    %v2226 = vadd.f32 %v2223, %v2225
    %v2227 = vmul.f32 %v2226, 0.01
    %v2228 = vmax.f32 %v2226, %v2227
    %v2229 = vsel %vm186, %v2228, 0.0
    %2230 = vadd.xlane.f32.xlu0 %v2229
    %v2231 = vpop.xlane.xlu0 %2230
    %v2232 = vmul.f32 %v2231, %v190
    %v2233 = vsel %vm192, %v2232, 0.0
    %v2234 = vrot.slane %v2233, 4
    %v2235 = vadd.f32 %v2233, %v2234
    %v2236 = vrot.slane %v2235, 2
    %v2237 = vadd.f32 %v2235, %v2236
    %v2238 = vrot.slane %v2237, 1
    %v2239 = vadd.f32 %v2237, %v2238
    %v2240 = vmul.f32 %v2239, %v200
    %v2241 = vmul.f32 %v2228, %v2228
    %v2242 = vsel %vm186, %v2241, 0.0
    %2243 = vadd.xlane.f32.xlu0 %v2242
    %v2244 = vpop.xlane.xlu0 %2243
    %v2245 = vmul.f32 %v2244, %v190
    %v2246 = vsel %vm192, %v2245, 0.0
    %v2247 = vrot.slane %v2246, 4
    %v2248 = vadd.f32 %v2246, %v2247
    %v2249 = vrot.slane %v2248, 2
    %v2250 = vadd.f32 %v2248, %v2249
    %v2251 = vrot.slane %v2250, 1
    %v2252 = vadd.f32 %v2250, %v2251
    %v2253 = vmul.f32 %v2252, %v200
    %v2254 = vmul.f32 %v2240, %v2240
    %v2255 = vsub.f32 %v2253, %v2254
    %v2256 = vmax.f32 %v2255, 0.0
    %s2257 = sld [smem:[#allocation13 + $0x8]]
    %s2258 = sld [smem:[#allocation14 + $0x8]]
    %v2259 = vadd.f32 %v2256, 1e-05
    %v2260 = vrsqrt.pop %v2259
    %v2261 = vstv %s2257
    %v2262 = vmul.f32 %v2261, %v2260
    %v2263 = vmul.f32 %v2240, %v2262
    %v2264 = vstv %s2258
    %v2265 = vsub.f32 %v2264, %v2263
    %v2266 = vmul.f32 %v2228, %v2262
    %v2267 = vadd.f32 %v2266, %v2265
    %s2268 = sld [smem:[#allocation10 + $0x9]]
    %v2269 = vstv %s2268
    %v2270 = vmul.f32 %v2269, %v677
    %v2271 = vadd.f32 %v2270, 0.0
    %s2272 = sld [smem:[#allocation10 + $0x89]]
    %v2273 = vstv %s2272
    %v2274 = vmul.f32 %v2273, %v228
    %v2275 = vadd.f32 %v2271, %v2274
    %s2276 = sld [smem:[#allocation10 + $0x109]]
    %v2277 = vstv %s2276
    %v2278 = vmul.f32 %v2277, %v677
    %2280 = vrot.lane.b32.xlu0 %v2278, 126
    %v2281 = vpop.permute.xlu0 %2280
    %v2283 = vadd.f32 %v2275, %v2281
    %s2284 = sld [smem:[#allocation10 + $0x19]]
    %v2285 = vstv %s2284
    %v2286 = vmul.f32 %v2285, %v683
    %v2287 = vadd.f32 %v2283, %v2286
    %s2288 = sld [smem:[#allocation10 + $0x99]]
    %v2289 = vstv %s2288
    %v2290 = vmul.f32 %v2289, %v291
    %v2291 = vadd.f32 %v2287, %v2290
    %s2292 = sld [smem:[#allocation10 + $0x119]]
    %v2293 = vstv %s2292
    %v2294 = vmul.f32 %v2293, %v683
    %2296 = vrot.lane.b32.xlu0 %v2294, 126
    %v2297 = vpop.permute.xlu0 %2296
    %v2299 = vadd.f32 %v2291, %v2297
    %s2300 = sld [smem:[#allocation10 + $0x29]]
    %v2301 = vstv %s2300
    %v2302 = vmul.f32 %v2301, %v689
    %v2303 = vadd.f32 %v2299, %v2302
    %s2304 = sld [smem:[#allocation10 + $0xa9]]
    %v2305 = vstv %s2304
    %v2306 = vmul.f32 %v2305, %v354
    %v2307 = vadd.f32 %v2303, %v2306
    %s2308 = sld [smem:[#allocation10 + $0x129]]
    %v2309 = vstv %s2308
    %v2310 = vmul.f32 %v2309, %v689
    %2312 = vrot.lane.b32.xlu0 %v2310, 126
    %v2313 = vpop.permute.xlu0 %2312
    %v2315 = vadd.f32 %v2307, %v2313
    %s2316 = sld [smem:[#allocation10 + $0x39]]
    %v2317 = vstv %s2316
    %v2318 = vmul.f32 %v2317, %v695
    %v2319 = vadd.f32 %v2315, %v2318
    %s2320 = sld [smem:[#allocation10 + $0xb9]]
    %v2321 = vstv %s2320
    %v2322 = vmul.f32 %v2321, %v417
    %v2323 = vadd.f32 %v2319, %v2322
    %s2324 = sld [smem:[#allocation10 + $0x139]]
    %v2325 = vstv %s2324
    %v2326 = vmul.f32 %v2325, %v695
    %2328 = vrot.lane.b32.xlu0 %v2326, 126
    %v2329 = vpop.permute.xlu0 %2328
    %v2331 = vadd.f32 %v2323, %v2329
    %s2332 = sld [smem:[#allocation10 + $0x49]]
    %v2333 = vstv %s2332
    %v2334 = vmul.f32 %v2333, %v701
    %v2335 = vadd.f32 %v2331, %v2334
    %s2336 = sld [smem:[#allocation10 + $0xc9]]
    %v2337 = vstv %s2336
    %v2338 = vmul.f32 %v2337, %v480
    %v2339 = vadd.f32 %v2335, %v2338
    %s2340 = sld [smem:[#allocation10 + $0x149]]
    %v2341 = vstv %s2340
    %v2342 = vmul.f32 %v2341, %v701
    %2344 = vrot.lane.b32.xlu0 %v2342, 126
    %v2345 = vpop.permute.xlu0 %2344
    %v2347 = vadd.f32 %v2339, %v2345
    %s2348 = sld [smem:[#allocation10 + $0x59]]
    %v2349 = vstv %s2348
    %v2350 = vmul.f32 %v2349, %v707
    %v2351 = vadd.f32 %v2347, %v2350
    %s2352 = sld [smem:[#allocation10 + $0xd9]]
    %v2353 = vstv %s2352
    %v2354 = vmul.f32 %v2353, %v543
    %v2355 = vadd.f32 %v2351, %v2354
    %s2356 = sld [smem:[#allocation10 + $0x159]]
    %v2357 = vstv %s2356
    %v2358 = vmul.f32 %v2357, %v707
    %2360 = vrot.lane.b32.xlu0 %v2358, 126
    %v2361 = vpop.permute.xlu0 %2360
    %v2363 = vadd.f32 %v2355, %v2361
    %s2364 = sld [smem:[#allocation10 + $0x69]]
    %v2365 = vstv %s2364
    %v2366 = vmul.f32 %v2365, %v713
    %v2367 = vadd.f32 %v2363, %v2366
    %s2368 = sld [smem:[#allocation10 + $0xe9]]
    %v2369 = vstv %s2368
    %v2370 = vmul.f32 %v2369, %v606
    %v2371 = vadd.f32 %v2367, %v2370
    %s2372 = sld [smem:[#allocation10 + $0x169]]
    %v2373 = vstv %s2372
    %v2374 = vmul.f32 %v2373, %v713
    %2376 = vrot.lane.b32.xlu0 %v2374, 126
    %v2377 = vpop.permute.xlu0 %2376
    %v2379 = vadd.f32 %v2371, %v2377
    %s2380 = sld [smem:[#allocation10 + $0x79]]
    %v2381 = vstv %s2380
    %v2382 = vmul.f32 %v2381, %v719
    %v2383 = vadd.f32 %v2379, %v2382
    %s2384 = sld [smem:[#allocation10 + $0xf9]]
    %v2385 = vstv %s2384
    %v2386 = vmul.f32 %v2385, %v669
    %v2387 = vadd.f32 %v2383, %v2386
    %s2388 = sld [smem:[#allocation10 + $0x179]]
    %v2389 = vstv %s2388
    %v2390 = vmul.f32 %v2389, %v719
    %2392 = vrot.lane.b32.xlu0 %v2390, 126
    %v2393 = vpop.permute.xlu0 %2392
    %v2395 = vadd.f32 %v2387, %v2393
    %s2396 = sld [smem:[#allocation11 + $0x9]]
    %v2397 = vstv %s2396
    %v2398 = vadd.f32 %v2395, %v2397
    %v2399 = vmul.f32 %v2398, 0.01
    %v2400 = vmax.f32 %v2398, %v2399
    %v2401 = vsel %vm186, %v2400, 0.0
    %2402 = vadd.xlane.f32.xlu0 %v2401
    %v2403 = vpop.xlane.xlu0 %2402
    %v2404 = vmul.f32 %v2403, %v190
    %v2405 = vsel %vm192, %v2404, 0.0
    %v2406 = vrot.slane %v2405, 4
    %v2407 = vadd.f32 %v2405, %v2406
    %v2408 = vrot.slane %v2407, 2
    %v2409 = vadd.f32 %v2407, %v2408
    %v2410 = vrot.slane %v2409, 1
    %v2411 = vadd.f32 %v2409, %v2410
    %v2412 = vmul.f32 %v2411, %v200
    %v2413 = vmul.f32 %v2400, %v2400
    %v2414 = vsel %vm186, %v2413, 0.0
    %2415 = vadd.xlane.f32.xlu0 %v2414
    %v2416 = vpop.xlane.xlu0 %2415
    %v2417 = vmul.f32 %v2416, %v190
    %v2418 = vsel %vm192, %v2417, 0.0
    %v2419 = vrot.slane %v2418, 4
    %v2420 = vadd.f32 %v2418, %v2419
    %v2421 = vrot.slane %v2420, 2
    %v2422 = vadd.f32 %v2420, %v2421
    %v2423 = vrot.slane %v2422, 1
    %v2424 = vadd.f32 %v2422, %v2423
    %v2425 = vmul.f32 %v2424, %v200
    %v2426 = vmul.f32 %v2412, %v2412
    %v2427 = vsub.f32 %v2425, %v2426
    %v2428 = vmax.f32 %v2427, 0.0
    %s2429 = sld [smem:[#allocation13 + $0x9]]
    %s2430 = sld [smem:[#allocation14 + $0x9]]
    %v2431 = vadd.f32 %v2428, 1e-05
    %v2432 = vrsqrt.pop %v2431
    %v2433 = vstv %s2429
    %v2434 = vmul.f32 %v2433, %v2432
    %v2435 = vmul.f32 %v2412, %v2434
    %v2436 = vstv %s2430
    %v2437 = vsub.f32 %v2436, %v2435
    %v2438 = vmul.f32 %v2400, %v2434
    %v2439 = vadd.f32 %v2438, %v2437
    %s2440 = sld [smem:[#allocation10 + $0xa]]
    %v2441 = vstv %s2440
    %v2442 = vmul.f32 %v2441, %v677
    %v2443 = vadd.f32 %v2442, 0.0
    %s2444 = sld [smem:[#allocation10 + $0x8a]]
    %v2445 = vstv %s2444
    %v2446 = vmul.f32 %v2445, %v228
    %v2447 = vadd.f32 %v2443, %v2446
    %s2448 = sld [smem:[#allocation10 + $0x10a]]
    %v2449 = vstv %s2448
    %v2450 = vmul.f32 %v2449, %v677
    %2452 = vrot.lane.b32.xlu0 %v2450, 126
    %v2453 = vpop.permute.xlu0 %2452
    %v2455 = vadd.f32 %v2447, %v2453
    %s2456 = sld [smem:[#allocation10 + $0x1a]]
    %v2457 = vstv %s2456
    %v2458 = vmul.f32 %v2457, %v683
    %v2459 = vadd.f32 %v2455, %v2458
    %s2460 = sld [smem:[#allocation10 + $0x9a]]
    %v2461 = vstv %s2460
    %v2462 = vmul.f32 %v2461, %v291
    %v2463 = vadd.f32 %v2459, %v2462
    %s2464 = sld [smem:[#allocation10 + $0x11a]]
    %v2465 = vstv %s2464
    %v2466 = vmul.f32 %v2465, %v683
    %2468 = vrot.lane.b32.xlu0 %v2466, 126
    %v2469 = vpop.permute.xlu0 %2468
    %v2471 = vadd.f32 %v2463, %v2469
    %s2472 = sld [smem:[#allocation10 + $0x2a]]
    %v2473 = vstv %s2472
    %v2474 = vmul.f32 %v2473, %v689
    %v2475 = vadd.f32 %v2471, %v2474
    %s2476 = sld [smem:[#allocation10 + $0xaa]]
    %v2477 = vstv %s2476
    %v2478 = vmul.f32 %v2477, %v354
    %v2479 = vadd.f32 %v2475, %v2478
    %s2480 = sld [smem:[#allocation10 + $0x12a]]
    %v2481 = vstv %s2480
    %v2482 = vmul.f32 %v2481, %v689
    %2484 = vrot.lane.b32.xlu0 %v2482, 126
    %v2485 = vpop.permute.xlu0 %2484
    %v2487 = vadd.f32 %v2479, %v2485
    %s2488 = sld [smem:[#allocation10 + $0x3a]]
    %v2489 = vstv %s2488
    %v2490 = vmul.f32 %v2489, %v695
    %v2491 = vadd.f32 %v2487, %v2490
    %s2492 = sld [smem:[#allocation10 + $0xba]]
    %v2493 = vstv %s2492
    %v2494 = vmul.f32 %v2493, %v417
    %v2495 = vadd.f32 %v2491, %v2494
    %s2496 = sld [smem:[#allocation10 + $0x13a]]
    %v2497 = vstv %s2496
    %v2498 = vmul.f32 %v2497, %v695
    %2500 = vrot.lane.b32.xlu0 %v2498, 126
    %v2501 = vpop.permute.xlu0 %2500
    %v2503 = vadd.f32 %v2495, %v2501
    %s2504 = sld [smem:[#allocation10 + $0x4a]]
    %v2505 = vstv %s2504
    %v2506 = vmul.f32 %v2505, %v701
    %v2507 = vadd.f32 %v2503, %v2506
    %s2508 = sld [smem:[#allocation10 + $0xca]]
    %v2509 = vstv %s2508
    %v2510 = vmul.f32 %v2509, %v480
    %v2511 = vadd.f32 %v2507, %v2510
    %s2512 = sld [smem:[#allocation10 + $0x14a]]
    %v2513 = vstv %s2512
    %v2514 = vmul.f32 %v2513, %v701
    %2516 = vrot.lane.b32.xlu0 %v2514, 126
    %v2517 = vpop.permute.xlu0 %2516
    %v2519 = vadd.f32 %v2511, %v2517
    %s2520 = sld [smem:[#allocation10 + $0x5a]]
    %v2521 = vstv %s2520
    %v2522 = vmul.f32 %v2521, %v707
    %v2523 = vadd.f32 %v2519, %v2522
    %s2524 = sld [smem:[#allocation10 + $0xda]]
    %v2525 = vstv %s2524
    %v2526 = vmul.f32 %v2525, %v543
    %v2527 = vadd.f32 %v2523, %v2526
    %s2528 = sld [smem:[#allocation10 + $0x15a]]
    %v2529 = vstv %s2528
    %v2530 = vmul.f32 %v2529, %v707
    %2532 = vrot.lane.b32.xlu0 %v2530, 126
    %v2533 = vpop.permute.xlu0 %2532
    %v2535 = vadd.f32 %v2527, %v2533
    %s2536 = sld [smem:[#allocation10 + $0x6a]]
    %v2537 = vstv %s2536
    %v2538 = vmul.f32 %v2537, %v713
    %v2539 = vadd.f32 %v2535, %v2538
    %s2540 = sld [smem:[#allocation10 + $0xea]]
    %v2541 = vstv %s2540
    %v2542 = vmul.f32 %v2541, %v606
    %v2543 = vadd.f32 %v2539, %v2542
    %s2544 = sld [smem:[#allocation10 + $0x16a]]
    %v2545 = vstv %s2544
    %v2546 = vmul.f32 %v2545, %v713
    %2548 = vrot.lane.b32.xlu0 %v2546, 126
    %v2549 = vpop.permute.xlu0 %2548
    %v2551 = vadd.f32 %v2543, %v2549
    %s2552 = sld [smem:[#allocation10 + $0x7a]]
    %v2553 = vstv %s2552
    %v2554 = vmul.f32 %v2553, %v719
    %v2555 = vadd.f32 %v2551, %v2554
    %s2556 = sld [smem:[#allocation10 + $0xfa]]
    %v2557 = vstv %s2556
    %v2558 = vmul.f32 %v2557, %v669
    %v2559 = vadd.f32 %v2555, %v2558
    %s2560 = sld [smem:[#allocation10 + $0x17a]]
    %v2561 = vstv %s2560
    %v2562 = vmul.f32 %v2561, %v719
    %2564 = vrot.lane.b32.xlu0 %v2562, 126
    %v2565 = vpop.permute.xlu0 %2564
    %v2567 = vadd.f32 %v2559, %v2565
    %s2568 = sld [smem:[#allocation11 + $0xa]]
    %v2569 = vstv %s2568
    %v2570 = vadd.f32 %v2567, %v2569
    %v2571 = vmul.f32 %v2570, 0.01
    %v2572 = vmax.f32 %v2570, %v2571
    %v2573 = vsel %vm186, %v2572, 0.0
    %2574 = vadd.xlane.f32.xlu0 %v2573
    %v2575 = vpop.xlane.xlu0 %2574
    %v2576 = vmul.f32 %v2575, %v190
    %v2577 = vsel %vm192, %v2576, 0.0
    %v2578 = vrot.slane %v2577, 4
    %v2579 = vadd.f32 %v2577, %v2578
    %v2580 = vrot.slane %v2579, 2
    %v2581 = vadd.f32 %v2579, %v2580
    %v2582 = vrot.slane %v2581, 1
    %v2583 = vadd.f32 %v2581, %v2582
    %v2584 = vmul.f32 %v2583, %v200
    %v2585 = vmul.f32 %v2572, %v2572
    %v2586 = vsel %vm186, %v2585, 0.0
    %2587 = vadd.xlane.f32.xlu0 %v2586
    %v2588 = vpop.xlane.xlu0 %2587
    %v2589 = vmul.f32 %v2588, %v190
    %v2590 = vsel %vm192, %v2589, 0.0
    %v2591 = vrot.slane %v2590, 4
    %v2592 = vadd.f32 %v2590, %v2591
    %v2593 = vrot.slane %v2592, 2
    %v2594 = vadd.f32 %v2592, %v2593
    %v2595 = vrot.slane %v2594, 1
    %v2596 = vadd.f32 %v2594, %v2595
    %v2597 = vmul.f32 %v2596, %v200
    %v2598 = vmul.f32 %v2584, %v2584
    %v2599 = vsub.f32 %v2597, %v2598
    %v2600 = vmax.f32 %v2599, 0.0
    %s2601 = sld [smem:[#allocation13 + $0xa]]
    %s2602 = sld [smem:[#allocation14 + $0xa]]
    %v2603 = vadd.f32 %v2600, 1e-05
    %v2604 = vrsqrt.pop %v2603
    %v2605 = vstv %s2601
    %v2606 = vmul.f32 %v2605, %v2604
    %v2607 = vmul.f32 %v2584, %v2606
    %v2608 = vstv %s2602
    %v2609 = vsub.f32 %v2608, %v2607
    %v2610 = vmul.f32 %v2572, %v2606
    %v2611 = vadd.f32 %v2610, %v2609
    %s2612 = sld [smem:[#allocation10 + $0xb]]
    %v2613 = vstv %s2612
    %v2614 = vmul.f32 %v2613, %v677
    %v2615 = vadd.f32 %v2614, 0.0
    %s2616 = sld [smem:[#allocation10 + $0x8b]]
    %v2617 = vstv %s2616
    %v2618 = vmul.f32 %v2617, %v228
    %v2619 = vadd.f32 %v2615, %v2618
    %s2620 = sld [smem:[#allocation10 + $0x10b]]
    %v2621 = vstv %s2620
    %v2622 = vmul.f32 %v2621, %v677
    %2624 = vrot.lane.b32.xlu0 %v2622, 126
    %v2625 = vpop.permute.xlu0 %2624
    %v2627 = vadd.f32 %v2619, %v2625
    %s2628 = sld [smem:[#allocation10 + $0x1b]]
    %v2629 = vstv %s2628
    %v2630 = vmul.f32 %v2629, %v683
    %v2631 = vadd.f32 %v2627, %v2630
    %s2632 = sld [smem:[#allocation10 + $0x9b]]
    %v2633 = vstv %s2632
    %v2634 = vmul.f32 %v2633, %v291
    %v2635 = vadd.f32 %v2631, %v2634
    %s2636 = sld [smem:[#allocation10 + $0x11b]]
    %v2637 = vstv %s2636
    %v2638 = vmul.f32 %v2637, %v683
    %2640 = vrot.lane.b32.xlu0 %v2638, 126
    %v2641 = vpop.permute.xlu0 %2640
    %v2643 = vadd.f32 %v2635, %v2641
    %s2644 = sld [smem:[#allocation10 + $0x2b]]
    %v2645 = vstv %s2644
    %v2646 = vmul.f32 %v2645, %v689
    %v2647 = vadd.f32 %v2643, %v2646
    %s2648 = sld [smem:[#allocation10 + $0xab]]
    %v2649 = vstv %s2648
    %v2650 = vmul.f32 %v2649, %v354
    %v2651 = vadd.f32 %v2647, %v2650
    %s2652 = sld [smem:[#allocation10 + $0x12b]]
    %v2653 = vstv %s2652
    %v2654 = vmul.f32 %v2653, %v689
    %2656 = vrot.lane.b32.xlu0 %v2654, 126
    %v2657 = vpop.permute.xlu0 %2656
    %v2659 = vadd.f32 %v2651, %v2657
    %s2660 = sld [smem:[#allocation10 + $0x3b]]
    %v2661 = vstv %s2660
    %v2662 = vmul.f32 %v2661, %v695
    %v2663 = vadd.f32 %v2659, %v2662
    %s2664 = sld [smem:[#allocation10 + $0xbb]]
    %v2665 = vstv %s2664
    %v2666 = vmul.f32 %v2665, %v417
    %v2667 = vadd.f32 %v2663, %v2666
    %s2668 = sld [smem:[#allocation10 + $0x13b]]
    %v2669 = vstv %s2668
    %v2670 = vmul.f32 %v2669, %v695
    %2672 = vrot.lane.b32.xlu0 %v2670, 126
    %v2673 = vpop.permute.xlu0 %2672
    %v2675 = vadd.f32 %v2667, %v2673
    %s2676 = sld [smem:[#allocation10 + $0x4b]]
    %v2677 = vstv %s2676
    %v2678 = vmul.f32 %v2677, %v701
    %v2679 = vadd.f32 %v2675, %v2678
    %s2680 = sld [smem:[#allocation10 + $0xcb]]
    %v2681 = vstv %s2680
    %v2682 = vmul.f32 %v2681, %v480
    %v2683 = vadd.f32 %v2679, %v2682
    %s2684 = sld [smem:[#allocation10 + $0x14b]]
    %v2685 = vstv %s2684
    %v2686 = vmul.f32 %v2685, %v701
    %2688 = vrot.lane.b32.xlu0 %v2686, 126
    %v2689 = vpop.permute.xlu0 %2688
    %v2691 = vadd.f32 %v2683, %v2689
    %s2692 = sld [smem:[#allocation10 + $0x5b]]
    %v2693 = vstv %s2692
    %v2694 = vmul.f32 %v2693, %v707
    %v2695 = vadd.f32 %v2691, %v2694
    %s2696 = sld [smem:[#allocation10 + $0xdb]]
    %v2697 = vstv %s2696
    %v2698 = vmul.f32 %v2697, %v543
    %v2699 = vadd.f32 %v2695, %v2698
    %s2700 = sld [smem:[#allocation10 + $0x15b]]
    %v2701 = vstv %s2700
    %v2702 = vmul.f32 %v2701, %v707
    %2704 = vrot.lane.b32.xlu0 %v2702, 126
    %v2705 = vpop.permute.xlu0 %2704
    %v2707 = vadd.f32 %v2699, %v2705
    %s2708 = sld [smem:[#allocation10 + $0x6b]]
    %v2709 = vstv %s2708
    %v2710 = vmul.f32 %v2709, %v713
    %v2711 = vadd.f32 %v2707, %v2710
    %s2712 = sld [smem:[#allocation10 + $0xeb]]
    %v2713 = vstv %s2712
    %v2714 = vmul.f32 %v2713, %v606
    %v2715 = vadd.f32 %v2711, %v2714
    %s2716 = sld [smem:[#allocation10 + $0x16b]]
    %v2717 = vstv %s2716
    %v2718 = vmul.f32 %v2717, %v713
    %2720 = vrot.lane.b32.xlu0 %v2718, 126
    %v2721 = vpop.permute.xlu0 %2720
    %v2723 = vadd.f32 %v2715, %v2721
    %s2724 = sld [smem:[#allocation10 + $0x7b]]
    %v2725 = vstv %s2724
    %v2726 = vmul.f32 %v2725, %v719
    %v2727 = vadd.f32 %v2723, %v2726
    %s2728 = sld [smem:[#allocation10 + $0xfb]]
    %v2729 = vstv %s2728
    %v2730 = vmul.f32 %v2729, %v669
    %v2731 = vadd.f32 %v2727, %v2730
    %s2732 = sld [smem:[#allocation10 + $0x17b]]
    %v2733 = vstv %s2732
    %v2734 = vmul.f32 %v2733, %v719
    %2736 = vrot.lane.b32.xlu0 %v2734, 126
    %v2737 = vpop.permute.xlu0 %2736
    %v2739 = vadd.f32 %v2731, %v2737
    %s2740 = sld [smem:[#allocation11 + $0xb]]
    %v2741 = vstv %s2740
    %v2742 = vadd.f32 %v2739, %v2741
    %v2743 = vmul.f32 %v2742, 0.01
    %v2744 = vmax.f32 %v2742, %v2743
    %v2745 = vsel %vm186, %v2744, 0.0
    %2746 = vadd.xlane.f32.xlu0 %v2745
    %v2747 = vpop.xlane.xlu0 %2746
    %v2748 = vmul.f32 %v2747, %v190
    %v2749 = vsel %vm192, %v2748, 0.0
    %v2750 = vrot.slane %v2749, 4
    %v2751 = vadd.f32 %v2749, %v2750
    %v2752 = vrot.slane %v2751, 2
    %v2753 = vadd.f32 %v2751, %v2752
    %v2754 = vrot.slane %v2753, 1
    %v2755 = vadd.f32 %v2753, %v2754
    %v2756 = vmul.f32 %v2755, %v200
    %v2757 = vmul.f32 %v2744, %v2744
    %v2758 = vsel %vm186, %v2757, 0.0
    %2759 = vadd.xlane.f32.xlu0 %v2758
    %v2760 = vpop.xlane.xlu0 %2759
    %v2761 = vmul.f32 %v2760, %v190
    %v2762 = vsel %vm192, %v2761, 0.0
    %v2763 = vrot.slane %v2762, 4
    %v2764 = vadd.f32 %v2762, %v2763
    %v2765 = vrot.slane %v2764, 2
    %v2766 = vadd.f32 %v2764, %v2765
    %v2767 = vrot.slane %v2766, 1
    %v2768 = vadd.f32 %v2766, %v2767
    %v2769 = vmul.f32 %v2768, %v200
    %v2770 = vmul.f32 %v2756, %v2756
    %v2771 = vsub.f32 %v2769, %v2770
    %v2772 = vmax.f32 %v2771, 0.0
    %s2773 = sld [smem:[#allocation13 + $0xb]]
    %s2774 = sld [smem:[#allocation14 + $0xb]]
    %v2775 = vadd.f32 %v2772, 1e-05
    %v2776 = vrsqrt.pop %v2775
    %v2777 = vstv %s2773
    %v2778 = vmul.f32 %v2777, %v2776
    %v2779 = vmul.f32 %v2756, %v2778
    %v2780 = vstv %s2774
    %v2781 = vsub.f32 %v2780, %v2779
    %v2782 = vmul.f32 %v2744, %v2778
    %v2783 = vadd.f32 %v2782, %v2781
    %s2784 = sld [smem:[#allocation10 + $0xc]]
    %v2785 = vstv %s2784
    %v2786 = vmul.f32 %v2785, %v677
    %v2787 = vadd.f32 %v2786, 0.0
    %s2788 = sld [smem:[#allocation10 + $0x8c]]
    %v2789 = vstv %s2788
    %v2790 = vmul.f32 %v2789, %v228
    %v2791 = vadd.f32 %v2787, %v2790
    %s2792 = sld [smem:[#allocation10 + $0x10c]]
    %v2793 = vstv %s2792
    %v2794 = vmul.f32 %v2793, %v677
    %2796 = vrot.lane.b32.xlu0 %v2794, 126
    %v2797 = vpop.permute.xlu0 %2796
    %v2799 = vadd.f32 %v2791, %v2797
    %s2800 = sld [smem:[#allocation10 + $0x1c]]
    %v2801 = vstv %s2800
    %v2802 = vmul.f32 %v2801, %v683
    %v2803 = vadd.f32 %v2799, %v2802
    %s2804 = sld [smem:[#allocation10 + $0x9c]]
    %v2805 = vstv %s2804
    %v2806 = vmul.f32 %v2805, %v291
    %v2807 = vadd.f32 %v2803, %v2806
    %s2808 = sld [smem:[#allocation10 + $0x11c]]
    %v2809 = vstv %s2808
    %v2810 = vmul.f32 %v2809, %v683
    %2812 = vrot.lane.b32.xlu0 %v2810, 126
    %v2813 = vpop.permute.xlu0 %2812
    %v2815 = vadd.f32 %v2807, %v2813
    %s2816 = sld [smem:[#allocation10 + $0x2c]]
    %v2817 = vstv %s2816
    %v2818 = vmul.f32 %v2817, %v689
    %v2819 = vadd.f32 %v2815, %v2818
    %s2820 = sld [smem:[#allocation10 + $0xac]]
    %v2821 = vstv %s2820
    %v2822 = vmul.f32 %v2821, %v354
    %v2823 = vadd.f32 %v2819, %v2822
    %s2824 = sld [smem:[#allocation10 + $0x12c]]
    %v2825 = vstv %s2824
    %v2826 = vmul.f32 %v2825, %v689
    %2828 = vrot.lane.b32.xlu0 %v2826, 126
    %v2829 = vpop.permute.xlu0 %2828
    %v2831 = vadd.f32 %v2823, %v2829
    %s2832 = sld [smem:[#allocation10 + $0x3c]]
    %v2833 = vstv %s2832
    %v2834 = vmul.f32 %v2833, %v695
    %v2835 = vadd.f32 %v2831, %v2834
    %s2836 = sld [smem:[#allocation10 + $0xbc]]
    %v2837 = vstv %s2836
    %v2838 = vmul.f32 %v2837, %v417
    %v2839 = vadd.f32 %v2835, %v2838
    %s2840 = sld [smem:[#allocation10 + $0x13c]]
    %v2841 = vstv %s2840
    %v2842 = vmul.f32 %v2841, %v695
    %2844 = vrot.lane.b32.xlu0 %v2842, 126
    %v2845 = vpop.permute.xlu0 %2844
    %v2847 = vadd.f32 %v2839, %v2845
    %s2848 = sld [smem:[#allocation10 + $0x4c]]
    %v2849 = vstv %s2848
    %v2850 = vmul.f32 %v2849, %v701
    %v2851 = vadd.f32 %v2847, %v2850
    %s2852 = sld [smem:[#allocation10 + $0xcc]]
    %v2853 = vstv %s2852
    %v2854 = vmul.f32 %v2853, %v480
    %v2855 = vadd.f32 %v2851, %v2854
    %s2856 = sld [smem:[#allocation10 + $0x14c]]
    %v2857 = vstv %s2856
    %v2858 = vmul.f32 %v2857, %v701
    %2860 = vrot.lane.b32.xlu0 %v2858, 126
    %v2861 = vpop.permute.xlu0 %2860
    %v2863 = vadd.f32 %v2855, %v2861
    %s2864 = sld [smem:[#allocation10 + $0x5c]]
    %v2865 = vstv %s2864
    %v2866 = vmul.f32 %v2865, %v707
    %v2867 = vadd.f32 %v2863, %v2866
    %s2868 = sld [smem:[#allocation10 + $0xdc]]
    %v2869 = vstv %s2868
    %v2870 = vmul.f32 %v2869, %v543
    %v2871 = vadd.f32 %v2867, %v2870
    %s2872 = sld [smem:[#allocation10 + $0x15c]]
    %v2873 = vstv %s2872
    %v2874 = vmul.f32 %v2873, %v707
    %2876 = vrot.lane.b32.xlu0 %v2874, 126
    %v2877 = vpop.permute.xlu0 %2876
    %v2879 = vadd.f32 %v2871, %v2877
    %s2880 = sld [smem:[#allocation10 + $0x6c]]
    %v2881 = vstv %s2880
    %v2882 = vmul.f32 %v2881, %v713
    %v2883 = vadd.f32 %v2879, %v2882
    %s2884 = sld [smem:[#allocation10 + $0xec]]
    %v2885 = vstv %s2884
    %v2886 = vmul.f32 %v2885, %v606
    %v2887 = vadd.f32 %v2883, %v2886
    %s2888 = sld [smem:[#allocation10 + $0x16c]]
    %v2889 = vstv %s2888
    %v2890 = vmul.f32 %v2889, %v713
    %2892 = vrot.lane.b32.xlu0 %v2890, 126
    %v2893 = vpop.permute.xlu0 %2892
    %v2895 = vadd.f32 %v2887, %v2893
    %s2896 = sld [smem:[#allocation10 + $0x7c]]
    %v2897 = vstv %s2896
    %v2898 = vmul.f32 %v2897, %v719
    %v2899 = vadd.f32 %v2895, %v2898
    %s2900 = sld [smem:[#allocation10 + $0xfc]]
    %v2901 = vstv %s2900
    %v2902 = vmul.f32 %v2901, %v669
    %v2903 = vadd.f32 %v2899, %v2902
    %s2904 = sld [smem:[#allocation10 + $0x17c]]
    %v2905 = vstv %s2904
    %v2906 = vmul.f32 %v2905, %v719
    %2908 = vrot.lane.b32.xlu0 %v2906, 126
    %v2909 = vpop.permute.xlu0 %2908
    %v2911 = vadd.f32 %v2903, %v2909
    %s2912 = sld [smem:[#allocation11 + $0xc]]
    %v2913 = vstv %s2912
    %v2914 = vadd.f32 %v2911, %v2913
    %v2915 = vmul.f32 %v2914, 0.01
    %v2916 = vmax.f32 %v2914, %v2915
    %v2917 = vsel %vm186, %v2916, 0.0
    %2918 = vadd.xlane.f32.xlu0 %v2917
    %v2919 = vpop.xlane.xlu0 %2918
    %v2920 = vmul.f32 %v2919, %v190
    %v2921 = vsel %vm192, %v2920, 0.0
    %v2922 = vrot.slane %v2921, 4
    %v2923 = vadd.f32 %v2921, %v2922
    %v2924 = vrot.slane %v2923, 2
    %v2925 = vadd.f32 %v2923, %v2924
    %v2926 = vrot.slane %v2925, 1
    %v2927 = vadd.f32 %v2925, %v2926
    %v2928 = vmul.f32 %v2927, %v200
    %v2929 = vmul.f32 %v2916, %v2916
    %v2930 = vsel %vm186, %v2929, 0.0
    %2931 = vadd.xlane.f32.xlu0 %v2930
    %v2932 = vpop.xlane.xlu0 %2931
    %v2933 = vmul.f32 %v2932, %v190
    %v2934 = vsel %vm192, %v2933, 0.0
    %v2935 = vrot.slane %v2934, 4
    %v2936 = vadd.f32 %v2934, %v2935
    %v2937 = vrot.slane %v2936, 2
    %v2938 = vadd.f32 %v2936, %v2937
    %v2939 = vrot.slane %v2938, 1
    %v2940 = vadd.f32 %v2938, %v2939
    %v2941 = vmul.f32 %v2940, %v200
    %v2942 = vmul.f32 %v2928, %v2928
    %v2943 = vsub.f32 %v2941, %v2942
    %v2944 = vmax.f32 %v2943, 0.0
    %s2945 = sld [smem:[#allocation13 + $0xc]]
    %s2946 = sld [smem:[#allocation14 + $0xc]]
    %v2947 = vadd.f32 %v2944, 1e-05
    %v2948 = vrsqrt.pop %v2947
    %v2949 = vstv %s2945
    %v2950 = vmul.f32 %v2949, %v2948
    %v2951 = vmul.f32 %v2928, %v2950
    %v2952 = vstv %s2946
    %v2953 = vsub.f32 %v2952, %v2951
    %v2954 = vmul.f32 %v2916, %v2950
    %v2955 = vadd.f32 %v2954, %v2953
    %s2956 = sld [smem:[#allocation10 + $0xd]]
    %v2957 = vstv %s2956
    %v2958 = vmul.f32 %v2957, %v677
    %v2959 = vadd.f32 %v2958, 0.0
    %s2960 = sld [smem:[#allocation10 + $0x8d]]
    %v2961 = vstv %s2960
    %v2962 = vmul.f32 %v2961, %v228
    %v2963 = vadd.f32 %v2959, %v2962
    %s2964 = sld [smem:[#allocation10 + $0x10d]]
    %v2965 = vstv %s2964
    %v2966 = vmul.f32 %v2965, %v677
    %2968 = vrot.lane.b32.xlu0 %v2966, 126
    %v2969 = vpop.permute.xlu0 %2968
    %v2971 = vadd.f32 %v2963, %v2969
    %s2972 = sld [smem:[#allocation10 + $0x1d]]
    %v2973 = vstv %s2972
    %v2974 = vmul.f32 %v2973, %v683
    %v2975 = vadd.f32 %v2971, %v2974
    %s2976 = sld [smem:[#allocation10 + $0x9d]]
    %v2977 = vstv %s2976
    %v2978 = vmul.f32 %v2977, %v291
    %v2979 = vadd.f32 %v2975, %v2978
    %s2980 = sld [smem:[#allocation10 + $0x11d]]
    %v2981 = vstv %s2980
    %v2982 = vmul.f32 %v2981, %v683
    %2984 = vrot.lane.b32.xlu0 %v2982, 126
    %v2985 = vpop.permute.xlu0 %2984
    %v2987 = vadd.f32 %v2979, %v2985
    %s2988 = sld [smem:[#allocation10 + $0x2d]]
    %v2989 = vstv %s2988
    %v2990 = vmul.f32 %v2989, %v689
    %v2991 = vadd.f32 %v2987, %v2990
    %s2992 = sld [smem:[#allocation10 + $0xad]]
    %v2993 = vstv %s2992
    %v2994 = vmul.f32 %v2993, %v354
    %v2995 = vadd.f32 %v2991, %v2994
    %s2996 = sld [smem:[#allocation10 + $0x12d]]
    %v2997 = vstv %s2996
    %v2998 = vmul.f32 %v2997, %v689
    %3000 = vrot.lane.b32.xlu0 %v2998, 126
    %v3001 = vpop.permute.xlu0 %3000
    %v3003 = vadd.f32 %v2995, %v3001
    %s3004 = sld [smem:[#allocation10 + $0x3d]]
    %v3005 = vstv %s3004
    %v3006 = vmul.f32 %v3005, %v695
    %v3007 = vadd.f32 %v3003, %v3006
    %s3008 = sld [smem:[#allocation10 + $0xbd]]
    %v3009 = vstv %s3008
    %v3010 = vmul.f32 %v3009, %v417
    %v3011 = vadd.f32 %v3007, %v3010
    %s3012 = sld [smem:[#allocation10 + $0x13d]]
    %v3013 = vstv %s3012
    %v3014 = vmul.f32 %v3013, %v695
    %3016 = vrot.lane.b32.xlu0 %v3014, 126
    %v3017 = vpop.permute.xlu0 %3016
    %v3019 = vadd.f32 %v3011, %v3017
    %s3020 = sld [smem:[#allocation10 + $0x4d]]
    %v3021 = vstv %s3020
    %v3022 = vmul.f32 %v3021, %v701
    %v3023 = vadd.f32 %v3019, %v3022
    %s3024 = sld [smem:[#allocation10 + $0xcd]]
    %v3025 = vstv %s3024
    %v3026 = vmul.f32 %v3025, %v480
    %v3027 = vadd.f32 %v3023, %v3026
    %s3028 = sld [smem:[#allocation10 + $0x14d]]
    %v3029 = vstv %s3028
    %v3030 = vmul.f32 %v3029, %v701
    %3032 = vrot.lane.b32.xlu0 %v3030, 126
    %v3033 = vpop.permute.xlu0 %3032
    %v3035 = vadd.f32 %v3027, %v3033
    %s3036 = sld [smem:[#allocation10 + $0x5d]]
    %v3037 = vstv %s3036
    %v3038 = vmul.f32 %v3037, %v707
    %v3039 = vadd.f32 %v3035, %v3038
    %s3040 = sld [smem:[#allocation10 + $0xdd]]
    %v3041 = vstv %s3040
    %v3042 = vmul.f32 %v3041, %v543
    %v3043 = vadd.f32 %v3039, %v3042
    %s3044 = sld [smem:[#allocation10 + $0x15d]]
    %v3045 = vstv %s3044
    %v3046 = vmul.f32 %v3045, %v707
    %3048 = vrot.lane.b32.xlu0 %v3046, 126
    %v3049 = vpop.permute.xlu0 %3048
    %v3051 = vadd.f32 %v3043, %v3049
    %s3052 = sld [smem:[#allocation10 + $0x6d]]
    %v3053 = vstv %s3052
    %v3054 = vmul.f32 %v3053, %v713
    %v3055 = vadd.f32 %v3051, %v3054
    %s3056 = sld [smem:[#allocation10 + $0xed]]
    %v3057 = vstv %s3056
    %v3058 = vmul.f32 %v3057, %v606
    %v3059 = vadd.f32 %v3055, %v3058
    %s3060 = sld [smem:[#allocation10 + $0x16d]]
    %v3061 = vstv %s3060
    %v3062 = vmul.f32 %v3061, %v713
    %3064 = vrot.lane.b32.xlu0 %v3062, 126
    %v3065 = vpop.permute.xlu0 %3064
    %v3067 = vadd.f32 %v3059, %v3065
    %s3068 = sld [smem:[#allocation10 + $0x7d]]
    %v3069 = vstv %s3068
    %v3070 = vmul.f32 %v3069, %v719
    %v3071 = vadd.f32 %v3067, %v3070
    %s3072 = sld [smem:[#allocation10 + $0xfd]]
    %v3073 = vstv %s3072
    %v3074 = vmul.f32 %v3073, %v669
    %v3075 = vadd.f32 %v3071, %v3074
    %s3076 = sld [smem:[#allocation10 + $0x17d]]
    %v3077 = vstv %s3076
    %v3078 = vmul.f32 %v3077, %v719
    %3080 = vrot.lane.b32.xlu0 %v3078, 126
    %v3081 = vpop.permute.xlu0 %3080
    %v3083 = vadd.f32 %v3075, %v3081
    %s3084 = sld [smem:[#allocation11 + $0xd]]
    %v3085 = vstv %s3084
    %v3086 = vadd.f32 %v3083, %v3085
    %v3087 = vmul.f32 %v3086, 0.01
    %v3088 = vmax.f32 %v3086, %v3087
    %v3089 = vsel %vm186, %v3088, 0.0
    %3090 = vadd.xlane.f32.xlu0 %v3089
    %v3091 = vpop.xlane.xlu0 %3090
    %v3092 = vmul.f32 %v3091, %v190
    %v3093 = vsel %vm192, %v3092, 0.0
    %v3094 = vrot.slane %v3093, 4
    %v3095 = vadd.f32 %v3093, %v3094
    %v3096 = vrot.slane %v3095, 2
    %v3097 = vadd.f32 %v3095, %v3096
    %v3098 = vrot.slane %v3097, 1
    %v3099 = vadd.f32 %v3097, %v3098
    %v3100 = vmul.f32 %v3099, %v200
    %v3101 = vmul.f32 %v3088, %v3088
    %v3102 = vsel %vm186, %v3101, 0.0
    %3103 = vadd.xlane.f32.xlu0 %v3102
    %v3104 = vpop.xlane.xlu0 %3103
    %v3105 = vmul.f32 %v3104, %v190
    %v3106 = vsel %vm192, %v3105, 0.0
    %v3107 = vrot.slane %v3106, 4
    %v3108 = vadd.f32 %v3106, %v3107
    %v3109 = vrot.slane %v3108, 2
    %v3110 = vadd.f32 %v3108, %v3109
    %v3111 = vrot.slane %v3110, 1
    %v3112 = vadd.f32 %v3110, %v3111
    %v3113 = vmul.f32 %v3112, %v200
    %v3114 = vmul.f32 %v3100, %v3100
    %v3115 = vsub.f32 %v3113, %v3114
    %v3116 = vmax.f32 %v3115, 0.0
    %s3117 = sld [smem:[#allocation13 + $0xd]]
    %s3118 = sld [smem:[#allocation14 + $0xd]]
    %v3119 = vadd.f32 %v3116, 1e-05
    %v3120 = vrsqrt.pop %v3119
    %v3121 = vstv %s3117
    %v3122 = vmul.f32 %v3121, %v3120
    %v3123 = vmul.f32 %v3100, %v3122
    %v3124 = vstv %s3118
    %v3125 = vsub.f32 %v3124, %v3123
    %v3126 = vmul.f32 %v3088, %v3122
    %v3127 = vadd.f32 %v3126, %v3125
    %s3128 = sld [smem:[#allocation10 + $0xe]]
    %v3129 = vstv %s3128
    %v3130 = vmul.f32 %v3129, %v677
    %v3131 = vadd.f32 %v3130, 0.0
    %s3132 = sld [smem:[#allocation10 + $0x8e]]
    %v3133 = vstv %s3132
    %v3134 = vmul.f32 %v3133, %v228
    %v3135 = vadd.f32 %v3131, %v3134
    %s3136 = sld [smem:[#allocation10 + $0x10e]]
    %v3137 = vstv %s3136
    %v3138 = vmul.f32 %v3137, %v677
    %3140 = vrot.lane.b32.xlu0 %v3138, 126
    %v3141 = vpop.permute.xlu0 %3140
    %v3143 = vadd.f32 %v3135, %v3141
    %s3144 = sld [smem:[#allocation10 + $0x1e]]
    %v3145 = vstv %s3144
    %v3146 = vmul.f32 %v3145, %v683
    %v3147 = vadd.f32 %v3143, %v3146
    %s3148 = sld [smem:[#allocation10 + $0x9e]]
    %v3149 = vstv %s3148
    %v3150 = vmul.f32 %v3149, %v291
    %v3151 = vadd.f32 %v3147, %v3150
    %s3152 = sld [smem:[#allocation10 + $0x11e]]
    %v3153 = vstv %s3152
    %v3154 = vmul.f32 %v3153, %v683
    %3156 = vrot.lane.b32.xlu0 %v3154, 126
    %v3157 = vpop.permute.xlu0 %3156
    %v3159 = vadd.f32 %v3151, %v3157
    %s3160 = sld [smem:[#allocation10 + $0x2e]]
    %v3161 = vstv %s3160
    %v3162 = vmul.f32 %v3161, %v689
    %v3163 = vadd.f32 %v3159, %v3162
    %s3164 = sld [smem:[#allocation10 + $0xae]]
    %v3165 = vstv %s3164
    %v3166 = vmul.f32 %v3165, %v354
    %v3167 = vadd.f32 %v3163, %v3166
    %s3168 = sld [smem:[#allocation10 + $0x12e]]
    %v3169 = vstv %s3168
    %v3170 = vmul.f32 %v3169, %v689
    %3172 = vrot.lane.b32.xlu0 %v3170, 126
    %v3173 = vpop.permute.xlu0 %3172
    %v3175 = vadd.f32 %v3167, %v3173
    %s3176 = sld [smem:[#allocation10 + $0x3e]]
    %v3177 = vstv %s3176
    %v3178 = vmul.f32 %v3177, %v695
    %v3179 = vadd.f32 %v3175, %v3178
    %s3180 = sld [smem:[#allocation10 + $0xbe]]
    %v3181 = vstv %s3180
    %v3182 = vmul.f32 %v3181, %v417
    %v3183 = vadd.f32 %v3179, %v3182
    %s3184 = sld [smem:[#allocation10 + $0x13e]]
    %v3185 = vstv %s3184
    %v3186 = vmul.f32 %v3185, %v695
    %3188 = vrot.lane.b32.xlu0 %v3186, 126
    %v3189 = vpop.permute.xlu0 %3188
    %v3191 = vadd.f32 %v3183, %v3189
    %s3192 = sld [smem:[#allocation10 + $0x4e]]
    %v3193 = vstv %s3192
    %v3194 = vmul.f32 %v3193, %v701
    %v3195 = vadd.f32 %v3191, %v3194
    %s3196 = sld [smem:[#allocation10 + $0xce]]
    %v3197 = vstv %s3196
    %v3198 = vmul.f32 %v3197, %v480
    %v3199 = vadd.f32 %v3195, %v3198
    %s3200 = sld [smem:[#allocation10 + $0x14e]]
    %v3201 = vstv %s3200
    %v3202 = vmul.f32 %v3201, %v701
    %3204 = vrot.lane.b32.xlu0 %v3202, 126
    %v3205 = vpop.permute.xlu0 %3204
    %v3207 = vadd.f32 %v3199, %v3205
    %s3208 = sld [smem:[#allocation10 + $0x5e]]
    %v3209 = vstv %s3208
    %v3210 = vmul.f32 %v3209, %v707
    %v3211 = vadd.f32 %v3207, %v3210
    %s3212 = sld [smem:[#allocation10 + $0xde]]
    %v3213 = vstv %s3212
    %v3214 = vmul.f32 %v3213, %v543
    %v3215 = vadd.f32 %v3211, %v3214
    %s3216 = sld [smem:[#allocation10 + $0x15e]]
    %v3217 = vstv %s3216
    %v3218 = vmul.f32 %v3217, %v707
    %3220 = vrot.lane.b32.xlu0 %v3218, 126
    %v3221 = vpop.permute.xlu0 %3220
    %v3223 = vadd.f32 %v3215, %v3221
    %s3224 = sld [smem:[#allocation10 + $0x6e]]
    %v3225 = vstv %s3224
    %v3226 = vmul.f32 %v3225, %v713
    %v3227 = vadd.f32 %v3223, %v3226
    %s3228 = sld [smem:[#allocation10 + $0xee]]
    %v3229 = vstv %s3228
    %v3230 = vmul.f32 %v3229, %v606
    %v3231 = vadd.f32 %v3227, %v3230
    %s3232 = sld [smem:[#allocation10 + $0x16e]]
    %v3233 = vstv %s3232
    %v3234 = vmul.f32 %v3233, %v713
    %3236 = vrot.lane.b32.xlu0 %v3234, 126
    %v3237 = vpop.permute.xlu0 %3236
    %v3239 = vadd.f32 %v3231, %v3237
    %s3240 = sld [smem:[#allocation10 + $0x7e]]
    %v3241 = vstv %s3240
    %v3242 = vmul.f32 %v3241, %v719
    %v3243 = vadd.f32 %v3239, %v3242
    %s3244 = sld [smem:[#allocation10 + $0xfe]]
    %v3245 = vstv %s3244
    %v3246 = vmul.f32 %v3245, %v669
    %v3247 = vadd.f32 %v3243, %v3246
    %s3248 = sld [smem:[#allocation10 + $0x17e]]
    %v3249 = vstv %s3248
    %v3250 = vmul.f32 %v3249, %v719
    %3252 = vrot.lane.b32.xlu0 %v3250, 126
    %v3253 = vpop.permute.xlu0 %3252
    %v3255 = vadd.f32 %v3247, %v3253
    %s3256 = sld [smem:[#allocation11 + $0xe]]
    %v3257 = vstv %s3256
    %v3258 = vadd.f32 %v3255, %v3257
    %v3259 = vmul.f32 %v3258, 0.01
    %v3260 = vmax.f32 %v3258, %v3259
    %v3261 = vsel %vm186, %v3260, 0.0
    %3262 = vadd.xlane.f32.xlu0 %v3261
    %v3263 = vpop.xlane.xlu0 %3262
    %v3264 = vmul.f32 %v3263, %v190
    %v3265 = vsel %vm192, %v3264, 0.0
    %v3266 = vrot.slane %v3265, 4
    %v3267 = vadd.f32 %v3265, %v3266
    %v3268 = vrot.slane %v3267, 2
    %v3269 = vadd.f32 %v3267, %v3268
    %v3270 = vrot.slane %v3269, 1
    %v3271 = vadd.f32 %v3269, %v3270
    %v3272 = vmul.f32 %v3271, %v200
    %v3273 = vmul.f32 %v3260, %v3260
    %v3274 = vsel %vm186, %v3273, 0.0
    %3275 = vadd.xlane.f32.xlu0 %v3274
    %v3276 = vpop.xlane.xlu0 %3275
    %v3277 = vmul.f32 %v3276, %v190
    %v3278 = vsel %vm192, %v3277, 0.0
    %v3279 = vrot.slane %v3278, 4
    %v3280 = vadd.f32 %v3278, %v3279
    %v3281 = vrot.slane %v3280, 2
    %v3282 = vadd.f32 %v3280, %v3281
    %v3283 = vrot.slane %v3282, 1
    %v3284 = vadd.f32 %v3282, %v3283
    %v3285 = vmul.f32 %v3284, %v200
    %v3286 = vmul.f32 %v3272, %v3272
    %v3287 = vsub.f32 %v3285, %v3286
    %v3288 = vmax.f32 %v3287, 0.0
    %s3289 = sld [smem:[#allocation13 + $0xe]]
    %s3290 = sld [smem:[#allocation14 + $0xe]]
    %v3291 = vadd.f32 %v3288, 1e-05
    %v3292 = vrsqrt.pop %v3291
    %v3293 = vstv %s3289
    %v3294 = vmul.f32 %v3293, %v3292
    %v3295 = vmul.f32 %v3272, %v3294
    %v3296 = vstv %s3290
    %v3297 = vsub.f32 %v3296, %v3295
    %v3298 = vmul.f32 %v3260, %v3294
    %v3299 = vadd.f32 %v3298, %v3297
    %s3300 = sld [smem:[#allocation10 + $0xf]]
    %v3301 = vstv %s3300
    %v3302 = vmul.f32 %v3301, %v677
    %v3303 = vadd.f32 %v3302, 0.0
    %s3304 = sld [smem:[#allocation10 + $0x8f]]
    %v3305 = vstv %s3304
    %v3306 = vmul.f32 %v3305, %v228
    %v3307 = vadd.f32 %v3303, %v3306
    %s3308 = sld [smem:[#allocation10 + $0x10f]]
    %v3309 = vstv %s3308
    %v3310 = vmul.f32 %v3309, %v677
    %3312 = vrot.lane.b32.xlu0 %v3310, 126
    %v3313 = vpop.permute.xlu0 %3312
    %v3315 = vadd.f32 %v3307, %v3313
    %s3316 = sld [smem:[#allocation10 + $0x1f]]
    %v3317 = vstv %s3316
    %v3318 = vmul.f32 %v3317, %v683
    %v3319 = vadd.f32 %v3315, %v3318
    %s3320 = sld [smem:[#allocation10 + $0x9f]]
    %v3321 = vstv %s3320
    %v3322 = vmul.f32 %v3321, %v291
    %v3323 = vadd.f32 %v3319, %v3322
    %s3324 = sld [smem:[#allocation10 + $0x11f]]
    %v3325 = vstv %s3324
    %v3326 = vmul.f32 %v3325, %v683
    %3328 = vrot.lane.b32.xlu0 %v3326, 126
    %v3329 = vpop.permute.xlu0 %3328
    %v3331 = vadd.f32 %v3323, %v3329
    %s3332 = sld [smem:[#allocation10 + $0x2f]]
    %v3333 = vstv %s3332
    %v3334 = vmul.f32 %v3333, %v689
    %v3335 = vadd.f32 %v3331, %v3334
    %s3336 = sld [smem:[#allocation10 + $0xaf]]
    %v3337 = vstv %s3336
    %v3338 = vmul.f32 %v3337, %v354
    %v3339 = vadd.f32 %v3335, %v3338
    %s3340 = sld [smem:[#allocation10 + $0x12f]]
    %v3341 = vstv %s3340
    %v3342 = vmul.f32 %v3341, %v689
    %3344 = vrot.lane.b32.xlu0 %v3342, 126
    %v3345 = vpop.permute.xlu0 %3344
    %v3347 = vadd.f32 %v3339, %v3345
    %s3348 = sld [smem:[#allocation10 + $0x3f]]
    %v3349 = vstv %s3348
    %v3350 = vmul.f32 %v3349, %v695
    %v3351 = vadd.f32 %v3347, %v3350
    %s3352 = sld [smem:[#allocation10 + $0xbf]]
    %v3353 = vstv %s3352
    %v3354 = vmul.f32 %v3353, %v417
    %v3355 = vadd.f32 %v3351, %v3354
    %s3356 = sld [smem:[#allocation10 + $0x13f]]
    %v3357 = vstv %s3356
    %v3358 = vmul.f32 %v3357, %v695
    %3360 = vrot.lane.b32.xlu0 %v3358, 126
    %v3361 = vpop.permute.xlu0 %3360
    %v3363 = vadd.f32 %v3355, %v3361
    %s3364 = sld [smem:[#allocation10 + $0x4f]]
    %v3365 = vstv %s3364
    %v3366 = vmul.f32 %v3365, %v701
    %v3367 = vadd.f32 %v3363, %v3366
    %s3368 = sld [smem:[#allocation10 + $0xcf]]
    %v3369 = vstv %s3368
    %v3370 = vmul.f32 %v3369, %v480
    %v3371 = vadd.f32 %v3367, %v3370
    %s3372 = sld [smem:[#allocation10 + $0x14f]]
    %v3373 = vstv %s3372
    %v3374 = vmul.f32 %v3373, %v701
    %3376 = vrot.lane.b32.xlu0 %v3374, 126
    %v3377 = vpop.permute.xlu0 %3376
    %v3379 = vadd.f32 %v3371, %v3377
    %s3380 = sld [smem:[#allocation10 + $0x5f]]
    %v3381 = vstv %s3380
    %v3382 = vmul.f32 %v3381, %v707
    %v3383 = vadd.f32 %v3379, %v3382
    %s3384 = sld [smem:[#allocation10 + $0xdf]]
    %v3385 = vstv %s3384
    %v3386 = vmul.f32 %v3385, %v543
    %v3387 = vadd.f32 %v3383, %v3386
    %s3388 = sld [smem:[#allocation10 + $0x15f]]
    %v3389 = vstv %s3388
    %v3390 = vmul.f32 %v3389, %v707
    %3392 = vrot.lane.b32.xlu0 %v3390, 126
    %v3393 = vpop.permute.xlu0 %3392
    %v3395 = vadd.f32 %v3387, %v3393
    %s3396 = sld [smem:[#allocation10 + $0x6f]]
    %v3397 = vstv %s3396
    %v3398 = vmul.f32 %v3397, %v713
    %v3399 = vadd.f32 %v3395, %v3398
    %s3400 = sld [smem:[#allocation10 + $0xef]]
    %v3401 = vstv %s3400
    %v3402 = vmul.f32 %v3401, %v606
    %v3403 = vadd.f32 %v3399, %v3402
    %s3404 = sld [smem:[#allocation10 + $0x16f]]
    %v3405 = vstv %s3404
    %v3406 = vmul.f32 %v3405, %v713
    %3408 = vrot.lane.b32.xlu0 %v3406, 126
    %v3409 = vpop.permute.xlu0 %3408
    %v3411 = vadd.f32 %v3403, %v3409
    %s3412 = sld [smem:[#allocation10 + $0x7f]]
    %v3413 = vstv %s3412
    %v3414 = vmul.f32 %v3413, %v719
    %v3415 = vadd.f32 %v3411, %v3414
    %s3416 = sld [smem:[#allocation10 + $0xff]]
    %v3417 = vstv %s3416
    %v3418 = vmul.f32 %v3417, %v669
    %v3419 = vadd.f32 %v3415, %v3418
    %s3420 = sld [smem:[#allocation10 + $0x17f]]
    %v3421 = vstv %s3420
    %v3422 = vmul.f32 %v3421, %v719
    %3424 = vrot.lane.b32.xlu0 %v3422, 126
    %v3425 = vpop.permute.xlu0 %3424
    %v3427 = vadd.f32 %v3419, %v3425
    %s3428 = sld [smem:[#allocation11 + $0xf]]
    %v3429 = vstv %s3428
    %v3430 = vadd.f32 %v3427, %v3429
    %v3431 = vmul.f32 %v3430, 0.01
    %v3432 = vmax.f32 %v3430, %v3431
    %v3433 = vsel %vm186, %v3432, 0.0
    %3434 = vadd.xlane.f32.xlu0 %v3433
    %v3435 = vpop.xlane.xlu0 %3434
    %v3436 = vmul.f32 %v3435, %v190
    %v3437 = vsel %vm192, %v3436, 0.0
    %v3438 = vrot.slane %v3437, 4
    %v3439 = vadd.f32 %v3437, %v3438
    %v3440 = vrot.slane %v3439, 2
    %v3441 = vadd.f32 %v3439, %v3440
    %v3442 = vrot.slane %v3441, 1
    %v3443 = vadd.f32 %v3441, %v3442
    %v3444 = vmul.f32 %v3443, %v200
    %v3445 = vmul.f32 %v3432, %v3432
    %v3446 = vsel %vm186, %v3445, 0.0
    %3447 = vadd.xlane.f32.xlu0 %v3446
    %v3448 = vpop.xlane.xlu0 %3447
    %v3449 = vmul.f32 %v3448, %v190
    %v3450 = vsel %vm192, %v3449, 0.0
    %v3451 = vrot.slane %v3450, 4
    %v3452 = vadd.f32 %v3450, %v3451
    %v3453 = vrot.slane %v3452, 2
    %v3454 = vadd.f32 %v3452, %v3453
    %v3455 = vrot.slane %v3454, 1
    %v3456 = vadd.f32 %v3454, %v3455
    %v3457 = vmul.f32 %v3456, %v200
    %v3458 = vmul.f32 %v3444, %v3444
    %v3459 = vsub.f32 %v3457, %v3458
    %v3460 = vmax.f32 %v3459, 0.0
    %s3461 = sld [smem:[#allocation13 + $0xf]]
    %s3462 = sld [smem:[#allocation14 + $0xf]]
    %v3463 = vadd.f32 %v3460, 1e-05
    %v3464 = vrsqrt.pop %v3463
    %v3465 = vstv %s3461
    %v3466 = vmul.f32 %v3465, %v3464
    %v3467 = vmul.f32 %v3444, %v3466
    %v3468 = vstv %s3462
    %v3469 = vsub.f32 %v3468, %v3467
    %v3470 = vmul.f32 %v3432, %v3466
    %v3471 = vadd.f32 %v3470, %v3469
    %v3472 = vpack.c.bf16 %v891, %v891
    %v3473 = vld [vmem:[%s9] sm:$0xf]
    %v3474 = vld [vmem:[%s9 + $0x4] sm:$0xf]
    %v3475 = vld [vmem:[%s9 + $0x8] sm:$0xf]
    %v3476 = vld [vmem:[%s9 + $0xc] sm:$0x7]
    %v3477 = vpack.c.bf16 %v1063, %v1063
    %s3478 = scalar_lea.vmem %s9, 16
    %v3479 = vld [vmem:[%s3478] sm:$0xf]
    %v3480 = vld [vmem:[%s3478 + $0x4] sm:$0xf]
    %v3481 = vld [vmem:[%s3478 + $0x8] sm:$0xf]
    %v3482 = vld [vmem:[%s3478 + $0xc] sm:$0x7]
    %v3487 = vunpack.c.l.b16 %v3479
    %v3488 = vunpack.c.l.b16 %v3480
    %v3489 = vunpack.c.l.b16 %v3481
    %v3490 = vunpack.c.l.b16 %v3482
    %v3491 = vpack.c.b16 %v3488, %v3487
    %v3492 = vpack.c.b16 %v3490, %v3489
    %vm3494 = vcmask 244736
    %v3496 = vsel %vm3494, %v3477, 0
    %vm3498 = vcmask 1046528
    %v3500 = vsel %vm3498, %v3492, 0
    %3502 = vmatprep.subr.bf16.mxu0 0
    %3503 = vmatpush1.bf16.msra.mxu0 %v3491
    %3504 = vmatprep.subr.bf16.mxu0 0
    %3505 = vmatpush1.bf16.msra.mxu0 %v3500
    %3506 = vmatprep.subr.bf16.mxu0 0
    %3507 = vmatpush1.bf16.msra.mxu0 0
    %3508 = vmatprep.subr.bf16.mxu0 0
    %3509 = vmatpush1.bf16.msra.mxu0 0
    %3510 = vmatprep.subr.bf16.mxu0 0
    %3511 = vmatpush1.bf16.msra.mxu0 0
    %3512 = vmatprep.subr.bf16.mxu0 0
    %3513 = vmatpush1.bf16.msra.mxu0 0
    %3514 = vmatprep.subr.bf16.mxu0 0
    %3515 = vmatpush1.bf16.msra.mxu0 0
    %3516 = vmatprep.subr.bf16.mxu0 0
    %3517 = vmatpush1.bf16.msra.mxu0 0
    %3518 = vmatprep.subr.bf16.mxu0 0
    %3519 = vmatpush1.bf16.msra.mxu0 0
    %3520 = vmatprep.subr.bf16.mxu0 0
    %3521 = vmatpush1.bf16.msra.mxu0 0
    %3522 = vmatprep.subr.bf16.mxu0 0
    %3523 = vmatpush1.bf16.msra.mxu0 0
    %3524 = vmatprep.subr.bf16.mxu0 0
    %3525 = vmatpush1.bf16.msra.mxu0 0
    %3526 = vmatprep.subr.bf16.mxu0 0
    %3527 = vmatpush1.bf16.msra.mxu0 0
    %3528 = vmatprep.subr.bf16.mxu0 0
    %3529 = vmatpush1.bf16.msra.mxu0 0
    %3530 = vmatprep.subr.bf16.mxu0 0
    %3531 = vmatpush1.bf16.msra.mxu0 0
    %3532 = vmatprep.subr.bf16.mxu0 0
    %3533 = vmatpush1.bf16.msra.mxu0 0
    %3534 = vmatprep.mubr.bf16.mxu0 0
    %3535 = vmatmul.mubr.bf16.gmra.mrb[0].mxu0 %v3496
    %v3536 = vpop.f32.mrb[0].mxu0
    %v3537 = vadd.f32 0.0, %v3536
    %v3538 = vpop.f32.mrb[0].mxu0
    %v3539 = vpop.f32.mrb[0].mxu0
    %v3540 = vpop.f32.mrb[0].mxu0
    %3541 = vdwg.mxu0
    %v3546 = vunpack.c.l.b16 %v3473
    %v3547 = vunpack.c.l.b16 %v3474
    %v3548 = vunpack.c.l.b16 %v3475
    %v3549 = vunpack.c.l.b16 %v3476
    %v3550 = vpack.c.b16 %v3547, %v3546
    %v3551 = vpack.c.b16 %v3549, %v3548
    %v3554 = vsel %vm3494, %v3472, 0
    %v3557 = vsel %vm3498, %v3551, 0
    %3559 = vmatprep.subr.bf16.mxu0 0
    %3560 = vmatpush1.bf16.msra.mxu0 %v3550
    %3561 = vmatprep.subr.bf16.mxu0 0
    %3562 = vmatpush1.bf16.msra.mxu0 %v3557
    %3563 = vmatprep.subr.bf16.mxu0 0
    %3564 = vmatpush1.bf16.msra.mxu0 0
    %3565 = vmatprep.subr.bf16.mxu0 0
    %3566 = vmatpush1.bf16.msra.mxu0 0
    %3567 = vmatprep.subr.bf16.mxu0 0
    %3568 = vmatpush1.bf16.msra.mxu0 0
    %3569 = vmatprep.subr.bf16.mxu0 0
    %3570 = vmatpush1.bf16.msra.mxu0 0
    %3571 = vmatprep.subr.bf16.mxu0 0
    %3572 = vmatpush1.bf16.msra.mxu0 0
    %3573 = vmatprep.subr.bf16.mxu0 0
    %3574 = vmatpush1.bf16.msra.mxu0 0
    %3575 = vmatprep.subr.bf16.mxu0 0
    %3576 = vmatpush1.bf16.msra.mxu0 0
    %3577 = vmatprep.subr.bf16.mxu0 0
    %3578 = vmatpush1.bf16.msra.mxu0 0
    %3579 = vmatprep.subr.bf16.mxu0 0
    %3580 = vmatpush1.bf16.msra.mxu0 0
    %3581 = vmatprep.subr.bf16.mxu0 0
    %3582 = vmatpush1.bf16.msra.mxu0 0
    %3583 = vmatprep.subr.bf16.mxu0 0
    %3584 = vmatpush1.bf16.msra.mxu0 0
    %3585 = vmatprep.subr.bf16.mxu0 0
    %3586 = vmatpush1.bf16.msra.mxu0 0
    %3587 = vmatprep.subr.bf16.mxu0 0
    %3588 = vmatpush1.bf16.msra.mxu0 0
    %3589 = vmatprep.subr.bf16.mxu0 0
    %3590 = vmatpush1.bf16.msra.mxu0 0
    %3591 = vmatprep.mubr.bf16.mxu0 0
    %3592 = vmatmul.mubr.bf16.gmra.mrb[0].mxu0 %v3554
    %v3593 = vpop.f32.mrb[0].mxu0
    %v3594 = vadd.f32 %v3537, %v3593
    %v3595 = vpop.f32.mrb[0].mxu0
    %v3596 = vpop.f32.mrb[0].mxu0
    %v3597 = vpop.f32.mrb[0].mxu0
    %3598 = vdwg.mxu0
    %v3599 = vpack.c.bf16 %v1235, %v1235
    %s3600 = scalar_lea.vmem %s9, 32
    %v3601 = vld [vmem:[%s3600] sm:$0xf]
    %v3602 = vld [vmem:[%s3600 + $0x4] sm:$0xf]
    %v3603 = vld [vmem:[%s3600 + $0x8] sm:$0xf]
    %v3604 = vld [vmem:[%s3600 + $0xc] sm:$0x7]
    %v3609 = vunpack.c.l.b16 %v3601
    %v3610 = vunpack.c.l.b16 %v3602
    %v3611 = vunpack.c.l.b16 %v3603
    %v3612 = vunpack.c.l.b16 %v3604
    %v3613 = vpack.c.b16 %v3610, %v3609
    %v3614 = vpack.c.b16 %v3612, %v3611
    %v3617 = vsel %vm3494, %v3599, 0
    %v3620 = vsel %vm3498, %v3614, 0
    %3622 = vmatprep.subr.bf16.mxu0 0
    %3623 = vmatpush1.bf16.msra.mxu0 %v3613
    %3624 = vmatprep.subr.bf16.mxu0 0
    %3625 = vmatpush1.bf16.msra.mxu0 %v3620
    %3626 = vmatprep.subr.bf16.mxu0 0
    %3627 = vmatpush1.bf16.msra.mxu0 0
    %3628 = vmatprep.subr.bf16.mxu0 0
    %3629 = vmatpush1.bf16.msra.mxu0 0
    %3630 = vmatprep.subr.bf16.mxu0 0
    %3631 = vmatpush1.bf16.msra.mxu0 0
    %3632 = vmatprep.subr.bf16.mxu0 0
    %3633 = vmatpush1.bf16.msra.mxu0 0
    %3634 = vmatprep.subr.bf16.mxu0 0
    %3635 = vmatpush1.bf16.msra.mxu0 0
    %3636 = vmatprep.subr.bf16.mxu0 0
    %3637 = vmatpush1.bf16.msra.mxu0 0
    %3638 = vmatprep.subr.bf16.mxu0 0
    %3639 = vmatpush1.bf16.msra.mxu0 0
    %3640 = vmatprep.subr.bf16.mxu0 0
    %3641 = vmatpush1.bf16.msra.mxu0 0
    %3642 = vmatprep.subr.bf16.mxu0 0
    %3643 = vmatpush1.bf16.msra.mxu0 0
    %3644 = vmatprep.subr.bf16.mxu0 0
    %3645 = vmatpush1.bf16.msra.mxu0 0
    %3646 = vmatprep.subr.bf16.mxu0 0
    %3647 = vmatpush1.bf16.msra.mxu0 0
    %3648 = vmatprep.subr.bf16.mxu0 0
    %3649 = vmatpush1.bf16.msra.mxu0 0
    %3650 = vmatprep.subr.bf16.mxu0 0
    %3651 = vmatpush1.bf16.msra.mxu0 0
    %3652 = vmatprep.subr.bf16.mxu0 0
    %3653 = vmatpush1.bf16.msra.mxu0 0
    %3654 = vmatprep.mubr.bf16.mxu0 0
    %3655 = vmatmul.mubr.bf16.gmra.mrb[0].mxu0 %v3617
    %v3656 = vpop.f32.mrb[0].mxu0
    %v3657 = vadd.f32 0.0, %v3656
    %v3658 = vpop.f32.mrb[0].mxu0
    %v3659 = vpop.f32.mrb[0].mxu0
    %v3660 = vpop.f32.mrb[0].mxu0
    %3661 = vdwg.mxu0
    %v3662 = vadd.f32 %v3594, %v3657
    %v3663 = vpack.c.bf16 %v1407, %v1407
    %s3664 = scalar_lea.vmem %s9, 48
    %v3665 = vld [vmem:[%s3664] sm:$0xf]
    %v3666 = vld [vmem:[%s3664 + $0x4] sm:$0xf]
    %v3667 = vld [vmem:[%s3664 + $0x8] sm:$0xf]
    %v3668 = vld [vmem:[%s3664 + $0xc] sm:$0x7]
    %v3673 = vunpack.c.l.b16 %v3665
    %v3674 = vunpack.c.l.b16 %v3666
    %v3675 = vunpack.c.l.b16 %v3667
    %v3676 = vunpack.c.l.b16 %v3668
    %v3677 = vpack.c.b16 %v3674, %v3673
    %v3678 = vpack.c.b16 %v3676, %v3675
    %v3681 = vsel %vm3494, %v3663, 0
    %v3684 = vsel %vm3498, %v3678, 0
    %3686 = vmatprep.subr.bf16.mxu0 0
    %3687 = vmatpush1.bf16.msra.mxu0 %v3677
    %3688 = vmatprep.subr.bf16.mxu0 0
    %3689 = vmatpush1.bf16.msra.mxu0 %v3684
    %3690 = vmatprep.subr.bf16.mxu0 0
    %3691 = vmatpush1.bf16.msra.mxu0 0
    %3692 = vmatprep.subr.bf16.mxu0 0
    %3693 = vmatpush1.bf16.msra.mxu0 0
    %3694 = vmatprep.subr.bf16.mxu0 0
    %3695 = vmatpush1.bf16.msra.mxu0 0
    %3696 = vmatprep.subr.bf16.mxu0 0
    %3697 = vmatpush1.bf16.msra.mxu0 0
    %3698 = vmatprep.subr.bf16.mxu0 0
    %3699 = vmatpush1.bf16.msra.mxu0 0
    %3700 = vmatprep.subr.bf16.mxu0 0
    %3701 = vmatpush1.bf16.msra.mxu0 0
    %3702 = vmatprep.subr.bf16.mxu0 0
    %3703 = vmatpush1.bf16.msra.mxu0 0
    %3704 = vmatprep.subr.bf16.mxu0 0
    %3705 = vmatpush1.bf16.msra.mxu0 0
    %3706 = vmatprep.subr.bf16.mxu0 0
    %3707 = vmatpush1.bf16.msra.mxu0 0
    %3708 = vmatprep.subr.bf16.mxu0 0
    %3709 = vmatpush1.bf16.msra.mxu0 0
    %3710 = vmatprep.subr.bf16.mxu0 0
    %3711 = vmatpush1.bf16.msra.mxu0 0
    %3712 = vmatprep.subr.bf16.mxu0 0
    %3713 = vmatpush1.bf16.msra.mxu0 0
    %3714 = vmatprep.subr.bf16.mxu0 0
    %3715 = vmatpush1.bf16.msra.mxu0 0
    %3716 = vmatprep.subr.bf16.mxu0 0
    %3717 = vmatpush1.bf16.msra.mxu0 0
    %3718 = vmatprep.mubr.bf16.mxu0 0
    %3719 = vmatmul.mubr.bf16.gmra.mrb[0].mxu0 %v3681
    %v3720 = vpop.f32.mrb[0].mxu0
    %v3721 = vadd.f32 0.0, %v3720
    %v3722 = vpop.f32.mrb[0].mxu0
    %v3723 = vpop.f32.mrb[0].mxu0
    %v3724 = vpop.f32.mrb[0].mxu0
    %3725 = vdwg.mxu0
    %v3726 = vadd.f32 %v3662, %v3721
    %v3727 = vpack.c.bf16 %v1579, %v1579
    %s3728 = scalar_lea.vmem %s9, 64
    %v3729 = vld [vmem:[%s3728] sm:$0xf]
    %v3730 = vld [vmem:[%s3728 + $0x4] sm:$0xf]
    %v3731 = vld [vmem:[%s3728 + $0x8] sm:$0xf]
    %v3732 = vld [vmem:[%s3728 + $0xc] sm:$0x7]
    %v3737 = vunpack.c.l.b16 %v3729
    %v3738 = vunpack.c.l.b16 %v3730
    %v3739 = vunpack.c.l.b16 %v3731
    %v3740 = vunpack.c.l.b16 %v3732
    %v3741 = vpack.c.b16 %v3738, %v3737
    %v3742 = vpack.c.b16 %v3740, %v3739
    %v3745 = vsel %vm3494, %v3727, 0
    %v3748 = vsel %vm3498, %v3742, 0
    %3750 = vmatprep.subr.bf16.mxu0 0
    %3751 = vmatpush1.bf16.msra.mxu0 %v3741
    %3752 = vmatprep.subr.bf16.mxu0 0
    %3753 = vmatpush1.bf16.msra.mxu0 %v3748
    %3754 = vmatprep.subr.bf16.mxu0 0
    %3755 = vmatpush1.bf16.msra.mxu0 0
    %3756 = vmatprep.subr.bf16.mxu0 0
    %3757 = vmatpush1.bf16.msra.mxu0 0
    %3758 = vmatprep.subr.bf16.mxu0 0
    %3759 = vmatpush1.bf16.msra.mxu0 0
    %3760 = vmatprep.subr.bf16.mxu0 0
    %3761 = vmatpush1.bf16.msra.mxu0 0
    %3762 = vmatprep.subr.bf16.mxu0 0
    %3763 = vmatpush1.bf16.msra.mxu0 0
    %3764 = vmatprep.subr.bf16.mxu0 0
    %3765 = vmatpush1.bf16.msra.mxu0 0
    %3766 = vmatprep.subr.bf16.mxu0 0
    %3767 = vmatpush1.bf16.msra.mxu0 0
    %3768 = vmatprep.subr.bf16.mxu0 0
    %3769 = vmatpush1.bf16.msra.mxu0 0
    %3770 = vmatprep.subr.bf16.mxu0 0
    %3771 = vmatpush1.bf16.msra.mxu0 0
    %3772 = vmatprep.subr.bf16.mxu0 0
    %3773 = vmatpush1.bf16.msra.mxu0 0
    %3774 = vmatprep.subr.bf16.mxu0 0
    %3775 = vmatpush1.bf16.msra.mxu0 0
    %3776 = vmatprep.subr.bf16.mxu0 0
    %3777 = vmatpush1.bf16.msra.mxu0 0
    %3778 = vmatprep.subr.bf16.mxu0 0
    %3779 = vmatpush1.bf16.msra.mxu0 0
    %3780 = vmatprep.subr.bf16.mxu0 0
    %3781 = vmatpush1.bf16.msra.mxu0 0
    %3782 = vmatprep.mubr.bf16.mxu0 0
    %3783 = vmatmul.mubr.bf16.gmra.mrb[0].mxu0 %v3745
    %v3784 = vpop.f32.mrb[0].mxu0
    %v3785 = vadd.f32 0.0, %v3784
    %v3786 = vpop.f32.mrb[0].mxu0
    %v3787 = vpop.f32.mrb[0].mxu0
    %v3788 = vpop.f32.mrb[0].mxu0
    %3789 = vdwg.mxu0
    %v3790 = vadd.f32 %v3726, %v3785
    %v3791 = vpack.c.bf16 %v1751, %v1751
    %s3792 = scalar_lea.vmem %s9, 80
    %v3793 = vld [vmem:[%s3792] sm:$0xf]
    %v3794 = vld [vmem:[%s3792 + $0x4] sm:$0xf]
    %v3795 = vld [vmem:[%s3792 + $0x8] sm:$0xf]
    %v3796 = vld [vmem:[%s3792 + $0xc] sm:$0x7]
    %v3801 = vunpack.c.l.b16 %v3793
    %v3802 = vunpack.c.l.b16 %v3794
    %v3803 = vunpack.c.l.b16 %v3795
    %v3804 = vunpack.c.l.b16 %v3796
    %v3805 = vpack.c.b16 %v3802, %v3801
    %v3806 = vpack.c.b16 %v3804, %v3803
    %v3809 = vsel %vm3494, %v3791, 0
    %v3812 = vsel %vm3498, %v3806, 0
    %3814 = vmatprep.subr.bf16.mxu0 0
    %3815 = vmatpush1.bf16.msra.mxu0 %v3805
    %3816 = vmatprep.subr.bf16.mxu0 0
    %3817 = vmatpush1.bf16.msra.mxu0 %v3812
    %3818 = vmatprep.subr.bf16.mxu0 0
    %3819 = vmatpush1.bf16.msra.mxu0 0
    %3820 = vmatprep.subr.bf16.mxu0 0
    %3821 = vmatpush1.bf16.msra.mxu0 0
    %3822 = vmatprep.subr.bf16.mxu0 0
    %3823 = vmatpush1.bf16.msra.mxu0 0
    %3824 = vmatprep.subr.bf16.mxu0 0
    %3825 = vmatpush1.bf16.msra.mxu0 0
    %3826 = vmatprep.subr.bf16.mxu0 0
    %3827 = vmatpush1.bf16.msra.mxu0 0
    %3828 = vmatprep.subr.bf16.mxu0 0
    %3829 = vmatpush1.bf16.msra.mxu0 0
    %3830 = vmatprep.subr.bf16.mxu0 0
    %3831 = vmatpush1.bf16.msra.mxu0 0
    %3832 = vmatprep.subr.bf16.mxu0 0
    %3833 = vmatpush1.bf16.msra.mxu0 0
    %3834 = vmatprep.subr.bf16.mxu0 0
    %3835 = vmatpush1.bf16.msra.mxu0 0
    %3836 = vmatprep.subr.bf16.mxu0 0
    %3837 = vmatpush1.bf16.msra.mxu0 0
    %3838 = vmatprep.subr.bf16.mxu0 0
    %3839 = vmatpush1.bf16.msra.mxu0 0
    %3840 = vmatprep.subr.bf16.mxu0 0
    %3841 = vmatpush1.bf16.msra.mxu0 0
    %3842 = vmatprep.subr.bf16.mxu0 0
    %3843 = vmatpush1.bf16.msra.mxu0 0
    %3844 = vmatprep.subr.bf16.mxu0 0
    %3845 = vmatpush1.bf16.msra.mxu0 0
    %3846 = vmatprep.mubr.bf16.mxu0 0
    %3847 = vmatmul.mubr.bf16.gmra.mrb[0].mxu0 %v3809
    %v3848 = vpop.f32.mrb[0].mxu0
    %v3849 = vadd.f32 0.0, %v3848
    %v3850 = vpop.f32.mrb[0].mxu0
    %v3851 = vpop.f32.mrb[0].mxu0
    %v3852 = vpop.f32.mrb[0].mxu0
    %3853 = vdwg.mxu0
    %v3854 = vadd.f32 %v3790, %v3849
    %v3855 = vpack.c.bf16 %v1923, %v1923
    %s3856 = scalar_lea.vmem %s9, 96
    %v3857 = vld [vmem:[%s3856] sm:$0xf]
    %v3858 = vld [vmem:[%s3856 + $0x4] sm:$0xf]
    %v3859 = vld [vmem:[%s3856 + $0x8] sm:$0xf]
    %v3860 = vld [vmem:[%s3856 + $0xc] sm:$0x7]
    %v3865 = vunpack.c.l.b16 %v3857
    %v3866 = vunpack.c.l.b16 %v3858
    %v3867 = vunpack.c.l.b16 %v3859
    %v3868 = vunpack.c.l.b16 %v3860
    %v3869 = vpack.c.b16 %v3866, %v3865
    %v3870 = vpack.c.b16 %v3868, %v3867
    %v3873 = vsel %vm3494, %v3855, 0
    %v3876 = vsel %vm3498, %v3870, 0
    %3878 = vmatprep.subr.bf16.mxu0 0
    %3879 = vmatpush1.bf16.msra.mxu0 %v3869
    %3880 = vmatprep.subr.bf16.mxu0 0
    %3881 = vmatpush1.bf16.msra.mxu0 %v3876
    %3882 = vmatprep.subr.bf16.mxu0 0
    %3883 = vmatpush1.bf16.msra.mxu0 0
    %3884 = vmatprep.subr.bf16.mxu0 0
    %3885 = vmatpush1.bf16.msra.mxu0 0
    %3886 = vmatprep.subr.bf16.mxu0 0
    %3887 = vmatpush1.bf16.msra.mxu0 0
    %3888 = vmatprep.subr.bf16.mxu0 0
    %3889 = vmatpush1.bf16.msra.mxu0 0
    %3890 = vmatprep.subr.bf16.mxu0 0
    %3891 = vmatpush1.bf16.msra.mxu0 0
    %3892 = vmatprep.subr.bf16.mxu0 0
    %3893 = vmatpush1.bf16.msra.mxu0 0
    %3894 = vmatprep.subr.bf16.mxu0 0
    %3895 = vmatpush1.bf16.msra.mxu0 0
    %3896 = vmatprep.subr.bf16.mxu0 0
    %3897 = vmatpush1.bf16.msra.mxu0 0
    %3898 = vmatprep.subr.bf16.mxu0 0
    %3899 = vmatpush1.bf16.msra.mxu0 0
    %3900 = vmatprep.subr.bf16.mxu0 0
    %3901 = vmatpush1.bf16.msra.mxu0 0
    %3902 = vmatprep.subr.bf16.mxu0 0
    %3903 = vmatpush1.bf16.msra.mxu0 0
    %3904 = vmatprep.subr.bf16.mxu0 0
    %3905 = vmatpush1.bf16.msra.mxu0 0
    %3906 = vmatprep.subr.bf16.mxu0 0
    %3907 = vmatpush1.bf16.msra.mxu0 0
    %3908 = vmatprep.subr.bf16.mxu0 0
    %3909 = vmatpush1.bf16.msra.mxu0 0
    %3910 = vmatprep.mubr.bf16.mxu0 0
    %3911 = vmatmul.mubr.bf16.gmra.mrb[0].mxu0 %v3873
    %v3912 = vpop.f32.mrb[0].mxu0
    %v3913 = vadd.f32 0.0, %v3912
    %v3914 = vpop.f32.mrb[0].mxu0
    %v3915 = vpop.f32.mrb[0].mxu0
    %v3916 = vpop.f32.mrb[0].mxu0
    %3917 = vdwg.mxu0
    %v3918 = vadd.f32 %v3854, %v3913
    %v3919 = vpack.c.bf16 %v2095, %v2095
    %s3920 = scalar_lea.vmem %s9, 112
    %v3921 = vld [vmem:[%s3920] sm:$0xf]
    %v3922 = vld [vmem:[%s3920 + $0x4] sm:$0xf]
    %v3923 = vld [vmem:[%s3920 + $0x8] sm:$0xf]
    %v3924 = vld [vmem:[%s3920 + $0xc] sm:$0x7]
    %v3929 = vunpack.c.l.b16 %v3921
    %v3930 = vunpack.c.l.b16 %v3922
    %v3931 = vunpack.c.l.b16 %v3923
    %v3932 = vunpack.c.l.b16 %v3924
    %v3933 = vpack.c.b16 %v3930, %v3929
    %v3934 = vpack.c.b16 %v3932, %v3931
    %v3937 = vsel %vm3494, %v3919, 0
    %v3940 = vsel %vm3498, %v3934, 0
    %3942 = vmatprep.subr.bf16.mxu0 0
    %3943 = vmatpush1.bf16.msra.mxu0 %v3933
    %3944 = vmatprep.subr.bf16.mxu0 0
    %3945 = vmatpush1.bf16.msra.mxu0 %v3940
    %3946 = vmatprep.subr.bf16.mxu0 0
    %3947 = vmatpush1.bf16.msra.mxu0 0
    %3948 = vmatprep.subr.bf16.mxu0 0
    %3949 = vmatpush1.bf16.msra.mxu0 0
    %3950 = vmatprep.subr.bf16.mxu0 0
    %3951 = vmatpush1.bf16.msra.mxu0 0
    %3952 = vmatprep.subr.bf16.mxu0 0
    %3953 = vmatpush1.bf16.msra.mxu0 0
    %3954 = vmatprep.subr.bf16.mxu0 0
    %3955 = vmatpush1.bf16.msra.mxu0 0
    %3956 = vmatprep.subr.bf16.mxu0 0
    %3957 = vmatpush1.bf16.msra.mxu0 0
    %3958 = vmatprep.subr.bf16.mxu0 0
    %3959 = vmatpush1.bf16.msra.mxu0 0
    %3960 = vmatprep.subr.bf16.mxu0 0
    %3961 = vmatpush1.bf16.msra.mxu0 0
    %3962 = vmatprep.subr.bf16.mxu0 0
    %3963 = vmatpush1.bf16.msra.mxu0 0
    %3964 = vmatprep.subr.bf16.mxu0 0
    %3965 = vmatpush1.bf16.msra.mxu0 0
    %3966 = vmatprep.subr.bf16.mxu0 0
    %3967 = vmatpush1.bf16.msra.mxu0 0
    %3968 = vmatprep.subr.bf16.mxu0 0
    %3969 = vmatpush1.bf16.msra.mxu0 0
    %3970 = vmatprep.subr.bf16.mxu0 0
    %3971 = vmatpush1.bf16.msra.mxu0 0
    %3972 = vmatprep.subr.bf16.mxu0 0
    %3973 = vmatpush1.bf16.msra.mxu0 0
    %3974 = vmatprep.mubr.bf16.mxu0 0
    %3975 = vmatmul.mubr.bf16.gmra.mrb[0].mxu0 %v3937
    %v3976 = vpop.f32.mrb[0].mxu0
    %v3977 = vadd.f32 0.0, %v3976
    %v3978 = vpop.f32.mrb[0].mxu0
    %v3979 = vpop.f32.mrb[0].mxu0
    %v3980 = vpop.f32.mrb[0].mxu0
    %3981 = vdwg.mxu0
    %v3982 = vadd.f32 %v3918, %v3977
    %v3983 = vpack.c.bf16 %v2267, %v2267
    %s3984 = scalar_lea.vmem %s9, 128
    %v3985 = vld [vmem:[%s3984] sm:$0xf]
    %v3986 = vld [vmem:[%s3984 + $0x4] sm:$0xf]
    %v3987 = vld [vmem:[%s3984 + $0x8] sm:$0xf]
    %v3988 = vld [vmem:[%s3984 + $0xc] sm:$0x7]
    %v3993 = vunpack.c.l.b16 %v3985
    %v3994 = vunpack.c.l.b16 %v3986
    %v3995 = vunpack.c.l.b16 %v3987
    %v3996 = vunpack.c.l.b16 %v3988
    %v3997 = vpack.c.b16 %v3994, %v3993
    %v3998 = vpack.c.b16 %v3996, %v3995
    %v4001 = vsel %vm3494, %v3983, 0
    %v4004 = vsel %vm3498, %v3998, 0
    %4006 = vmatprep.subr.bf16.mxu0 0
    %4007 = vmatpush1.bf16.msra.mxu0 %v3997
    %4008 = vmatprep.subr.bf16.mxu0 0
    %4009 = vmatpush1.bf16.msra.mxu0 %v4004
    %4010 = vmatprep.subr.bf16.mxu0 0
    %4011 = vmatpush1.bf16.msra.mxu0 0
    %4012 = vmatprep.subr.bf16.mxu0 0
    %4013 = vmatpush1.bf16.msra.mxu0 0
    %4014 = vmatprep.subr.bf16.mxu0 0
    %4015 = vmatpush1.bf16.msra.mxu0 0
    %4016 = vmatprep.subr.bf16.mxu0 0
    %4017 = vmatpush1.bf16.msra.mxu0 0
    %4018 = vmatprep.subr.bf16.mxu0 0
    %4019 = vmatpush1.bf16.msra.mxu0 0
    %4020 = vmatprep.subr.bf16.mxu0 0
    %4021 = vmatpush1.bf16.msra.mxu0 0
    %4022 = vmatprep.subr.bf16.mxu0 0
    %4023 = vmatpush1.bf16.msra.mxu0 0
    %4024 = vmatprep.subr.bf16.mxu0 0
    %4025 = vmatpush1.bf16.msra.mxu0 0
    %4026 = vmatprep.subr.bf16.mxu0 0
    %4027 = vmatpush1.bf16.msra.mxu0 0
    %4028 = vmatprep.subr.bf16.mxu0 0
    %4029 = vmatpush1.bf16.msra.mxu0 0
    %4030 = vmatprep.subr.bf16.mxu0 0
    %4031 = vmatpush1.bf16.msra.mxu0 0
    %4032 = vmatprep.subr.bf16.mxu0 0
    %4033 = vmatpush1.bf16.msra.mxu0 0
    %4034 = vmatprep.subr.bf16.mxu0 0
    %4035 = vmatpush1.bf16.msra.mxu0 0
    %4036 = vmatprep.subr.bf16.mxu0 0
    %4037 = vmatpush1.bf16.msra.mxu0 0
    %4038 = vmatprep.mubr.bf16.mxu0 0
    %4039 = vmatmul.mubr.bf16.gmra.mrb[0].mxu0 %v4001
    %v4040 = vpop.f32.mrb[0].mxu0
    %v4041 = vadd.f32 0.0, %v4040
    %v4042 = vpop.f32.mrb[0].mxu0
    %v4043 = vpop.f32.mrb[0].mxu0
    %v4044 = vpop.f32.mrb[0].mxu0
    %4045 = vdwg.mxu0
    %v4046 = vadd.f32 %v3982, %v4041
    %v4047 = vpack.c.bf16 %v2439, %v2439
    %s4048 = scalar_lea.vmem %s9, 144
    %v4049 = vld [vmem:[%s4048] sm:$0xf]
    %v4050 = vld [vmem:[%s4048 + $0x4] sm:$0xf]
    %v4051 = vld [vmem:[%s4048 + $0x8] sm:$0xf]
    %v4052 = vld [vmem:[%s4048 + $0xc] sm:$0x7]
    %v4057 = vunpack.c.l.b16 %v4049
    %v4058 = vunpack.c.l.b16 %v4050
    %v4059 = vunpack.c.l.b16 %v4051
    %v4060 = vunpack.c.l.b16 %v4052
    %v4061 = vpack.c.b16 %v4058, %v4057
    %v4062 = vpack.c.b16 %v4060, %v4059
    %v4065 = vsel %vm3494, %v4047, 0
    %v4068 = vsel %vm3498, %v4062, 0
    %4070 = vmatprep.subr.bf16.mxu0 0
    %4071 = vmatpush1.bf16.msra.mxu0 %v4061
    %4072 = vmatprep.subr.bf16.mxu0 0
    %4073 = vmatpush1.bf16.msra.mxu0 %v4068
    %4074 = vmatprep.subr.bf16.mxu0 0
    %4075 = vmatpush1.bf16.msra.mxu0 0
    %4076 = vmatprep.subr.bf16.mxu0 0
    %4077 = vmatpush1.bf16.msra.mxu0 0
    %4078 = vmatprep.subr.bf16.mxu0 0
    %4079 = vmatpush1.bf16.msra.mxu0 0
    %4080 = vmatprep.subr.bf16.mxu0 0
    %4081 = vmatpush1.bf16.msra.mxu0 0
    %4082 = vmatprep.subr.bf16.mxu0 0
    %4083 = vmatpush1.bf16.msra.mxu0 0
    %4084 = vmatprep.subr.bf16.mxu0 0
    %4085 = vmatpush1.bf16.msra.mxu0 0
    %4086 = vmatprep.subr.bf16.mxu0 0
    %4087 = vmatpush1.bf16.msra.mxu0 0
    %4088 = vmatprep.subr.bf16.mxu0 0
    %4089 = vmatpush1.bf16.msra.mxu0 0
    %4090 = vmatprep.subr.bf16.mxu0 0
    %4091 = vmatpush1.bf16.msra.mxu0 0
    %4092 = vmatprep.subr.bf16.mxu0 0
    %4093 = vmatpush1.bf16.msra.mxu0 0
    %4094 = vmatprep.subr.bf16.mxu0 0
    %4095 = vmatpush1.bf16.msra.mxu0 0
    %4096 = vmatprep.subr.bf16.mxu0 0
    %4097 = vmatpush1.bf16.msra.mxu0 0
    %4098 = vmatprep.subr.bf16.mxu0 0
    %4099 = vmatpush1.bf16.msra.mxu0 0
    %4100 = vmatprep.subr.bf16.mxu0 0
    %4101 = vmatpush1.bf16.msra.mxu0 0
    %4102 = vmatprep.mubr.bf16.mxu0 0
    %4103 = vmatmul.mubr.bf16.gmra.mrb[0].mxu0 %v4065
    %v4104 = vpop.f32.mrb[0].mxu0
    %v4105 = vadd.f32 0.0, %v4104
    %v4106 = vpop.f32.mrb[0].mxu0
    %v4107 = vpop.f32.mrb[0].mxu0
    %v4108 = vpop.f32.mrb[0].mxu0
    %4109 = vdwg.mxu0
    %v4110 = vadd.f32 %v4046, %v4105
    %v4111 = vpack.c.bf16 %v2611, %v2611
    %s4112 = scalar_lea.vmem %s9, 160
    %v4113 = vld [vmem:[%s4112] sm:$0xf]
    %v4114 = vld [vmem:[%s4112 + $0x4] sm:$0xf]
    %v4115 = vld [vmem:[%s4112 + $0x8] sm:$0xf]
    %v4116 = vld [vmem:[%s4112 + $0xc] sm:$0x7]
    %v4121 = vunpack.c.l.b16 %v4113
    %v4122 = vunpack.c.l.b16 %v4114
    %v4123 = vunpack.c.l.b16 %v4115
    %v4124 = vunpack.c.l.b16 %v4116
    %v4125 = vpack.c.b16 %v4122, %v4121
    %v4126 = vpack.c.b16 %v4124, %v4123
    %v4129 = vsel %vm3494, %v4111, 0
    %v4132 = vsel %vm3498, %v4126, 0
    %4134 = vmatprep.subr.bf16.mxu0 0
    %4135 = vmatpush1.bf16.msra.mxu0 %v4125
    %4136 = vmatprep.subr.bf16.mxu0 0
    %4137 = vmatpush1.bf16.msra.mxu0 %v4132
    %4138 = vmatprep.subr.bf16.mxu0 0
    %4139 = vmatpush1.bf16.msra.mxu0 0
    %4140 = vmatprep.subr.bf16.mxu0 0
    %4141 = vmatpush1.bf16.msra.mxu0 0
    %4142 = vmatprep.subr.bf16.mxu0 0
    %4143 = vmatpush1.bf16.msra.mxu0 0
    %4144 = vmatprep.subr.bf16.mxu0 0
    %4145 = vmatpush1.bf16.msra.mxu0 0
    %4146 = vmatprep.subr.bf16.mxu0 0
    %4147 = vmatpush1.bf16.msra.mxu0 0
    %4148 = vmatprep.subr.bf16.mxu0 0
    %4149 = vmatpush1.bf16.msra.mxu0 0
    %4150 = vmatprep.subr.bf16.mxu0 0
    %4151 = vmatpush1.bf16.msra.mxu0 0
    %4152 = vmatprep.subr.bf16.mxu0 0
    %4153 = vmatpush1.bf16.msra.mxu0 0
    %4154 = vmatprep.subr.bf16.mxu0 0
    %4155 = vmatpush1.bf16.msra.mxu0 0
    %4156 = vmatprep.subr.bf16.mxu0 0
    %4157 = vmatpush1.bf16.msra.mxu0 0
    %4158 = vmatprep.subr.bf16.mxu0 0
    %4159 = vmatpush1.bf16.msra.mxu0 0
    %4160 = vmatprep.subr.bf16.mxu0 0
    %4161 = vmatpush1.bf16.msra.mxu0 0
    %4162 = vmatprep.subr.bf16.mxu0 0
    %4163 = vmatpush1.bf16.msra.mxu0 0
    %4164 = vmatprep.subr.bf16.mxu0 0
    %4165 = vmatpush1.bf16.msra.mxu0 0
    %4166 = vmatprep.mubr.bf16.mxu0 0
    %4167 = vmatmul.mubr.bf16.gmra.mrb[0].mxu0 %v4129
    %v4168 = vpop.f32.mrb[0].mxu0
    %v4169 = vadd.f32 0.0, %v4168
    %v4170 = vpop.f32.mrb[0].mxu0
    %v4171 = vpop.f32.mrb[0].mxu0
    %v4172 = vpop.f32.mrb[0].mxu0
    %4173 = vdwg.mxu0
    %v4174 = vadd.f32 %v4110, %v4169
    %v4175 = vpack.c.bf16 %v2783, %v2783
    %s4176 = scalar_lea.vmem %s9, 176
    %v4177 = vld [vmem:[%s4176] sm:$0xf]
    %v4178 = vld [vmem:[%s4176 + $0x4] sm:$0xf]
    %v4179 = vld [vmem:[%s4176 + $0x8] sm:$0xf]
    %v4180 = vld [vmem:[%s4176 + $0xc] sm:$0x7]
    %v4185 = vunpack.c.l.b16 %v4177
    %v4186 = vunpack.c.l.b16 %v4178
    %v4187 = vunpack.c.l.b16 %v4179
    %v4188 = vunpack.c.l.b16 %v4180
    %v4189 = vpack.c.b16 %v4186, %v4185
    %v4190 = vpack.c.b16 %v4188, %v4187
    %v4193 = vsel %vm3494, %v4175, 0
    %v4196 = vsel %vm3498, %v4190, 0
    %4198 = vmatprep.subr.bf16.mxu0 0
    %4199 = vmatpush1.bf16.msra.mxu0 %v4189
    %4200 = vmatprep.subr.bf16.mxu0 0
    %4201 = vmatpush1.bf16.msra.mxu0 %v4196
    %4202 = vmatprep.subr.bf16.mxu0 0
    %4203 = vmatpush1.bf16.msra.mxu0 0
    %4204 = vmatprep.subr.bf16.mxu0 0
    %4205 = vmatpush1.bf16.msra.mxu0 0
    %4206 = vmatprep.subr.bf16.mxu0 0
    %4207 = vmatpush1.bf16.msra.mxu0 0
    %4208 = vmatprep.subr.bf16.mxu0 0
    %4209 = vmatpush1.bf16.msra.mxu0 0
    %4210 = vmatprep.subr.bf16.mxu0 0
    %4211 = vmatpush1.bf16.msra.mxu0 0
    %4212 = vmatprep.subr.bf16.mxu0 0
    %4213 = vmatpush1.bf16.msra.mxu0 0
    %4214 = vmatprep.subr.bf16.mxu0 0
    %4215 = vmatpush1.bf16.msra.mxu0 0
    %4216 = vmatprep.subr.bf16.mxu0 0
    %4217 = vmatpush1.bf16.msra.mxu0 0
    %4218 = vmatprep.subr.bf16.mxu0 0
    %4219 = vmatpush1.bf16.msra.mxu0 0
    %4220 = vmatprep.subr.bf16.mxu0 0
    %4221 = vmatpush1.bf16.msra.mxu0 0
    %4222 = vmatprep.subr.bf16.mxu0 0
    %4223 = vmatpush1.bf16.msra.mxu0 0
    %4224 = vmatprep.subr.bf16.mxu0 0
    %4225 = vmatpush1.bf16.msra.mxu0 0
    %4226 = vmatprep.subr.bf16.mxu0 0
    %4227 = vmatpush1.bf16.msra.mxu0 0
    %4228 = vmatprep.subr.bf16.mxu0 0
    %4229 = vmatpush1.bf16.msra.mxu0 0
    %4230 = vmatprep.mubr.bf16.mxu0 0
    %4231 = vmatmul.mubr.bf16.gmra.mrb[0].mxu0 %v4193
    %v4232 = vpop.f32.mrb[0].mxu0
    %v4233 = vadd.f32 0.0, %v4232
    %v4234 = vpop.f32.mrb[0].mxu0
    %v4235 = vpop.f32.mrb[0].mxu0
    %v4236 = vpop.f32.mrb[0].mxu0
    %4237 = vdwg.mxu0
    %v4238 = vadd.f32 %v4174, %v4233
    %v4239 = vpack.c.bf16 %v2955, %v2955
    %s4240 = scalar_lea.vmem %s9, 192
    %v4241 = vld [vmem:[%s4240] sm:$0xf]
    %v4242 = vld [vmem:[%s4240 + $0x4] sm:$0xf]
    %v4243 = vld [vmem:[%s4240 + $0x8] sm:$0xf]
    %v4244 = vld [vmem:[%s4240 + $0xc] sm:$0x7]
    %v4249 = vunpack.c.l.b16 %v4241
    %v4250 = vunpack.c.l.b16 %v4242
    %v4251 = vunpack.c.l.b16 %v4243
    %v4252 = vunpack.c.l.b16 %v4244
    %v4253 = vpack.c.b16 %v4250, %v4249
    %v4254 = vpack.c.b16 %v4252, %v4251
    %v4257 = vsel %vm3494, %v4239, 0
    %v4260 = vsel %vm3498, %v4254, 0
    %4262 = vmatprep.subr.bf16.mxu0 0
    %4263 = vmatpush1.bf16.msra.mxu0 %v4253
    %4264 = vmatprep.subr.bf16.mxu0 0
    %4265 = vmatpush1.bf16.msra.mxu0 %v4260
    %4266 = vmatprep.subr.bf16.mxu0 0
    %4267 = vmatpush1.bf16.msra.mxu0 0
    %4268 = vmatprep.subr.bf16.mxu0 0
    %4269 = vmatpush1.bf16.msra.mxu0 0
    %4270 = vmatprep.subr.bf16.mxu0 0
    %4271 = vmatpush1.bf16.msra.mxu0 0
    %4272 = vmatprep.subr.bf16.mxu0 0
    %4273 = vmatpush1.bf16.msra.mxu0 0
    %4274 = vmatprep.subr.bf16.mxu0 0
    %4275 = vmatpush1.bf16.msra.mxu0 0
    %4276 = vmatprep.subr.bf16.mxu0 0
    %4277 = vmatpush1.bf16.msra.mxu0 0
    %4278 = vmatprep.subr.bf16.mxu0 0
    %4279 = vmatpush1.bf16.msra.mxu0 0
    %4280 = vmatprep.subr.bf16.mxu0 0
    %4281 = vmatpush1.bf16.msra.mxu0 0
    %4282 = vmatprep.subr.bf16.mxu0 0
    %4283 = vmatpush1.bf16.msra.mxu0 0
    %4284 = vmatprep.subr.bf16.mxu0 0
    %4285 = vmatpush1.bf16.msra.mxu0 0
    %4286 = vmatprep.subr.bf16.mxu0 0
    %4287 = vmatpush1.bf16.msra.mxu0 0
    %4288 = vmatprep.subr.bf16.mxu0 0
    %4289 = vmatpush1.bf16.msra.mxu0 0
    %4290 = vmatprep.subr.bf16.mxu0 0
    %4291 = vmatpush1.bf16.msra.mxu0 0
    %4292 = vmatprep.subr.bf16.mxu0 0
    %4293 = vmatpush1.bf16.msra.mxu0 0
    %4294 = vmatprep.mubr.bf16.mxu0 0
    %4295 = vmatmul.mubr.bf16.gmra.mrb[0].mxu0 %v4257
    %v4296 = vpop.f32.mrb[0].mxu0
    %v4297 = vadd.f32 0.0, %v4296
    %v4298 = vpop.f32.mrb[0].mxu0
    %v4299 = vpop.f32.mrb[0].mxu0
    %v4300 = vpop.f32.mrb[0].mxu0
    %4301 = vdwg.mxu0
    %v4302 = vadd.f32 %v4238, %v4297
    %v4303 = vpack.c.bf16 %v3127, %v3127
    %s4304 = scalar_lea.vmem %s9, 208
    %v4305 = vld [vmem:[%s4304] sm:$0xf]
    %v4306 = vld [vmem:[%s4304 + $0x4] sm:$0xf]
    %v4307 = vld [vmem:[%s4304 + $0x8] sm:$0xf]
    %v4308 = vld [vmem:[%s4304 + $0xc] sm:$0x7]
    %v4313 = vunpack.c.l.b16 %v4305
    %v4314 = vunpack.c.l.b16 %v4306
    %v4315 = vunpack.c.l.b16 %v4307
    %v4316 = vunpack.c.l.b16 %v4308
    %v4317 = vpack.c.b16 %v4314, %v4313
    %v4318 = vpack.c.b16 %v4316, %v4315
    %v4321 = vsel %vm3494, %v4303, 0
    %v4324 = vsel %vm3498, %v4318, 0
    %4326 = vmatprep.subr.bf16.mxu0 0
    %4327 = vmatpush1.bf16.msra.mxu0 %v4317
    %4328 = vmatprep.subr.bf16.mxu0 0
    %4329 = vmatpush1.bf16.msra.mxu0 %v4324
    %4330 = vmatprep.subr.bf16.mxu0 0
    %4331 = vmatpush1.bf16.msra.mxu0 0
    %4332 = vmatprep.subr.bf16.mxu0 0
    %4333 = vmatpush1.bf16.msra.mxu0 0
    %4334 = vmatprep.subr.bf16.mxu0 0
    %4335 = vmatpush1.bf16.msra.mxu0 0
    %4336 = vmatprep.subr.bf16.mxu0 0
    %4337 = vmatpush1.bf16.msra.mxu0 0
    %4338 = vmatprep.subr.bf16.mxu0 0
    %4339 = vmatpush1.bf16.msra.mxu0 0
    %4340 = vmatprep.subr.bf16.mxu0 0
    %4341 = vmatpush1.bf16.msra.mxu0 0
    %4342 = vmatprep.subr.bf16.mxu0 0
    %4343 = vmatpush1.bf16.msra.mxu0 0
    %4344 = vmatprep.subr.bf16.mxu0 0
    %4345 = vmatpush1.bf16.msra.mxu0 0
    %4346 = vmatprep.subr.bf16.mxu0 0
    %4347 = vmatpush1.bf16.msra.mxu0 0
    %4348 = vmatprep.subr.bf16.mxu0 0
    %4349 = vmatpush1.bf16.msra.mxu0 0
    %4350 = vmatprep.subr.bf16.mxu0 0
    %4351 = vmatpush1.bf16.msra.mxu0 0
    %4352 = vmatprep.subr.bf16.mxu0 0
    %4353 = vmatpush1.bf16.msra.mxu0 0
    %4354 = vmatprep.subr.bf16.mxu0 0
    %4355 = vmatpush1.bf16.msra.mxu0 0
    %4356 = vmatprep.subr.bf16.mxu0 0
    %4357 = vmatpush1.bf16.msra.mxu0 0
    %4358 = vmatprep.mubr.bf16.mxu0 0
    %4359 = vmatmul.mubr.bf16.gmra.mrb[0].mxu0 %v4321
    %v4360 = vpop.f32.mrb[0].mxu0
    %v4361 = vadd.f32 0.0, %v4360
    %v4362 = vpop.f32.mrb[0].mxu0
    %v4363 = vpop.f32.mrb[0].mxu0
    %v4364 = vpop.f32.mrb[0].mxu0
    %4365 = vdwg.mxu0
    %v4366 = vadd.f32 %v4302, %v4361
    %v4367 = vpack.c.bf16 %v3299, %v3299
    %s4368 = scalar_lea.vmem %s9, 224
    %v4369 = vld [vmem:[%s4368] sm:$0xf]
    %v4370 = vld [vmem:[%s4368 + $0x4] sm:$0xf]
    %v4371 = vld [vmem:[%s4368 + $0x8] sm:$0xf]
    %v4372 = vld [vmem:[%s4368 + $0xc] sm:$0x7]
    %v4377 = vunpack.c.l.b16 %v4369
    %v4378 = vunpack.c.l.b16 %v4370
    %v4379 = vunpack.c.l.b16 %v4371
    %v4380 = vunpack.c.l.b16 %v4372
    %v4381 = vpack.c.b16 %v4378, %v4377
    %v4382 = vpack.c.b16 %v4380, %v4379
    %v4385 = vsel %vm3494, %v4367, 0
    %v4388 = vsel %vm3498, %v4382, 0
    %4390 = vmatprep.subr.bf16.mxu0 0
    %4391 = vmatpush1.bf16.msra.mxu0 %v4381
    %4392 = vmatprep.subr.bf16.mxu0 0
    %4393 = vmatpush1.bf16.msra.mxu0 %v4388
    %4394 = vmatprep.subr.bf16.mxu0 0
    %4395 = vmatpush1.bf16.msra.mxu0 0
    %4396 = vmatprep.subr.bf16.mxu0 0
    %4397 = vmatpush1.bf16.msra.mxu0 0
    %4398 = vmatprep.subr.bf16.mxu0 0
    %4399 = vmatpush1.bf16.msra.mxu0 0
    %4400 = vmatprep.subr.bf16.mxu0 0
    %4401 = vmatpush1.bf16.msra.mxu0 0
    %4402 = vmatprep.subr.bf16.mxu0 0
    %4403 = vmatpush1.bf16.msra.mxu0 0
    %4404 = vmatprep.subr.bf16.mxu0 0
    %4405 = vmatpush1.bf16.msra.mxu0 0
    %4406 = vmatprep.subr.bf16.mxu0 0
    %4407 = vmatpush1.bf16.msra.mxu0 0
    %4408 = vmatprep.subr.bf16.mxu0 0
    %4409 = vmatpush1.bf16.msra.mxu0 0
    %4410 = vmatprep.subr.bf16.mxu0 0
    %4411 = vmatpush1.bf16.msra.mxu0 0
    %4412 = vmatprep.subr.bf16.mxu0 0
    %4413 = vmatpush1.bf16.msra.mxu0 0
    %4414 = vmatprep.subr.bf16.mxu0 0
    %4415 = vmatpush1.bf16.msra.mxu0 0
    %4416 = vmatprep.subr.bf16.mxu0 0
    %4417 = vmatpush1.bf16.msra.mxu0 0
    %4418 = vmatprep.subr.bf16.mxu0 0
    %4419 = vmatpush1.bf16.msra.mxu0 0
    %4420 = vmatprep.subr.bf16.mxu0 0
    %4421 = vmatpush1.bf16.msra.mxu0 0
    %4422 = vmatprep.mubr.bf16.mxu0 0
    %4423 = vmatmul.mubr.bf16.gmra.mrb[0].mxu0 %v4385
    %v4424 = vpop.f32.mrb[0].mxu0
    %v4425 = vadd.f32 0.0, %v4424
    %v4426 = vpop.f32.mrb[0].mxu0
    %v4427 = vpop.f32.mrb[0].mxu0
    %v4428 = vpop.f32.mrb[0].mxu0
    %4429 = vdwg.mxu0
    %v4430 = vadd.f32 %v4366, %v4425
    %v4431 = vpack.c.bf16 %v3471, %v3471
    %s4432 = scalar_lea.vmem %s9, 240
    %v4433 = vld [vmem:[%s4432] sm:$0xf]
    %v4434 = vld [vmem:[%s4432 + $0x4] sm:$0xf]
    %v4435 = vld [vmem:[%s4432 + $0x8] sm:$0xf]
    %v4436 = vld [vmem:[%s4432 + $0xc] sm:$0x7]
    %v4441 = vunpack.c.l.b16 %v4433
    %v4442 = vunpack.c.l.b16 %v4434
    %v4443 = vunpack.c.l.b16 %v4435
    %v4444 = vunpack.c.l.b16 %v4436
    %v4445 = vpack.c.b16 %v4442, %v4441
    %v4446 = vpack.c.b16 %v4444, %v4443
    %v4449 = vsel %vm3494, %v4431, 0
    %v4452 = vsel %vm3498, %v4446, 0
    %4454 = vmatprep.subr.bf16.mxu0 0
    %4455 = vmatpush1.bf16.msra.mxu0 %v4445
    %4456 = vmatprep.subr.bf16.mxu0 0
    %4457 = vmatpush1.bf16.msra.mxu0 %v4452
    %4458 = vmatprep.subr.bf16.mxu0 0
    %4459 = vmatpush1.bf16.msra.mxu0 0
    %4460 = vmatprep.subr.bf16.mxu0 0
    %4461 = vmatpush1.bf16.msra.mxu0 0
    %4462 = vmatprep.subr.bf16.mxu0 0
    %4463 = vmatpush1.bf16.msra.mxu0 0
    %4464 = vmatprep.subr.bf16.mxu0 0
    %4465 = vmatpush1.bf16.msra.mxu0 0
    %4466 = vmatprep.subr.bf16.mxu0 0
    %4467 = vmatpush1.bf16.msra.mxu0 0
    %4468 = vmatprep.subr.bf16.mxu0 0
    %4469 = vmatpush1.bf16.msra.mxu0 0
    %4470 = vmatprep.subr.bf16.mxu0 0
    %4471 = vmatpush1.bf16.msra.mxu0 0
    %4472 = vmatprep.subr.bf16.mxu0 0
    %4473 = vmatpush1.bf16.msra.mxu0 0
    %4474 = vmatprep.subr.bf16.mxu0 0
    %4475 = vmatpush1.bf16.msra.mxu0 0
    %4476 = vmatprep.subr.bf16.mxu0 0
    %4477 = vmatpush1.bf16.msra.mxu0 0
    %4478 = vmatprep.subr.bf16.mxu0 0
    %4479 = vmatpush1.bf16.msra.mxu0 0
    %4480 = vmatprep.subr.bf16.mxu0 0
    %4481 = vmatpush1.bf16.msra.mxu0 0
    %4482 = vmatprep.subr.bf16.mxu0 0
    %4483 = vmatpush1.bf16.msra.mxu0 0
    %4484 = vmatprep.subr.bf16.mxu0 0
    %4485 = vmatpush1.bf16.msra.mxu0 0
    %4486 = vmatprep.mubr.bf16.mxu0 0
    %4487 = vmatmul.mubr.bf16.gmra.mrb[0].mxu0 %v4449
    %v4488 = vpop.f32.mrb[0].mxu0
    %v4489 = vadd.f32 0.0, %v4488
    %v4490 = vpop.f32.mrb[0].mxu0
    %v4491 = vpop.f32.mrb[0].mxu0
    %v4492 = vpop.f32.mrb[0].mxu0
    %4493 = vdwg.mxu0
    %v4494 = vadd.f32 %v4430, %v4489
    %v4495 = vld [vmem:[%s10] sm:$0x1]
    %v4497 = vlaneseq
    %v4498 = vshrl.u32 %v4497, 7
    %v4499 = vsub.s32 0, %v4498
    %v4500 = vrot.slane %v4495, %v4499
    %v4502 = vadd.f32 %v4494, %v4500
    %v4503 = vmul.f32 %v4502, 0.01
    %v4504 = vmax.f32 %v4502, %v4503
    %vm4505 = vcmask 125952
    %v4506 = vsel %vm4505, %v4504, 0.0
    %v4507 = vrot.slane %v4506, 4
    %v4508 = vadd.f32 %v4506, %v4507
    %v4509 = vrot.slane %v4508, 2
    %v4510 = vadd.f32 %v4508, %v4509
    %v4511 = vrot.slane %v4510, 1
    %v4512 = vadd.f32 %v4510, %v4511
    %v4513 = vmul.f32 %v4512, %v200
    %v4514 = vmul.f32 %v4504, %v4504
    %v4515 = vsel %vm4505, %v4514, 0.0
    %v4516 = vrot.slane %v4515, 4
    %v4517 = vadd.f32 %v4515, %v4516
    %v4518 = vrot.slane %v4517, 2
    %v4519 = vadd.f32 %v4517, %v4518
    %v4520 = vrot.slane %v4519, 1
    %v4521 = vadd.f32 %v4519, %v4520
    %v4522 = vmul.f32 %v4521, %v200
    %v4523 = vmul.f32 %v4513, %v4513
    %v4524 = vsub.f32 %v4522, %v4523
    %v4525 = vmax.f32 %v4524, 0.0
    %v4526 = vld [vmem:[%s11] sm:$0x1]
    %v4527 = vadd.f32 %v4525, 1e-05
    %v4528 = vrsqrt.pop %v4527
    %v4529 = vmul.f32 %v4526, %v4528
    %v4530 = vld [vmem:[%s12] sm:$0x1]
    %v4531 = vmul.f32 %v4513, %v4529
    %v4532 = vsub.f32 %v4530, %v4531
    %v4534 = vlaneseq
    %v4535 = vshrl.u32 %v4534, 7
    %v4536 = vsub.s32 0, %v4535
    %v4537 = vrot.slane %v4529, %v4536
    %v4539 = vmul.f32 %v4504, %v4537
    %v4541 = vlaneseq
    %v4542 = vshrl.u32 %v4541, 7
    %v4543 = vsub.s32 0, %v4542
    %v4544 = vrot.slane %v4532, %v4543
    %v4546 = vadd.f32 %v4539, %v4544
    %v4547 = vpack.c.bf16 %v4546, %v4546
    %v4548 = vld [vmem:[%s13] sm:$0xf]
    %v4549 = vld [vmem:[%s13 + $0x4] sm:$0xf]
    %v4550 = vld [vmem:[%s14] sm:$0x1]
    %v4552 = vlaneseq
    %v4553 = vshrl.u32 %v4552, 7
    %v4554 = vsub.s32 0, %v4553
    %v4555 = vrot.slane %v4550, %v4554
    %v4559 = vunpack.c.l.b16 %v4548
    %v4560 = vunpack.c.l.b16 %v4549
    %v4561 = vpack.c.b16 %v4560, %v4559
    %vm4563 = vcmask 130048
    %v4565 = vsel %vm4563, %v4547, 0
    %4567 = vmatprep.subr.bf16.mxu0 0
    %4568 = vmatpush1.bf16.msra.mxu0 %v4561
    %4569 = vmatprep.subr.bf16.mxu0 0
    %4570 = vmatpush1.bf16.msra.mxu0 0
    %4571 = vmatprep.subr.bf16.mxu0 0
    %4572 = vmatpush1.bf16.msra.mxu0 0
    %4573 = vmatprep.subr.bf16.mxu0 0
    %4574 = vmatpush1.bf16.msra.mxu0 0
    %4575 = vmatprep.subr.bf16.mxu0 0
    %4576 = vmatpush1.bf16.msra.mxu0 0
    %4577 = vmatprep.subr.bf16.mxu0 0
    %4578 = vmatpush1.bf16.msra.mxu0 0
    %4579 = vmatprep.subr.bf16.mxu0 0
    %4580 = vmatpush1.bf16.msra.mxu0 0
    %4581 = vmatprep.subr.bf16.mxu0 0
    %4582 = vmatpush1.bf16.msra.mxu0 0
    %4583 = vmatprep.subr.bf16.mxu0 0
    %4584 = vmatpush1.bf16.msra.mxu0 0
    %4585 = vmatprep.subr.bf16.mxu0 0
    %4586 = vmatpush1.bf16.msra.mxu0 0
    %4587 = vmatprep.subr.bf16.mxu0 0
    %4588 = vmatpush1.bf16.msra.mxu0 0
    %4589 = vmatprep.subr.bf16.mxu0 0
    %4590 = vmatpush1.bf16.msra.mxu0 0
    %4591 = vmatprep.subr.bf16.mxu0 0
    %4592 = vmatpush1.bf16.msra.mxu0 0
    %4593 = vmatprep.subr.bf16.mxu0 0
    %4594 = vmatpush1.bf16.msra.mxu0 0
    %4595 = vmatprep.subr.bf16.mxu0 0
    %4596 = vmatpush1.bf16.msra.mxu0 0
    %4597 = vmatprep.subr.bf16.mxu0 0
    %4598 = vmatpush1.bf16.msra.mxu0 0
    %4599 = vmatprep.mubr.bf16.mxu0 0
    %4600 = vmatmul.mubr.bf16.gmra.mrb[0].mxu0 %v4565
    %v4601 = vpop.f32.mrb[0].mxu0
    %v4602 = vadd.f32 %v4555, %v4601
    %v4603 = vpop.f32.mrb[0].mxu0
    %v4604 = vpop.f32.mrb[0].mxu0
    %v4605 = vpop.f32.mrb[0].mxu0
    %4606 = vdwg.mxu0
    %vm4607 = vcmask 60416
    %4608 = vst.msk [vmem:[#allocation16] sm:$0xf] %vm4607, %v4602
    // Predicated region
    $region94: #{tpu_custom_call.1} parent=1 // pred_check
      _
    $region95: #{tpu_custom_call.1} parent=1 // pred_check_branch
      %4610 = sbr.rel (0) target = $region97
    $region96: #{tpu_custom_call.1} parent=1 // pred_region
      %s4612 = ssub.s32 64, 64
      %4613 = vsyncadd [#allocation3], %s4612
      %s4615 = sshll.u32 [#allocation16], 4
      %s4616 = int_to_ptr.vmem [resolvable:$true] %s4615
      %4618 = dma.vmem_to_hbm [thread:$0]  %s4616, 64, %s15, [#allocation3]
    $region97: #{tpu_custom_call.1} parent=1 // pred_fallthru
      _
    // Predicated region
    $region98: #{tpu_custom_call.1} parent=1 // pred_check
      _
    $region99: #{tpu_custom_call.1} parent=1 // pred_check_branch
      %4620 = sbr.rel (0) target = $region101
    $region100: #{tpu_custom_call.1} parent=1 // pred_region
      %4621 = dma.done [#allocation3], 64
    $region101: #{tpu_custom_call.1} parent=1 // pred_fallthru
      _
    %4622 = vsyncpa [#allocation3], 1
    %4623 = vsyncpa [#allocation4], 1
    %4624 = vsyncpa [#allocation6], 1
    %4625 = vsyncpa [#allocation9], 1
    %4626 = vsyncpa [#allocation12], 1
    %4627 = vsyncpa [#allocation15], 1

</llo_original>
